<compile_context>
chip_gen: v7x
topology: tpu7x:2x2x1
jax: 0.10.0
libtpu: 0.0.40
codegen_flags: <defaults>
</compile_context>

<pallas_src>
import functools

import jax
import jax.numpy as jnp
from jax import lax
from jax.experimental import pallas as pl
from jax.experimental.pallas import tpu as pltpu

EPS = 1e-5
LANE = 128


def _round_up(x, m):
    return (x + m - 1) // m * m


def _vmem_limit_bytes():
    # Generation-aware scoped-VMEM budget: 3/4 of physical capacity, capped at 64 MiB
    # (48 MiB on v7x's 64 MiB VMEM, 64 MiB on v5e/v6e's 128 MiB).
    try:
        cap = int(pltpu.get_tpu_info().vmem_capacity_bytes)
    except Exception:
        cap = 128 * 1024 * 1024
    return int(min(3 * cap // 4, 64 * 1024 * 1024))


# --------------------------------------------------------------------------------------
# Fused kernel: per grid step n (one batch image)
#   conv1 (3x3x3, pad=1) via one packed-tap MXU dot  ->  h stored in VMEM scratch
#   accumulate per-channel sum / sum-of-squares for global BatchNorm stats
#   on the last step: finalize BN, ReLU, conv2 (1x1x1) and write all outputs (C2, DHW).
# --------------------------------------------------------------------------------------
def _fused_kernel(N, D, H, W, Cin, C2, KP, inv_m,
                  x_ref, w1_ref, b1_ref, gb_ref, w2_ref, b2_ref,
                  out_ref, h_ref, stats_ref):
    n = pl.program_id(0)
    DHW = D * H * W
    K = 27 * Cin

    # ---- conv1: slice the 27 shifted taps directly off the padded-input ref and pack
    #      them into one lane-dense [DHW, KP] operand -> a single accumulating MXU dot.
    taps = []
    for kd in range(3):
        for kh in range(3):
            for kw in range(3):
                taps.append(
                    x_ref[kd:kd + D, kh:kh + H, kw:kw + W, :].reshape(DHW, Cin))
    if KP > K:
        taps.append(jnp.zeros((DHW, KP - K), jnp.float32))
    packed = jnp.concatenate(taps, axis=-1)                       # [DHW, KP]

    h = jnp.dot(packed, w1_ref[...],
                preferred_element_type=jnp.float32) + b1_ref[...]  # [DHW, C1P]
    h_ref[n] = h

    # ---- global BatchNorm statistics: fused sum / sum-of-squares, accumulated over n ----
    part = jnp.concatenate([jnp.sum(h, axis=0, keepdims=True),
                            jnp.sum(h * h, axis=0, keepdims=True)], axis=0)  # [2, C1P]

    @pl.when(n == 0)
    def _():
        stats_ref[...] = jnp.zeros_like(stats_ref)

    stats_ref[...] = stats_ref[...] + part

    # ---- last step: finalize BN (once), apply BN + ReLU + 1x1x1 conv, write outputs ----
    @pl.when(n == pl.num_programs(0) - 1)
    def _():
        mean = stats_ref[0:1, :] * inv_m                           # [1, C1P]
        var = jnp.maximum(stats_ref[1:2, :] * inv_m - mean * mean, 0.0)  # biased (1/m)
        inv_std = lax.rsqrt(var + EPS)                             # EUP
        scale = gb_ref[0:1, :] * inv_std                           # gamma / sqrt(var+eps)
        shift = gb_ref[1:2, :] - mean * scale                      # beta - mean*scale

        for i in range(N):                                         # static unroll, N small
            hr = jnp.maximum(h_ref[i] * scale + shift, 0.0)        # BN + ReLU, [DHW, C1P]
            # conv2 as w2 @ hr^T so the result lands directly in (C2, DHW) layout.
            y = jnp.dot(w2_ref[...], hr.T,
                        preferred_element_type=jnp.float32) + b2_ref[...]  # [C2R, DHW]
            out_ref[i] = y[:C2, :]


# --------------------------------------------------------------------------------------
# Wrapper
# --------------------------------------------------------------------------------------
def block_decoder_final(x, w1, b1, gamma, beta, w2, b2):
    """x: [N, Cin, D, H, W] (NCDHW, like PyTorch). Returns [N, C2, D, H, W]."""
    N, Cin, D, H, W = x.shape
    C1 = w1.shape[0]
    C2 = w2.shape[0]
    C1P = _round_up(max(C1, LANE), LANE)        # conv1 output channels, lane padded
    C2R = _round_up(C2, 8)                      # conv2 output channels, sublane padded
    KP = _round_up(27 * Cin, LANE)              # packed-tap contraction dim, lane padded
    Dp, Hp, Wp = D + 2, H + 2, W + 2
    DHW = D * H * W
    M = N * DHW
    f32 = jnp.float32

    # channels-last, spatially zero-padded input: (N, D+2, H+2, W+2, Cin)
    xp = jnp.pad(jnp.transpose(x, (0, 2, 3, 4, 1)).astype(f32),
                 ((0, 0), (1, 1), (1, 1), (1, 1), (0, 0)))

    # conv1 weights -> [KP, C1P]; row t*Cin+ci with t = kd*9 + kh*3 + kw (matches kernel)
    w1_p = jnp.transpose(w1.astype(f32), (2, 3, 4, 1, 0)).reshape(27 * Cin, C1)
    w1_p = jnp.pad(w1_p, ((0, KP - 27 * Cin), (0, C1P - C1)))
    b1_p = jnp.pad(b1.astype(f32).reshape(1, C1), ((0, 0), (0, C1P - C1)))

    # packed gamma/beta; padded lanes are exactly 0 so padded channels stay 0 downstream
    gb = jnp.stack([jnp.pad(gamma.astype(f32), (0, C1P - C1)),
                    jnp.pad(beta.astype(f32), (0, C1P - C1))], axis=0)       # [2, C1P]

    # conv2 weights -> [C2R, C1P] f32 (kept f32: K=128, accuracy over negligible cost)
    w2_p = jnp.pad(w2.reshape(C2, C1).astype(f32),
                   ((0, C2R - C2), (0, C1P - C1)))
    b2_p = jnp.pad(b2.astype(f32).reshape(C2, 1), ((0, C2R - C2), (0, 0)))   # [C2R, 1]

    kern = functools.partial(_fused_kernel, N, D, H, W, Cin, C2, KP, 1.0 / M)

    out = pl.pallas_call(
        kern,
        grid_spec=pltpu.PrefetchScalarGridSpec(
            num_scalar_prefetch=0,
            grid=(N,),
            in_specs=[
                pl.BlockSpec((None, Dp, Hp, Wp, Cin), lambda n: (n, 0, 0, 0, 0)),
                pl.BlockSpec((KP, C1P), lambda n: (0, 0)),
                pl.BlockSpec((1, C1P), lambda n: (0, 0)),
                pl.BlockSpec((2, C1P), lambda n: (0, 0)),
                pl.BlockSpec((C2R, C1P), lambda n: (0, 0)),
                pl.BlockSpec((C2R, 1), lambda n: (0, 0)),
            ],
            out_specs=pl.BlockSpec((N, C2, DHW), lambda n: (0, 0, 0)),
            scratch_shapes=[
                pltpu.VMEM((N, DHW, C1P), f32),   # conv1 activations, VMEM resident
                pltpu.VMEM((2, C1P), f32),        # BN sum / sum-of-squares accumulator
            ]),
        out_shape=jax.ShapeDtypeStruct((N, C2, DHW), f32),
        compiler_params=pltpu.CompilerParams(
            dimension_semantics=("arbitrary",),   # global BN forces a sequential batch axis
            vmem_limit_bytes=_vmem_limit_bytes()),
    )(xp, w1_p, b1_p, gb, w2_p, b2_p)

    # kernel already emitted (N, C2, D*H*W): a pure reshape, no data movement
    return out.reshape(N, C2, D, H, W)


def _reference(x, w1, b1, gamma, beta, w2, b2):
    """Plain-JAX reference mirroring the PyTorch forward (training-mode BN)."""
    y = jax.lax.conv_general_dilated(
        x, w1, window_strides=(1, 1, 1), padding=[(1, 1), (1, 1), (1, 1)],
        dimension_numbers=("NCDHW", "OIDHW", "NCDHW"))
    y = y + b1.reshape(1, -1, 1, 1, 1)
    mean = jnp.mean(y, axis=(0, 2, 3, 4), keepdims=True)
    var = jnp.mean((y - mean) ** 2, axis=(0, 2, 3, 4), keepdims=True)
    y = (y - mean) / jnp.sqrt(var + EPS) * gamma.reshape(1, -1, 1, 1, 1) \
        + beta.reshape(1, -1, 1, 1, 1)
    y = jnp.maximum(y, 0.0)
    y = jax.lax.conv_general_dilated(
        y, w2, window_strides=(1, 1, 1), padding=[(0, 0), (0, 0), (0, 0)],
        dimension_numbers=("NCDHW", "OIDHW", "NCDHW"))
    return y + b2.reshape(1, -1, 1, 1, 1)


# TODO(synk): BatchNorm3d's running_mean/running_var momentum update (a training-time buffer
# side effect) is not reproduced; it does not affect the forward output.

if __name__ == "__main__":
    # Module config: in1=4, out1=8, in2=8 (must equal out1), out2=4
    IN1, OUT1, IN2, OUT2 = 4, 8, 8, 4
    N, D, H, W = 2, 8, 8, 8

    key = jax.random.PRNGKey(0)
    k_x, k_w1, k_b1, k_g, k_be, k_w2, k_b2 = jax.random.split(key, 7)

    x = jax.random.normal(k_x, (N, IN1, D, H, W), jnp.float32)
    w1 = 0.1 * jax.random.normal(k_w1, (OUT1, IN1, 3, 3, 3), jnp.float32)
    b1 = 0.1 * jax.random.normal(k_b1, (OUT1,), jnp.float32)
    gamma = 1.0 + 0.1 * jax.random.normal(k_g, (OUT1,), jnp.float32)
    beta = 0.1 * jax.random.normal(k_be, (OUT1,), jnp.float32)
    w2 = 0.1 * jax.random.normal(k_w2, (OUT2, IN2, 1, 1, 1), jnp.float32)
    b2 = 0.1 * jax.random.normal(k_b2, (OUT2,), jnp.float32)

    fn = jax.jit(block_decoder_final)
    out = jax.block_until_ready(fn(x, w1, b1, gamma, beta, w2, b2))

    ref = _reference(x, w1, b1, gamma, beta, w2, b2)
    assert out.shape == (N, OUT2, D, H, W), out.shape
    max_err = float(jnp.max(jnp.abs(out - ref)))
    assert jnp.allclose(out, ref, atol=1e-3, rtol=1e-3), max_err

    print("KERNEL_OK")
</pallas_src>

<mosaic_0001>
module attributes {stable_mosaic.version = 11 : i64} {
  func.func @_fused_kernel(%arg0: i32, %arg1: memref<1x10x10x10x4xf32, #tpu.memory_space<vmem>>, %arg2: memref<128x128xf32, #tpu.memory_space<vmem>>, %arg3: memref<1x128xf32, #tpu.memory_space<vmem>>, %arg4: memref<2x128xf32, #tpu.memory_space<vmem>>, %arg5: memref<8x128xf32, #tpu.memory_space<vmem>>, %arg6: memref<8x1xf32, #tpu.memory_space<vmem>>, %arg7: memref<2x4x512xf32, #tpu.memory_space<vmem>>, %arg8: memref<2x512x128xf32, #tpu.memory_space<vmem>>, %arg9: memref<2x128xf32, #tpu.memory_space<vmem>>) attributes {dimension_semantics = [#tpu.dimension_semantics<arbitrary>], iteration_bounds = array<i64: 2>, scalar_prefetch = 0 : i64, scratch_operands = 2 : i64, tpu.core_type = #tpu.core_type<tc>, window_params = [{transform_indices = @transform_0, window_bounds = array<i64: 1, 10, 10, 10, 4>}, {pipeline_mode = #tpu.pipeline_mode<synchronous>, transform_indices = @transform_1, window_bounds = array<i64: 128, 128>}, {pipeline_mode = #tpu.pipeline_mode<synchronous>, transform_indices = @transform_2, window_bounds = array<i64: 1, 128>}, {pipeline_mode = #tpu.pipeline_mode<synchronous>, transform_indices = @transform_3, window_bounds = array<i64: 2, 128>}, {pipeline_mode = #tpu.pipeline_mode<synchronous>, transform_indices = @transform_4, window_bounds = array<i64: 8, 128>}, {pipeline_mode = #tpu.pipeline_mode<synchronous>, transform_indices = @transform_5, window_bounds = array<i64: 8, 1>}, {pipeline_mode = #tpu.pipeline_mode<synchronous>, transform_indices = @transform_6, window_bounds = array<i64: 2, 4, 512>}]} {
    %c0 = arith.constant 0 : index
    %c0_0 = arith.constant 0 : index
    %c0_1 = arith.constant 0 : index
    %c0_2 = arith.constant 0 : index
    %c0_3 = arith.constant 0 : index
    %0 = vector.load %arg1[%c0, %c0_0, %c0_1, %c0_2, %c0_3] : memref<1x10x10x10x4xf32, #tpu.memory_space<vmem>>, vector<1x8x8x8x4xf32>
    %1 = vector.shape_cast %0 : vector<1x8x8x8x4xf32> to vector<8x8x8x4xf32>
    %2 = vector.shape_cast %1 : vector<8x8x8x4xf32> to vector<512x4xf32>
    %c0_4 = arith.constant 0 : index
    %c0_5 = arith.constant 0 : index
    %c0_6 = arith.constant 0 : index
    %c1 = arith.constant 1 : index
    %c0_7 = arith.constant 0 : index
    %3 = vector.load %arg1[%c0_4, %c0_5, %c0_6, %c1, %c0_7] : memref<1x10x10x10x4xf32, #tpu.memory_space<vmem>>, vector<1x8x8x8x4xf32>
    %4 = vector.shape_cast %3 : vector<1x8x8x8x4xf32> to vector<8x8x8x4xf32>
    %5 = vector.shape_cast %4 : vector<8x8x8x4xf32> to vector<512x4xf32>
    %c0_8 = arith.constant 0 : index
    %c0_9 = arith.constant 0 : index
    %c0_10 = arith.constant 0 : index
    %c2 = arith.constant 2 : index
    %c0_11 = arith.constant 0 : index
    %6 = vector.load %arg1[%c0_8, %c0_9, %c0_10, %c2, %c0_11] : memref<1x10x10x10x4xf32, #tpu.memory_space<vmem>>, vector<1x8x8x8x4xf32>
    %7 = vector.shape_cast %6 : vector<1x8x8x8x4xf32> to vector<8x8x8x4xf32>
    %8 = vector.shape_cast %7 : vector<8x8x8x4xf32> to vector<512x4xf32>
    %c0_12 = arith.constant 0 : index
    %c0_13 = arith.constant 0 : index
    %c1_14 = arith.constant 1 : index
    %c0_15 = arith.constant 0 : index
    %c0_16 = arith.constant 0 : index
    %9 = vector.load %arg1[%c0_12, %c0_13, %c1_14, %c0_15, %c0_16] : memref<1x10x10x10x4xf32, #tpu.memory_space<vmem>>, vector<1x8x8x8x4xf32>
    %10 = vector.shape_cast %9 : vector<1x8x8x8x4xf32> to vector<8x8x8x4xf32>
    %11 = vector.shape_cast %10 : vector<8x8x8x4xf32> to vector<512x4xf32>
    %c0_17 = arith.constant 0 : index
    %c0_18 = arith.constant 0 : index
    %c1_19 = arith.constant 1 : index
    %c1_20 = arith.constant 1 : index
    %c0_21 = arith.constant 0 : index
    %12 = vector.load %arg1[%c0_17, %c0_18, %c1_19, %c1_20, %c0_21] : memref<1x10x10x10x4xf32, #tpu.memory_space<vmem>>, vector<1x8x8x8x4xf32>
    %13 = vector.shape_cast %12 : vector<1x8x8x8x4xf32> to vector<8x8x8x4xf32>
    %14 = vector.shape_cast %13 : vector<8x8x8x4xf32> to vector<512x4xf32>
    %c0_22 = arith.constant 0 : index
    %c0_23 = arith.constant 0 : index
    %c1_24 = arith.constant 1 : index
    %c2_25 = arith.constant 2 : index
    %c0_26 = arith.constant 0 : index
    %15 = vector.load %arg1[%c0_22, %c0_23, %c1_24, %c2_25, %c0_26] : memref<1x10x10x10x4xf32, #tpu.memory_space<vmem>>, vector<1x8x8x8x4xf32>
    %16 = vector.shape_cast %15 : vector<1x8x8x8x4xf32> to vector<8x8x8x4xf32>
    %17 = vector.shape_cast %16 : vector<8x8x8x4xf32> to vector<512x4xf32>
    %c0_27 = arith.constant 0 : index
    %c0_28 = arith.constant 0 : index
    %c2_29 = arith.constant 2 : index
    %c0_30 = arith.constant 0 : index
    %c0_31 = arith.constant 0 : index
    %18 = vector.load %arg1[%c0_27, %c0_28, %c2_29, %c0_30, %c0_31] : memref<1x10x10x10x4xf32, #tpu.memory_space<vmem>>, vector<1x8x8x8x4xf32>
    %19 = vector.shape_cast %18 : vector<1x8x8x8x4xf32> to vector<8x8x8x4xf32>
    %20 = vector.shape_cast %19 : vector<8x8x8x4xf32> to vector<512x4xf32>
    %c0_32 = arith.constant 0 : index
    %c0_33 = arith.constant 0 : index
    %c2_34 = arith.constant 2 : index
    %c1_35 = arith.constant 1 : index
    %c0_36 = arith.constant 0 : index
    %21 = vector.load %arg1[%c0_32, %c0_33, %c2_34, %c1_35, %c0_36] : memref<1x10x10x10x4xf32, #tpu.memory_space<vmem>>, vector<1x8x8x8x4xf32>
    %22 = vector.shape_cast %21 : vector<1x8x8x8x4xf32> to vector<8x8x8x4xf32>
    %23 = vector.shape_cast %22 : vector<8x8x8x4xf32> to vector<512x4xf32>
    %c0_37 = arith.constant 0 : index
    %c0_38 = arith.constant 0 : index
    %c2_39 = arith.constant 2 : index
    %c2_40 = arith.constant 2 : index
    %c0_41 = arith.constant 0 : index
    %24 = vector.load %arg1[%c0_37, %c0_38, %c2_39, %c2_40, %c0_41] : memref<1x10x10x10x4xf32, #tpu.memory_space<vmem>>, vector<1x8x8x8x4xf32>
    %25 = vector.shape_cast %24 : vector<1x8x8x8x4xf32> to vector<8x8x8x4xf32>
    %26 = vector.shape_cast %25 : vector<8x8x8x4xf32> to vector<512x4xf32>
    %c0_42 = arith.constant 0 : index
    %c1_43 = arith.constant 1 : index
    %c0_44 = arith.constant 0 : index
    %c0_45 = arith.constant 0 : index
    %c0_46 = arith.constant 0 : index
    %27 = vector.load %arg1[%c0_42, %c1_43, %c0_44, %c0_45, %c0_46] : memref<1x10x10x10x4xf32, #tpu.memory_space<vmem>>, vector<1x8x8x8x4xf32>
    %28 = vector.shape_cast %27 : vector<1x8x8x8x4xf32> to vector<8x8x8x4xf32>
    %29 = vector.shape_cast %28 : vector<8x8x8x4xf32> to vector<512x4xf32>
    %c0_47 = arith.constant 0 : index
    %c1_48 = arith.constant 1 : index
    %c0_49 = arith.constant 0 : index
    %c1_50 = arith.constant 1 : index
    %c0_51 = arith.constant 0 : index
    %30 = vector.load %arg1[%c0_47, %c1_48, %c0_49, %c1_50, %c0_51] : memref<1x10x10x10x4xf32, #tpu.memory_space<vmem>>, vector<1x8x8x8x4xf32>
    %31 = vector.shape_cast %30 : vector<1x8x8x8x4xf32> to vector<8x8x8x4xf32>
    %32 = vector.shape_cast %31 : vector<8x8x8x4xf32> to vector<512x4xf32>
    %c0_52 = arith.constant 0 : index
    %c1_53 = arith.constant 1 : index
    %c0_54 = arith.constant 0 : index
    %c2_55 = arith.constant 2 : index
    %c0_56 = arith.constant 0 : index
    %33 = vector.load %arg1[%c0_52, %c1_53, %c0_54, %c2_55, %c0_56] : memref<1x10x10x10x4xf32, #tpu.memory_space<vmem>>, vector<1x8x8x8x4xf32>
    %34 = vector.shape_cast %33 : vector<1x8x8x8x4xf32> to vector<8x8x8x4xf32>
    %35 = vector.shape_cast %34 : vector<8x8x8x4xf32> to vector<512x4xf32>
    %c0_57 = arith.constant 0 : index
    %c1_58 = arith.constant 1 : index
    %c1_59 = arith.constant 1 : index
    %c0_60 = arith.constant 0 : index
    %c0_61 = arith.constant 0 : index
    %36 = vector.load %arg1[%c0_57, %c1_58, %c1_59, %c0_60, %c0_61] : memref<1x10x10x10x4xf32, #tpu.memory_space<vmem>>, vector<1x8x8x8x4xf32>
    %37 = vector.shape_cast %36 : vector<1x8x8x8x4xf32> to vector<8x8x8x4xf32>
    %38 = vector.shape_cast %37 : vector<8x8x8x4xf32> to vector<512x4xf32>
    %c0_62 = arith.constant 0 : index
    %c1_63 = arith.constant 1 : index
    %c1_64 = arith.constant 1 : index
    %c1_65 = arith.constant 1 : index
    %c0_66 = arith.constant 0 : index
    %39 = vector.load %arg1[%c0_62, %c1_63, %c1_64, %c1_65, %c0_66] : memref<1x10x10x10x4xf32, #tpu.memory_space<vmem>>, vector<1x8x8x8x4xf32>
    %40 = vector.shape_cast %39 : vector<1x8x8x8x4xf32> to vector<8x8x8x4xf32>
    %41 = vector.shape_cast %40 : vector<8x8x8x4xf32> to vector<512x4xf32>
    %c0_67 = arith.constant 0 : index
    %c1_68 = arith.constant 1 : index
    %c1_69 = arith.constant 1 : index
    %c2_70 = arith.constant 2 : index
    %c0_71 = arith.constant 0 : index
    %42 = vector.load %arg1[%c0_67, %c1_68, %c1_69, %c2_70, %c0_71] : memref<1x10x10x10x4xf32, #tpu.memory_space<vmem>>, vector<1x8x8x8x4xf32>
    %43 = vector.shape_cast %42 : vector<1x8x8x8x4xf32> to vector<8x8x8x4xf32>
    %44 = vector.shape_cast %43 : vector<8x8x8x4xf32> to vector<512x4xf32>
    %c0_72 = arith.constant 0 : index
    %c1_73 = arith.constant 1 : index
    %c2_74 = arith.constant 2 : index
    %c0_75 = arith.constant 0 : index
    %c0_76 = arith.constant 0 : index
    %45 = vector.load %arg1[%c0_72, %c1_73, %c2_74, %c0_75, %c0_76] : memref<1x10x10x10x4xf32, #tpu.memory_space<vmem>>, vector<1x8x8x8x4xf32>
    %46 = vector.shape_cast %45 : vector<1x8x8x8x4xf32> to vector<8x8x8x4xf32>
    %47 = vector.shape_cast %46 : vector<8x8x8x4xf32> to vector<512x4xf32>
    %c0_77 = arith.constant 0 : index
    %c1_78 = arith.constant 1 : index
    %c2_79 = arith.constant 2 : index
    %c1_80 = arith.constant 1 : index
    %c0_81 = arith.constant 0 : index
    %48 = vector.load %arg1[%c0_77, %c1_78, %c2_79, %c1_80, %c0_81] : memref<1x10x10x10x4xf32, #tpu.memory_space<vmem>>, vector<1x8x8x8x4xf32>
    %49 = vector.shape_cast %48 : vector<1x8x8x8x4xf32> to vector<8x8x8x4xf32>
    %50 = vector.shape_cast %49 : vector<8x8x8x4xf32> to vector<512x4xf32>
    %c0_82 = arith.constant 0 : index
    %c1_83 = arith.constant 1 : index
    %c2_84 = arith.constant 2 : index
    %c2_85 = arith.constant 2 : index
    %c0_86 = arith.constant 0 : index
    %51 = vector.load %arg1[%c0_82, %c1_83, %c2_84, %c2_85, %c0_86] : memref<1x10x10x10x4xf32, #tpu.memory_space<vmem>>, vector<1x8x8x8x4xf32>
    %52 = vector.shape_cast %51 : vector<1x8x8x8x4xf32> to vector<8x8x8x4xf32>
    %53 = vector.shape_cast %52 : vector<8x8x8x4xf32> to vector<512x4xf32>
    %c0_87 = arith.constant 0 : index
    %c2_88 = arith.constant 2 : index
    %c0_89 = arith.constant 0 : index
    %c0_90 = arith.constant 0 : index
    %c0_91 = arith.constant 0 : index
    %54 = vector.load %arg1[%c0_87, %c2_88, %c0_89, %c0_90, %c0_91] : memref<1x10x10x10x4xf32, #tpu.memory_space<vmem>>, vector<1x8x8x8x4xf32>
    %55 = vector.shape_cast %54 : vector<1x8x8x8x4xf32> to vector<8x8x8x4xf32>
    %56 = vector.shape_cast %55 : vector<8x8x8x4xf32> to vector<512x4xf32>
    %c0_92 = arith.constant 0 : index
    %c2_93 = arith.constant 2 : index
    %c0_94 = arith.constant 0 : index
    %c1_95 = arith.constant 1 : index
    %c0_96 = arith.constant 0 : index
    %57 = vector.load %arg1[%c0_92, %c2_93, %c0_94, %c1_95, %c0_96] : memref<1x10x10x10x4xf32, #tpu.memory_space<vmem>>, vector<1x8x8x8x4xf32>
    %58 = vector.shape_cast %57 : vector<1x8x8x8x4xf32> to vector<8x8x8x4xf32>
    %59 = vector.shape_cast %58 : vector<8x8x8x4xf32> to vector<512x4xf32>
    %c0_97 = arith.constant 0 : index
    %c2_98 = arith.constant 2 : index
    %c0_99 = arith.constant 0 : index
    %c2_100 = arith.constant 2 : index
    %c0_101 = arith.constant 0 : index
    %60 = vector.load %arg1[%c0_97, %c2_98, %c0_99, %c2_100, %c0_101] : memref<1x10x10x10x4xf32, #tpu.memory_space<vmem>>, vector<1x8x8x8x4xf32>
    %61 = vector.shape_cast %60 : vector<1x8x8x8x4xf32> to vector<8x8x8x4xf32>
    %62 = vector.shape_cast %61 : vector<8x8x8x4xf32> to vector<512x4xf32>
    %c0_102 = arith.constant 0 : index
    %c2_103 = arith.constant 2 : index
    %c1_104 = arith.constant 1 : index
    %c0_105 = arith.constant 0 : index
    %c0_106 = arith.constant 0 : index
    %63 = vector.load %arg1[%c0_102, %c2_103, %c1_104, %c0_105, %c0_106] : memref<1x10x10x10x4xf32, #tpu.memory_space<vmem>>, vector<1x8x8x8x4xf32>
    %64 = vector.shape_cast %63 : vector<1x8x8x8x4xf32> to vector<8x8x8x4xf32>
    %65 = vector.shape_cast %64 : vector<8x8x8x4xf32> to vector<512x4xf32>
    %c0_107 = arith.constant 0 : index
    %c2_108 = arith.constant 2 : index
    %c1_109 = arith.constant 1 : index
    %c1_110 = arith.constant 1 : index
    %c0_111 = arith.constant 0 : index
    %66 = vector.load %arg1[%c0_107, %c2_108, %c1_109, %c1_110, %c0_111] : memref<1x10x10x10x4xf32, #tpu.memory_space<vmem>>, vector<1x8x8x8x4xf32>
    %67 = vector.shape_cast %66 : vector<1x8x8x8x4xf32> to vector<8x8x8x4xf32>
    %68 = vector.shape_cast %67 : vector<8x8x8x4xf32> to vector<512x4xf32>
    %c0_112 = arith.constant 0 : index
    %c2_113 = arith.constant 2 : index
    %c1_114 = arith.constant 1 : index
    %c2_115 = arith.constant 2 : index
    %c0_116 = arith.constant 0 : index
    %69 = vector.load %arg1[%c0_112, %c2_113, %c1_114, %c2_115, %c0_116] : memref<1x10x10x10x4xf32, #tpu.memory_space<vmem>>, vector<1x8x8x8x4xf32>
    %70 = vector.shape_cast %69 : vector<1x8x8x8x4xf32> to vector<8x8x8x4xf32>
    %71 = vector.shape_cast %70 : vector<8x8x8x4xf32> to vector<512x4xf32>
    %c0_117 = arith.constant 0 : index
    %c2_118 = arith.constant 2 : index
    %c2_119 = arith.constant 2 : index
    %c0_120 = arith.constant 0 : index
    %c0_121 = arith.constant 0 : index
    %72 = vector.load %arg1[%c0_117, %c2_118, %c2_119, %c0_120, %c0_121] : memref<1x10x10x10x4xf32, #tpu.memory_space<vmem>>, vector<1x8x8x8x4xf32>
    %73 = vector.shape_cast %72 : vector<1x8x8x8x4xf32> to vector<8x8x8x4xf32>
    %74 = vector.shape_cast %73 : vector<8x8x8x4xf32> to vector<512x4xf32>
    %c0_122 = arith.constant 0 : index
    %c2_123 = arith.constant 2 : index
    %c2_124 = arith.constant 2 : index
    %c1_125 = arith.constant 1 : index
    %c0_126 = arith.constant 0 : index
    %75 = vector.load %arg1[%c0_122, %c2_123, %c2_124, %c1_125, %c0_126] : memref<1x10x10x10x4xf32, #tpu.memory_space<vmem>>, vector<1x8x8x8x4xf32>
    %76 = vector.shape_cast %75 : vector<1x8x8x8x4xf32> to vector<8x8x8x4xf32>
    %77 = vector.shape_cast %76 : vector<8x8x8x4xf32> to vector<512x4xf32>
    %c0_127 = arith.constant 0 : index
    %c2_128 = arith.constant 2 : index
    %c2_129 = arith.constant 2 : index
    %c2_130 = arith.constant 2 : index
    %c0_131 = arith.constant 0 : index
    %78 = vector.load %arg1[%c0_127, %c2_128, %c2_129, %c2_130, %c0_131] : memref<1x10x10x10x4xf32, #tpu.memory_space<vmem>>, vector<1x8x8x8x4xf32>
    %79 = vector.shape_cast %78 : vector<1x8x8x8x4xf32> to vector<8x8x8x4xf32>
    %80 = vector.shape_cast %79 : vector<8x8x8x4xf32> to vector<512x4xf32>
    %cst = arith.constant 0.000000e+00 : f32
    %81 = vector.broadcast %cst : f32 to vector<512x20xf32>
    %82 = tpu.concatenate %2, %5, %8, %11, %14, %17, %20, %23, %26, %29, %32, %35, %38, %41, %44, %47 in 1 : vector<512x4xf32>, vector<512x4xf32>, vector<512x4xf32>, vector<512x4xf32>, vector<512x4xf32>, vector<512x4xf32>, vector<512x4xf32>, vector<512x4xf32>, vector<512x4xf32>, vector<512x4xf32>, vector<512x4xf32>, vector<512x4xf32>, vector<512x4xf32>, vector<512x4xf32>, vector<512x4xf32>, vector<512x4xf32> -> vector<512x64xf32>
    %83 = tpu.concatenate %50, %53, %56, %59, %62, %65, %68, %71, %74, %77, %80, %81 in 1 : vector<512x4xf32>, vector<512x4xf32>, vector<512x4xf32>, vector<512x4xf32>, vector<512x4xf32>, vector<512x4xf32>, vector<512x4xf32>, vector<512x4xf32>, vector<512x4xf32>, vector<512x4xf32>, vector<512x4xf32>, vector<512x20xf32> -> vector<512x64xf32>
    %84 = tpu.concatenate %82, %83 in 1 : vector<512x64xf32>, vector<512x64xf32> -> vector<512x128xf32>
    %c0_132 = arith.constant 0 : index
    %c0_133 = arith.constant 0 : index
    %85 = vector.load %arg2[%c0_132, %c0_133] : memref<128x128xf32, #tpu.memory_space<vmem>>, vector<128x128xf32>
    %cst_134 = arith.constant dense<0.000000e+00> : vector<512x128xf32>
    %86 = tpu.matmul %84, %85, %cst_134 {dimension_numbers = #tpu.dot_dimension_numbers<[1], [0], [0], [1], [0, 0, 1, 1], [], []>} : vector<512x128xf32>, vector<128x128xf32>, vector<512x128xf32> -> vector<512x128xf32>
    %c0_135 = arith.constant 0 : index
    %c0_136 = arith.constant 0 : index
    %87 = vector.load %arg3[%c0_135, %c0_136] : memref<1x128xf32, #tpu.memory_space<vmem>>, vector<1x128xf32>
    %88 = vector.broadcast %87 : vector<1x128xf32> to vector<512x128xf32>
    %89 = arith.addf %86, %88 : vector<512x128xf32>
    %90 = arith.index_cast %arg0 : i32 to index
    %c0_137 = arith.constant 0 : index
    %c0_138 = arith.constant 0 : index
    %91 = vector.load %arg8[%90, %c0_137, %c0_138] : memref<2x512x128xf32, #tpu.memory_space<vmem>>, vector<1x512x128xf32>
    %92 = vector.shape_cast %91 : vector<1x512x128xf32> to vector<512x128xf32>
    %93 = vector.shape_cast %89 : vector<512x128xf32> to vector<1x512x128xf32>
    tpu.vector_store %arg8[%90, %c0_137, %c0_138], %93 {strides = array<i32>} : memref<2x512x128xf32, #tpu.memory_space<vmem>>, vector<1x512x128xf32>,
    %cst_139 = arith.constant dense<0.000000e+00> : vector<128xf32>
    %94 = vector.multi_reduction <add>, %89, %cst_139 [0] : vector<512x128xf32> to vector<128xf32>
    %95 = vector.shape_cast %94 : vector<128xf32> to vector<1x128xf32>
    %96 = arith.mulf %89, %89 : vector<512x128xf32>
    %cst_140 = arith.constant dense<0.000000e+00> : vector<128xf32>
    %97 = vector.multi_reduction <add>, %96, %cst_140 [0] : vector<512x128xf32> to vector<128xf32>
    %98 = vector.shape_cast %97 : vector<128xf32> to vector<1x128xf32>
    %99 = tpu.concatenate %95, %98 in 0 : vector<1x128xf32>, vector<1x128xf32> -> vector<2x128xf32>
    %c0_i32 = arith.constant 0 : i32
    %100 = arith.cmpi eq, %arg0, %c0_i32 : i32
    %101 = arith.extui %100 : i1 to i32
    %c0_i32_141 = arith.constant 0 : i32
    %102 = arith.cmpi ne, %101, %c0_i32_141 : i32
    scf.if %102 {
      %cst_147 = arith.constant 0.000000e+00 : f32
      %109 = vector.broadcast %cst_147 : f32 to vector<2x128xf32>
      %c0_148 = arith.constant 0 : index
      %c0_149 = arith.constant 0 : index
      %110 = vector.load %arg9[%c0_148, %c0_149] : memref<2x128xf32, #tpu.memory_space<vmem>>, vector<2x128xf32>
      tpu.vector_store %arg9[%c0_148, %c0_149], %109 {strides = array<i32>} : memref<2x128xf32, #tpu.memory_space<vmem>>, vector<2x128xf32>,
    } else {
    }
    %c0_142 = arith.constant 0 : index
    %c0_143 = arith.constant 0 : index
    %103 = vector.load %arg9[%c0_142, %c0_143] : memref<2x128xf32, #tpu.memory_space<vmem>>, vector<2x128xf32>
    %104 = arith.addf %103, %99 : vector<2x128xf32>
    %c0_144 = arith.constant 0 : index
    %c0_145 = arith.constant 0 : index
    %105 = vector.load %arg9[%c0_144, %c0_145] : memref<2x128xf32, #tpu.memory_space<vmem>>, vector<2x128xf32>
    tpu.vector_store %arg9[%c0_144, %c0_145], %104 {strides = array<i32>} : memref<2x128xf32, #tpu.memory_space<vmem>>, vector<2x128xf32>,
    %c1_i32 = arith.constant 1 : i32
    %106 = arith.cmpi eq, %arg0, %c1_i32 : i32
    %107 = arith.extui %106 : i1 to i32
    %c0_i32_146 = arith.constant 0 : i32
    %108 = arith.cmpi ne, %107, %c0_i32_146 : i32
    scf.if %108 {
      %c0_147 = arith.constant 0 : index
      %c0_148 = arith.constant 0 : index
      %109 = vector.load %arg9[%c0_147, %c0_148] : memref<2x128xf32, #tpu.memory_space<vmem>>, vector<1x128xf32>
      %cst_149 = arith.constant 9.765625E-4 : f32
      %110 = vector.broadcast %cst_149 : f32 to vector<1x128xf32>
      %111 = arith.mulf %109, %110 : vector<1x128xf32>
      %c1_150 = arith.constant 1 : index
      %c0_151 = arith.constant 0 : index
      %112 = vector.load %arg9[%c1_150, %c0_151] : memref<2x128xf32, #tpu.memory_space<vmem>>, vector<1x128xf32>
      %cst_152 = arith.constant 9.765625E-4 : f32
      %113 = vector.broadcast %cst_152 : f32 to vector<1x128xf32>
      %114 = arith.mulf %112, %113 : vector<1x128xf32>
      %115 = arith.mulf %111, %111 : vector<1x128xf32>
      %116 = arith.subf %114, %115 : vector<1x128xf32>
      %cst_153 = arith.constant 0.000000e+00 : f32
      %117 = vector.broadcast %cst_153 : f32 to vector<1x128xf32>
      %118 = arith.maximumf %116, %117 : vector<1x128xf32>
      %cst_154 = arith.constant 9.99999974E-6 : f32
      %119 = vector.broadcast %cst_154 : f32 to vector<1x128xf32>
      %120 = arith.addf %118, %119 : vector<1x128xf32>
      %121 = math.rsqrt %120 : vector<1x128xf32>
      %c0_155 = arith.constant 0 : index
      %c0_156 = arith.constant 0 : index
      %122 = vector.load %arg4[%c0_155, %c0_156] : memref<2x128xf32, #tpu.memory_space<vmem>>, vector<1x128xf32>
      %123 = arith.mulf %122, %121 : vector<1x128xf32>
      %c1_157 = arith.constant 1 : index
      %c0_158 = arith.constant 0 : index
      %124 = vector.load %arg4[%c1_157, %c0_158] : memref<2x128xf32, #tpu.memory_space<vmem>>, vector<1x128xf32>
      %125 = arith.mulf %111, %123 : vector<1x128xf32>
      %126 = arith.subf %124, %125 : vector<1x128xf32>
      %c0_159 = arith.constant 0 : index
      %c0_160 = arith.constant 0 : index
      %c0_161 = arith.constant 0 : index
      %127 = vector.load %arg8[%c0_159, %c0_160, %c0_161] : memref<2x512x128xf32, #tpu.memory_space<vmem>>, vector<1x512x128xf32>
      %128 = vector.shape_cast %127 : vector<1x512x128xf32> to vector<512x128xf32>
      %129 = vector.broadcast %123 : vector<1x128xf32> to vector<512x128xf32>
      %130 = arith.mulf %128, %129 : vector<512x128xf32>
      %131 = vector.broadcast %126 : vector<1x128xf32> to vector<512x128xf32>
      %132 = arith.addf %130, %131 : vector<512x128xf32>
      %cst_162 = arith.constant 0.000000e+00 : f32
      %133 = vector.broadcast %cst_162 : f32 to vector<512x128xf32>
      %134 = arith.maximumf %132, %133 : vector<512x128xf32>
      %c0_163 = arith.constant 0 : index
      %c0_164 = arith.constant 0 : index
      %135 = vector.load %arg5[%c0_163, %c0_164] : memref<8x128xf32, #tpu.memory_space<vmem>>, vector<8x128xf32>
      %136 = tpu.transpose %134, [1, 0] : vector<512x128xf32> -> vector<128x512xf32>
      %cst_165 = arith.constant dense<0.000000e+00> : vector<8x512xf32>
      %137 = tpu.matmul %135, %136, %cst_165 {dimension_numbers = #tpu.dot_dimension_numbers<[1], [0], [0], [1], [0, 0, 1, 1], [], []>} : vector<8x128xf32>, vector<128x512xf32>, vector<8x512xf32> -> vector<8x512xf32>
      %c0_166 = arith.constant 0 : index
      %c0_167 = arith.constant 0 : index
      %138 = vector.load %arg6[%c0_166, %c0_167] : memref<8x1xf32, #tpu.memory_space<vmem>>, vector<8x1xf32>
      %139 = vector.broadcast %138 : vector<8x1xf32> to vector<8x512xf32>
      %140 = arith.addf %137, %139 : vector<8x512xf32>
      %141 = vector.extract_strided_slice %140 {offsets = [0, 0], sizes = [4, 512], strides = [1, 1]} : vector<8x512xf32> to vector<4x512xf32>
      %c0_168 = arith.constant 0 : index
      %c0_169 = arith.constant 0 : index
      %c0_170 = arith.constant 0 : index
      %142 = vector.load %arg7[%c0_168, %c0_169, %c0_170] : memref<2x4x512xf32, #tpu.memory_space<vmem>>, vector<1x4x512xf32>
      %143 = vector.shape_cast %142 : vector<1x4x512xf32> to vector<4x512xf32>
      %144 = vector.shape_cast %141 : vector<4x512xf32> to vector<1x4x512xf32>
      tpu.vector_store %arg7[%c0_168, %c0_169, %c0_170], %144 {strides = array<i32>} : memref<2x4x512xf32, #tpu.memory_space<vmem>>, vector<1x4x512xf32>,
      %c1_171 = arith.constant 1 : index
      %c0_172 = arith.constant 0 : index
      %c0_173 = arith.constant 0 : index
      %145 = vector.load %arg8[%c1_171, %c0_172, %c0_173] : memref<2x512x128xf32, #tpu.memory_space<vmem>>, vector<1x512x128xf32>
      %146 = vector.shape_cast %145 : vector<1x512x128xf32> to vector<512x128xf32>
      %147 = vector.broadcast %123 : vector<1x128xf32> to vector<512x128xf32>
      %148 = arith.mulf %146, %147 : vector<512x128xf32>
      %149 = vector.broadcast %126 : vector<1x128xf32> to vector<512x128xf32>
      %150 = arith.addf %148, %149 : vector<512x128xf32>
      %cst_174 = arith.constant 0.000000e+00 : f32
      %151 = vector.broadcast %cst_174 : f32 to vector<512x128xf32>
      %152 = arith.maximumf %150, %151 : vector<512x128xf32>
      %c0_175 = arith.constant 0 : index
      %c0_176 = arith.constant 0 : index
      %153 = vector.load %arg5[%c0_175, %c0_176] : memref<8x128xf32, #tpu.memory_space<vmem>>, vector<8x128xf32>
      %154 = tpu.transpose %152, [1, 0] : vector<512x128xf32> -> vector<128x512xf32>
      %cst_177 = arith.constant dense<0.000000e+00> : vector<8x512xf32>
      %155 = tpu.matmul %153, %154, %cst_177 {dimension_numbers = #tpu.dot_dimension_numbers<[1], [0], [0], [1], [0, 0, 1, 1], [], []>} : vector<8x128xf32>, vector<128x512xf32>, vector<8x512xf32> -> vector<8x512xf32>
      %c0_178 = arith.constant 0 : index
      %c0_179 = arith.constant 0 : index
      %156 = vector.load %arg6[%c0_178, %c0_179] : memref<8x1xf32, #tpu.memory_space<vmem>>, vector<8x1xf32>
      %157 = vector.broadcast %156 : vector<8x1xf32> to vector<8x512xf32>
      %158 = arith.addf %155, %157 : vector<8x512xf32>
      %159 = vector.extract_strided_slice %158 {offsets = [0, 0], sizes = [4, 512], strides = [1, 1]} : vector<8x512xf32> to vector<4x512xf32>
      %c1_180 = arith.constant 1 : index
      %c0_181 = arith.constant 0 : index
      %c0_182 = arith.constant 0 : index
      %160 = vector.load %arg7[%c1_180, %c0_181, %c0_182] : memref<2x4x512xf32, #tpu.memory_space<vmem>>, vector<1x4x512xf32>
      %161 = vector.shape_cast %160 : vector<1x4x512xf32> to vector<4x512xf32>
      %162 = vector.shape_cast %159 : vector<4x512xf32> to vector<1x4x512xf32>
      tpu.vector_store %arg7[%c1_180, %c0_181, %c0_182], %162 {strides = array<i32>} : memref<2x4x512xf32, #tpu.memory_space<vmem>>, vector<1x4x512xf32>,
    } else {
    }
    return
  }
  func.func @transform_0(%arg0: i32) -> (i32, i32, i32, i32, i32) {
    %c0_i32 = arith.constant 0 : i32
    %c0_i32_0 = arith.constant 0 : i32
    %c0_i32_1 = arith.constant 0 : i32
    %c0_i32_2 = arith.constant 0 : i32
    %c0_i32_3 = arith.constant 0 : i32
    return %arg0, %c0_i32, %c0_i32_0, %c0_i32_1, %c0_i32_2 : i32, i32, i32, i32, i32
  }
  func.func @transform_1(%arg0: i32) -> (i32, i32) {
    %c0_i32 = arith.constant 0 : i32
    %c0_i32_0 = arith.constant 0 : i32
    %c0_i32_1 = arith.constant 0 : i32
    return %c0_i32, %c0_i32_0 : i32, i32
  }
  func.func @transform_2(%arg0: i32) -> (i32, i32) {
    %c0_i32 = arith.constant 0 : i32
    %c0_i32_0 = arith.constant 0 : i32
    %c0_i32_1 = arith.constant 0 : i32
    return %c0_i32, %c0_i32_0 : i32, i32
  }
  func.func @transform_3(%arg0: i32) -> (i32, i32) {
    %c0_i32 = arith.constant 0 : i32
    %c0_i32_0 = arith.constant 0 : i32
    %c0_i32_1 = arith.constant 0 : i32
    return %c0_i32, %c0_i32_0 : i32, i32
  }
  func.func @transform_4(%arg0: i32) -> (i32, i32) {
    %c0_i32 = arith.constant 0 : i32
    %c0_i32_0 = arith.constant 0 : i32
    %c0_i32_1 = arith.constant 0 : i32
    return %c0_i32, %c0_i32_0 : i32, i32
  }
  func.func @transform_5(%arg0: i32) -> (i32, i32) {
    %c0_i32 = arith.constant 0 : i32
    %c0_i32_0 = arith.constant 0 : i32
    %c0_i32_1 = arith.constant 0 : i32
    return %c0_i32, %c0_i32_0 : i32, i32
  }
  func.func @transform_6(%arg0: i32) -> (i32, i32, i32) {
    %c0_i32 = arith.constant 0 : i32
    %c0_i32_0 = arith.constant 0 : i32
    %c0_i32_1 = arith.constant 0 : i32
    %c0_i32_2 = arith.constant 0 : i32
    return %c0_i32, %c0_i32_0, %c0_i32_1 : i32, i32, i32
  }
}

</mosaic_0001>

<llo_original>
// kernel: block_decoder_final.1
$region0: #{block_decoder_final.1}
  #allocation0 [shape = 'u32[]', space=smem, size = 0x4, offset = 0x4, fixed_abs, tag = 'smem constant byte address 0x4 - core index']
  #allocation1 [shape = 'u32[144,128]{1,0:T(1,128)}', space=vmem, size = 0x12000, scoped, tag = 'internal scratch']
  #allocation2 [shape = 'f32[2,512,128]{2,1,0:T(8,128)}', space=vmem, size = 0x80000, scoped, tag = 'scratch operand']
  #allocation3 [shape = 'f32[2,128]{1,0:T(2,128)}', space=vmem, size = 0x400, scoped, tag = 'scratch operand']
  %s0 = inlined_call_operand.hbm [shape: f32[2,10,10,10,4], index: 0, kind: input, shape index: {}]
  %s1 = inlined_call_operand.hbm [shape: f32[128,128], index: 1, kind: input, shape index: {}]
  %s2 = inlined_call_operand.hbm [shape: f32[1,128], index: 2, kind: input, shape index: {}]
  %s3 = inlined_call_operand.hbm [shape: f32[2,128], index: 3, kind: input, shape index: {}]
  %s4 = inlined_call_operand.hbm [shape: f32[8,128], index: 4, kind: input, shape index: {}]
  %s5 = inlined_call_operand.hbm [shape: f32[8,1], index: 5, kind: input, shape index: {}]
  %s6 = inlined_call_operand.hbm [shape: f32[2,4,512], index: 6, kind: output, shape index: {}]
  %s7 = sld [smem:[#allocation0]]
  $region89: #{block_decoder_final.1} parent=0
    _
  %s9 = ssub.s32 1, %s7
  %s10 = scalar_select 0, %s9, %s7
  $region1: #{block_decoder_final.1} parent=0
    #allocation4 [shape = 'u8[1638400]{0}', space=vmem, size = 0x190000, scoped, tag = 'input window, operand 0']
    #allocation5 [shape = 's32[2]{0}', space=sflag, size = 0x8, scoped, tag = 'scoped memory for block_decoder_final.1']
    #allocation6 [shape = 's32[2]{0}', space=sflag, size = 0x8, scoped, tag = 'scoped memory for block_decoder_final.1']
    #allocation7 [shape = 'u8[65536]{0}', space=vmem, size = 0x10000, scoped, tag = 'input window, operand 1, single buffered']
    #allocation8 [shape = 's32[1]{0}', space=sflag, size = 0x4, scoped, tag = 'scoped memory for block_decoder_final.1']
    #allocation9 [shape = 'u8[512]{0}', space=vmem, size = 0x400, scoped, tag = 'input window, operand 2, single buffered']
    #allocation10 [shape = 'u8[1024]{0}', space=vmem, size = 0x400, scoped, tag = 'input window, operand 3, single buffered']
    #allocation11 [shape = 's32[1]{0}', space=sflag, size = 0x4, scoped, tag = 'scoped memory for block_decoder_final.1']
    #allocation12 [shape = 'u8[4096]{0}', space=vmem, size = 0x1000, scoped, tag = 'input window, operand 4, single buffered']
    #allocation13 [shape = 'u8[4096]{0}', space=vmem, size = 0x1000, scoped, tag = 'input window, operand 5, single buffered']
    #allocation14 [shape = 's32[1]{0}', space=sflag, size = 0x4, scoped, tag = 'scoped memory for block_decoder_final.1']
    #allocation15 [shape = 'u8[16384]{0}', space=vmem, size = 0x4000, scoped, tag = 'output window, operand 0, single buffered']
    %11 = vsyncpa [#allocation5], 0
    %s12 = scalar_lea.sflag [#allocation5], 1
    %13 = vsyncpa %s12, 0
    %14 = vsyncpa [#allocation8], 0
    %15 = vsyncpa [#allocation11], 0
    %16 = vsyncpa [#allocation14], 0
    %17 = vsyncpa [#allocation6], 0
    loop: start=0, step=1, limit=4
    $region2: #{block_decoder_final.1} parent=1 // loop_pre_header
      _
    $region3: #{block_decoder_final.1} parent=1 // loop_header
      %s19 = sphi 0, %s23
      %p20 = scmp.ge.s32.totalorder %s19, 4
      %s29 = sphi 0, %s31
      %s32 = sphi 0, %s29
      %s33 = sphi 0, %s32
      %s49 = sphi 0, %s33
      %s53 = sphi 0, %s53
      %s55 = sphi 0, %s53
      %s56 = sphi 0, %s55
      %s70 = sphi 0, %s56
      %s74 = sphi 0, %s74
      %s76 = sphi 0, %s74
      %s77 = sphi 0, %s76
      %s91 = sphi 0, %s77
      %s95 = sphi 0, %s95
      %s97 = sphi 0, %s95
      %s98 = sphi 0, %s97
      %s112 = sphi 0, %s98
      %s116 = sphi 0, %s116
      %s118 = sphi 0, %s116
      %s119 = sphi 0, %s118
      %s133 = sphi 0, %s119
      %s137 = sphi 0, %s137
      %s139 = sphi 0, %s137
      %s140 = sphi 0, %s139
      %s154 = sphi 0, %s140
      %s158 = sphi 0, %s158
      %s160 = sphi 0, %s158
      %s161 = sphi 0, %s160
      %s175 = sphi 0, %s161
    $region4: #{block_decoder_final.1} parent=1 // loop_header_branch
      %22 = sbr.rel (%p20) target = $region8
    $region5: #{block_decoder_final.1} parent=1 // loop_body
      %s24 = ssub.s32 %s19, 1
      %s25 = ssub.s32 %s19, 2
      %s26 = sadd.s32 %s19, 1
      %s27 = ssub.s32 %s19, %s26
      %p28 = scmp.eq.s32.totalorder %s27, 0
      %s30 = sadd.s32 %s29, 1
      %s31 = scalar_select %p28, %s29, %s30
      %p34 = pneg %p28
      %p35 = scmp.eq.s32.totalorder %s19, 1
      %p36 = por %p34, %p35
      %p37 = scmp.ne.s32.totalorder %s29, %s32
      %p38 = scmp.eq.s32.totalorder %s19, 0
      %p39 = por %p37, %p38
      %p40 = scmp.ne.s32.totalorder %s29, %s32
      %p41 = scmp.eq.s32.totalorder %s24, 1
      %p42 = por %p40, %p41
      %p43 = scmp.ne.s32.totalorder %s32, %s33
      %p44 = scmp.eq.s32.totalorder %s24, 0
      %p45 = por %p43, %p44
      %p46 = scmp.ne.s32.totalorder %s32, %s33
      %p47 = scmp.eq.s32.totalorder %s25, 1
      %p48 = por %p46, %p47
      %p50 = scmp.ne.s32.totalorder %s33, %s49
      %p51 = scmp.eq.s32.totalorder %s25, 0
      %p52 = por %p50, %p51
      %s54 = sadd.s32 %s53, 1
      %p57 = scmp.eq.s32.totalorder %s19, 1
      %p58 = scmp.ne.s32.totalorder %s53, %s55
      %p59 = scmp.eq.s32.totalorder %s19, 0
      %p60 = por %p58, %p59
      %p61 = scmp.ne.s32.totalorder %s53, %s55
      %p62 = scmp.eq.s32.totalorder %s24, 1
      %p63 = por %p61, %p62
      %p64 = scmp.ne.s32.totalorder %s55, %s56
      %p65 = scmp.eq.s32.totalorder %s24, 0
      %p66 = por %p64, %p65
      %p67 = scmp.ne.s32.totalorder %s55, %s56
      %p68 = scmp.eq.s32.totalorder %s25, 1
      %p69 = por %p67, %p68
      %p71 = scmp.ne.s32.totalorder %s56, %s70
      %p72 = scmp.eq.s32.totalorder %s25, 0
      %p73 = por %p71, %p72
      %s75 = sadd.s32 %s74, 1
      %p78 = scmp.eq.s32.totalorder %s19, 1
      %p79 = scmp.ne.s32.totalorder %s74, %s76
      %p80 = scmp.eq.s32.totalorder %s19, 0
      %p81 = por %p79, %p80
      %p82 = scmp.ne.s32.totalorder %s74, %s76
      %p83 = scmp.eq.s32.totalorder %s24, 1
      %p84 = por %p82, %p83
      %p85 = scmp.ne.s32.totalorder %s76, %s77
      %p86 = scmp.eq.s32.totalorder %s24, 0
      %p87 = por %p85, %p86
      %p88 = scmp.ne.s32.totalorder %s76, %s77
      %p89 = scmp.eq.s32.totalorder %s25, 1
      %p90 = por %p88, %p89
      %p92 = scmp.ne.s32.totalorder %s77, %s91
      %p93 = scmp.eq.s32.totalorder %s25, 0
      %p94 = por %p92, %p93
      %s96 = sadd.s32 %s95, 1
      %p99 = scmp.eq.s32.totalorder %s19, 1
      %p100 = scmp.ne.s32.totalorder %s95, %s97
      %p101 = scmp.eq.s32.totalorder %s19, 0
      %p102 = por %p100, %p101
      %p103 = scmp.ne.s32.totalorder %s95, %s97
      %p104 = scmp.eq.s32.totalorder %s24, 1
      %p105 = por %p103, %p104
      %p106 = scmp.ne.s32.totalorder %s97, %s98
      %p107 = scmp.eq.s32.totalorder %s24, 0
      %p108 = por %p106, %p107
      %p109 = scmp.ne.s32.totalorder %s97, %s98
      %p110 = scmp.eq.s32.totalorder %s25, 1
      %p111 = por %p109, %p110
      %p113 = scmp.ne.s32.totalorder %s98, %s112
      %p114 = scmp.eq.s32.totalorder %s25, 0
      %p115 = por %p113, %p114
      %s117 = sadd.s32 %s116, 1
      %p120 = scmp.eq.s32.totalorder %s19, 1
      %p121 = scmp.ne.s32.totalorder %s116, %s118
      %p122 = scmp.eq.s32.totalorder %s19, 0
      %p123 = por %p121, %p122
      %p124 = scmp.ne.s32.totalorder %s116, %s118
      %p125 = scmp.eq.s32.totalorder %s24, 1
      %p126 = por %p124, %p125
      %p127 = scmp.ne.s32.totalorder %s118, %s119
      %p128 = scmp.eq.s32.totalorder %s24, 0
      %p129 = por %p127, %p128
      %p130 = scmp.ne.s32.totalorder %s118, %s119
      %p131 = scmp.eq.s32.totalorder %s25, 1
      %p132 = por %p130, %p131
      %p134 = scmp.ne.s32.totalorder %s119, %s133
      %p135 = scmp.eq.s32.totalorder %s25, 0
      %p136 = por %p134, %p135
      %s138 = sadd.s32 %s137, 1
      %p141 = scmp.eq.s32.totalorder %s19, 1
      %p142 = scmp.ne.s32.totalorder %s137, %s139
      %p143 = scmp.eq.s32.totalorder %s19, 0
      %p144 = por %p142, %p143
      %p145 = scmp.ne.s32.totalorder %s137, %s139
      %p146 = scmp.eq.s32.totalorder %s24, 1
      %p147 = por %p145, %p146
      %p148 = scmp.ne.s32.totalorder %s139, %s140
      %p149 = scmp.eq.s32.totalorder %s24, 0
      %p150 = por %p148, %p149
      %p151 = scmp.ne.s32.totalorder %s139, %s140
      %p152 = scmp.eq.s32.totalorder %s25, 1
      %p153 = por %p151, %p152
      %p155 = scmp.ne.s32.totalorder %s140, %s154
      %p156 = scmp.eq.s32.totalorder %s25, 0
      %p157 = por %p155, %p156
      %s159 = sadd.s32 %s158, 1
      %p162 = scmp.eq.s32.totalorder %s19, 1
      %p163 = scmp.ne.s32.totalorder %s158, %s160
      %p164 = scmp.eq.s32.totalorder %s19, 0
      %p165 = por %p163, %p164
      %p166 = scmp.ne.s32.totalorder %s158, %s160
      %p167 = scmp.eq.s32.totalorder %s24, 1
      %p168 = por %p166, %p167
      %p169 = scmp.ne.s32.totalorder %s160, %s161
      %p170 = scmp.eq.s32.totalorder %s24, 0
      %p171 = por %p169, %p170
      %p172 = scmp.ne.s32.totalorder %s160, %s161
      %p173 = scmp.eq.s32.totalorder %s25, 1
      %p174 = por %p172, %p173
      %p176 = scmp.ne.s32.totalorder %s161, %s175
      %p177 = scmp.eq.s32.totalorder %s25, 0
      %p178 = por %p176, %p177
      %p179 = scmp.le.s32.totalorder 1, %s19
      %p180 = scmp.lt.s32.totalorder %s19, 3
      %p181 = pnand %p179, %p180
      %p182 = pneg %p181
      // Predicated region
      $region9: #{block_decoder_final.1} parent=5 // pred_check
        _
      $region10: #{block_decoder_final.1} parent=5 // pred_check_branch
        %184 = sbr.rel (%p181) target = $region12
      $region11: #{block_decoder_final.1} parent=5 // pred_region
        %s185 = ssub.s32 %s19, 1
        // Predicated region
        $region13: #{block_decoder_final.1} parent=11 // pred_check
          %p186 = pneg %p66
        $region14: #{block_decoder_final.1} parent=11 // pred_check_branch
          %188 = sbr.rel (%p186) target = $region16
        $region15: #{block_decoder_final.1} parent=11 // pred_region
          %s190 = ssub.s32 2048, 2048
          %191 = vsyncadd [#allocation8], %s190
          %s192 = sshll.u32 [#allocation7], 4
          %s193 = int_to_ptr.vmem [resolvable:$true] %s192
          %198 = dma.hbm_to_vmem [thread:$0]  %s1, 2048, %s193, [#allocation8], 128, 128, 8
        $region16: #{block_decoder_final.1} parent=11 // pred_fallthru
          _
        // Predicated region
        $region17: #{block_decoder_final.1} parent=11 // pred_check
          %p199 = pneg %p87
        $region18: #{block_decoder_final.1} parent=11 // pred_check_branch
          %201 = sbr.rel (%p199) target = $region20
        $region19: #{block_decoder_final.1} parent=11 // pred_region
          %s203 = ssub.s32 16, 16
          %204 = vsyncadd [#allocation8], %s203
          %s206 = sshll.u32 [#allocation9], 4
          %s207 = int_to_ptr.vmem [resolvable:$true] %s206
          %209 = dma.hbm_to_vmem [thread:$0]  %s2, 16, %s207, [#allocation8]
        $region20: #{block_decoder_final.1} parent=11 // pred_fallthru
          _
        // Predicated region
        $region21: #{block_decoder_final.1} parent=11 // pred_check
          %p210 = pneg %p108
        $region22: #{block_decoder_final.1} parent=11 // pred_check_branch
          %212 = sbr.rel (%p210) target = $region24
        $region23: #{block_decoder_final.1} parent=11 // pred_region
          %s214 = ssub.s32 32, 32
          %215 = vsyncadd [#allocation11], %s214
          %s217 = sshll.u32 [#allocation10], 4
          %s218 = int_to_ptr.vmem [resolvable:$true] %s217
          %220 = dma.hbm_to_vmem [thread:$0]  %s3, 32, %s218, [#allocation11]
        $region24: #{block_decoder_final.1} parent=11 // pred_fallthru
          _
        // Predicated region
        $region25: #{block_decoder_final.1} parent=11 // pred_check
          %p221 = pneg %p129
        $region26: #{block_decoder_final.1} parent=11 // pred_check_branch
          %223 = sbr.rel (%p221) target = $region28
        $region27: #{block_decoder_final.1} parent=11 // pred_region
          %s225 = ssub.s32 128, 128
          %226 = vsyncadd [#allocation11], %s225
          %s228 = sshll.u32 [#allocation12], 4
          %s229 = int_to_ptr.vmem [resolvable:$true] %s228
          %231 = dma.hbm_to_vmem [thread:$0]  %s4, 128, %s229, [#allocation11]
        $region28: #{block_decoder_final.1} parent=11 // pred_fallthru
          _
        // Predicated region
        $region29: #{block_decoder_final.1} parent=11 // pred_check
          %p232 = pneg %p150
        $region30: #{block_decoder_final.1} parent=11 // pred_check_branch
          %234 = sbr.rel (%p232) target = $region32
        $region31: #{block_decoder_final.1} parent=11 // pred_region
          %s236 = ssub.s32 128, 128
          %237 = vsyncadd [#allocation14], %s236
          %s239 = sshll.u32 [#allocation13], 4
          %s240 = int_to_ptr.vmem [resolvable:$true] %s239
          %242 = dma.hbm_to_vmem [thread:$0]  %s5, 128, %s240, [#allocation14]
        $region32: #{block_decoder_final.1} parent=11 // pred_fallthru
          _
      $region12: #{block_decoder_final.1} parent=5 // pred_fallthru
        _
      %p243 = scmp.lt.s32.totalorder %s19, 2
      // Predicated region
      $region33: #{block_decoder_final.1} parent=5 // pred_check
        %p244 = pneg %p243
      $region34: #{block_decoder_final.1} parent=5 // pred_check_branch
        %246 = sbr.rel (%p244) target = $region36
      $region35: #{block_decoder_final.1} parent=5 // pred_region
        // Predicated region
        $region37: #{block_decoder_final.1} parent=35 // pred_check
          %p247 = pneg %p39
        $region38: #{block_decoder_final.1} parent=35 // pred_check_branch
          %249 = sbr.rel (%p247) target = $region40
        $region39: #{block_decoder_final.1} parent=35 // pred_region
          %s250 = sand.u32 %s29, 1
          %s251 = scalar_lea.sflag [#allocation5], %s250
          %s252 = sand.u32 %s29, 1
          %s253 = smul.addr %s252, 1600
          %s254 = scalar_lea.vmem [#allocation4], %s253
          %s256 = ssub.s32 25600, 25600
          %257 = vsyncadd %s251, %s256
          %s258 = smul.addr %s19, 200
          %s259 = smul.addr %s258, 128
          %s260 = scalar_lea.hbm %s0, %s259
          %s261 = sshll.u32 %s254, 4
          %s262 = int_to_ptr.vmem [resolvable:$true] %s261
          %267 = dma.hbm_to_vmem [thread:$0]  %s260, 25600, %s262, %s251, 128, 128, 8
        $region40: #{block_decoder_final.1} parent=35 // pred_fallthru
          _
      $region36: #{block_decoder_final.1} parent=5 // pred_fallthru
        _
      %p268 = scmp.le.s32.totalorder 1, %s19
      %p269 = scmp.lt.s32.totalorder %s19, 3
      %p270 = pnand %p268, %p269
      %p271 = pneg %p270
      // Predicated region
      $region41: #{block_decoder_final.1} parent=5 // pred_check
        _
      $region42: #{block_decoder_final.1} parent=5 // pred_check_branch
        %273 = sbr.rel (%p270) target = $region44
      $region43: #{block_decoder_final.1} parent=5 // pred_region
        %s274 = ssub.s32 %s19, 1
        %s275 = sand.u32 %s32, 1
        %s276 = scalar_lea.sflag [#allocation5], %s275
        %s277 = sand.u32 %s32, 1
        %s278 = smul.addr %s277, 1600
        %s279 = scalar_lea.vmem [#allocation4], %s278
        // Predicated region
        $region45: #{block_decoder_final.1} parent=43 // pred_check
          %p280 = pneg %p45
        $region46: #{block_decoder_final.1} parent=43 // pred_check_branch
          %282 = sbr.rel (%p280) target = $region48
        $region47: #{block_decoder_final.1} parent=43 // pred_region
          %283 = dma.done %s276, 25600
        $region48: #{block_decoder_final.1} parent=43 // pred_fallthru
          _
        // Predicated region
        $region49: #{block_decoder_final.1} parent=43 // pred_check
          %p284 = pneg %p66
        $region50: #{block_decoder_final.1} parent=43 // pred_check_branch
          %286 = sbr.rel (%p284) target = $region52
        $region51: #{block_decoder_final.1} parent=43 // pred_region
          %287 = dma.done [#allocation8], 2048
        $region52: #{block_decoder_final.1} parent=43 // pred_fallthru
          _
        // Predicated region
        $region53: #{block_decoder_final.1} parent=43 // pred_check
          %p288 = pneg %p87
        $region54: #{block_decoder_final.1} parent=43 // pred_check_branch
          %290 = sbr.rel (%p288) target = $region56
        $region55: #{block_decoder_final.1} parent=43 // pred_region
          %291 = dma.done [#allocation8], 16
        $region56: #{block_decoder_final.1} parent=43 // pred_fallthru
          _
        // Predicated region
        $region57: #{block_decoder_final.1} parent=43 // pred_check
          %p292 = pneg %p108
        $region58: #{block_decoder_final.1} parent=43 // pred_check_branch
          %294 = sbr.rel (%p292) target = $region60
        $region59: #{block_decoder_final.1} parent=43 // pred_region
          %295 = dma.done [#allocation11], 32
        $region60: #{block_decoder_final.1} parent=43 // pred_fallthru
          _
        // Predicated region
        $region61: #{block_decoder_final.1} parent=43 // pred_check
          %p296 = pneg %p129
        $region62: #{block_decoder_final.1} parent=43 // pred_check_branch
          %298 = sbr.rel (%p296) target = $region64
        $region63: #{block_decoder_final.1} parent=43 // pred_region
          %299 = dma.done [#allocation11], 128
        $region64: #{block_decoder_final.1} parent=43 // pred_fallthru
          _
        // Predicated region
        $region65: #{block_decoder_final.1} parent=43 // pred_check
          %p300 = pneg %p150
        $region66: #{block_decoder_final.1} parent=43 // pred_check_branch
          %302 = sbr.rel (%p300) target = $region68
        $region67: #{block_decoder_final.1} parent=43 // pred_region
          %303 = dma.done [#allocation14], 128
        $region68: #{block_decoder_final.1} parent=43 // pred_fallthru
          _
        %s304 = sand.u32 %s32, 1
        %s305 = scalar_lea.sflag [#allocation5], %s304
        %s306 = sand.u32 %s32, 1
        %s307 = smul.addr %s306, 1600
        %s308 = scalar_lea.vmem [#allocation4], %s307
        %p309 = pneg %p45
        %p310 = pneg %p42
        %p311 = pneg %p66
        %p312 = pneg %p63
        %p313 = pneg %p87
        %p314 = pneg %p84
        %p315 = pneg %p108
        %p316 = pneg %p105
        %p317 = pneg %p129
        %p318 = pneg %p126
        %p319 = pneg %p150
        %p320 = pneg %p147
        %p321 = pneg %p171
        %p322 = pneg %p168
        %v323 = vld [vmem:[%s279] sm:$0xff]
        %v324 = vld [vmem:[%s279 + $0x10] sm:$0xff]
        %v325 = vld [vmem:[%s279 + $0x20] sm:$0xff]
        %v326 = vld [vmem:[%s279 + $0x30] sm:$0xff]
        %v327 = vld [vmem:[%s279 + $0x40] sm:$0xff]
        %v328 = vld [vmem:[%s279 + $0x50] sm:$0xff]
        %v329 = vld [vmem:[%s279 + $0x60] sm:$0xff]
        %v330 = vld [vmem:[%s279 + $0x70] sm:$0xff]
        %v331 = vld [vmem:[%s279 + $0xa0] sm:$0xff]
        %v332 = vld [vmem:[%s279 + $0xb0] sm:$0xff]
        %v333 = vld [vmem:[%s279 + $0xc0] sm:$0xff]
        %v334 = vld [vmem:[%s279 + $0xd0] sm:$0xff]
        %v335 = vld [vmem:[%s279 + $0xe0] sm:$0xff]
        %v336 = vld [vmem:[%s279 + $0xf0] sm:$0xff]
        %v337 = vld [vmem:[%s279 + $0x100] sm:$0xff]
        %v338 = vld [vmem:[%s279 + $0x110] sm:$0xff]
        %v339 = vld [vmem:[%s279 + $0x140] sm:$0xff]
        %v340 = vld [vmem:[%s279 + $0x150] sm:$0xff]
        %v341 = vld [vmem:[%s279 + $0x160] sm:$0xff]
        %v342 = vld [vmem:[%s279 + $0x170] sm:$0xff]
        %v343 = vld [vmem:[%s279 + $0x180] sm:$0xff]
        %v344 = vld [vmem:[%s279 + $0x190] sm:$0xff]
        %v345 = vld [vmem:[%s279 + $0x1a0] sm:$0xff]
        %v346 = vld [vmem:[%s279 + $0x1b0] sm:$0xff]
        %v347 = vld [vmem:[%s279 + $0x1e0] sm:$0xff]
        %v348 = vld [vmem:[%s279 + $0x1f0] sm:$0xff]
        %v349 = vld [vmem:[%s279 + $0x200] sm:$0xff]
        %v350 = vld [vmem:[%s279 + $0x210] sm:$0xff]
        %v351 = vld [vmem:[%s279 + $0x220] sm:$0xff]
        %v352 = vld [vmem:[%s279 + $0x230] sm:$0xff]
        %v353 = vld [vmem:[%s279 + $0x240] sm:$0xff]
        %v354 = vld [vmem:[%s279 + $0x250] sm:$0xff]
        %v355 = vld [vmem:[%s279 + $0x280] sm:$0xff]
        %v356 = vld [vmem:[%s279 + $0x290] sm:$0xff]
        %v357 = vld [vmem:[%s279 + $0x2a0] sm:$0xff]
        %v358 = vld [vmem:[%s279 + $0x2b0] sm:$0xff]
        %v359 = vld [vmem:[%s279 + $0x2c0] sm:$0xff]
        %v360 = vld [vmem:[%s279 + $0x2d0] sm:$0xff]
        %v361 = vld [vmem:[%s279 + $0x2e0] sm:$0xff]
        %v362 = vld [vmem:[%s279 + $0x2f0] sm:$0xff]
        %v363 = vld [vmem:[%s279 + $0x320] sm:$0xff]
        %v364 = vld [vmem:[%s279 + $0x330] sm:$0xff]
        %v365 = vld [vmem:[%s279 + $0x340] sm:$0xff]
        %v366 = vld [vmem:[%s279 + $0x350] sm:$0xff]
        %v367 = vld [vmem:[%s279 + $0x360] sm:$0xff]
        %v368 = vld [vmem:[%s279 + $0x370] sm:$0xff]
        %v369 = vld [vmem:[%s279 + $0x380] sm:$0xff]
        %v370 = vld [vmem:[%s279 + $0x390] sm:$0xff]
        %v371 = vld [vmem:[%s279 + $0x3c0] sm:$0xff]
        %v372 = vld [vmem:[%s279 + $0x3d0] sm:$0xff]
        %v373 = vld [vmem:[%s279 + $0x3e0] sm:$0xff]
        %v374 = vld [vmem:[%s279 + $0x3f0] sm:$0xff]
        %v375 = vld [vmem:[%s279 + $0x400] sm:$0xff]
        %v376 = vld [vmem:[%s279 + $0x410] sm:$0xff]
        %v377 = vld [vmem:[%s279 + $0x420] sm:$0xff]
        %v378 = vld [vmem:[%s279 + $0x430] sm:$0xff]
        %v379 = vld [vmem:[%s279 + $0x460] sm:$0xff]
        %v380 = vld [vmem:[%s279 + $0x470] sm:$0xff]
        %v381 = vld [vmem:[%s279 + $0x480] sm:$0xff]
        %v382 = vld [vmem:[%s279 + $0x490] sm:$0xff]
        %v383 = vld [vmem:[%s279 + $0x4a0] sm:$0xff]
        %v384 = vld [vmem:[%s279 + $0x4b0] sm:$0xff]
        %v385 = vld [vmem:[%s279 + $0x4c0] sm:$0xff]
        %v386 = vld [vmem:[%s279 + $0x4d0] sm:$0xff]
        %v387 = vld [vmem:[%s279 + $0x1] sm:$0xff]
        %v388 = vld [vmem:[%s279 + $0x11] sm:$0xff]
        %v389 = vld [vmem:[%s279 + $0x21] sm:$0xff]
        %v390 = vld [vmem:[%s279 + $0x31] sm:$0xff]
        %v391 = vld [vmem:[%s279 + $0x41] sm:$0xff]
        %v392 = vld [vmem:[%s279 + $0x51] sm:$0xff]
        %v393 = vld [vmem:[%s279 + $0x61] sm:$0xff]
        %v394 = vld [vmem:[%s279 + $0x71] sm:$0xff]
        %v395 = vld [vmem:[%s279 + $0xa1] sm:$0xff]
        %v396 = vld [vmem:[%s279 + $0xb1] sm:$0xff]
        %v397 = vld [vmem:[%s279 + $0xc1] sm:$0xff]
        %v398 = vld [vmem:[%s279 + $0xd1] sm:$0xff]
        %v399 = vld [vmem:[%s279 + $0xe1] sm:$0xff]
        %v400 = vld [vmem:[%s279 + $0xf1] sm:$0xff]
        %v401 = vld [vmem:[%s279 + $0x101] sm:$0xff]
        %v402 = vld [vmem:[%s279 + $0x111] sm:$0xff]
        %v403 = vld [vmem:[%s279 + $0x141] sm:$0xff]
        %v404 = vld [vmem:[%s279 + $0x151] sm:$0xff]
        %v405 = vld [vmem:[%s279 + $0x161] sm:$0xff]
        %v406 = vld [vmem:[%s279 + $0x171] sm:$0xff]
        %v407 = vld [vmem:[%s279 + $0x181] sm:$0xff]
        %v408 = vld [vmem:[%s279 + $0x191] sm:$0xff]
        %v409 = vld [vmem:[%s279 + $0x1a1] sm:$0xff]
        %v410 = vld [vmem:[%s279 + $0x1b1] sm:$0xff]
        %v411 = vld [vmem:[%s279 + $0x1e1] sm:$0xff]
        %v412 = vld [vmem:[%s279 + $0x1f1] sm:$0xff]
        %v413 = vld [vmem:[%s279 + $0x201] sm:$0xff]
        %v414 = vld [vmem:[%s279 + $0x211] sm:$0xff]
        %v415 = vld [vmem:[%s279 + $0x221] sm:$0xff]
        %v416 = vld [vmem:[%s279 + $0x231] sm:$0xff]
        %v417 = vld [vmem:[%s279 + $0x241] sm:$0xff]
        %v418 = vld [vmem:[%s279 + $0x251] sm:$0xff]
        %v419 = vld [vmem:[%s279 + $0x281] sm:$0xff]
        %v420 = vld [vmem:[%s279 + $0x291] sm:$0xff]
        %v421 = vld [vmem:[%s279 + $0x2a1] sm:$0xff]
        %v422 = vld [vmem:[%s279 + $0x2b1] sm:$0xff]
        %v423 = vld [vmem:[%s279 + $0x2c1] sm:$0xff]
        %v424 = vld [vmem:[%s279 + $0x2d1] sm:$0xff]
        %v425 = vld [vmem:[%s279 + $0x2e1] sm:$0xff]
        %v426 = vld [vmem:[%s279 + $0x2f1] sm:$0xff]
        %v427 = vld [vmem:[%s279 + $0x321] sm:$0xff]
        %v428 = vld [vmem:[%s279 + $0x331] sm:$0xff]
        %v429 = vld [vmem:[%s279 + $0x341] sm:$0xff]
        %v430 = vld [vmem:[%s279 + $0x351] sm:$0xff]
        %v431 = vld [vmem:[%s279 + $0x361] sm:$0xff]
        %v432 = vld [vmem:[%s279 + $0x371] sm:$0xff]
        %v433 = vld [vmem:[%s279 + $0x381] sm:$0xff]
        %v434 = vld [vmem:[%s279 + $0x391] sm:$0xff]
        %v435 = vld [vmem:[%s279 + $0x3c1] sm:$0xff]
        %v436 = vld [vmem:[%s279 + $0x3d1] sm:$0xff]
        %v437 = vld [vmem:[%s279 + $0x3e1] sm:$0xff]
        %v438 = vld [vmem:[%s279 + $0x3f1] sm:$0xff]
        %v439 = vld [vmem:[%s279 + $0x401] sm:$0xff]
        %v440 = vld [vmem:[%s279 + $0x411] sm:$0xff]
        %v441 = vld [vmem:[%s279 + $0x421] sm:$0xff]
        %v442 = vld [vmem:[%s279 + $0x431] sm:$0xff]
        %v443 = vld [vmem:[%s279 + $0x461] sm:$0xff]
        %v444 = vld [vmem:[%s279 + $0x471] sm:$0xff]
        %v445 = vld [vmem:[%s279 + $0x481] sm:$0xff]
        %v446 = vld [vmem:[%s279 + $0x491] sm:$0xff]
        %v447 = vld [vmem:[%s279 + $0x4a1] sm:$0xff]
        %v448 = vld [vmem:[%s279 + $0x4b1] sm:$0xff]
        %v449 = vld [vmem:[%s279 + $0x4c1] sm:$0xff]
        %v450 = vld [vmem:[%s279 + $0x4d1] sm:$0xff]
        %v451 = vld [vmem:[%s279 + $0x2] sm:$0xff]
        %v452 = vld [vmem:[%s279 + $0x12] sm:$0xff]
        %v453 = vld [vmem:[%s279 + $0x22] sm:$0xff]
        %v454 = vld [vmem:[%s279 + $0x32] sm:$0xff]
        %v455 = vld [vmem:[%s279 + $0x42] sm:$0xff]
        %v456 = vld [vmem:[%s279 + $0x52] sm:$0xff]
        %v457 = vld [vmem:[%s279 + $0x62] sm:$0xff]
        %v458 = vld [vmem:[%s279 + $0x72] sm:$0xff]
        %v459 = vld [vmem:[%s279 + $0xa2] sm:$0xff]
        %v460 = vld [vmem:[%s279 + $0xb2] sm:$0xff]
        %v461 = vld [vmem:[%s279 + $0xc2] sm:$0xff]
        %v462 = vld [vmem:[%s279 + $0xd2] sm:$0xff]
        %v463 = vld [vmem:[%s279 + $0xe2] sm:$0xff]
        %v464 = vld [vmem:[%s279 + $0xf2] sm:$0xff]
        %v465 = vld [vmem:[%s279 + $0x102] sm:$0xff]
        %v466 = vld [vmem:[%s279 + $0x112] sm:$0xff]
        %v467 = vld [vmem:[%s279 + $0x142] sm:$0xff]
        %v468 = vld [vmem:[%s279 + $0x152] sm:$0xff]
        %v469 = vld [vmem:[%s279 + $0x162] sm:$0xff]
        %v470 = vld [vmem:[%s279 + $0x172] sm:$0xff]
        %v471 = vld [vmem:[%s279 + $0x182] sm:$0xff]
        %v472 = vld [vmem:[%s279 + $0x192] sm:$0xff]
        %v473 = vld [vmem:[%s279 + $0x1a2] sm:$0xff]
        %v474 = vld [vmem:[%s279 + $0x1b2] sm:$0xff]
        %v475 = vld [vmem:[%s279 + $0x1e2] sm:$0xff]
        %v476 = vld [vmem:[%s279 + $0x1f2] sm:$0xff]
        %v477 = vld [vmem:[%s279 + $0x202] sm:$0xff]
        %v478 = vld [vmem:[%s279 + $0x212] sm:$0xff]
        %v479 = vld [vmem:[%s279 + $0x222] sm:$0xff]
        %v480 = vld [vmem:[%s279 + $0x232] sm:$0xff]
        %v481 = vld [vmem:[%s279 + $0x242] sm:$0xff]
        %v482 = vld [vmem:[%s279 + $0x252] sm:$0xff]
        %v483 = vld [vmem:[%s279 + $0x282] sm:$0xff]
        %v484 = vld [vmem:[%s279 + $0x292] sm:$0xff]
        %v485 = vld [vmem:[%s279 + $0x2a2] sm:$0xff]
        %v486 = vld [vmem:[%s279 + $0x2b2] sm:$0xff]
        %v487 = vld [vmem:[%s279 + $0x2c2] sm:$0xff]
        %v488 = vld [vmem:[%s279 + $0x2d2] sm:$0xff]
        %v489 = vld [vmem:[%s279 + $0x2e2] sm:$0xff]
        %v490 = vld [vmem:[%s279 + $0x2f2] sm:$0xff]
        %v491 = vld [vmem:[%s279 + $0x322] sm:$0xff]
        %v492 = vld [vmem:[%s279 + $0x332] sm:$0xff]
        %v493 = vld [vmem:[%s279 + $0x342] sm:$0xff]
        %v494 = vld [vmem:[%s279 + $0x352] sm:$0xff]
        %v495 = vld [vmem:[%s279 + $0x362] sm:$0xff]
        %v496 = vld [vmem:[%s279 + $0x372] sm:$0xff]
        %v497 = vld [vmem:[%s279 + $0x382] sm:$0xff]
        %v498 = vld [vmem:[%s279 + $0x392] sm:$0xff]
        %v499 = vld [vmem:[%s279 + $0x3c2] sm:$0xff]
        %v500 = vld [vmem:[%s279 + $0x3d2] sm:$0xff]
        %v501 = vld [vmem:[%s279 + $0x3e2] sm:$0xff]
        %v502 = vld [vmem:[%s279 + $0x3f2] sm:$0xff]
        %v503 = vld [vmem:[%s279 + $0x402] sm:$0xff]
        %v504 = vld [vmem:[%s279 + $0x412] sm:$0xff]
        %v505 = vld [vmem:[%s279 + $0x422] sm:$0xff]
        %v506 = vld [vmem:[%s279 + $0x432] sm:$0xff]
        %v507 = vld [vmem:[%s279 + $0x462] sm:$0xff]
        %v508 = vld [vmem:[%s279 + $0x472] sm:$0xff]
        %v509 = vld [vmem:[%s279 + $0x482] sm:$0xff]
        %v510 = vld [vmem:[%s279 + $0x492] sm:$0xff]
        %v511 = vld [vmem:[%s279 + $0x4a2] sm:$0xff]
        %v512 = vld [vmem:[%s279 + $0x4b2] sm:$0xff]
        %v513 = vld [vmem:[%s279 + $0x4c2] sm:$0xff]
        %v514 = vld [vmem:[%s279 + $0x4d2] sm:$0xff]
        %s515 = scalar_lea.vmem %s279, 16 [#allocation4]
        %v516 = vld [vmem:[%s515] sm:$0xff]
        %v517 = vld [vmem:[%s515 + $0x10] sm:$0xff]
        %v518 = vld [vmem:[%s515 + $0x20] sm:$0xff]
        %v519 = vld [vmem:[%s515 + $0x30] sm:$0xff]
        %v520 = vld [vmem:[%s515 + $0x40] sm:$0xff]
        %v521 = vld [vmem:[%s515 + $0x50] sm:$0xff]
        %v522 = vld [vmem:[%s515 + $0x60] sm:$0xff]
        %v523 = vld [vmem:[%s515 + $0x70] sm:$0xff]
        %v524 = vld [vmem:[%s515 + $0xa0] sm:$0xff]
        %v525 = vld [vmem:[%s515 + $0xb0] sm:$0xff]
        %v526 = vld [vmem:[%s515 + $0xc0] sm:$0xff]
        %v527 = vld [vmem:[%s515 + $0xd0] sm:$0xff]
        %v528 = vld [vmem:[%s515 + $0xe0] sm:$0xff]
        %v529 = vld [vmem:[%s515 + $0xf0] sm:$0xff]
        %v530 = vld [vmem:[%s515 + $0x100] sm:$0xff]
        %v531 = vld [vmem:[%s515 + $0x110] sm:$0xff]
        %v532 = vld [vmem:[%s515 + $0x140] sm:$0xff]
        %v533 = vld [vmem:[%s515 + $0x150] sm:$0xff]
        %v534 = vld [vmem:[%s515 + $0x160] sm:$0xff]
        %v535 = vld [vmem:[%s515 + $0x170] sm:$0xff]
        %v536 = vld [vmem:[%s515 + $0x180] sm:$0xff]
        %v537 = vld [vmem:[%s515 + $0x190] sm:$0xff]
        %v538 = vld [vmem:[%s515 + $0x1a0] sm:$0xff]
        %v539 = vld [vmem:[%s515 + $0x1b0] sm:$0xff]
        %v540 = vld [vmem:[%s515 + $0x1e0] sm:$0xff]
        %v541 = vld [vmem:[%s515 + $0x1f0] sm:$0xff]
        %v542 = vld [vmem:[%s515 + $0x200] sm:$0xff]
        %v543 = vld [vmem:[%s515 + $0x210] sm:$0xff]
        %v544 = vld [vmem:[%s515 + $0x220] sm:$0xff]
        %v545 = vld [vmem:[%s515 + $0x230] sm:$0xff]
        %v546 = vld [vmem:[%s515 + $0x240] sm:$0xff]
        %v547 = vld [vmem:[%s515 + $0x250] sm:$0xff]
        %v548 = vld [vmem:[%s515 + $0x280] sm:$0xff]
        %v549 = vld [vmem:[%s515 + $0x290] sm:$0xff]
        %v550 = vld [vmem:[%s515 + $0x2a0] sm:$0xff]
        %v551 = vld [vmem:[%s515 + $0x2b0] sm:$0xff]
        %v552 = vld [vmem:[%s515 + $0x2c0] sm:$0xff]
        %v553 = vld [vmem:[%s515 + $0x2d0] sm:$0xff]
        %v554 = vld [vmem:[%s515 + $0x2e0] sm:$0xff]
        %v555 = vld [vmem:[%s515 + $0x2f0] sm:$0xff]
        %v556 = vld [vmem:[%s515 + $0x320] sm:$0xff]
        %v557 = vld [vmem:[%s515 + $0x330] sm:$0xff]
        %v558 = vld [vmem:[%s515 + $0x340] sm:$0xff]
        %v559 = vld [vmem:[%s515 + $0x350] sm:$0xff]
        %v560 = vld [vmem:[%s515 + $0x360] sm:$0xff]
        %v561 = vld [vmem:[%s515 + $0x370] sm:$0xff]
        %v562 = vld [vmem:[%s515 + $0x380] sm:$0xff]
        %v563 = vld [vmem:[%s515 + $0x390] sm:$0xff]
        %v564 = vld [vmem:[%s515 + $0x3c0] sm:$0xff]
        %v565 = vld [vmem:[%s515 + $0x3d0] sm:$0xff]
        %v566 = vld [vmem:[%s515 + $0x3e0] sm:$0xff]
        %v567 = vld [vmem:[%s515 + $0x3f0] sm:$0xff]
        %v568 = vld [vmem:[%s515 + $0x400] sm:$0xff]
        %v569 = vld [vmem:[%s515 + $0x410] sm:$0xff]
        %v570 = vld [vmem:[%s515 + $0x420] sm:$0xff]
        %v571 = vld [vmem:[%s515 + $0x430] sm:$0xff]
        %v572 = vld [vmem:[%s515 + $0x460] sm:$0xff]
        %v573 = vld [vmem:[%s515 + $0x470] sm:$0xff]
        %v574 = vld [vmem:[%s515 + $0x480] sm:$0xff]
        %v575 = vld [vmem:[%s515 + $0x490] sm:$0xff]
        %v576 = vld [vmem:[%s515 + $0x4a0] sm:$0xff]
        %v577 = vld [vmem:[%s515 + $0x4b0] sm:$0xff]
        %v578 = vld [vmem:[%s515 + $0x4c0] sm:$0xff]
        %v579 = vld [vmem:[%s515 + $0x4d0] sm:$0xff]
        %v580 = vld [vmem:[%s515 + $0x1] sm:$0xff]
        %v581 = vld [vmem:[%s515 + $0x11] sm:$0xff]
        %v582 = vld [vmem:[%s515 + $0x21] sm:$0xff]
        %v583 = vld [vmem:[%s515 + $0x31] sm:$0xff]
        %v584 = vld [vmem:[%s515 + $0x41] sm:$0xff]
        %v585 = vld [vmem:[%s515 + $0x51] sm:$0xff]
        %v586 = vld [vmem:[%s515 + $0x61] sm:$0xff]
        %v587 = vld [vmem:[%s515 + $0x71] sm:$0xff]
        %v588 = vld [vmem:[%s515 + $0xa1] sm:$0xff]
        %v589 = vld [vmem:[%s515 + $0xb1] sm:$0xff]
        %v590 = vld [vmem:[%s515 + $0xc1] sm:$0xff]
        %v591 = vld [vmem:[%s515 + $0xd1] sm:$0xff]
        %v592 = vld [vmem:[%s515 + $0xe1] sm:$0xff]
        %v593 = vld [vmem:[%s515 + $0xf1] sm:$0xff]
        %v594 = vld [vmem:[%s515 + $0x101] sm:$0xff]
        %v595 = vld [vmem:[%s515 + $0x111] sm:$0xff]
        %v596 = vld [vmem:[%s515 + $0x141] sm:$0xff]
        %v597 = vld [vmem:[%s515 + $0x151] sm:$0xff]
        %v598 = vld [vmem:[%s515 + $0x161] sm:$0xff]
        %v599 = vld [vmem:[%s515 + $0x171] sm:$0xff]
        %v600 = vld [vmem:[%s515 + $0x181] sm:$0xff]
        %v601 = vld [vmem:[%s515 + $0x191] sm:$0xff]
        %v602 = vld [vmem:[%s515 + $0x1a1] sm:$0xff]
        %v603 = vld [vmem:[%s515 + $0x1b1] sm:$0xff]
        %v604 = vld [vmem:[%s515 + $0x1e1] sm:$0xff]
        %v605 = vld [vmem:[%s515 + $0x1f1] sm:$0xff]
        %v606 = vld [vmem:[%s515 + $0x201] sm:$0xff]
        %v607 = vld [vmem:[%s515 + $0x211] sm:$0xff]
        %v608 = vld [vmem:[%s515 + $0x221] sm:$0xff]
        %v609 = vld [vmem:[%s515 + $0x231] sm:$0xff]
        %v610 = vld [vmem:[%s515 + $0x241] sm:$0xff]
        %v611 = vld [vmem:[%s515 + $0x251] sm:$0xff]
        %v612 = vld [vmem:[%s515 + $0x281] sm:$0xff]
        %v613 = vld [vmem:[%s515 + $0x291] sm:$0xff]
        %v614 = vld [vmem:[%s515 + $0x2a1] sm:$0xff]
        %v615 = vld [vmem:[%s515 + $0x2b1] sm:$0xff]
        %v616 = vld [vmem:[%s515 + $0x2c1] sm:$0xff]
        %v617 = vld [vmem:[%s515 + $0x2d1] sm:$0xff]
        %v618 = vld [vmem:[%s515 + $0x2e1] sm:$0xff]
        %v619 = vld [vmem:[%s515 + $0x2f1] sm:$0xff]
        %v620 = vld [vmem:[%s515 + $0x321] sm:$0xff]
        %v621 = vld [vmem:[%s515 + $0x331] sm:$0xff]
        %v622 = vld [vmem:[%s515 + $0x341] sm:$0xff]
        %v623 = vld [vmem:[%s515 + $0x351] sm:$0xff]
        %v624 = vld [vmem:[%s515 + $0x361] sm:$0xff]
        %v625 = vld [vmem:[%s515 + $0x371] sm:$0xff]
        %v626 = vld [vmem:[%s515 + $0x381] sm:$0xff]
        %v627 = vld [vmem:[%s515 + $0x391] sm:$0xff]
        %v628 = vld [vmem:[%s515 + $0x3c1] sm:$0xff]
        %v629 = vld [vmem:[%s515 + $0x3d1] sm:$0xff]
        %v630 = vld [vmem:[%s515 + $0x3e1] sm:$0xff]
        %v631 = vld [vmem:[%s515 + $0x3f1] sm:$0xff]
        %v632 = vld [vmem:[%s515 + $0x401] sm:$0xff]
        %v633 = vld [vmem:[%s515 + $0x411] sm:$0xff]
        %v634 = vld [vmem:[%s515 + $0x421] sm:$0xff]
        %v635 = vld [vmem:[%s515 + $0x431] sm:$0xff]
        %v636 = vld [vmem:[%s515 + $0x461] sm:$0xff]
        %v637 = vld [vmem:[%s515 + $0x471] sm:$0xff]
        %v638 = vld [vmem:[%s515 + $0x481] sm:$0xff]
        %v639 = vld [vmem:[%s515 + $0x491] sm:$0xff]
        %v640 = vld [vmem:[%s515 + $0x4a1] sm:$0xff]
        %v641 = vld [vmem:[%s515 + $0x4b1] sm:$0xff]
        %v642 = vld [vmem:[%s515 + $0x4c1] sm:$0xff]
        %v643 = vld [vmem:[%s515 + $0x4d1] sm:$0xff]
        %v644 = vld [vmem:[%s515 + $0x2] sm:$0xff]
        %v645 = vld [vmem:[%s515 + $0x12] sm:$0xff]
        %v646 = vld [vmem:[%s515 + $0x22] sm:$0xff]
        %v647 = vld [vmem:[%s515 + $0x32] sm:$0xff]
        %v648 = vld [vmem:[%s515 + $0x42] sm:$0xff]
        %v649 = vld [vmem:[%s515 + $0x52] sm:$0xff]
        %v650 = vld [vmem:[%s515 + $0x62] sm:$0xff]
        %v651 = vld [vmem:[%s515 + $0x72] sm:$0xff]
        %v652 = vld [vmem:[%s515 + $0xa2] sm:$0xff]
        %v653 = vld [vmem:[%s515 + $0xb2] sm:$0xff]
        %v654 = vld [vmem:[%s515 + $0xc2] sm:$0xff]
        %v655 = vld [vmem:[%s515 + $0xd2] sm:$0xff]
        %v656 = vld [vmem:[%s515 + $0xe2] sm:$0xff]
        %v657 = vld [vmem:[%s515 + $0xf2] sm:$0xff]
        %v658 = vld [vmem:[%s515 + $0x102] sm:$0xff]
        %v659 = vld [vmem:[%s515 + $0x112] sm:$0xff]
        %v660 = vld [vmem:[%s515 + $0x142] sm:$0xff]
        %v661 = vld [vmem:[%s515 + $0x152] sm:$0xff]
        %v662 = vld [vmem:[%s515 + $0x162] sm:$0xff]
        %v663 = vld [vmem:[%s515 + $0x172] sm:$0xff]
        %v664 = vld [vmem:[%s515 + $0x182] sm:$0xff]
        %v665 = vld [vmem:[%s515 + $0x192] sm:$0xff]
        %v666 = vld [vmem:[%s515 + $0x1a2] sm:$0xff]
        %v667 = vld [vmem:[%s515 + $0x1b2] sm:$0xff]
        %v668 = vld [vmem:[%s515 + $0x1e2] sm:$0xff]
        %v669 = vld [vmem:[%s515 + $0x1f2] sm:$0xff]
        %v670 = vld [vmem:[%s515 + $0x202] sm:$0xff]
        %v671 = vld [vmem:[%s515 + $0x212] sm:$0xff]
        %v672 = vld [vmem:[%s515 + $0x222] sm:$0xff]
        %v673 = vld [vmem:[%s515 + $0x232] sm:$0xff]
        %v674 = vld [vmem:[%s515 + $0x242] sm:$0xff]
        %v675 = vld [vmem:[%s515 + $0x252] sm:$0xff]
        %v676 = vld [vmem:[%s515 + $0x282] sm:$0xff]
        %v677 = vld [vmem:[%s515 + $0x292] sm:$0xff]
        %v678 = vld [vmem:[%s515 + $0x2a2] sm:$0xff]
        %v679 = vld [vmem:[%s515 + $0x2b2] sm:$0xff]
        %v680 = vld [vmem:[%s515 + $0x2c2] sm:$0xff]
        %v681 = vld [vmem:[%s515 + $0x2d2] sm:$0xff]
        %v682 = vld [vmem:[%s515 + $0x2e2] sm:$0xff]
        %v683 = vld [vmem:[%s515 + $0x2f2] sm:$0xff]
        %v684 = vld [vmem:[%s515 + $0x322] sm:$0xff]
        %v685 = vld [vmem:[%s515 + $0x332] sm:$0xff]
        %v686 = vld [vmem:[%s515 + $0x342] sm:$0xff]
        %v687 = vld [vmem:[%s515 + $0x352] sm:$0xff]
        %v688 = vld [vmem:[%s515 + $0x362] sm:$0xff]
        %v689 = vld [vmem:[%s515 + $0x372] sm:$0xff]
        %v690 = vld [vmem:[%s515 + $0x382] sm:$0xff]
        %v691 = vld [vmem:[%s515 + $0x392] sm:$0xff]
        %v692 = vld [vmem:[%s515 + $0x3c2] sm:$0xff]
        %v693 = vld [vmem:[%s515 + $0x3d2] sm:$0xff]
        %v694 = vld [vmem:[%s515 + $0x3e2] sm:$0xff]
        %v695 = vld [vmem:[%s515 + $0x3f2] sm:$0xff]
        %v696 = vld [vmem:[%s515 + $0x402] sm:$0xff]
        %v697 = vld [vmem:[%s515 + $0x412] sm:$0xff]
        %v698 = vld [vmem:[%s515 + $0x422] sm:$0xff]
        %v699 = vld [vmem:[%s515 + $0x432] sm:$0xff]
        %v700 = vld [vmem:[%s515 + $0x462] sm:$0xff]
        %v701 = vld [vmem:[%s515 + $0x472] sm:$0xff]
        %v702 = vld [vmem:[%s515 + $0x482] sm:$0xff]
        %v703 = vld [vmem:[%s515 + $0x492] sm:$0xff]
        %v704 = vld [vmem:[%s515 + $0x4a2] sm:$0xff]
        %v705 = vld [vmem:[%s515 + $0x4b2] sm:$0xff]
        %v706 = vld [vmem:[%s515 + $0x4c2] sm:$0xff]
        %v707 = vld [vmem:[%s515 + $0x4d2] sm:$0xff]
        %s708 = scalar_lea.vmem %s279, 32 [#allocation4]
        %v709 = vld [vmem:[%s708] sm:$0xff]
        %v710 = vld [vmem:[%s708 + $0x10] sm:$0xff]
        %v711 = vld [vmem:[%s708 + $0x20] sm:$0xff]
        %v712 = vld [vmem:[%s708 + $0x30] sm:$0xff]
        %v713 = vld [vmem:[%s708 + $0x40] sm:$0xff]
        %v714 = vld [vmem:[%s708 + $0x50] sm:$0xff]
        %v715 = vld [vmem:[%s708 + $0x60] sm:$0xff]
        %v716 = vld [vmem:[%s708 + $0x70] sm:$0xff]
        %v717 = vld [vmem:[%s708 + $0xa0] sm:$0xff]
        %v718 = vld [vmem:[%s708 + $0xb0] sm:$0xff]
        %v719 = vld [vmem:[%s708 + $0xc0] sm:$0xff]
        %v720 = vld [vmem:[%s708 + $0xd0] sm:$0xff]
        %v721 = vld [vmem:[%s708 + $0xe0] sm:$0xff]
        %v722 = vld [vmem:[%s708 + $0xf0] sm:$0xff]
        %v723 = vld [vmem:[%s708 + $0x100] sm:$0xff]
        %v724 = vld [vmem:[%s708 + $0x110] sm:$0xff]
        %v725 = vld [vmem:[%s708 + $0x140] sm:$0xff]
        %v726 = vld [vmem:[%s708 + $0x150] sm:$0xff]
        %v727 = vld [vmem:[%s708 + $0x160] sm:$0xff]
        %v728 = vld [vmem:[%s708 + $0x170] sm:$0xff]
        %v729 = vld [vmem:[%s708 + $0x180] sm:$0xff]
        %v730 = vld [vmem:[%s708 + $0x190] sm:$0xff]
        %v731 = vld [vmem:[%s708 + $0x1a0] sm:$0xff]
        %v732 = vld [vmem:[%s708 + $0x1b0] sm:$0xff]
        %v733 = vld [vmem:[%s708 + $0x1e0] sm:$0xff]
        %v734 = vld [vmem:[%s708 + $0x1f0] sm:$0xff]
        %v735 = vld [vmem:[%s708 + $0x200] sm:$0xff]
        %v736 = vld [vmem:[%s708 + $0x210] sm:$0xff]
        %v737 = vld [vmem:[%s708 + $0x220] sm:$0xff]
        %v738 = vld [vmem:[%s708 + $0x230] sm:$0xff]
        %v739 = vld [vmem:[%s708 + $0x240] sm:$0xff]
        %v740 = vld [vmem:[%s708 + $0x250] sm:$0xff]
        %v741 = vld [vmem:[%s708 + $0x280] sm:$0xff]
        %v742 = vld [vmem:[%s708 + $0x290] sm:$0xff]
        %v743 = vld [vmem:[%s708 + $0x2a0] sm:$0xff]
        %v744 = vld [vmem:[%s708 + $0x2b0] sm:$0xff]
        %v745 = vld [vmem:[%s708 + $0x2c0] sm:$0xff]
        %v746 = vld [vmem:[%s708 + $0x2d0] sm:$0xff]
        %v747 = vld [vmem:[%s708 + $0x2e0] sm:$0xff]
        %v748 = vld [vmem:[%s708 + $0x2f0] sm:$0xff]
        %v749 = vld [vmem:[%s708 + $0x320] sm:$0xff]
        %v750 = vld [vmem:[%s708 + $0x330] sm:$0xff]
        %v751 = vld [vmem:[%s708 + $0x340] sm:$0xff]
        %v752 = vld [vmem:[%s708 + $0x350] sm:$0xff]
        %v753 = vld [vmem:[%s708 + $0x360] sm:$0xff]
        %v754 = vld [vmem:[%s708 + $0x370] sm:$0xff]
        %v755 = vld [vmem:[%s708 + $0x380] sm:$0xff]
        %v756 = vld [vmem:[%s708 + $0x390] sm:$0xff]
        %v757 = vld [vmem:[%s708 + $0x3c0] sm:$0xff]
        %v758 = vld [vmem:[%s708 + $0x3d0] sm:$0xff]
        %v759 = vld [vmem:[%s708 + $0x3e0] sm:$0xff]
        %v760 = vld [vmem:[%s708 + $0x3f0] sm:$0xff]
        %v761 = vld [vmem:[%s708 + $0x400] sm:$0xff]
        %v762 = vld [vmem:[%s708 + $0x410] sm:$0xff]
        %v763 = vld [vmem:[%s708 + $0x420] sm:$0xff]
        %v764 = vld [vmem:[%s708 + $0x430] sm:$0xff]
        %v765 = vld [vmem:[%s708 + $0x460] sm:$0xff]
        %v766 = vld [vmem:[%s708 + $0x470] sm:$0xff]
        %v767 = vld [vmem:[%s708 + $0x480] sm:$0xff]
        %v768 = vld [vmem:[%s708 + $0x490] sm:$0xff]
        %v769 = vld [vmem:[%s708 + $0x4a0] sm:$0xff]
        %v770 = vld [vmem:[%s708 + $0x4b0] sm:$0xff]
        %v771 = vld [vmem:[%s708 + $0x4c0] sm:$0xff]
        %v772 = vld [vmem:[%s708 + $0x4d0] sm:$0xff]
        %v773 = vld [vmem:[%s708 + $0x1] sm:$0xff]
        %v774 = vld [vmem:[%s708 + $0x11] sm:$0xff]
        %v775 = vld [vmem:[%s708 + $0x21] sm:$0xff]
        %v776 = vld [vmem:[%s708 + $0x31] sm:$0xff]
        %v777 = vld [vmem:[%s708 + $0x41] sm:$0xff]
        %v778 = vld [vmem:[%s708 + $0x51] sm:$0xff]
        %v779 = vld [vmem:[%s708 + $0x61] sm:$0xff]
        %v780 = vld [vmem:[%s708 + $0x71] sm:$0xff]
        %v781 = vld [vmem:[%s708 + $0xa1] sm:$0xff]
        %v782 = vld [vmem:[%s708 + $0xb1] sm:$0xff]
        %v783 = vld [vmem:[%s708 + $0xc1] sm:$0xff]
        %v784 = vld [vmem:[%s708 + $0xd1] sm:$0xff]
        %v785 = vld [vmem:[%s708 + $0xe1] sm:$0xff]
        %v786 = vld [vmem:[%s708 + $0xf1] sm:$0xff]
        %v787 = vld [vmem:[%s708 + $0x101] sm:$0xff]
        %v788 = vld [vmem:[%s708 + $0x111] sm:$0xff]
        %v789 = vld [vmem:[%s708 + $0x141] sm:$0xff]
        %v790 = vld [vmem:[%s708 + $0x151] sm:$0xff]
        %v791 = vld [vmem:[%s708 + $0x161] sm:$0xff]
        %v792 = vld [vmem:[%s708 + $0x171] sm:$0xff]
        %v793 = vld [vmem:[%s708 + $0x181] sm:$0xff]
        %v794 = vld [vmem:[%s708 + $0x191] sm:$0xff]
        %v795 = vld [vmem:[%s708 + $0x1a1] sm:$0xff]
        %v796 = vld [vmem:[%s708 + $0x1b1] sm:$0xff]
        %v797 = vld [vmem:[%s708 + $0x1e1] sm:$0xff]
        %v798 = vld [vmem:[%s708 + $0x1f1] sm:$0xff]
        %v799 = vld [vmem:[%s708 + $0x201] sm:$0xff]
        %v800 = vld [vmem:[%s708 + $0x211] sm:$0xff]
        %v801 = vld [vmem:[%s708 + $0x221] sm:$0xff]
        %v802 = vld [vmem:[%s708 + $0x231] sm:$0xff]
        %v803 = vld [vmem:[%s708 + $0x241] sm:$0xff]
        %v804 = vld [vmem:[%s708 + $0x251] sm:$0xff]
        %v805 = vld [vmem:[%s708 + $0x281] sm:$0xff]
        %v806 = vld [vmem:[%s708 + $0x291] sm:$0xff]
        %v807 = vld [vmem:[%s708 + $0x2a1] sm:$0xff]
        %v808 = vld [vmem:[%s708 + $0x2b1] sm:$0xff]
        %v809 = vld [vmem:[%s708 + $0x2c1] sm:$0xff]
        %v810 = vld [vmem:[%s708 + $0x2d1] sm:$0xff]
        %v811 = vld [vmem:[%s708 + $0x2e1] sm:$0xff]
        %v812 = vld [vmem:[%s708 + $0x2f1] sm:$0xff]
        %v813 = vld [vmem:[%s708 + $0x321] sm:$0xff]
        %v814 = vld [vmem:[%s708 + $0x331] sm:$0xff]
        %v815 = vld [vmem:[%s708 + $0x341] sm:$0xff]
        %v816 = vld [vmem:[%s708 + $0x351] sm:$0xff]
        %v817 = vld [vmem:[%s708 + $0x361] sm:$0xff]
        %v818 = vld [vmem:[%s708 + $0x371] sm:$0xff]
        %v819 = vld [vmem:[%s708 + $0x381] sm:$0xff]
        %v820 = vld [vmem:[%s708 + $0x391] sm:$0xff]
        %v821 = vld [vmem:[%s708 + $0x3c1] sm:$0xff]
        %v822 = vld [vmem:[%s708 + $0x3d1] sm:$0xff]
        %v823 = vld [vmem:[%s708 + $0x3e1] sm:$0xff]
        %v824 = vld [vmem:[%s708 + $0x3f1] sm:$0xff]
        %v825 = vld [vmem:[%s708 + $0x401] sm:$0xff]
        %v826 = vld [vmem:[%s708 + $0x411] sm:$0xff]
        %v827 = vld [vmem:[%s708 + $0x421] sm:$0xff]
        %v828 = vld [vmem:[%s708 + $0x431] sm:$0xff]
        %v829 = vld [vmem:[%s708 + $0x461] sm:$0xff]
        %v830 = vld [vmem:[%s708 + $0x471] sm:$0xff]
        %v831 = vld [vmem:[%s708 + $0x481] sm:$0xff]
        %v832 = vld [vmem:[%s708 + $0x491] sm:$0xff]
        %v833 = vld [vmem:[%s708 + $0x4a1] sm:$0xff]
        %v834 = vld [vmem:[%s708 + $0x4b1] sm:$0xff]
        %v835 = vld [vmem:[%s708 + $0x4c1] sm:$0xff]
        %v836 = vld [vmem:[%s708 + $0x4d1] sm:$0xff]
        %v837 = vld [vmem:[%s708 + $0x2] sm:$0xff]
        %v838 = vld [vmem:[%s708 + $0x12] sm:$0xff]
        %v839 = vld [vmem:[%s708 + $0x22] sm:$0xff]
        %v840 = vld [vmem:[%s708 + $0x32] sm:$0xff]
        %v841 = vld [vmem:[%s708 + $0x42] sm:$0xff]
        %v842 = vld [vmem:[%s708 + $0x52] sm:$0xff]
        %v843 = vld [vmem:[%s708 + $0x62] sm:$0xff]
        %v844 = vld [vmem:[%s708 + $0x72] sm:$0xff]
        %v845 = vld [vmem:[%s708 + $0xa2] sm:$0xff]
        %v846 = vld [vmem:[%s708 + $0xb2] sm:$0xff]
        %v847 = vld [vmem:[%s708 + $0xc2] sm:$0xff]
        %v848 = vld [vmem:[%s708 + $0xd2] sm:$0xff]
        %v849 = vld [vmem:[%s708 + $0xe2] sm:$0xff]
        %v850 = vld [vmem:[%s708 + $0xf2] sm:$0xff]
        %v851 = vld [vmem:[%s708 + $0x102] sm:$0xff]
        %v852 = vld [vmem:[%s708 + $0x112] sm:$0xff]
        %v853 = vld [vmem:[%s708 + $0x142] sm:$0xff]
        %v854 = vld [vmem:[%s708 + $0x152] sm:$0xff]
        %v855 = vld [vmem:[%s708 + $0x162] sm:$0xff]
        %v856 = vld [vmem:[%s708 + $0x172] sm:$0xff]
        %v857 = vld [vmem:[%s708 + $0x182] sm:$0xff]
        %v858 = vld [vmem:[%s708 + $0x192] sm:$0xff]
        %v859 = vld [vmem:[%s708 + $0x1a2] sm:$0xff]
        %v860 = vld [vmem:[%s708 + $0x1b2] sm:$0xff]
        %v861 = vld [vmem:[%s708 + $0x1e2] sm:$0xff]
        %v862 = vld [vmem:[%s708 + $0x1f2] sm:$0xff]
        %v863 = vld [vmem:[%s708 + $0x202] sm:$0xff]
        %v864 = vld [vmem:[%s708 + $0x212] sm:$0xff]
        %v865 = vld [vmem:[%s708 + $0x222] sm:$0xff]
        %v866 = vld [vmem:[%s708 + $0x232] sm:$0xff]
        %v867 = vld [vmem:[%s708 + $0x242] sm:$0xff]
        %v868 = vld [vmem:[%s708 + $0x252] sm:$0xff]
        %v869 = vld [vmem:[%s708 + $0x282] sm:$0xff]
        %v870 = vld [vmem:[%s708 + $0x292] sm:$0xff]
        %v871 = vld [vmem:[%s708 + $0x2a2] sm:$0xff]
        %v872 = vld [vmem:[%s708 + $0x2b2] sm:$0xff]
        %v873 = vld [vmem:[%s708 + $0x2c2] sm:$0xff]
        %v874 = vld [vmem:[%s708 + $0x2d2] sm:$0xff]
        %v875 = vld [vmem:[%s708 + $0x2e2] sm:$0xff]
        %v876 = vld [vmem:[%s708 + $0x2f2] sm:$0xff]
        %v877 = vld [vmem:[%s708 + $0x322] sm:$0xff]
        %v878 = vld [vmem:[%s708 + $0x332] sm:$0xff]
        %v879 = vld [vmem:[%s708 + $0x342] sm:$0xff]
        %v880 = vld [vmem:[%s708 + $0x352] sm:$0xff]
        %v881 = vld [vmem:[%s708 + $0x362] sm:$0xff]
        %v882 = vld [vmem:[%s708 + $0x372] sm:$0xff]
        %v883 = vld [vmem:[%s708 + $0x382] sm:$0xff]
        %v884 = vld [vmem:[%s708 + $0x392] sm:$0xff]
        %v885 = vld [vmem:[%s708 + $0x3c2] sm:$0xff]
        %v886 = vld [vmem:[%s708 + $0x3d2] sm:$0xff]
        %v887 = vld [vmem:[%s708 + $0x3e2] sm:$0xff]
        %v888 = vld [vmem:[%s708 + $0x3f2] sm:$0xff]
        %v889 = vld [vmem:[%s708 + $0x402] sm:$0xff]
        %v890 = vld [vmem:[%s708 + $0x412] sm:$0xff]
        %v891 = vld [vmem:[%s708 + $0x422] sm:$0xff]
        %v892 = vld [vmem:[%s708 + $0x432] sm:$0xff]
        %v893 = vld [vmem:[%s708 + $0x462] sm:$0xff]
        %v894 = vld [vmem:[%s708 + $0x472] sm:$0xff]
        %v895 = vld [vmem:[%s708 + $0x482] sm:$0xff]
        %v896 = vld [vmem:[%s708 + $0x492] sm:$0xff]
        %v897 = vld [vmem:[%s708 + $0x4a2] sm:$0xff]
        %v898 = vld [vmem:[%s708 + $0x4b2] sm:$0xff]
        %v899 = vld [vmem:[%s708 + $0x4c2] sm:$0xff]
        %v900 = vld [vmem:[%s708 + $0x4d2] sm:$0xff]
        %s901 = scalar_lea.vmem %s279, 160 [#allocation4]
        %v902 = vld [vmem:[%s901] sm:$0xff]
        %v903 = vld [vmem:[%s901 + $0x10] sm:$0xff]
        %v904 = vld [vmem:[%s901 + $0x20] sm:$0xff]
        %v905 = vld [vmem:[%s901 + $0x30] sm:$0xff]
        %v906 = vld [vmem:[%s901 + $0x40] sm:$0xff]
        %v907 = vld [vmem:[%s901 + $0x50] sm:$0xff]
        %v908 = vld [vmem:[%s901 + $0x60] sm:$0xff]
        %v909 = vld [vmem:[%s901 + $0x70] sm:$0xff]
        %v910 = vld [vmem:[%s901 + $0xa0] sm:$0xff]
        %v911 = vld [vmem:[%s901 + $0xb0] sm:$0xff]
        %v912 = vld [vmem:[%s901 + $0xc0] sm:$0xff]
        %v913 = vld [vmem:[%s901 + $0xd0] sm:$0xff]
        %v914 = vld [vmem:[%s901 + $0xe0] sm:$0xff]
        %v915 = vld [vmem:[%s901 + $0xf0] sm:$0xff]
        %v916 = vld [vmem:[%s901 + $0x100] sm:$0xff]
        %v917 = vld [vmem:[%s901 + $0x110] sm:$0xff]
        %v918 = vld [vmem:[%s901 + $0x140] sm:$0xff]
        %v919 = vld [vmem:[%s901 + $0x150] sm:$0xff]
        %v920 = vld [vmem:[%s901 + $0x160] sm:$0xff]
        %v921 = vld [vmem:[%s901 + $0x170] sm:$0xff]
        %v922 = vld [vmem:[%s901 + $0x180] sm:$0xff]
        %v923 = vld [vmem:[%s901 + $0x190] sm:$0xff]
        %v924 = vld [vmem:[%s901 + $0x1a0] sm:$0xff]
        %v925 = vld [vmem:[%s901 + $0x1b0] sm:$0xff]
        %v926 = vld [vmem:[%s901 + $0x1e0] sm:$0xff]
        %v927 = vld [vmem:[%s901 + $0x1f0] sm:$0xff]
        %v928 = vld [vmem:[%s901 + $0x200] sm:$0xff]
        %v929 = vld [vmem:[%s901 + $0x210] sm:$0xff]
        %v930 = vld [vmem:[%s901 + $0x220] sm:$0xff]
        %v931 = vld [vmem:[%s901 + $0x230] sm:$0xff]
        %v932 = vld [vmem:[%s901 + $0x240] sm:$0xff]
        %v933 = vld [vmem:[%s901 + $0x250] sm:$0xff]
        %v934 = vld [vmem:[%s901 + $0x280] sm:$0xff]
        %v935 = vld [vmem:[%s901 + $0x290] sm:$0xff]
        %v936 = vld [vmem:[%s901 + $0x2a0] sm:$0xff]
        %v937 = vld [vmem:[%s901 + $0x2b0] sm:$0xff]
        %v938 = vld [vmem:[%s901 + $0x2c0] sm:$0xff]
        %v939 = vld [vmem:[%s901 + $0x2d0] sm:$0xff]
        %v940 = vld [vmem:[%s901 + $0x2e0] sm:$0xff]
        %v941 = vld [vmem:[%s901 + $0x2f0] sm:$0xff]
        %v942 = vld [vmem:[%s901 + $0x320] sm:$0xff]
        %v943 = vld [vmem:[%s901 + $0x330] sm:$0xff]
        %v944 = vld [vmem:[%s901 + $0x340] sm:$0xff]
        %v945 = vld [vmem:[%s901 + $0x350] sm:$0xff]
        %v946 = vld [vmem:[%s901 + $0x360] sm:$0xff]
        %v947 = vld [vmem:[%s901 + $0x370] sm:$0xff]
        %v948 = vld [vmem:[%s901 + $0x380] sm:$0xff]
        %v949 = vld [vmem:[%s901 + $0x390] sm:$0xff]
        %v950 = vld [vmem:[%s901 + $0x3c0] sm:$0xff]
        %v951 = vld [vmem:[%s901 + $0x3d0] sm:$0xff]
        %v952 = vld [vmem:[%s901 + $0x3e0] sm:$0xff]
        %v953 = vld [vmem:[%s901 + $0x3f0] sm:$0xff]
        %v954 = vld [vmem:[%s901 + $0x400] sm:$0xff]
        %v955 = vld [vmem:[%s901 + $0x410] sm:$0xff]
        %v956 = vld [vmem:[%s901 + $0x420] sm:$0xff]
        %v957 = vld [vmem:[%s901 + $0x430] sm:$0xff]
        %v958 = vld [vmem:[%s901 + $0x460] sm:$0xff]
        %v959 = vld [vmem:[%s901 + $0x470] sm:$0xff]
        %v960 = vld [vmem:[%s901 + $0x480] sm:$0xff]
        %v961 = vld [vmem:[%s901 + $0x490] sm:$0xff]
        %v962 = vld [vmem:[%s901 + $0x4a0] sm:$0xff]
        %v963 = vld [vmem:[%s901 + $0x4b0] sm:$0xff]
        %v964 = vld [vmem:[%s901 + $0x4c0] sm:$0xff]
        %v965 = vld [vmem:[%s901 + $0x4d0] sm:$0xff]
        %v966 = vld [vmem:[%s901 + $0x1] sm:$0xff]
        %v967 = vld [vmem:[%s901 + $0x11] sm:$0xff]
        %v968 = vld [vmem:[%s901 + $0x21] sm:$0xff]
        %v969 = vld [vmem:[%s901 + $0x31] sm:$0xff]
        %v970 = vld [vmem:[%s901 + $0x41] sm:$0xff]
        %v971 = vld [vmem:[%s901 + $0x51] sm:$0xff]
        %v972 = vld [vmem:[%s901 + $0x61] sm:$0xff]
        %v973 = vld [vmem:[%s901 + $0x71] sm:$0xff]
        %v974 = vld [vmem:[%s901 + $0xa1] sm:$0xff]
        %v975 = vld [vmem:[%s901 + $0xb1] sm:$0xff]
        %v976 = vld [vmem:[%s901 + $0xc1] sm:$0xff]
        %v977 = vld [vmem:[%s901 + $0xd1] sm:$0xff]
        %v978 = vld [vmem:[%s901 + $0xe1] sm:$0xff]
        %v979 = vld [vmem:[%s901 + $0xf1] sm:$0xff]
        %v980 = vld [vmem:[%s901 + $0x101] sm:$0xff]
        %v981 = vld [vmem:[%s901 + $0x111] sm:$0xff]
        %v982 = vld [vmem:[%s901 + $0x141] sm:$0xff]
        %v983 = vld [vmem:[%s901 + $0x151] sm:$0xff]
        %v984 = vld [vmem:[%s901 + $0x161] sm:$0xff]
        %v985 = vld [vmem:[%s901 + $0x171] sm:$0xff]
        %v986 = vld [vmem:[%s901 + $0x181] sm:$0xff]
        %v987 = vld [vmem:[%s901 + $0x191] sm:$0xff]
        %v988 = vld [vmem:[%s901 + $0x1a1] sm:$0xff]
        %v989 = vld [vmem:[%s901 + $0x1b1] sm:$0xff]
        %v990 = vld [vmem:[%s901 + $0x1e1] sm:$0xff]
        %v991 = vld [vmem:[%s901 + $0x1f1] sm:$0xff]
        %v992 = vld [vmem:[%s901 + $0x201] sm:$0xff]
        %v993 = vld [vmem:[%s901 + $0x211] sm:$0xff]
        %v994 = vld [vmem:[%s901 + $0x221] sm:$0xff]
        %v995 = vld [vmem:[%s901 + $0x231] sm:$0xff]
        %v996 = vld [vmem:[%s901 + $0x241] sm:$0xff]
        %v997 = vld [vmem:[%s901 + $0x251] sm:$0xff]
        %v998 = vld [vmem:[%s901 + $0x281] sm:$0xff]
        %v999 = vld [vmem:[%s901 + $0x291] sm:$0xff]
        %v1000 = vld [vmem:[%s901 + $0x2a1] sm:$0xff]
        %v1001 = vld [vmem:[%s901 + $0x2b1] sm:$0xff]
        %v1002 = vld [vmem:[%s901 + $0x2c1] sm:$0xff]
        %v1003 = vld [vmem:[%s901 + $0x2d1] sm:$0xff]
        %v1004 = vld [vmem:[%s901 + $0x2e1] sm:$0xff]
        %v1005 = vld [vmem:[%s901 + $0x2f1] sm:$0xff]
        %v1006 = vld [vmem:[%s901 + $0x321] sm:$0xff]
        %v1007 = vld [vmem:[%s901 + $0x331] sm:$0xff]
        %v1008 = vld [vmem:[%s901 + $0x341] sm:$0xff]
        %v1009 = vld [vmem:[%s901 + $0x351] sm:$0xff]
        %v1010 = vld [vmem:[%s901 + $0x361] sm:$0xff]
        %v1011 = vld [vmem:[%s901 + $0x371] sm:$0xff]
        %v1012 = vld [vmem:[%s901 + $0x381] sm:$0xff]
        %v1013 = vld [vmem:[%s901 + $0x391] sm:$0xff]
        %v1014 = vld [vmem:[%s901 + $0x3c1] sm:$0xff]
        %v1015 = vld [vmem:[%s901 + $0x3d1] sm:$0xff]
        %v1016 = vld [vmem:[%s901 + $0x3e1] sm:$0xff]
        %v1017 = vld [vmem:[%s901 + $0x3f1] sm:$0xff]
        %v1018 = vld [vmem:[%s901 + $0x401] sm:$0xff]
        %v1019 = vld [vmem:[%s901 + $0x411] sm:$0xff]
        %v1020 = vld [vmem:[%s901 + $0x421] sm:$0xff]
        %v1021 = vld [vmem:[%s901 + $0x431] sm:$0xff]
        %v1022 = vld [vmem:[%s901 + $0x461] sm:$0xff]
        %v1023 = vld [vmem:[%s901 + $0x471] sm:$0xff]
        %v1024 = vld [vmem:[%s901 + $0x481] sm:$0xff]
        %v1025 = vld [vmem:[%s901 + $0x491] sm:$0xff]
        %v1026 = vld [vmem:[%s901 + $0x4a1] sm:$0xff]
        %v1027 = vld [vmem:[%s901 + $0x4b1] sm:$0xff]
        %v1028 = vld [vmem:[%s901 + $0x4c1] sm:$0xff]
        %v1029 = vld [vmem:[%s901 + $0x4d1] sm:$0xff]
        %v1030 = vld [vmem:[%s901 + $0x2] sm:$0xff]
        %v1031 = vld [vmem:[%s901 + $0x12] sm:$0xff]
        %v1032 = vld [vmem:[%s901 + $0x22] sm:$0xff]
        %v1033 = vld [vmem:[%s901 + $0x32] sm:$0xff]
        %v1034 = vld [vmem:[%s901 + $0x42] sm:$0xff]
        %v1035 = vld [vmem:[%s901 + $0x52] sm:$0xff]
        %v1036 = vld [vmem:[%s901 + $0x62] sm:$0xff]
        %v1037 = vld [vmem:[%s901 + $0x72] sm:$0xff]
        %v1038 = vld [vmem:[%s901 + $0xa2] sm:$0xff]
        %v1039 = vld [vmem:[%s901 + $0xb2] sm:$0xff]
        %v1040 = vld [vmem:[%s901 + $0xc2] sm:$0xff]
        %v1041 = vld [vmem:[%s901 + $0xd2] sm:$0xff]
        %v1042 = vld [vmem:[%s901 + $0xe2] sm:$0xff]
        %v1043 = vld [vmem:[%s901 + $0xf2] sm:$0xff]
        %v1044 = vld [vmem:[%s901 + $0x102] sm:$0xff]
        %v1045 = vld [vmem:[%s901 + $0x112] sm:$0xff]
        %v1046 = vld [vmem:[%s901 + $0x142] sm:$0xff]
        %v1047 = vld [vmem:[%s901 + $0x152] sm:$0xff]
        %v1048 = vld [vmem:[%s901 + $0x162] sm:$0xff]
        %v1049 = vld [vmem:[%s901 + $0x172] sm:$0xff]
        %v1050 = vld [vmem:[%s901 + $0x182] sm:$0xff]
        %v1051 = vld [vmem:[%s901 + $0x192] sm:$0xff]
        %v1052 = vld [vmem:[%s901 + $0x1a2] sm:$0xff]
        %v1053 = vld [vmem:[%s901 + $0x1b2] sm:$0xff]
        %v1054 = vld [vmem:[%s901 + $0x1e2] sm:$0xff]
        %v1055 = vld [vmem:[%s901 + $0x1f2] sm:$0xff]
        %v1056 = vld [vmem:[%s901 + $0x202] sm:$0xff]
        %v1057 = vld [vmem:[%s901 + $0x212] sm:$0xff]
        %v1058 = vld [vmem:[%s901 + $0x222] sm:$0xff]
        %v1059 = vld [vmem:[%s901 + $0x232] sm:$0xff]
        %v1060 = vld [vmem:[%s901 + $0x242] sm:$0xff]
        %v1061 = vld [vmem:[%s901 + $0x252] sm:$0xff]
        %v1062 = vld [vmem:[%s901 + $0x282] sm:$0xff]
        %v1063 = vld [vmem:[%s901 + $0x292] sm:$0xff]
        %v1064 = vld [vmem:[%s901 + $0x2a2] sm:$0xff]
        %v1065 = vld [vmem:[%s901 + $0x2b2] sm:$0xff]
        %v1066 = vld [vmem:[%s901 + $0x2c2] sm:$0xff]
        %v1067 = vld [vmem:[%s901 + $0x2d2] sm:$0xff]
        %v1068 = vld [vmem:[%s901 + $0x2e2] sm:$0xff]
        %v1069 = vld [vmem:[%s901 + $0x2f2] sm:$0xff]
        %v1070 = vld [vmem:[%s901 + $0x322] sm:$0xff]
        %v1071 = vld [vmem:[%s901 + $0x332] sm:$0xff]
        %v1072 = vld [vmem:[%s901 + $0x342] sm:$0xff]
        %v1073 = vld [vmem:[%s901 + $0x352] sm:$0xff]
        %v1074 = vld [vmem:[%s901 + $0x362] sm:$0xff]
        %v1075 = vld [vmem:[%s901 + $0x372] sm:$0xff]
        %v1076 = vld [vmem:[%s901 + $0x382] sm:$0xff]
        %v1077 = vld [vmem:[%s901 + $0x392] sm:$0xff]
        %v1078 = vld [vmem:[%s901 + $0x3c2] sm:$0xff]
        %v1079 = vld [vmem:[%s901 + $0x3d2] sm:$0xff]
        %v1080 = vld [vmem:[%s901 + $0x3e2] sm:$0xff]
        %v1081 = vld [vmem:[%s901 + $0x3f2] sm:$0xff]
        %v1082 = vld [vmem:[%s901 + $0x402] sm:$0xff]
        %v1083 = vld [vmem:[%s901 + $0x412] sm:$0xff]
        %v1084 = vld [vmem:[%s901 + $0x422] sm:$0xff]
        %v1085 = vld [vmem:[%s901 + $0x432] sm:$0xff]
        %v1086 = vld [vmem:[%s901 + $0x462] sm:$0xff]
        %v1087 = vld [vmem:[%s901 + $0x472] sm:$0xff]
        %v1088 = vld [vmem:[%s901 + $0x482] sm:$0xff]
        %v1089 = vld [vmem:[%s901 + $0x492] sm:$0xff]
        %v1090 = vld [vmem:[%s901 + $0x4a2] sm:$0xff]
        %v1091 = vld [vmem:[%s901 + $0x4b2] sm:$0xff]
        %v1092 = vld [vmem:[%s901 + $0x4c2] sm:$0xff]
        %v1093 = vld [vmem:[%s901 + $0x4d2] sm:$0xff]
        %s1094 = scalar_lea.vmem %s279, 176 [#allocation4]
        %v1095 = vld [vmem:[%s1094] sm:$0xff]
        %v1096 = vld [vmem:[%s1094 + $0x10] sm:$0xff]
        %v1097 = vld [vmem:[%s1094 + $0x20] sm:$0xff]
        %v1098 = vld [vmem:[%s1094 + $0x30] sm:$0xff]
        %v1099 = vld [vmem:[%s1094 + $0x40] sm:$0xff]
        %v1100 = vld [vmem:[%s1094 + $0x50] sm:$0xff]
        %v1101 = vld [vmem:[%s1094 + $0x60] sm:$0xff]
        %v1102 = vld [vmem:[%s1094 + $0x70] sm:$0xff]
        %v1103 = vld [vmem:[%s1094 + $0xa0] sm:$0xff]
        %v1104 = vld [vmem:[%s1094 + $0xb0] sm:$0xff]
        %v1105 = vld [vmem:[%s1094 + $0xc0] sm:$0xff]
        %v1106 = vld [vmem:[%s1094 + $0xd0] sm:$0xff]
        %v1107 = vld [vmem:[%s1094 + $0xe0] sm:$0xff]
        %v1108 = vld [vmem:[%s1094 + $0xf0] sm:$0xff]
        %v1109 = vld [vmem:[%s1094 + $0x100] sm:$0xff]
        %v1110 = vld [vmem:[%s1094 + $0x110] sm:$0xff]
        %v1111 = vld [vmem:[%s1094 + $0x140] sm:$0xff]
        %v1112 = vld [vmem:[%s1094 + $0x150] sm:$0xff]
        %v1113 = vld [vmem:[%s1094 + $0x160] sm:$0xff]
        %v1114 = vld [vmem:[%s1094 + $0x170] sm:$0xff]
        %v1115 = vld [vmem:[%s1094 + $0x180] sm:$0xff]
        %v1116 = vld [vmem:[%s1094 + $0x190] sm:$0xff]
        %v1117 = vld [vmem:[%s1094 + $0x1a0] sm:$0xff]
        %v1118 = vld [vmem:[%s1094 + $0x1b0] sm:$0xff]
        %v1119 = vld [vmem:[%s1094 + $0x1e0] sm:$0xff]
        %v1120 = vld [vmem:[%s1094 + $0x1f0] sm:$0xff]
        %v1121 = vld [vmem:[%s1094 + $0x200] sm:$0xff]
        %v1122 = vld [vmem:[%s1094 + $0x210] sm:$0xff]
        %v1123 = vld [vmem:[%s1094 + $0x220] sm:$0xff]
        %v1124 = vld [vmem:[%s1094 + $0x230] sm:$0xff]
        %v1125 = vld [vmem:[%s1094 + $0x240] sm:$0xff]
        %v1126 = vld [vmem:[%s1094 + $0x250] sm:$0xff]
        %v1127 = vld [vmem:[%s1094 + $0x280] sm:$0xff]
        %v1128 = vld [vmem:[%s1094 + $0x290] sm:$0xff]
        %v1129 = vld [vmem:[%s1094 + $0x2a0] sm:$0xff]
        %v1130 = vld [vmem:[%s1094 + $0x2b0] sm:$0xff]
        %v1131 = vld [vmem:[%s1094 + $0x2c0] sm:$0xff]
        %v1132 = vld [vmem:[%s1094 + $0x2d0] sm:$0xff]
        %v1133 = vld [vmem:[%s1094 + $0x2e0] sm:$0xff]
        %v1134 = vld [vmem:[%s1094 + $0x2f0] sm:$0xff]
        %v1135 = vld [vmem:[%s1094 + $0x320] sm:$0xff]
        %v1136 = vld [vmem:[%s1094 + $0x330] sm:$0xff]
        %v1137 = vld [vmem:[%s1094 + $0x340] sm:$0xff]
        %v1138 = vld [vmem:[%s1094 + $0x350] sm:$0xff]
        %v1139 = vld [vmem:[%s1094 + $0x360] sm:$0xff]
        %v1140 = vld [vmem:[%s1094 + $0x370] sm:$0xff]
        %v1141 = vld [vmem:[%s1094 + $0x380] sm:$0xff]
        %v1142 = vld [vmem:[%s1094 + $0x390] sm:$0xff]
        %v1143 = vld [vmem:[%s1094 + $0x3c0] sm:$0xff]
        %v1144 = vld [vmem:[%s1094 + $0x3d0] sm:$0xff]
        %v1145 = vld [vmem:[%s1094 + $0x3e0] sm:$0xff]
        %v1146 = vld [vmem:[%s1094 + $0x3f0] sm:$0xff]
        %v1147 = vld [vmem:[%s1094 + $0x400] sm:$0xff]
        %v1148 = vld [vmem:[%s1094 + $0x410] sm:$0xff]
        %v1149 = vld [vmem:[%s1094 + $0x420] sm:$0xff]
        %v1150 = vld [vmem:[%s1094 + $0x430] sm:$0xff]
        %v1151 = vld [vmem:[%s1094 + $0x460] sm:$0xff]
        %v1152 = vld [vmem:[%s1094 + $0x470] sm:$0xff]
        %v1153 = vld [vmem:[%s1094 + $0x480] sm:$0xff]
        %v1154 = vld [vmem:[%s1094 + $0x490] sm:$0xff]
        %v1155 = vld [vmem:[%s1094 + $0x4a0] sm:$0xff]
        %v1156 = vld [vmem:[%s1094 + $0x4b0] sm:$0xff]
        %v1157 = vld [vmem:[%s1094 + $0x4c0] sm:$0xff]
        %v1158 = vld [vmem:[%s1094 + $0x4d0] sm:$0xff]
        %v1159 = vld [vmem:[%s1094 + $0x1] sm:$0xff]
        %v1160 = vld [vmem:[%s1094 + $0x11] sm:$0xff]
        %v1161 = vld [vmem:[%s1094 + $0x21] sm:$0xff]
        %v1162 = vld [vmem:[%s1094 + $0x31] sm:$0xff]
        %v1163 = vld [vmem:[%s1094 + $0x41] sm:$0xff]
        %v1164 = vld [vmem:[%s1094 + $0x51] sm:$0xff]
        %v1165 = vld [vmem:[%s1094 + $0x61] sm:$0xff]
        %v1166 = vld [vmem:[%s1094 + $0x71] sm:$0xff]
        %v1167 = vld [vmem:[%s1094 + $0xa1] sm:$0xff]
        %v1168 = vld [vmem:[%s1094 + $0xb1] sm:$0xff]
        %v1169 = vld [vmem:[%s1094 + $0xc1] sm:$0xff]
        %v1170 = vld [vmem:[%s1094 + $0xd1] sm:$0xff]
        %v1171 = vld [vmem:[%s1094 + $0xe1] sm:$0xff]
        %v1172 = vld [vmem:[%s1094 + $0xf1] sm:$0xff]
        %v1173 = vld [vmem:[%s1094 + $0x101] sm:$0xff]
        %v1174 = vld [vmem:[%s1094 + $0x111] sm:$0xff]
        %v1175 = vld [vmem:[%s1094 + $0x141] sm:$0xff]
        %v1176 = vld [vmem:[%s1094 + $0x151] sm:$0xff]
        %v1177 = vld [vmem:[%s1094 + $0x161] sm:$0xff]
        %v1178 = vld [vmem:[%s1094 + $0x171] sm:$0xff]
        %v1179 = vld [vmem:[%s1094 + $0x181] sm:$0xff]
        %v1180 = vld [vmem:[%s1094 + $0x191] sm:$0xff]
        %v1181 = vld [vmem:[%s1094 + $0x1a1] sm:$0xff]
        %v1182 = vld [vmem:[%s1094 + $0x1b1] sm:$0xff]
        %v1183 = vld [vmem:[%s1094 + $0x1e1] sm:$0xff]
        %v1184 = vld [vmem:[%s1094 + $0x1f1] sm:$0xff]
        %v1185 = vld [vmem:[%s1094 + $0x201] sm:$0xff]
        %v1186 = vld [vmem:[%s1094 + $0x211] sm:$0xff]
        %v1187 = vld [vmem:[%s1094 + $0x221] sm:$0xff]
        %v1188 = vld [vmem:[%s1094 + $0x231] sm:$0xff]
        %v1189 = vld [vmem:[%s1094 + $0x241] sm:$0xff]
        %v1190 = vld [vmem:[%s1094 + $0x251] sm:$0xff]
        %v1191 = vld [vmem:[%s1094 + $0x281] sm:$0xff]
        %v1192 = vld [vmem:[%s1094 + $0x291] sm:$0xff]
        %v1193 = vld [vmem:[%s1094 + $0x2a1] sm:$0xff]
        %v1194 = vld [vmem:[%s1094 + $0x2b1] sm:$0xff]
        %v1195 = vld [vmem:[%s1094 + $0x2c1] sm:$0xff]
        %v1196 = vld [vmem:[%s1094 + $0x2d1] sm:$0xff]
        %v1197 = vld [vmem:[%s1094 + $0x2e1] sm:$0xff]
        %v1198 = vld [vmem:[%s1094 + $0x2f1] sm:$0xff]
        %v1199 = vld [vmem:[%s1094 + $0x321] sm:$0xff]
        %v1200 = vld [vmem:[%s1094 + $0x331] sm:$0xff]
        %v1201 = vld [vmem:[%s1094 + $0x341] sm:$0xff]
        %v1202 = vld [vmem:[%s1094 + $0x351] sm:$0xff]
        %v1203 = vld [vmem:[%s1094 + $0x361] sm:$0xff]
        %v1204 = vld [vmem:[%s1094 + $0x371] sm:$0xff]
        %v1205 = vld [vmem:[%s1094 + $0x381] sm:$0xff]
        %v1206 = vld [vmem:[%s1094 + $0x391] sm:$0xff]
        %v1207 = vld [vmem:[%s1094 + $0x3c1] sm:$0xff]
        %v1208 = vld [vmem:[%s1094 + $0x3d1] sm:$0xff]
        %v1209 = vld [vmem:[%s1094 + $0x3e1] sm:$0xff]
        %v1210 = vld [vmem:[%s1094 + $0x3f1] sm:$0xff]
        %v1211 = vld [vmem:[%s1094 + $0x401] sm:$0xff]
        %v1212 = vld [vmem:[%s1094 + $0x411] sm:$0xff]
        %v1213 = vld [vmem:[%s1094 + $0x421] sm:$0xff]
        %v1214 = vld [vmem:[%s1094 + $0x431] sm:$0xff]
        %v1215 = vld [vmem:[%s1094 + $0x461] sm:$0xff]
        %v1216 = vld [vmem:[%s1094 + $0x471] sm:$0xff]
        %v1217 = vld [vmem:[%s1094 + $0x481] sm:$0xff]
        %v1218 = vld [vmem:[%s1094 + $0x491] sm:$0xff]
        %v1219 = vld [vmem:[%s1094 + $0x4a1] sm:$0xff]
        %v1220 = vld [vmem:[%s1094 + $0x4b1] sm:$0xff]
        %v1221 = vld [vmem:[%s1094 + $0x4c1] sm:$0xff]
        %v1222 = vld [vmem:[%s1094 + $0x4d1] sm:$0xff]
        %v1223 = vld [vmem:[%s1094 + $0x2] sm:$0xff]
        %v1224 = vld [vmem:[%s1094 + $0x12] sm:$0xff]
        %v1225 = vld [vmem:[%s1094 + $0x22] sm:$0xff]
        %v1226 = vld [vmem:[%s1094 + $0x32] sm:$0xff]
        %v1227 = vld [vmem:[%s1094 + $0x42] sm:$0xff]
        %v1228 = vld [vmem:[%s1094 + $0x52] sm:$0xff]
        %v1229 = vld [vmem:[%s1094 + $0x62] sm:$0xff]
        %v1230 = vld [vmem:[%s1094 + $0x72] sm:$0xff]
        %v1231 = vld [vmem:[%s1094 + $0xa2] sm:$0xff]
        %v1232 = vld [vmem:[%s1094 + $0xb2] sm:$0xff]
        %v1233 = vld [vmem:[%s1094 + $0xc2] sm:$0xff]
        %v1234 = vld [vmem:[%s1094 + $0xd2] sm:$0xff]
        %v1235 = vld [vmem:[%s1094 + $0xe2] sm:$0xff]
        %v1236 = vld [vmem:[%s1094 + $0xf2] sm:$0xff]
        %v1237 = vld [vmem:[%s1094 + $0x102] sm:$0xff]
        %v1238 = vld [vmem:[%s1094 + $0x112] sm:$0xff]
        %v1239 = vld [vmem:[%s1094 + $0x142] sm:$0xff]
        %v1240 = vld [vmem:[%s1094 + $0x152] sm:$0xff]
        %v1241 = vld [vmem:[%s1094 + $0x162] sm:$0xff]
        %v1242 = vld [vmem:[%s1094 + $0x172] sm:$0xff]
        %v1243 = vld [vmem:[%s1094 + $0x182] sm:$0xff]
        %v1244 = vld [vmem:[%s1094 + $0x192] sm:$0xff]
        %v1245 = vld [vmem:[%s1094 + $0x1a2] sm:$0xff]
        %v1246 = vld [vmem:[%s1094 + $0x1b2] sm:$0xff]
        %v1247 = vld [vmem:[%s1094 + $0x1e2] sm:$0xff]
        %v1248 = vld [vmem:[%s1094 + $0x1f2] sm:$0xff]
        %v1249 = vld [vmem:[%s1094 + $0x202] sm:$0xff]
        %v1250 = vld [vmem:[%s1094 + $0x212] sm:$0xff]
        %v1251 = vld [vmem:[%s1094 + $0x222] sm:$0xff]
        %v1252 = vld [vmem:[%s1094 + $0x232] sm:$0xff]
        %v1253 = vld [vmem:[%s1094 + $0x242] sm:$0xff]
        %v1254 = vld [vmem:[%s1094 + $0x252] sm:$0xff]
        %v1255 = vld [vmem:[%s1094 + $0x282] sm:$0xff]
        %v1256 = vld [vmem:[%s1094 + $0x292] sm:$0xff]
        %v1257 = vld [vmem:[%s1094 + $0x2a2] sm:$0xff]
        %v1258 = vld [vmem:[%s1094 + $0x2b2] sm:$0xff]
        %v1259 = vld [vmem:[%s1094 + $0x2c2] sm:$0xff]
        %v1260 = vld [vmem:[%s1094 + $0x2d2] sm:$0xff]
        %v1261 = vld [vmem:[%s1094 + $0x2e2] sm:$0xff]
        %v1262 = vld [vmem:[%s1094 + $0x2f2] sm:$0xff]
        %v1263 = vld [vmem:[%s1094 + $0x322] sm:$0xff]
        %v1264 = vld [vmem:[%s1094 + $0x332] sm:$0xff]
        %v1265 = vld [vmem:[%s1094 + $0x342] sm:$0xff]
        %v1266 = vld [vmem:[%s1094 + $0x352] sm:$0xff]
        %v1267 = vld [vmem:[%s1094 + $0x362] sm:$0xff]
        %v1268 = vld [vmem:[%s1094 + $0x372] sm:$0xff]
        %v1269 = vld [vmem:[%s1094 + $0x382] sm:$0xff]
        %v1270 = vld [vmem:[%s1094 + $0x392] sm:$0xff]
        %v1271 = vld [vmem:[%s1094 + $0x3c2] sm:$0xff]
        %v1272 = vld [vmem:[%s1094 + $0x3d2] sm:$0xff]
        %v1273 = vld [vmem:[%s1094 + $0x3e2] sm:$0xff]
        %v1274 = vld [vmem:[%s1094 + $0x3f2] sm:$0xff]
        %v1275 = vld [vmem:[%s1094 + $0x402] sm:$0xff]
        %v1276 = vld [vmem:[%s1094 + $0x412] sm:$0xff]
        %v1277 = vld [vmem:[%s1094 + $0x422] sm:$0xff]
        %v1278 = vld [vmem:[%s1094 + $0x432] sm:$0xff]
        %v1279 = vld [vmem:[%s1094 + $0x462] sm:$0xff]
        %v1280 = vld [vmem:[%s1094 + $0x472] sm:$0xff]
        %v1281 = vld [vmem:[%s1094 + $0x482] sm:$0xff]
        %v1282 = vld [vmem:[%s1094 + $0x492] sm:$0xff]
        %v1283 = vld [vmem:[%s1094 + $0x4a2] sm:$0xff]
        %v1284 = vld [vmem:[%s1094 + $0x4b2] sm:$0xff]
        %v1285 = vld [vmem:[%s1094 + $0x4c2] sm:$0xff]
        %v1286 = vld [vmem:[%s1094 + $0x4d2] sm:$0xff]
        %s1287 = scalar_lea.vmem %s279, 192 [#allocation4]
        %v1288 = vld [vmem:[%s1287] sm:$0xff]
        %v1289 = vld [vmem:[%s1287 + $0x10] sm:$0xff]
        %v1290 = vld [vmem:[%s1287 + $0x20] sm:$0xff]
        %v1291 = vld [vmem:[%s1287 + $0x30] sm:$0xff]
        %v1292 = vld [vmem:[%s1287 + $0x40] sm:$0xff]
        %v1293 = vld [vmem:[%s1287 + $0x50] sm:$0xff]
        %v1294 = vld [vmem:[%s1287 + $0x60] sm:$0xff]
        %v1295 = vld [vmem:[%s1287 + $0x70] sm:$0xff]
        %v1296 = vld [vmem:[%s1287 + $0xa0] sm:$0xff]
        %v1297 = vld [vmem:[%s1287 + $0xb0] sm:$0xff]
        %v1298 = vld [vmem:[%s1287 + $0xc0] sm:$0xff]
        %v1299 = vld [vmem:[%s1287 + $0xd0] sm:$0xff]
        %v1300 = vld [vmem:[%s1287 + $0xe0] sm:$0xff]
        %v1301 = vld [vmem:[%s1287 + $0xf0] sm:$0xff]
        %v1302 = vld [vmem:[%s1287 + $0x100] sm:$0xff]
        %v1303 = vld [vmem:[%s1287 + $0x110] sm:$0xff]
        %v1304 = vld [vmem:[%s1287 + $0x140] sm:$0xff]
        %v1305 = vld [vmem:[%s1287 + $0x150] sm:$0xff]
        %v1306 = vld [vmem:[%s1287 + $0x160] sm:$0xff]
        %v1307 = vld [vmem:[%s1287 + $0x170] sm:$0xff]
        %v1308 = vld [vmem:[%s1287 + $0x180] sm:$0xff]
        %v1309 = vld [vmem:[%s1287 + $0x190] sm:$0xff]
        %v1310 = vld [vmem:[%s1287 + $0x1a0] sm:$0xff]
        %v1311 = vld [vmem:[%s1287 + $0x1b0] sm:$0xff]
        %v1312 = vld [vmem:[%s1287 + $0x1e0] sm:$0xff]
        %v1313 = vld [vmem:[%s1287 + $0x1f0] sm:$0xff]
        %v1314 = vld [vmem:[%s1287 + $0x200] sm:$0xff]
        %v1315 = vld [vmem:[%s1287 + $0x210] sm:$0xff]
        %v1316 = vld [vmem:[%s1287 + $0x220] sm:$0xff]
        %v1317 = vld [vmem:[%s1287 + $0x230] sm:$0xff]
        %v1318 = vld [vmem:[%s1287 + $0x240] sm:$0xff]
        %v1319 = vld [vmem:[%s1287 + $0x250] sm:$0xff]
        %v1320 = vld [vmem:[%s1287 + $0x280] sm:$0xff]
        %v1321 = vld [vmem:[%s1287 + $0x290] sm:$0xff]
        %v1322 = vld [vmem:[%s1287 + $0x2a0] sm:$0xff]
        %v1323 = vld [vmem:[%s1287 + $0x2b0] sm:$0xff]
        %v1324 = vld [vmem:[%s1287 + $0x2c0] sm:$0xff]
        %v1325 = vld [vmem:[%s1287 + $0x2d0] sm:$0xff]
        %v1326 = vld [vmem:[%s1287 + $0x2e0] sm:$0xff]
        %v1327 = vld [vmem:[%s1287 + $0x2f0] sm:$0xff]
        %v1328 = vld [vmem:[%s1287 + $0x320] sm:$0xff]
        %v1329 = vld [vmem:[%s1287 + $0x330] sm:$0xff]
        %v1330 = vld [vmem:[%s1287 + $0x340] sm:$0xff]
        %v1331 = vld [vmem:[%s1287 + $0x350] sm:$0xff]
        %v1332 = vld [vmem:[%s1287 + $0x360] sm:$0xff]
        %v1333 = vld [vmem:[%s1287 + $0x370] sm:$0xff]
        %v1334 = vld [vmem:[%s1287 + $0x380] sm:$0xff]
        %v1335 = vld [vmem:[%s1287 + $0x390] sm:$0xff]
        %v1336 = vld [vmem:[%s1287 + $0x3c0] sm:$0xff]
        %v1337 = vld [vmem:[%s1287 + $0x3d0] sm:$0xff]
        %v1338 = vld [vmem:[%s1287 + $0x3e0] sm:$0xff]
        %v1339 = vld [vmem:[%s1287 + $0x3f0] sm:$0xff]
        %v1340 = vld [vmem:[%s1287 + $0x400] sm:$0xff]
        %v1341 = vld [vmem:[%s1287 + $0x410] sm:$0xff]
        %v1342 = vld [vmem:[%s1287 + $0x420] sm:$0xff]
        %v1343 = vld [vmem:[%s1287 + $0x430] sm:$0xff]
        %v1344 = vld [vmem:[%s1287 + $0x460] sm:$0xff]
        %v1345 = vld [vmem:[%s1287 + $0x470] sm:$0xff]
        %v1346 = vld [vmem:[%s1287 + $0x480] sm:$0xff]
        %v1347 = vld [vmem:[%s1287 + $0x490] sm:$0xff]
        %v1348 = vld [vmem:[%s1287 + $0x4a0] sm:$0xff]
        %v1349 = vld [vmem:[%s1287 + $0x4b0] sm:$0xff]
        %v1350 = vld [vmem:[%s1287 + $0x4c0] sm:$0xff]
        %v1351 = vld [vmem:[%s1287 + $0x4d0] sm:$0xff]
        %v1352 = vld [vmem:[%s1287 + $0x1] sm:$0xff]
        %v1353 = vld [vmem:[%s1287 + $0x11] sm:$0xff]
        %v1354 = vld [vmem:[%s1287 + $0x21] sm:$0xff]
        %v1355 = vld [vmem:[%s1287 + $0x31] sm:$0xff]
        %v1356 = vld [vmem:[%s1287 + $0x41] sm:$0xff]
        %v1357 = vld [vmem:[%s1287 + $0x51] sm:$0xff]
        %v1358 = vld [vmem:[%s1287 + $0x61] sm:$0xff]
        %v1359 = vld [vmem:[%s1287 + $0x71] sm:$0xff]
        %v1360 = vld [vmem:[%s1287 + $0xa1] sm:$0xff]
        %v1361 = vld [vmem:[%s1287 + $0xb1] sm:$0xff]
        %v1362 = vld [vmem:[%s1287 + $0xc1] sm:$0xff]
        %v1363 = vld [vmem:[%s1287 + $0xd1] sm:$0xff]
        %v1364 = vld [vmem:[%s1287 + $0xe1] sm:$0xff]
        %v1365 = vld [vmem:[%s1287 + $0xf1] sm:$0xff]
        %v1366 = vld [vmem:[%s1287 + $0x101] sm:$0xff]
        %v1367 = vld [vmem:[%s1287 + $0x111] sm:$0xff]
        %v1368 = vld [vmem:[%s1287 + $0x141] sm:$0xff]
        %v1369 = vld [vmem:[%s1287 + $0x151] sm:$0xff]
        %v1370 = vld [vmem:[%s1287 + $0x161] sm:$0xff]
        %v1371 = vld [vmem:[%s1287 + $0x171] sm:$0xff]
        %v1372 = vld [vmem:[%s1287 + $0x181] sm:$0xff]
        %v1373 = vld [vmem:[%s1287 + $0x191] sm:$0xff]
        %v1374 = vld [vmem:[%s1287 + $0x1a1] sm:$0xff]
        %v1375 = vld [vmem:[%s1287 + $0x1b1] sm:$0xff]
        %v1376 = vld [vmem:[%s1287 + $0x1e1] sm:$0xff]
        %v1377 = vld [vmem:[%s1287 + $0x1f1] sm:$0xff]
        %v1378 = vld [vmem:[%s1287 + $0x201] sm:$0xff]
        %v1379 = vld [vmem:[%s1287 + $0x211] sm:$0xff]
        %v1380 = vld [vmem:[%s1287 + $0x221] sm:$0xff]
        %v1381 = vld [vmem:[%s1287 + $0x231] sm:$0xff]
        %v1382 = vld [vmem:[%s1287 + $0x241] sm:$0xff]
        %v1383 = vld [vmem:[%s1287 + $0x251] sm:$0xff]
        %v1384 = vld [vmem:[%s1287 + $0x281] sm:$0xff]
        %v1385 = vld [vmem:[%s1287 + $0x291] sm:$0xff]
        %v1386 = vld [vmem:[%s1287 + $0x2a1] sm:$0xff]
        %v1387 = vld [vmem:[%s1287 + $0x2b1] sm:$0xff]
        %v1388 = vld [vmem:[%s1287 + $0x2c1] sm:$0xff]
        %v1389 = vld [vmem:[%s1287 + $0x2d1] sm:$0xff]
        %v1390 = vld [vmem:[%s1287 + $0x2e1] sm:$0xff]
        %v1391 = vld [vmem:[%s1287 + $0x2f1] sm:$0xff]
        %v1392 = vld [vmem:[%s1287 + $0x321] sm:$0xff]
        %v1393 = vld [vmem:[%s1287 + $0x331] sm:$0xff]
        %v1394 = vld [vmem:[%s1287 + $0x341] sm:$0xff]
        %v1395 = vld [vmem:[%s1287 + $0x351] sm:$0xff]
        %v1396 = vld [vmem:[%s1287 + $0x361] sm:$0xff]
        %v1397 = vld [vmem:[%s1287 + $0x371] sm:$0xff]
        %v1398 = vld [vmem:[%s1287 + $0x381] sm:$0xff]
        %v1399 = vld [vmem:[%s1287 + $0x391] sm:$0xff]
        %v1400 = vld [vmem:[%s1287 + $0x3c1] sm:$0xff]
        %v1401 = vld [vmem:[%s1287 + $0x3d1] sm:$0xff]
        %v1402 = vld [vmem:[%s1287 + $0x3e1] sm:$0xff]
        %v1403 = vld [vmem:[%s1287 + $0x3f1] sm:$0xff]
        %v1404 = vld [vmem:[%s1287 + $0x401] sm:$0xff]
        %v1405 = vld [vmem:[%s1287 + $0x411] sm:$0xff]
        %v1406 = vld [vmem:[%s1287 + $0x421] sm:$0xff]
        %v1407 = vld [vmem:[%s1287 + $0x431] sm:$0xff]
        %v1408 = vld [vmem:[%s1287 + $0x461] sm:$0xff]
        %v1409 = vld [vmem:[%s1287 + $0x471] sm:$0xff]
        %v1410 = vld [vmem:[%s1287 + $0x481] sm:$0xff]
        %v1411 = vld [vmem:[%s1287 + $0x491] sm:$0xff]
        %v1412 = vld [vmem:[%s1287 + $0x4a1] sm:$0xff]
        %v1413 = vld [vmem:[%s1287 + $0x4b1] sm:$0xff]
        %v1414 = vld [vmem:[%s1287 + $0x4c1] sm:$0xff]
        %v1415 = vld [vmem:[%s1287 + $0x4d1] sm:$0xff]
        %v1416 = vld [vmem:[%s1287 + $0x2] sm:$0xff]
        %v1417 = vld [vmem:[%s1287 + $0x12] sm:$0xff]
        %v1418 = vld [vmem:[%s1287 + $0x22] sm:$0xff]
        %v1419 = vld [vmem:[%s1287 + $0x32] sm:$0xff]
        %v1420 = vld [vmem:[%s1287 + $0x42] sm:$0xff]
        %v1421 = vld [vmem:[%s1287 + $0x52] sm:$0xff]
        %v1422 = vld [vmem:[%s1287 + $0x62] sm:$0xff]
        %v1423 = vld [vmem:[%s1287 + $0x72] sm:$0xff]
        %v1424 = vld [vmem:[%s1287 + $0xa2] sm:$0xff]
        %v1425 = vld [vmem:[%s1287 + $0xb2] sm:$0xff]
        %v1426 = vld [vmem:[%s1287 + $0xc2] sm:$0xff]
        %v1427 = vld [vmem:[%s1287 + $0xd2] sm:$0xff]
        %v1428 = vld [vmem:[%s1287 + $0xe2] sm:$0xff]
        %v1429 = vld [vmem:[%s1287 + $0xf2] sm:$0xff]
        %v1430 = vld [vmem:[%s1287 + $0x102] sm:$0xff]
        %v1431 = vld [vmem:[%s1287 + $0x112] sm:$0xff]
        %v1432 = vld [vmem:[%s1287 + $0x142] sm:$0xff]
        %v1433 = vld [vmem:[%s1287 + $0x152] sm:$0xff]
        %v1434 = vld [vmem:[%s1287 + $0x162] sm:$0xff]
        %v1435 = vld [vmem:[%s1287 + $0x172] sm:$0xff]
        %v1436 = vld [vmem:[%s1287 + $0x182] sm:$0xff]
        %v1437 = vld [vmem:[%s1287 + $0x192] sm:$0xff]
        %v1438 = vld [vmem:[%s1287 + $0x1a2] sm:$0xff]
        %v1439 = vld [vmem:[%s1287 + $0x1b2] sm:$0xff]
        %v1440 = vld [vmem:[%s1287 + $0x1e2] sm:$0xff]
        %v1441 = vld [vmem:[%s1287 + $0x1f2] sm:$0xff]
        %v1442 = vld [vmem:[%s1287 + $0x202] sm:$0xff]
        %v1443 = vld [vmem:[%s1287 + $0x212] sm:$0xff]
        %v1444 = vld [vmem:[%s1287 + $0x222] sm:$0xff]
        %v1445 = vld [vmem:[%s1287 + $0x232] sm:$0xff]
        %v1446 = vld [vmem:[%s1287 + $0x242] sm:$0xff]
        %v1447 = vld [vmem:[%s1287 + $0x252] sm:$0xff]
        %v1448 = vld [vmem:[%s1287 + $0x282] sm:$0xff]
        %v1449 = vld [vmem:[%s1287 + $0x292] sm:$0xff]
        %v1450 = vld [vmem:[%s1287 + $0x2a2] sm:$0xff]
        %v1451 = vld [vmem:[%s1287 + $0x2b2] sm:$0xff]
        %v1452 = vld [vmem:[%s1287 + $0x2c2] sm:$0xff]
        %v1453 = vld [vmem:[%s1287 + $0x2d2] sm:$0xff]
        %v1454 = vld [vmem:[%s1287 + $0x2e2] sm:$0xff]
        %v1455 = vld [vmem:[%s1287 + $0x2f2] sm:$0xff]
        %v1456 = vld [vmem:[%s1287 + $0x322] sm:$0xff]
        %v1457 = vld [vmem:[%s1287 + $0x332] sm:$0xff]
        %v1458 = vld [vmem:[%s1287 + $0x342] sm:$0xff]
        %v1459 = vld [vmem:[%s1287 + $0x352] sm:$0xff]
        %v1460 = vld [vmem:[%s1287 + $0x362] sm:$0xff]
        %v1461 = vld [vmem:[%s1287 + $0x372] sm:$0xff]
        %v1462 = vld [vmem:[%s1287 + $0x382] sm:$0xff]
        %v1463 = vld [vmem:[%s1287 + $0x392] sm:$0xff]
        %v1464 = vld [vmem:[%s1287 + $0x3c2] sm:$0xff]
        %v1465 = vld [vmem:[%s1287 + $0x3d2] sm:$0xff]
        %v1466 = vld [vmem:[%s1287 + $0x3e2] sm:$0xff]
        %v1467 = vld [vmem:[%s1287 + $0x3f2] sm:$0xff]
        %v1468 = vld [vmem:[%s1287 + $0x402] sm:$0xff]
        %v1469 = vld [vmem:[%s1287 + $0x412] sm:$0xff]
        %v1470 = vld [vmem:[%s1287 + $0x422] sm:$0xff]
        %v1471 = vld [vmem:[%s1287 + $0x432] sm:$0xff]
        %v1472 = vld [vmem:[%s1287 + $0x462] sm:$0xff]
        %v1473 = vld [vmem:[%s1287 + $0x472] sm:$0xff]
        %v1474 = vld [vmem:[%s1287 + $0x482] sm:$0xff]
        %v1475 = vld [vmem:[%s1287 + $0x492] sm:$0xff]
        %v1476 = vld [vmem:[%s1287 + $0x4a2] sm:$0xff]
        %v1477 = vld [vmem:[%s1287 + $0x4b2] sm:$0xff]
        %v1478 = vld [vmem:[%s1287 + $0x4c2] sm:$0xff]
        %v1479 = vld [vmem:[%s1287 + $0x4d2] sm:$0xff]
        %s1480 = scalar_lea.vmem %s279, 320 [#allocation4]
        %v1481 = vld [vmem:[%s1480] sm:$0xff]
        %v1482 = vld [vmem:[%s1480 + $0x10] sm:$0xff]
        %v1483 = vld [vmem:[%s1480 + $0x20] sm:$0xff]
        %v1484 = vld [vmem:[%s1480 + $0x30] sm:$0xff]
        %v1485 = vld [vmem:[%s1480 + $0x40] sm:$0xff]
        %v1486 = vld [vmem:[%s1480 + $0x50] sm:$0xff]
        %v1487 = vld [vmem:[%s1480 + $0x60] sm:$0xff]
        %v1488 = vld [vmem:[%s1480 + $0x70] sm:$0xff]
        %v1489 = vld [vmem:[%s1480 + $0xa0] sm:$0xff]
        %v1490 = vld [vmem:[%s1480 + $0xb0] sm:$0xff]
        %v1491 = vld [vmem:[%s1480 + $0xc0] sm:$0xff]
        %v1492 = vld [vmem:[%s1480 + $0xd0] sm:$0xff]
        %v1493 = vld [vmem:[%s1480 + $0xe0] sm:$0xff]
        %v1494 = vld [vmem:[%s1480 + $0xf0] sm:$0xff]
        %v1495 = vld [vmem:[%s1480 + $0x100] sm:$0xff]
        %v1496 = vld [vmem:[%s1480 + $0x110] sm:$0xff]
        %v1497 = vld [vmem:[%s1480 + $0x140] sm:$0xff]
        %v1498 = vld [vmem:[%s1480 + $0x150] sm:$0xff]
        %v1499 = vld [vmem:[%s1480 + $0x160] sm:$0xff]
        %v1500 = vld [vmem:[%s1480 + $0x170] sm:$0xff]
        %v1501 = vld [vmem:[%s1480 + $0x180] sm:$0xff]
        %v1502 = vld [vmem:[%s1480 + $0x190] sm:$0xff]
        %v1503 = vld [vmem:[%s1480 + $0x1a0] sm:$0xff]
        %v1504 = vld [vmem:[%s1480 + $0x1b0] sm:$0xff]
        %v1505 = vld [vmem:[%s1480 + $0x1e0] sm:$0xff]
        %v1506 = vld [vmem:[%s1480 + $0x1f0] sm:$0xff]
        %v1507 = vld [vmem:[%s1480 + $0x200] sm:$0xff]
        %v1508 = vld [vmem:[%s1480 + $0x210] sm:$0xff]
        %v1509 = vld [vmem:[%s1480 + $0x220] sm:$0xff]
        %v1510 = vld [vmem:[%s1480 + $0x230] sm:$0xff]
        %v1511 = vld [vmem:[%s1480 + $0x240] sm:$0xff]
        %v1512 = vld [vmem:[%s1480 + $0x250] sm:$0xff]
        %v1513 = vld [vmem:[%s1480 + $0x280] sm:$0xff]
        %v1514 = vld [vmem:[%s1480 + $0x290] sm:$0xff]
        %v1515 = vld [vmem:[%s1480 + $0x2a0] sm:$0xff]
        %v1516 = vld [vmem:[%s1480 + $0x2b0] sm:$0xff]
        %v1517 = vld [vmem:[%s1480 + $0x2c0] sm:$0xff]
        %v1518 = vld [vmem:[%s1480 + $0x2d0] sm:$0xff]
        %v1519 = vld [vmem:[%s1480 + $0x2e0] sm:$0xff]
        %v1520 = vld [vmem:[%s1480 + $0x2f0] sm:$0xff]
        %v1521 = vld [vmem:[%s1480 + $0x320] sm:$0xff]
        %v1522 = vld [vmem:[%s1480 + $0x330] sm:$0xff]
        %v1523 = vld [vmem:[%s1480 + $0x340] sm:$0xff]
        %v1524 = vld [vmem:[%s1480 + $0x350] sm:$0xff]
        %v1525 = vld [vmem:[%s1480 + $0x360] sm:$0xff]
        %v1526 = vld [vmem:[%s1480 + $0x370] sm:$0xff]
        %v1527 = vld [vmem:[%s1480 + $0x380] sm:$0xff]
        %v1528 = vld [vmem:[%s1480 + $0x390] sm:$0xff]
        %v1529 = vld [vmem:[%s1480 + $0x3c0] sm:$0xff]
        %v1530 = vld [vmem:[%s1480 + $0x3d0] sm:$0xff]
        %v1531 = vld [vmem:[%s1480 + $0x3e0] sm:$0xff]
        %v1532 = vld [vmem:[%s1480 + $0x3f0] sm:$0xff]
        %v1533 = vld [vmem:[%s1480 + $0x400] sm:$0xff]
        %v1534 = vld [vmem:[%s1480 + $0x410] sm:$0xff]
        %v1535 = vld [vmem:[%s1480 + $0x420] sm:$0xff]
        %v1536 = vld [vmem:[%s1480 + $0x430] sm:$0xff]
        %v1537 = vld [vmem:[%s1480 + $0x460] sm:$0xff]
        %v1538 = vld [vmem:[%s1480 + $0x470] sm:$0xff]
        %v1539 = vld [vmem:[%s1480 + $0x480] sm:$0xff]
        %v1540 = vld [vmem:[%s1480 + $0x490] sm:$0xff]
        %v1541 = vld [vmem:[%s1480 + $0x4a0] sm:$0xff]
        %v1542 = vld [vmem:[%s1480 + $0x4b0] sm:$0xff]
        %v1543 = vld [vmem:[%s1480 + $0x4c0] sm:$0xff]
        %v1544 = vld [vmem:[%s1480 + $0x4d0] sm:$0xff]
        %v1545 = vld [vmem:[%s1480 + $0x1] sm:$0xff]
        %v1546 = vld [vmem:[%s1480 + $0x11] sm:$0xff]
        %v1547 = vld [vmem:[%s1480 + $0x21] sm:$0xff]
        %v1548 = vld [vmem:[%s1480 + $0x31] sm:$0xff]
        %v1549 = vld [vmem:[%s1480 + $0x41] sm:$0xff]
        %v1550 = vld [vmem:[%s1480 + $0x51] sm:$0xff]
        %v1551 = vld [vmem:[%s1480 + $0x61] sm:$0xff]
        %v1552 = vld [vmem:[%s1480 + $0x71] sm:$0xff]
        %v1553 = vld [vmem:[%s1480 + $0xa1] sm:$0xff]
        %v1554 = vld [vmem:[%s1480 + $0xb1] sm:$0xff]
        %v1555 = vld [vmem:[%s1480 + $0xc1] sm:$0xff]
        %v1556 = vld [vmem:[%s1480 + $0xd1] sm:$0xff]
        %v1557 = vld [vmem:[%s1480 + $0xe1] sm:$0xff]
        %v1558 = vld [vmem:[%s1480 + $0xf1] sm:$0xff]
        %v1559 = vld [vmem:[%s1480 + $0x101] sm:$0xff]
        %v1560 = vld [vmem:[%s1480 + $0x111] sm:$0xff]
        %v1561 = vld [vmem:[%s1480 + $0x141] sm:$0xff]
        %v1562 = vld [vmem:[%s1480 + $0x151] sm:$0xff]
        %v1563 = vld [vmem:[%s1480 + $0x161] sm:$0xff]
        %v1564 = vld [vmem:[%s1480 + $0x171] sm:$0xff]
        %v1565 = vld [vmem:[%s1480 + $0x181] sm:$0xff]
        %v1566 = vld [vmem:[%s1480 + $0x191] sm:$0xff]
        %v1567 = vld [vmem:[%s1480 + $0x1a1] sm:$0xff]
        %v1568 = vld [vmem:[%s1480 + $0x1b1] sm:$0xff]
        %v1569 = vld [vmem:[%s1480 + $0x1e1] sm:$0xff]
        %v1570 = vld [vmem:[%s1480 + $0x1f1] sm:$0xff]
        %v1571 = vld [vmem:[%s1480 + $0x201] sm:$0xff]
        %v1572 = vld [vmem:[%s1480 + $0x211] sm:$0xff]
        %v1573 = vld [vmem:[%s1480 + $0x221] sm:$0xff]
        %v1574 = vld [vmem:[%s1480 + $0x231] sm:$0xff]
        %v1575 = vld [vmem:[%s1480 + $0x241] sm:$0xff]
        %v1576 = vld [vmem:[%s1480 + $0x251] sm:$0xff]
        %v1577 = vld [vmem:[%s1480 + $0x281] sm:$0xff]
        %v1578 = vld [vmem:[%s1480 + $0x291] sm:$0xff]
        %v1579 = vld [vmem:[%s1480 + $0x2a1] sm:$0xff]
        %v1580 = vld [vmem:[%s1480 + $0x2b1] sm:$0xff]
        %v1581 = vld [vmem:[%s1480 + $0x2c1] sm:$0xff]
        %v1582 = vld [vmem:[%s1480 + $0x2d1] sm:$0xff]
        %v1583 = vld [vmem:[%s1480 + $0x2e1] sm:$0xff]
        %v1584 = vld [vmem:[%s1480 + $0x2f1] sm:$0xff]
        %v1585 = vld [vmem:[%s1480 + $0x321] sm:$0xff]
        %v1586 = vld [vmem:[%s1480 + $0x331] sm:$0xff]
        %v1587 = vld [vmem:[%s1480 + $0x341] sm:$0xff]
        %v1588 = vld [vmem:[%s1480 + $0x351] sm:$0xff]
        %v1589 = vld [vmem:[%s1480 + $0x361] sm:$0xff]
        %v1590 = vld [vmem:[%s1480 + $0x371] sm:$0xff]
        %v1591 = vld [vmem:[%s1480 + $0x381] sm:$0xff]
        %v1592 = vld [vmem:[%s1480 + $0x391] sm:$0xff]
        %v1593 = vld [vmem:[%s1480 + $0x3c1] sm:$0xff]
        %v1594 = vld [vmem:[%s1480 + $0x3d1] sm:$0xff]
        %v1595 = vld [vmem:[%s1480 + $0x3e1] sm:$0xff]
        %v1596 = vld [vmem:[%s1480 + $0x3f1] sm:$0xff]
        %v1597 = vld [vmem:[%s1480 + $0x401] sm:$0xff]
        %v1598 = vld [vmem:[%s1480 + $0x411] sm:$0xff]
        %v1599 = vld [vmem:[%s1480 + $0x421] sm:$0xff]
        %v1600 = vld [vmem:[%s1480 + $0x431] sm:$0xff]
        %v1601 = vld [vmem:[%s1480 + $0x461] sm:$0xff]
        %v1602 = vld [vmem:[%s1480 + $0x471] sm:$0xff]
        %v1603 = vld [vmem:[%s1480 + $0x481] sm:$0xff]
        %v1604 = vld [vmem:[%s1480 + $0x491] sm:$0xff]
        %v1605 = vld [vmem:[%s1480 + $0x4a1] sm:$0xff]
        %v1606 = vld [vmem:[%s1480 + $0x4b1] sm:$0xff]
        %v1607 = vld [vmem:[%s1480 + $0x4c1] sm:$0xff]
        %v1608 = vld [vmem:[%s1480 + $0x4d1] sm:$0xff]
        %v1609 = vld [vmem:[%s1480 + $0x2] sm:$0xff]
        %v1610 = vld [vmem:[%s1480 + $0x12] sm:$0xff]
        %v1611 = vld [vmem:[%s1480 + $0x22] sm:$0xff]
        %v1612 = vld [vmem:[%s1480 + $0x32] sm:$0xff]
        %v1613 = vld [vmem:[%s1480 + $0x42] sm:$0xff]
        %v1614 = vld [vmem:[%s1480 + $0x52] sm:$0xff]
        %v1615 = vld [vmem:[%s1480 + $0x62] sm:$0xff]
        %v1616 = vld [vmem:[%s1480 + $0x72] sm:$0xff]
        %v1617 = vld [vmem:[%s1480 + $0xa2] sm:$0xff]
        %v1618 = vld [vmem:[%s1480 + $0xb2] sm:$0xff]
        %v1619 = vld [vmem:[%s1480 + $0xc2] sm:$0xff]
        %v1620 = vld [vmem:[%s1480 + $0xd2] sm:$0xff]
        %v1621 = vld [vmem:[%s1480 + $0xe2] sm:$0xff]
        %v1622 = vld [vmem:[%s1480 + $0xf2] sm:$0xff]
        %v1623 = vld [vmem:[%s1480 + $0x102] sm:$0xff]
        %v1624 = vld [vmem:[%s1480 + $0x112] sm:$0xff]
        %v1625 = vld [vmem:[%s1480 + $0x142] sm:$0xff]
        %v1626 = vld [vmem:[%s1480 + $0x152] sm:$0xff]
        %v1627 = vld [vmem:[%s1480 + $0x162] sm:$0xff]
        %v1628 = vld [vmem:[%s1480 + $0x172] sm:$0xff]
        %v1629 = vld [vmem:[%s1480 + $0x182] sm:$0xff]
        %v1630 = vld [vmem:[%s1480 + $0x192] sm:$0xff]
        %v1631 = vld [vmem:[%s1480 + $0x1a2] sm:$0xff]
        %v1632 = vld [vmem:[%s1480 + $0x1b2] sm:$0xff]
        %v1633 = vld [vmem:[%s1480 + $0x1e2] sm:$0xff]
        %v1634 = vld [vmem:[%s1480 + $0x1f2] sm:$0xff]
        %v1635 = vld [vmem:[%s1480 + $0x202] sm:$0xff]
        %v1636 = vld [vmem:[%s1480 + $0x212] sm:$0xff]
        %v1637 = vld [vmem:[%s1480 + $0x222] sm:$0xff]
        %v1638 = vld [vmem:[%s1480 + $0x232] sm:$0xff]
        %v1639 = vld [vmem:[%s1480 + $0x242] sm:$0xff]
        %v1640 = vld [vmem:[%s1480 + $0x252] sm:$0xff]
        %v1641 = vld [vmem:[%s1480 + $0x282] sm:$0xff]
        %v1642 = vld [vmem:[%s1480 + $0x292] sm:$0xff]
        %v1643 = vld [vmem:[%s1480 + $0x2a2] sm:$0xff]
        %v1644 = vld [vmem:[%s1480 + $0x2b2] sm:$0xff]
        %v1645 = vld [vmem:[%s1480 + $0x2c2] sm:$0xff]
        %v1646 = vld [vmem:[%s1480 + $0x2d2] sm:$0xff]
        %v1647 = vld [vmem:[%s1480 + $0x2e2] sm:$0xff]
        %v1648 = vld [vmem:[%s1480 + $0x2f2] sm:$0xff]
        %v1649 = vld [vmem:[%s1480 + $0x322] sm:$0xff]
        %v1650 = vld [vmem:[%s1480 + $0x332] sm:$0xff]
        %v1651 = vld [vmem:[%s1480 + $0x342] sm:$0xff]
        %v1652 = vld [vmem:[%s1480 + $0x352] sm:$0xff]
        %v1653 = vld [vmem:[%s1480 + $0x362] sm:$0xff]
        %v1654 = vld [vmem:[%s1480 + $0x372] sm:$0xff]
        %v1655 = vld [vmem:[%s1480 + $0x382] sm:$0xff]
        %v1656 = vld [vmem:[%s1480 + $0x392] sm:$0xff]
        %v1657 = vld [vmem:[%s1480 + $0x3c2] sm:$0xff]
        %v1658 = vld [vmem:[%s1480 + $0x3d2] sm:$0xff]
        %v1659 = vld [vmem:[%s1480 + $0x3e2] sm:$0xff]
        %v1660 = vld [vmem:[%s1480 + $0x3f2] sm:$0xff]
        %v1661 = vld [vmem:[%s1480 + $0x402] sm:$0xff]
        %v1662 = vld [vmem:[%s1480 + $0x412] sm:$0xff]
        %v1663 = vld [vmem:[%s1480 + $0x422] sm:$0xff]
        %v1664 = vld [vmem:[%s1480 + $0x432] sm:$0xff]
        %v1665 = vld [vmem:[%s1480 + $0x462] sm:$0xff]
        %v1666 = vld [vmem:[%s1480 + $0x472] sm:$0xff]
        %v1667 = vld [vmem:[%s1480 + $0x482] sm:$0xff]
        %v1668 = vld [vmem:[%s1480 + $0x492] sm:$0xff]
        %v1669 = vld [vmem:[%s1480 + $0x4a2] sm:$0xff]
        %v1670 = vld [vmem:[%s1480 + $0x4b2] sm:$0xff]
        %v1671 = vld [vmem:[%s1480 + $0x4c2] sm:$0xff]
        %v1672 = vld [vmem:[%s1480 + $0x4d2] sm:$0xff]
        %s1673 = scalar_lea.vmem %s279, 336 [#allocation4]
        %v1674 = vld [vmem:[%s1673] sm:$0xff]
        %v1675 = vld [vmem:[%s1673 + $0x10] sm:$0xff]
        %v1676 = vld [vmem:[%s1673 + $0x20] sm:$0xff]
        %v1677 = vld [vmem:[%s1673 + $0x30] sm:$0xff]
        %v1678 = vld [vmem:[%s1673 + $0x40] sm:$0xff]
        %v1679 = vld [vmem:[%s1673 + $0x50] sm:$0xff]
        %v1680 = vld [vmem:[%s1673 + $0x60] sm:$0xff]
        %v1681 = vld [vmem:[%s1673 + $0x70] sm:$0xff]
        %v1682 = vld [vmem:[%s1673 + $0xa0] sm:$0xff]
        %v1683 = vld [vmem:[%s1673 + $0xb0] sm:$0xff]
        %v1684 = vld [vmem:[%s1673 + $0xc0] sm:$0xff]
        %v1685 = vld [vmem:[%s1673 + $0xd0] sm:$0xff]
        %v1686 = vld [vmem:[%s1673 + $0xe0] sm:$0xff]
        %v1687 = vld [vmem:[%s1673 + $0xf0] sm:$0xff]
        %v1688 = vld [vmem:[%s1673 + $0x100] sm:$0xff]
        %v1689 = vld [vmem:[%s1673 + $0x110] sm:$0xff]
        %v1690 = vld [vmem:[%s1673 + $0x140] sm:$0xff]
        %v1691 = vld [vmem:[%s1673 + $0x150] sm:$0xff]
        %v1692 = vld [vmem:[%s1673 + $0x160] sm:$0xff]
        %v1693 = vld [vmem:[%s1673 + $0x170] sm:$0xff]
        %v1694 = vld [vmem:[%s1673 + $0x180] sm:$0xff]
        %v1695 = vld [vmem:[%s1673 + $0x190] sm:$0xff]
        %v1696 = vld [vmem:[%s1673 + $0x1a0] sm:$0xff]
        %v1697 = vld [vmem:[%s1673 + $0x1b0] sm:$0xff]
        %v1698 = vld [vmem:[%s1673 + $0x1e0] sm:$0xff]
        %v1699 = vld [vmem:[%s1673 + $0x1f0] sm:$0xff]
        %v1700 = vld [vmem:[%s1673 + $0x200] sm:$0xff]
        %v1701 = vld [vmem:[%s1673 + $0x210] sm:$0xff]
        %v1702 = vld [vmem:[%s1673 + $0x220] sm:$0xff]
        %v1703 = vld [vmem:[%s1673 + $0x230] sm:$0xff]
        %v1704 = vld [vmem:[%s1673 + $0x240] sm:$0xff]
        %v1705 = vld [vmem:[%s1673 + $0x250] sm:$0xff]
        %v1706 = vld [vmem:[%s1673 + $0x280] sm:$0xff]
        %v1707 = vld [vmem:[%s1673 + $0x290] sm:$0xff]
        %v1708 = vld [vmem:[%s1673 + $0x2a0] sm:$0xff]
        %v1709 = vld [vmem:[%s1673 + $0x2b0] sm:$0xff]
        %v1710 = vld [vmem:[%s1673 + $0x2c0] sm:$0xff]
        %v1711 = vld [vmem:[%s1673 + $0x2d0] sm:$0xff]
        %v1712 = vld [vmem:[%s1673 + $0x2e0] sm:$0xff]
        %v1713 = vld [vmem:[%s1673 + $0x2f0] sm:$0xff]
        %v1714 = vld [vmem:[%s1673 + $0x320] sm:$0xff]
        %v1715 = vld [vmem:[%s1673 + $0x330] sm:$0xff]
        %v1716 = vld [vmem:[%s1673 + $0x340] sm:$0xff]
        %v1717 = vld [vmem:[%s1673 + $0x350] sm:$0xff]
        %v1718 = vld [vmem:[%s1673 + $0x360] sm:$0xff]
        %v1719 = vld [vmem:[%s1673 + $0x370] sm:$0xff]
        %v1720 = vld [vmem:[%s1673 + $0x380] sm:$0xff]
        %v1721 = vld [vmem:[%s1673 + $0x390] sm:$0xff]
        %v1722 = vld [vmem:[%s1673 + $0x3c0] sm:$0xff]
        %v1723 = vld [vmem:[%s1673 + $0x3d0] sm:$0xff]
        %v1724 = vld [vmem:[%s1673 + $0x3e0] sm:$0xff]
        %v1725 = vld [vmem:[%s1673 + $0x3f0] sm:$0xff]
        %v1726 = vld [vmem:[%s1673 + $0x400] sm:$0xff]
        %v1727 = vld [vmem:[%s1673 + $0x410] sm:$0xff]
        %v1728 = vld [vmem:[%s1673 + $0x420] sm:$0xff]
        %v1729 = vld [vmem:[%s1673 + $0x430] sm:$0xff]
        %v1730 = vld [vmem:[%s1673 + $0x460] sm:$0xff]
        %v1731 = vld [vmem:[%s1673 + $0x470] sm:$0xff]
        %v1732 = vld [vmem:[%s1673 + $0x480] sm:$0xff]
        %v1733 = vld [vmem:[%s1673 + $0x490] sm:$0xff]
        %v1734 = vld [vmem:[%s1673 + $0x4a0] sm:$0xff]
        %v1735 = vld [vmem:[%s1673 + $0x4b0] sm:$0xff]
        %v1736 = vld [vmem:[%s1673 + $0x4c0] sm:$0xff]
        %v1737 = vld [vmem:[%s1673 + $0x4d0] sm:$0xff]
        %v1738 = vld [vmem:[%s1673 + $0x1] sm:$0xff]
        %v1739 = vld [vmem:[%s1673 + $0x11] sm:$0xff]
        %v1740 = vld [vmem:[%s1673 + $0x21] sm:$0xff]
        %v1741 = vld [vmem:[%s1673 + $0x31] sm:$0xff]
        %v1742 = vld [vmem:[%s1673 + $0x41] sm:$0xff]
        %v1743 = vld [vmem:[%s1673 + $0x51] sm:$0xff]
        %v1744 = vld [vmem:[%s1673 + $0x61] sm:$0xff]
        %v1745 = vld [vmem:[%s1673 + $0x71] sm:$0xff]
        %v1746 = vld [vmem:[%s1673 + $0xa1] sm:$0xff]
        %v1747 = vld [vmem:[%s1673 + $0xb1] sm:$0xff]
        %v1748 = vld [vmem:[%s1673 + $0xc1] sm:$0xff]
        %v1749 = vld [vmem:[%s1673 + $0xd1] sm:$0xff]
        %v1750 = vld [vmem:[%s1673 + $0xe1] sm:$0xff]
        %v1751 = vld [vmem:[%s1673 + $0xf1] sm:$0xff]
        %v1752 = vld [vmem:[%s1673 + $0x101] sm:$0xff]
        %v1753 = vld [vmem:[%s1673 + $0x111] sm:$0xff]
        %v1754 = vld [vmem:[%s1673 + $0x141] sm:$0xff]
        %v1755 = vld [vmem:[%s1673 + $0x151] sm:$0xff]
        %v1756 = vld [vmem:[%s1673 + $0x161] sm:$0xff]
        %v1757 = vld [vmem:[%s1673 + $0x171] sm:$0xff]
        %v1758 = vld [vmem:[%s1673 + $0x181] sm:$0xff]
        %v1759 = vld [vmem:[%s1673 + $0x191] sm:$0xff]
        %v1760 = vld [vmem:[%s1673 + $0x1a1] sm:$0xff]
        %v1761 = vld [vmem:[%s1673 + $0x1b1] sm:$0xff]
        %v1762 = vld [vmem:[%s1673 + $0x1e1] sm:$0xff]
        %v1763 = vld [vmem:[%s1673 + $0x1f1] sm:$0xff]
        %v1764 = vld [vmem:[%s1673 + $0x201] sm:$0xff]
        %v1765 = vld [vmem:[%s1673 + $0x211] sm:$0xff]
        %v1766 = vld [vmem:[%s1673 + $0x221] sm:$0xff]
        %v1767 = vld [vmem:[%s1673 + $0x231] sm:$0xff]
        %v1768 = vld [vmem:[%s1673 + $0x241] sm:$0xff]
        %v1769 = vld [vmem:[%s1673 + $0x251] sm:$0xff]
        %v1770 = vld [vmem:[%s1673 + $0x281] sm:$0xff]
        %v1771 = vld [vmem:[%s1673 + $0x291] sm:$0xff]
        %v1772 = vld [vmem:[%s1673 + $0x2a1] sm:$0xff]
        %v1773 = vld [vmem:[%s1673 + $0x2b1] sm:$0xff]
        %v1774 = vld [vmem:[%s1673 + $0x2c1] sm:$0xff]
        %v1775 = vld [vmem:[%s1673 + $0x2d1] sm:$0xff]
        %v1776 = vld [vmem:[%s1673 + $0x2e1] sm:$0xff]
        %v1777 = vld [vmem:[%s1673 + $0x2f1] sm:$0xff]
        %v1778 = vld [vmem:[%s1673 + $0x321] sm:$0xff]
        %v1779 = vld [vmem:[%s1673 + $0x331] sm:$0xff]
        %v1780 = vld [vmem:[%s1673 + $0x341] sm:$0xff]
        %v1781 = vld [vmem:[%s1673 + $0x351] sm:$0xff]
        %v1782 = vld [vmem:[%s1673 + $0x361] sm:$0xff]
        %v1783 = vld [vmem:[%s1673 + $0x371] sm:$0xff]
        %v1784 = vld [vmem:[%s1673 + $0x381] sm:$0xff]
        %v1785 = vld [vmem:[%s1673 + $0x391] sm:$0xff]
        %v1786 = vld [vmem:[%s1673 + $0x3c1] sm:$0xff]
        %v1787 = vld [vmem:[%s1673 + $0x3d1] sm:$0xff]
        %v1788 = vld [vmem:[%s1673 + $0x3e1] sm:$0xff]
        %v1789 = vld [vmem:[%s1673 + $0x3f1] sm:$0xff]
        %v1790 = vld [vmem:[%s1673 + $0x401] sm:$0xff]
        %v1791 = vld [vmem:[%s1673 + $0x411] sm:$0xff]
        %v1792 = vld [vmem:[%s1673 + $0x421] sm:$0xff]
        %v1793 = vld [vmem:[%s1673 + $0x431] sm:$0xff]
        %v1794 = vld [vmem:[%s1673 + $0x461] sm:$0xff]
        %v1795 = vld [vmem:[%s1673 + $0x471] sm:$0xff]
        %v1796 = vld [vmem:[%s1673 + $0x481] sm:$0xff]
        %v1797 = vld [vmem:[%s1673 + $0x491] sm:$0xff]
        %v1798 = vld [vmem:[%s1673 + $0x4a1] sm:$0xff]
        %v1799 = vld [vmem:[%s1673 + $0x4b1] sm:$0xff]
        %v1800 = vld [vmem:[%s1673 + $0x4c1] sm:$0xff]
        %v1801 = vld [vmem:[%s1673 + $0x4d1] sm:$0xff]
        %v1802 = vld [vmem:[%s1673 + $0x2] sm:$0xff]
        %v1803 = vld [vmem:[%s1673 + $0x12] sm:$0xff]
        %v1804 = vld [vmem:[%s1673 + $0x22] sm:$0xff]
        %v1805 = vld [vmem:[%s1673 + $0x32] sm:$0xff]
        %v1806 = vld [vmem:[%s1673 + $0x42] sm:$0xff]
        %v1807 = vld [vmem:[%s1673 + $0x52] sm:$0xff]
        %v1808 = vld [vmem:[%s1673 + $0x62] sm:$0xff]
        %v1809 = vld [vmem:[%s1673 + $0x72] sm:$0xff]
        %v1810 = vld [vmem:[%s1673 + $0xa2] sm:$0xff]
        %v1811 = vld [vmem:[%s1673 + $0xb2] sm:$0xff]
        %v1812 = vld [vmem:[%s1673 + $0xc2] sm:$0xff]
        %v1813 = vld [vmem:[%s1673 + $0xd2] sm:$0xff]
        %v1814 = vld [vmem:[%s1673 + $0xe2] sm:$0xff]
        %v1815 = vld [vmem:[%s1673 + $0xf2] sm:$0xff]
        %v1816 = vld [vmem:[%s1673 + $0x102] sm:$0xff]
        %v1817 = vld [vmem:[%s1673 + $0x112] sm:$0xff]
        %v1818 = vld [vmem:[%s1673 + $0x142] sm:$0xff]
        %v1819 = vld [vmem:[%s1673 + $0x152] sm:$0xff]
        %v1820 = vld [vmem:[%s1673 + $0x162] sm:$0xff]
        %v1821 = vld [vmem:[%s1673 + $0x172] sm:$0xff]
        %v1822 = vld [vmem:[%s1673 + $0x182] sm:$0xff]
        %v1823 = vld [vmem:[%s1673 + $0x192] sm:$0xff]
        %v1824 = vld [vmem:[%s1673 + $0x1a2] sm:$0xff]
        %v1825 = vld [vmem:[%s1673 + $0x1b2] sm:$0xff]
        %v1826 = vld [vmem:[%s1673 + $0x1e2] sm:$0xff]
        %v1827 = vld [vmem:[%s1673 + $0x1f2] sm:$0xff]
        %v1828 = vld [vmem:[%s1673 + $0x202] sm:$0xff]
        %v1829 = vld [vmem:[%s1673 + $0x212] sm:$0xff]
        %v1830 = vld [vmem:[%s1673 + $0x222] sm:$0xff]
        %v1831 = vld [vmem:[%s1673 + $0x232] sm:$0xff]
        %v1832 = vld [vmem:[%s1673 + $0x242] sm:$0xff]
        %v1833 = vld [vmem:[%s1673 + $0x252] sm:$0xff]
        %v1834 = vld [vmem:[%s1673 + $0x282] sm:$0xff]
        %v1835 = vld [vmem:[%s1673 + $0x292] sm:$0xff]
        %v1836 = vld [vmem:[%s1673 + $0x2a2] sm:$0xff]
        %v1837 = vld [vmem:[%s1673 + $0x2b2] sm:$0xff]
        %v1838 = vld [vmem:[%s1673 + $0x2c2] sm:$0xff]
        %v1839 = vld [vmem:[%s1673 + $0x2d2] sm:$0xff]
        %v1840 = vld [vmem:[%s1673 + $0x2e2] sm:$0xff]
        %v1841 = vld [vmem:[%s1673 + $0x2f2] sm:$0xff]
        %v1842 = vld [vmem:[%s1673 + $0x322] sm:$0xff]
        %v1843 = vld [vmem:[%s1673 + $0x332] sm:$0xff]
        %v1844 = vld [vmem:[%s1673 + $0x342] sm:$0xff]
        %v1845 = vld [vmem:[%s1673 + $0x352] sm:$0xff]
        %v1846 = vld [vmem:[%s1673 + $0x362] sm:$0xff]
        %v1847 = vld [vmem:[%s1673 + $0x372] sm:$0xff]
        %v1848 = vld [vmem:[%s1673 + $0x382] sm:$0xff]
        %v1849 = vld [vmem:[%s1673 + $0x392] sm:$0xff]
        %v1850 = vld [vmem:[%s1673 + $0x3c2] sm:$0xff]
        %v1851 = vld [vmem:[%s1673 + $0x3d2] sm:$0xff]
        %v1852 = vld [vmem:[%s1673 + $0x3e2] sm:$0xff]
        %v1853 = vld [vmem:[%s1673 + $0x3f2] sm:$0xff]
        %v1854 = vld [vmem:[%s1673 + $0x402] sm:$0xff]
        %v1855 = vld [vmem:[%s1673 + $0x412] sm:$0xff]
        %v1856 = vld [vmem:[%s1673 + $0x422] sm:$0xff]
        %v1857 = vld [vmem:[%s1673 + $0x432] sm:$0xff]
        %v1858 = vld [vmem:[%s1673 + $0x462] sm:$0xff]
        %v1859 = vld [vmem:[%s1673 + $0x472] sm:$0xff]
        %v1860 = vld [vmem:[%s1673 + $0x482] sm:$0xff]
        %v1861 = vld [vmem:[%s1673 + $0x492] sm:$0xff]
        %v1862 = vld [vmem:[%s1673 + $0x4a2] sm:$0xff]
        %v1863 = vld [vmem:[%s1673 + $0x4b2] sm:$0xff]
        %v1864 = vld [vmem:[%s1673 + $0x4c2] sm:$0xff]
        %v1865 = vld [vmem:[%s1673 + $0x4d2] sm:$0xff]
        %s1866 = scalar_lea.vmem %s279, 352 [#allocation4]
        %v1867 = vld [vmem:[%s1866] sm:$0xff]
        %v1868 = vld [vmem:[%s1866 + $0x10] sm:$0xff]
        %v1869 = vld [vmem:[%s1866 + $0x20] sm:$0xff]
        %v1870 = vld [vmem:[%s1866 + $0x30] sm:$0xff]
        %v1871 = vld [vmem:[%s1866 + $0x40] sm:$0xff]
        %v1872 = vld [vmem:[%s1866 + $0x50] sm:$0xff]
        %v1873 = vld [vmem:[%s1866 + $0x60] sm:$0xff]
        %v1874 = vld [vmem:[%s1866 + $0x70] sm:$0xff]
        %v1875 = vld [vmem:[%s1866 + $0xa0] sm:$0xff]
        %v1876 = vld [vmem:[%s1866 + $0xb0] sm:$0xff]
        %v1877 = vld [vmem:[%s1866 + $0xc0] sm:$0xff]
        %v1878 = vld [vmem:[%s1866 + $0xd0] sm:$0xff]
        %v1879 = vld [vmem:[%s1866 + $0xe0] sm:$0xff]
        %v1880 = vld [vmem:[%s1866 + $0xf0] sm:$0xff]
        %v1881 = vld [vmem:[%s1866 + $0x100] sm:$0xff]
        %v1882 = vld [vmem:[%s1866 + $0x110] sm:$0xff]
        %v1883 = vld [vmem:[%s1866 + $0x140] sm:$0xff]
        %v1884 = vld [vmem:[%s1866 + $0x150] sm:$0xff]
        %v1885 = vld [vmem:[%s1866 + $0x160] sm:$0xff]
        %v1886 = vld [vmem:[%s1866 + $0x170] sm:$0xff]
        %v1887 = vld [vmem:[%s1866 + $0x180] sm:$0xff]
        %v1888 = vld [vmem:[%s1866 + $0x190] sm:$0xff]
        %v1889 = vld [vmem:[%s1866 + $0x1a0] sm:$0xff]
        %v1890 = vld [vmem:[%s1866 + $0x1b0] sm:$0xff]
        %v1891 = vld [vmem:[%s1866 + $0x1e0] sm:$0xff]
        %v1892 = vld [vmem:[%s1866 + $0x1f0] sm:$0xff]
        %v1893 = vld [vmem:[%s1866 + $0x200] sm:$0xff]
        %v1894 = vld [vmem:[%s1866 + $0x210] sm:$0xff]
        %v1895 = vld [vmem:[%s1866 + $0x220] sm:$0xff]
        %v1896 = vld [vmem:[%s1866 + $0x230] sm:$0xff]
        %v1897 = vld [vmem:[%s1866 + $0x240] sm:$0xff]
        %v1898 = vld [vmem:[%s1866 + $0x250] sm:$0xff]
        %v1899 = vld [vmem:[%s1866 + $0x280] sm:$0xff]
        %v1900 = vld [vmem:[%s1866 + $0x290] sm:$0xff]
        %v1901 = vld [vmem:[%s1866 + $0x2a0] sm:$0xff]
        %v1902 = vld [vmem:[%s1866 + $0x2b0] sm:$0xff]
        %v1903 = vld [vmem:[%s1866 + $0x2c0] sm:$0xff]
        %v1904 = vld [vmem:[%s1866 + $0x2d0] sm:$0xff]
        %v1905 = vld [vmem:[%s1866 + $0x2e0] sm:$0xff]
        %v1906 = vld [vmem:[%s1866 + $0x2f0] sm:$0xff]
        %v1907 = vld [vmem:[%s1866 + $0x320] sm:$0xff]
        %v1908 = vld [vmem:[%s1866 + $0x330] sm:$0xff]
        %v1909 = vld [vmem:[%s1866 + $0x340] sm:$0xff]
        %v1910 = vld [vmem:[%s1866 + $0x350] sm:$0xff]
        %v1911 = vld [vmem:[%s1866 + $0x360] sm:$0xff]
        %v1912 = vld [vmem:[%s1866 + $0x370] sm:$0xff]
        %v1913 = vld [vmem:[%s1866 + $0x380] sm:$0xff]
        %v1914 = vld [vmem:[%s1866 + $0x390] sm:$0xff]
        %v1915 = vld [vmem:[%s1866 + $0x3c0] sm:$0xff]
        %v1916 = vld [vmem:[%s1866 + $0x3d0] sm:$0xff]
        %v1917 = vld [vmem:[%s1866 + $0x3e0] sm:$0xff]
        %v1918 = vld [vmem:[%s1866 + $0x3f0] sm:$0xff]
        %v1919 = vld [vmem:[%s1866 + $0x400] sm:$0xff]
        %v1920 = vld [vmem:[%s1866 + $0x410] sm:$0xff]
        %v1921 = vld [vmem:[%s1866 + $0x420] sm:$0xff]
        %v1922 = vld [vmem:[%s1866 + $0x430] sm:$0xff]
        %v1923 = vld [vmem:[%s1866 + $0x460] sm:$0xff]
        %v1924 = vld [vmem:[%s1866 + $0x470] sm:$0xff]
        %v1925 = vld [vmem:[%s1866 + $0x480] sm:$0xff]
        %v1926 = vld [vmem:[%s1866 + $0x490] sm:$0xff]
        %v1927 = vld [vmem:[%s1866 + $0x4a0] sm:$0xff]
        %v1928 = vld [vmem:[%s1866 + $0x4b0] sm:$0xff]
        %v1929 = vld [vmem:[%s1866 + $0x4c0] sm:$0xff]
        %v1930 = vld [vmem:[%s1866 + $0x4d0] sm:$0xff]
        %v1931 = vld [vmem:[%s1866 + $0x1] sm:$0xff]
        %v1932 = vld [vmem:[%s1866 + $0x11] sm:$0xff]
        %v1933 = vld [vmem:[%s1866 + $0x21] sm:$0xff]
        %v1934 = vld [vmem:[%s1866 + $0x31] sm:$0xff]
        %v1935 = vld [vmem:[%s1866 + $0x41] sm:$0xff]
        %v1936 = vld [vmem:[%s1866 + $0x51] sm:$0xff]
        %v1937 = vld [vmem:[%s1866 + $0x61] sm:$0xff]
        %v1938 = vld [vmem:[%s1866 + $0x71] sm:$0xff]
        %v1939 = vld [vmem:[%s1866 + $0xa1] sm:$0xff]
        %v1940 = vld [vmem:[%s1866 + $0xb1] sm:$0xff]
        %v1941 = vld [vmem:[%s1866 + $0xc1] sm:$0xff]
        %v1942 = vld [vmem:[%s1866 + $0xd1] sm:$0xff]
        %v1943 = vld [vmem:[%s1866 + $0xe1] sm:$0xff]
        %v1944 = vld [vmem:[%s1866 + $0xf1] sm:$0xff]
        %v1945 = vld [vmem:[%s1866 + $0x101] sm:$0xff]
        %v1946 = vld [vmem:[%s1866 + $0x111] sm:$0xff]
        %v1947 = vld [vmem:[%s1866 + $0x141] sm:$0xff]
        %v1948 = vld [vmem:[%s1866 + $0x151] sm:$0xff]
        %v1949 = vld [vmem:[%s1866 + $0x161] sm:$0xff]
        %v1950 = vld [vmem:[%s1866 + $0x171] sm:$0xff]
        %v1951 = vld [vmem:[%s1866 + $0x181] sm:$0xff]
        %v1952 = vld [vmem:[%s1866 + $0x191] sm:$0xff]
        %v1953 = vld [vmem:[%s1866 + $0x1a1] sm:$0xff]
        %v1954 = vld [vmem:[%s1866 + $0x1b1] sm:$0xff]
        %v1955 = vld [vmem:[%s1866 + $0x1e1] sm:$0xff]
        %v1956 = vld [vmem:[%s1866 + $0x1f1] sm:$0xff]
        %v1957 = vld [vmem:[%s1866 + $0x201] sm:$0xff]
        %v1958 = vld [vmem:[%s1866 + $0x211] sm:$0xff]
        %v1959 = vld [vmem:[%s1866 + $0x221] sm:$0xff]
        %v1960 = vld [vmem:[%s1866 + $0x231] sm:$0xff]
        %v1961 = vld [vmem:[%s1866 + $0x241] sm:$0xff]
        %v1962 = vld [vmem:[%s1866 + $0x251] sm:$0xff]
        %v1963 = vld [vmem:[%s1866 + $0x281] sm:$0xff]
        %v1964 = vld [vmem:[%s1866 + $0x291] sm:$0xff]
        %v1965 = vld [vmem:[%s1866 + $0x2a1] sm:$0xff]
        %v1966 = vld [vmem:[%s1866 + $0x2b1] sm:$0xff]
        %v1967 = vld [vmem:[%s1866 + $0x2c1] sm:$0xff]
        %v1968 = vld [vmem:[%s1866 + $0x2d1] sm:$0xff]
        %v1969 = vld [vmem:[%s1866 + $0x2e1] sm:$0xff]
        %v1970 = vld [vmem:[%s1866 + $0x2f1] sm:$0xff]
        %v1971 = vld [vmem:[%s1866 + $0x321] sm:$0xff]
        %v1972 = vld [vmem:[%s1866 + $0x331] sm:$0xff]
        %v1973 = vld [vmem:[%s1866 + $0x341] sm:$0xff]
        %v1974 = vld [vmem:[%s1866 + $0x351] sm:$0xff]
        %v1975 = vld [vmem:[%s1866 + $0x361] sm:$0xff]
        %v1976 = vld [vmem:[%s1866 + $0x371] sm:$0xff]
        %v1977 = vld [vmem:[%s1866 + $0x381] sm:$0xff]
        %v1978 = vld [vmem:[%s1866 + $0x391] sm:$0xff]
        %v1979 = vld [vmem:[%s1866 + $0x3c1] sm:$0xff]
        %v1980 = vld [vmem:[%s1866 + $0x3d1] sm:$0xff]
        %v1981 = vld [vmem:[%s1866 + $0x3e1] sm:$0xff]
        %v1982 = vld [vmem:[%s1866 + $0x3f1] sm:$0xff]
        %v1983 = vld [vmem:[%s1866 + $0x401] sm:$0xff]
        %v1984 = vld [vmem:[%s1866 + $0x411] sm:$0xff]
        %v1985 = vld [vmem:[%s1866 + $0x421] sm:$0xff]
        %v1986 = vld [vmem:[%s1866 + $0x431] sm:$0xff]
        %v1987 = vld [vmem:[%s1866 + $0x461] sm:$0xff]
        %v1988 = vld [vmem:[%s1866 + $0x471] sm:$0xff]
        %v1989 = vld [vmem:[%s1866 + $0x481] sm:$0xff]
        %v1990 = vld [vmem:[%s1866 + $0x491] sm:$0xff]
        %v1991 = vld [vmem:[%s1866 + $0x4a1] sm:$0xff]
        %v1992 = vld [vmem:[%s1866 + $0x4b1] sm:$0xff]
        %v1993 = vld [vmem:[%s1866 + $0x4c1] sm:$0xff]
        %v1994 = vld [vmem:[%s1866 + $0x4d1] sm:$0xff]
        %v1995 = vld [vmem:[%s1866 + $0x2] sm:$0xff]
        %v1996 = vld [vmem:[%s1866 + $0x12] sm:$0xff]
        %v1997 = vld [vmem:[%s1866 + $0x22] sm:$0xff]
        %v1998 = vld [vmem:[%s1866 + $0x32] sm:$0xff]
        %v1999 = vld [vmem:[%s1866 + $0x42] sm:$0xff]
        %v2000 = vld [vmem:[%s1866 + $0x52] sm:$0xff]
        %v2001 = vld [vmem:[%s1866 + $0x62] sm:$0xff]
        %v2002 = vld [vmem:[%s1866 + $0x72] sm:$0xff]
        %v2003 = vld [vmem:[%s1866 + $0xa2] sm:$0xff]
        %v2004 = vld [vmem:[%s1866 + $0xb2] sm:$0xff]
        %v2005 = vld [vmem:[%s1866 + $0xc2] sm:$0xff]
        %v2006 = vld [vmem:[%s1866 + $0xd2] sm:$0xff]
        %v2007 = vld [vmem:[%s1866 + $0xe2] sm:$0xff]
        %v2008 = vld [vmem:[%s1866 + $0xf2] sm:$0xff]
        %v2009 = vld [vmem:[%s1866 + $0x102] sm:$0xff]
        %v2010 = vld [vmem:[%s1866 + $0x112] sm:$0xff]
        %v2011 = vld [vmem:[%s1866 + $0x142] sm:$0xff]
        %v2012 = vld [vmem:[%s1866 + $0x152] sm:$0xff]
        %v2013 = vld [vmem:[%s1866 + $0x162] sm:$0xff]
        %v2014 = vld [vmem:[%s1866 + $0x172] sm:$0xff]
        %v2015 = vld [vmem:[%s1866 + $0x182] sm:$0xff]
        %v2016 = vld [vmem:[%s1866 + $0x192] sm:$0xff]
        %v2017 = vld [vmem:[%s1866 + $0x1a2] sm:$0xff]
        %v2018 = vld [vmem:[%s1866 + $0x1b2] sm:$0xff]
        %v2019 = vld [vmem:[%s1866 + $0x1e2] sm:$0xff]
        %v2020 = vld [vmem:[%s1866 + $0x1f2] sm:$0xff]
        %v2021 = vld [vmem:[%s1866 + $0x202] sm:$0xff]
        %v2022 = vld [vmem:[%s1866 + $0x212] sm:$0xff]
        %v2023 = vld [vmem:[%s1866 + $0x222] sm:$0xff]
        %v2024 = vld [vmem:[%s1866 + $0x232] sm:$0xff]
        %v2025 = vld [vmem:[%s1866 + $0x242] sm:$0xff]
        %v2026 = vld [vmem:[%s1866 + $0x252] sm:$0xff]
        %v2027 = vld [vmem:[%s1866 + $0x282] sm:$0xff]
        %v2028 = vld [vmem:[%s1866 + $0x292] sm:$0xff]
        %v2029 = vld [vmem:[%s1866 + $0x2a2] sm:$0xff]
        %v2030 = vld [vmem:[%s1866 + $0x2b2] sm:$0xff]
        %v2031 = vld [vmem:[%s1866 + $0x2c2] sm:$0xff]
        %v2032 = vld [vmem:[%s1866 + $0x2d2] sm:$0xff]
        %v2033 = vld [vmem:[%s1866 + $0x2e2] sm:$0xff]
        %v2034 = vld [vmem:[%s1866 + $0x2f2] sm:$0xff]
        %v2035 = vld [vmem:[%s1866 + $0x322] sm:$0xff]
        %v2036 = vld [vmem:[%s1866 + $0x332] sm:$0xff]
        %v2037 = vld [vmem:[%s1866 + $0x342] sm:$0xff]
        %v2038 = vld [vmem:[%s1866 + $0x352] sm:$0xff]
        %v2039 = vld [vmem:[%s1866 + $0x362] sm:$0xff]
        %v2040 = vld [vmem:[%s1866 + $0x372] sm:$0xff]
        %v2041 = vld [vmem:[%s1866 + $0x382] sm:$0xff]
        %v2042 = vld [vmem:[%s1866 + $0x392] sm:$0xff]
        %v2043 = vld [vmem:[%s1866 + $0x3c2] sm:$0xff]
        %v2044 = vld [vmem:[%s1866 + $0x3d2] sm:$0xff]
        %v2045 = vld [vmem:[%s1866 + $0x3e2] sm:$0xff]
        %v2046 = vld [vmem:[%s1866 + $0x3f2] sm:$0xff]
        %v2047 = vld [vmem:[%s1866 + $0x402] sm:$0xff]
        %v2048 = vld [vmem:[%s1866 + $0x412] sm:$0xff]
        %v2049 = vld [vmem:[%s1866 + $0x422] sm:$0xff]
        %v2050 = vld [vmem:[%s1866 + $0x432] sm:$0xff]
        %v2051 = vld [vmem:[%s1866 + $0x462] sm:$0xff]
        %v2052 = vld [vmem:[%s1866 + $0x472] sm:$0xff]
        %v2053 = vld [vmem:[%s1866 + $0x482] sm:$0xff]
        %v2054 = vld [vmem:[%s1866 + $0x492] sm:$0xff]
        %v2055 = vld [vmem:[%s1866 + $0x4a2] sm:$0xff]
        %v2056 = vld [vmem:[%s1866 + $0x4b2] sm:$0xff]
        %v2057 = vld [vmem:[%s1866 + $0x4c2] sm:$0xff]
        %v2058 = vld [vmem:[%s1866 + $0x4d2] sm:$0xff]
        %2123 = vrot.lane.b32.xlu0 %v387, 4
        %v2124 = vpop.permute.xlu0 %2123
        %2125 = vrot.lane.b32.xlu0 %v388, 4
        %v2126 = vpop.permute.xlu0 %2125
        %2127 = vrot.lane.b32.xlu0 %v389, 4
        %v2128 = vpop.permute.xlu0 %2127
        %2129 = vrot.lane.b32.xlu0 %v390, 4
        %v2130 = vpop.permute.xlu0 %2129
        %2131 = vrot.lane.b32.xlu0 %v391, 4
        %v2132 = vpop.permute.xlu0 %2131
        %2133 = vrot.lane.b32.xlu0 %v392, 4
        %v2134 = vpop.permute.xlu0 %2133
        %2135 = vrot.lane.b32.xlu0 %v393, 4
        %v2136 = vpop.permute.xlu0 %2135
        %2137 = vrot.lane.b32.xlu0 %v394, 4
        %v2138 = vpop.permute.xlu0 %2137
        %2139 = vrot.lane.b32.xlu0 %v395, 4
        %v2140 = vpop.permute.xlu0 %2139
        %2141 = vrot.lane.b32.xlu0 %v396, 4
        %v2142 = vpop.permute.xlu0 %2141
        %2143 = vrot.lane.b32.xlu0 %v397, 4
        %v2144 = vpop.permute.xlu0 %2143
        %2145 = vrot.lane.b32.xlu0 %v398, 4
        %v2146 = vpop.permute.xlu0 %2145
        %2147 = vrot.lane.b32.xlu0 %v399, 4
        %v2148 = vpop.permute.xlu0 %2147
        %2149 = vrot.lane.b32.xlu0 %v400, 4
        %v2150 = vpop.permute.xlu0 %2149
        %2151 = vrot.lane.b32.xlu0 %v401, 4
        %v2152 = vpop.permute.xlu0 %2151
        %2153 = vrot.lane.b32.xlu0 %v402, 4
        %v2154 = vpop.permute.xlu0 %2153
        %2155 = vrot.lane.b32.xlu0 %v403, 4
        %v2156 = vpop.permute.xlu0 %2155
        %2157 = vrot.lane.b32.xlu0 %v404, 4
        %v2158 = vpop.permute.xlu0 %2157
        %2159 = vrot.lane.b32.xlu0 %v405, 4
        %v2160 = vpop.permute.xlu0 %2159
        %2161 = vrot.lane.b32.xlu0 %v406, 4
        %v2162 = vpop.permute.xlu0 %2161
        %2163 = vrot.lane.b32.xlu0 %v407, 4
        %v2164 = vpop.permute.xlu0 %2163
        %2165 = vrot.lane.b32.xlu0 %v408, 4
        %v2166 = vpop.permute.xlu0 %2165
        %2167 = vrot.lane.b32.xlu0 %v409, 4
        %v2168 = vpop.permute.xlu0 %2167
        %2169 = vrot.lane.b32.xlu0 %v410, 4
        %v2170 = vpop.permute.xlu0 %2169
        %2171 = vrot.lane.b32.xlu0 %v411, 4
        %v2172 = vpop.permute.xlu0 %2171
        %2173 = vrot.lane.b32.xlu0 %v412, 4
        %v2174 = vpop.permute.xlu0 %2173
        %2175 = vrot.lane.b32.xlu0 %v413, 4
        %v2176 = vpop.permute.xlu0 %2175
        %2177 = vrot.lane.b32.xlu0 %v414, 4
        %v2178 = vpop.permute.xlu0 %2177
        %2179 = vrot.lane.b32.xlu0 %v415, 4
        %v2180 = vpop.permute.xlu0 %2179
        %2181 = vrot.lane.b32.xlu0 %v416, 4
        %v2182 = vpop.permute.xlu0 %2181
        %2183 = vrot.lane.b32.xlu0 %v417, 4
        %v2184 = vpop.permute.xlu0 %2183
        %2185 = vrot.lane.b32.xlu0 %v418, 4
        %v2186 = vpop.permute.xlu0 %2185
        %2187 = vrot.lane.b32.xlu0 %v419, 4
        %v2188 = vpop.permute.xlu0 %2187
        %2189 = vrot.lane.b32.xlu0 %v420, 4
        %v2190 = vpop.permute.xlu0 %2189
        %2191 = vrot.lane.b32.xlu0 %v421, 4
        %v2192 = vpop.permute.xlu0 %2191
        %2193 = vrot.lane.b32.xlu0 %v422, 4
        %v2194 = vpop.permute.xlu0 %2193
        %2195 = vrot.lane.b32.xlu0 %v423, 4
        %v2196 = vpop.permute.xlu0 %2195
        %2197 = vrot.lane.b32.xlu0 %v424, 4
        %v2198 = vpop.permute.xlu0 %2197
        %2199 = vrot.lane.b32.xlu0 %v425, 4
        %v2200 = vpop.permute.xlu0 %2199
        %2201 = vrot.lane.b32.xlu0 %v426, 4
        %v2202 = vpop.permute.xlu0 %2201
        %2203 = vrot.lane.b32.xlu0 %v427, 4
        %v2204 = vpop.permute.xlu0 %2203
        %2205 = vrot.lane.b32.xlu0 %v428, 4
        %v2206 = vpop.permute.xlu0 %2205
        %2207 = vrot.lane.b32.xlu0 %v429, 4
        %v2208 = vpop.permute.xlu0 %2207
        %2209 = vrot.lane.b32.xlu0 %v430, 4
        %v2210 = vpop.permute.xlu0 %2209
        %2211 = vrot.lane.b32.xlu0 %v431, 4
        %v2212 = vpop.permute.xlu0 %2211
        %2213 = vrot.lane.b32.xlu0 %v432, 4
        %v2214 = vpop.permute.xlu0 %2213
        %2215 = vrot.lane.b32.xlu0 %v433, 4
        %v2216 = vpop.permute.xlu0 %2215
        %2217 = vrot.lane.b32.xlu0 %v434, 4
        %v2218 = vpop.permute.xlu0 %2217
        %2219 = vrot.lane.b32.xlu0 %v435, 4
        %v2220 = vpop.permute.xlu0 %2219
        %2221 = vrot.lane.b32.xlu0 %v436, 4
        %v2222 = vpop.permute.xlu0 %2221
        %2223 = vrot.lane.b32.xlu0 %v437, 4
        %v2224 = vpop.permute.xlu0 %2223
        %2225 = vrot.lane.b32.xlu0 %v438, 4
        %v2226 = vpop.permute.xlu0 %2225
        %2227 = vrot.lane.b32.xlu0 %v439, 4
        %v2228 = vpop.permute.xlu0 %2227
        %2229 = vrot.lane.b32.xlu0 %v440, 4
        %v2230 = vpop.permute.xlu0 %2229
        %2231 = vrot.lane.b32.xlu0 %v441, 4
        %v2232 = vpop.permute.xlu0 %2231
        %2233 = vrot.lane.b32.xlu0 %v442, 4
        %v2234 = vpop.permute.xlu0 %2233
        %2235 = vrot.lane.b32.xlu0 %v443, 4
        %v2236 = vpop.permute.xlu0 %2235
        %2237 = vrot.lane.b32.xlu0 %v444, 4
        %v2238 = vpop.permute.xlu0 %2237
        %2239 = vrot.lane.b32.xlu0 %v445, 4
        %v2240 = vpop.permute.xlu0 %2239
        %2241 = vrot.lane.b32.xlu0 %v446, 4
        %v2242 = vpop.permute.xlu0 %2241
        %2243 = vrot.lane.b32.xlu0 %v447, 4
        %v2244 = vpop.permute.xlu0 %2243
        %2245 = vrot.lane.b32.xlu0 %v448, 4
        %v2246 = vpop.permute.xlu0 %2245
        %2247 = vrot.lane.b32.xlu0 %v449, 4
        %v2248 = vpop.permute.xlu0 %2247
        %2249 = vrot.lane.b32.xlu0 %v450, 4
        %v2250 = vpop.permute.xlu0 %2249
        %2379 = vrot.lane.b32.xlu0 %v451, 8
        %v2380 = vpop.permute.xlu0 %2379
        %2381 = vrot.lane.b32.xlu0 %v452, 8
        %v2382 = vpop.permute.xlu0 %2381
        %2383 = vrot.lane.b32.xlu0 %v453, 8
        %v2384 = vpop.permute.xlu0 %2383
        %2385 = vrot.lane.b32.xlu0 %v454, 8
        %v2386 = vpop.permute.xlu0 %2385
        %2387 = vrot.lane.b32.xlu0 %v455, 8
        %v2388 = vpop.permute.xlu0 %2387
        %2389 = vrot.lane.b32.xlu0 %v456, 8
        %v2390 = vpop.permute.xlu0 %2389
        %2391 = vrot.lane.b32.xlu0 %v457, 8
        %v2392 = vpop.permute.xlu0 %2391
        %2393 = vrot.lane.b32.xlu0 %v458, 8
        %v2394 = vpop.permute.xlu0 %2393
        %2395 = vrot.lane.b32.xlu0 %v459, 8
        %v2396 = vpop.permute.xlu0 %2395
        %2397 = vrot.lane.b32.xlu0 %v460, 8
        %v2398 = vpop.permute.xlu0 %2397
        %2399 = vrot.lane.b32.xlu0 %v461, 8
        %v2400 = vpop.permute.xlu0 %2399
        %2401 = vrot.lane.b32.xlu0 %v462, 8
        %v2402 = vpop.permute.xlu0 %2401
        %2403 = vrot.lane.b32.xlu0 %v463, 8
        %v2404 = vpop.permute.xlu0 %2403
        %2405 = vrot.lane.b32.xlu0 %v464, 8
        %v2406 = vpop.permute.xlu0 %2405
        %2407 = vrot.lane.b32.xlu0 %v465, 8
        %v2408 = vpop.permute.xlu0 %2407
        %2409 = vrot.lane.b32.xlu0 %v466, 8
        %v2410 = vpop.permute.xlu0 %2409
        %2411 = vrot.lane.b32.xlu0 %v467, 8
        %v2412 = vpop.permute.xlu0 %2411
        %2413 = vrot.lane.b32.xlu0 %v468, 8
        %v2414 = vpop.permute.xlu0 %2413
        %2415 = vrot.lane.b32.xlu0 %v469, 8
        %v2416 = vpop.permute.xlu0 %2415
        %2417 = vrot.lane.b32.xlu0 %v470, 8
        %v2418 = vpop.permute.xlu0 %2417
        %2419 = vrot.lane.b32.xlu0 %v471, 8
        %v2420 = vpop.permute.xlu0 %2419
        %2421 = vrot.lane.b32.xlu0 %v472, 8
        %v2422 = vpop.permute.xlu0 %2421
        %2423 = vrot.lane.b32.xlu0 %v473, 8
        %v2424 = vpop.permute.xlu0 %2423
        %2425 = vrot.lane.b32.xlu0 %v474, 8
        %v2426 = vpop.permute.xlu0 %2425
        %2427 = vrot.lane.b32.xlu0 %v475, 8
        %v2428 = vpop.permute.xlu0 %2427
        %2429 = vrot.lane.b32.xlu0 %v476, 8
        %v2430 = vpop.permute.xlu0 %2429
        %2431 = vrot.lane.b32.xlu0 %v477, 8
        %v2432 = vpop.permute.xlu0 %2431
        %2433 = vrot.lane.b32.xlu0 %v478, 8
        %v2434 = vpop.permute.xlu0 %2433
        %2435 = vrot.lane.b32.xlu0 %v479, 8
        %v2436 = vpop.permute.xlu0 %2435
        %2437 = vrot.lane.b32.xlu0 %v480, 8
        %v2438 = vpop.permute.xlu0 %2437
        %2439 = vrot.lane.b32.xlu0 %v481, 8
        %v2440 = vpop.permute.xlu0 %2439
        %2441 = vrot.lane.b32.xlu0 %v482, 8
        %v2442 = vpop.permute.xlu0 %2441
        %2443 = vrot.lane.b32.xlu0 %v483, 8
        %v2444 = vpop.permute.xlu0 %2443
        %2445 = vrot.lane.b32.xlu0 %v484, 8
        %v2446 = vpop.permute.xlu0 %2445
        %2447 = vrot.lane.b32.xlu0 %v485, 8
        %v2448 = vpop.permute.xlu0 %2447
        %2449 = vrot.lane.b32.xlu0 %v486, 8
        %v2450 = vpop.permute.xlu0 %2449
        %2451 = vrot.lane.b32.xlu0 %v487, 8
        %v2452 = vpop.permute.xlu0 %2451
        %2453 = vrot.lane.b32.xlu0 %v488, 8
        %v2454 = vpop.permute.xlu0 %2453
        %2455 = vrot.lane.b32.xlu0 %v489, 8
        %v2456 = vpop.permute.xlu0 %2455
        %2457 = vrot.lane.b32.xlu0 %v490, 8
        %v2458 = vpop.permute.xlu0 %2457
        %2459 = vrot.lane.b32.xlu0 %v491, 8
        %v2460 = vpop.permute.xlu0 %2459
        %2461 = vrot.lane.b32.xlu0 %v492, 8
        %v2462 = vpop.permute.xlu0 %2461
        %2463 = vrot.lane.b32.xlu0 %v493, 8
        %v2464 = vpop.permute.xlu0 %2463
        %2465 = vrot.lane.b32.xlu0 %v494, 8
        %v2466 = vpop.permute.xlu0 %2465
        %2467 = vrot.lane.b32.xlu0 %v495, 8
        %v2468 = vpop.permute.xlu0 %2467
        %2469 = vrot.lane.b32.xlu0 %v496, 8
        %v2470 = vpop.permute.xlu0 %2469
        %2471 = vrot.lane.b32.xlu0 %v497, 8
        %v2472 = vpop.permute.xlu0 %2471
        %2473 = vrot.lane.b32.xlu0 %v498, 8
        %v2474 = vpop.permute.xlu0 %2473
        %2475 = vrot.lane.b32.xlu0 %v499, 8
        %v2476 = vpop.permute.xlu0 %2475
        %2477 = vrot.lane.b32.xlu0 %v500, 8
        %v2478 = vpop.permute.xlu0 %2477
        %2479 = vrot.lane.b32.xlu0 %v501, 8
        %v2480 = vpop.permute.xlu0 %2479
        %2481 = vrot.lane.b32.xlu0 %v502, 8
        %v2482 = vpop.permute.xlu0 %2481
        %2483 = vrot.lane.b32.xlu0 %v503, 8
        %v2484 = vpop.permute.xlu0 %2483
        %2485 = vrot.lane.b32.xlu0 %v504, 8
        %v2486 = vpop.permute.xlu0 %2485
        %2487 = vrot.lane.b32.xlu0 %v505, 8
        %v2488 = vpop.permute.xlu0 %2487
        %2489 = vrot.lane.b32.xlu0 %v506, 8
        %v2490 = vpop.permute.xlu0 %2489
        %2491 = vrot.lane.b32.xlu0 %v507, 8
        %v2492 = vpop.permute.xlu0 %2491
        %2493 = vrot.lane.b32.xlu0 %v508, 8
        %v2494 = vpop.permute.xlu0 %2493
        %2495 = vrot.lane.b32.xlu0 %v509, 8
        %v2496 = vpop.permute.xlu0 %2495
        %2497 = vrot.lane.b32.xlu0 %v510, 8
        %v2498 = vpop.permute.xlu0 %2497
        %2499 = vrot.lane.b32.xlu0 %v511, 8
        %v2500 = vpop.permute.xlu0 %2499
        %2501 = vrot.lane.b32.xlu0 %v512, 8
        %v2502 = vpop.permute.xlu0 %2501
        %2503 = vrot.lane.b32.xlu0 %v513, 8
        %v2504 = vpop.permute.xlu0 %2503
        %2505 = vrot.lane.b32.xlu0 %v514, 8
        %v2506 = vpop.permute.xlu0 %2505
        %2635 = vrot.lane.b32.xlu0 %v516, 12
        %v2636 = vpop.permute.xlu0 %2635
        %2637 = vrot.lane.b32.xlu0 %v517, 12
        %v2638 = vpop.permute.xlu0 %2637
        %2639 = vrot.lane.b32.xlu0 %v518, 12
        %v2640 = vpop.permute.xlu0 %2639
        %2641 = vrot.lane.b32.xlu0 %v519, 12
        %v2642 = vpop.permute.xlu0 %2641
        %2643 = vrot.lane.b32.xlu0 %v520, 12
        %v2644 = vpop.permute.xlu0 %2643
        %2645 = vrot.lane.b32.xlu0 %v521, 12
        %v2646 = vpop.permute.xlu0 %2645
        %2647 = vrot.lane.b32.xlu0 %v522, 12
        %v2648 = vpop.permute.xlu0 %2647
        %2649 = vrot.lane.b32.xlu0 %v523, 12
        %v2650 = vpop.permute.xlu0 %2649
        %2651 = vrot.lane.b32.xlu0 %v524, 12
        %v2652 = vpop.permute.xlu0 %2651
        %2653 = vrot.lane.b32.xlu0 %v525, 12
        %v2654 = vpop.permute.xlu0 %2653
        %2655 = vrot.lane.b32.xlu0 %v526, 12
        %v2656 = vpop.permute.xlu0 %2655
        %2657 = vrot.lane.b32.xlu0 %v527, 12
        %v2658 = vpop.permute.xlu0 %2657
        %2659 = vrot.lane.b32.xlu0 %v528, 12
        %v2660 = vpop.permute.xlu0 %2659
        %2661 = vrot.lane.b32.xlu0 %v529, 12
        %v2662 = vpop.permute.xlu0 %2661
        %2663 = vrot.lane.b32.xlu0 %v530, 12
        %v2664 = vpop.permute.xlu0 %2663
        %2665 = vrot.lane.b32.xlu0 %v531, 12
        %v2666 = vpop.permute.xlu0 %2665
        %2667 = vrot.lane.b32.xlu0 %v532, 12
        %v2668 = vpop.permute.xlu0 %2667
        %2669 = vrot.lane.b32.xlu0 %v533, 12
        %v2670 = vpop.permute.xlu0 %2669
        %2671 = vrot.lane.b32.xlu0 %v534, 12
        %v2672 = vpop.permute.xlu0 %2671
        %2673 = vrot.lane.b32.xlu0 %v535, 12
        %v2674 = vpop.permute.xlu0 %2673
        %2675 = vrot.lane.b32.xlu0 %v536, 12
        %v2676 = vpop.permute.xlu0 %2675
        %2677 = vrot.lane.b32.xlu0 %v537, 12
        %v2678 = vpop.permute.xlu0 %2677
        %2679 = vrot.lane.b32.xlu0 %v538, 12
        %v2680 = vpop.permute.xlu0 %2679
        %2681 = vrot.lane.b32.xlu0 %v539, 12
        %v2682 = vpop.permute.xlu0 %2681
        %2683 = vrot.lane.b32.xlu0 %v540, 12
        %v2684 = vpop.permute.xlu0 %2683
        %2685 = vrot.lane.b32.xlu0 %v541, 12
        %v2686 = vpop.permute.xlu0 %2685
        %2687 = vrot.lane.b32.xlu0 %v542, 12
        %v2688 = vpop.permute.xlu0 %2687
        %2689 = vrot.lane.b32.xlu0 %v543, 12
        %v2690 = vpop.permute.xlu0 %2689
        %2691 = vrot.lane.b32.xlu0 %v544, 12
        %v2692 = vpop.permute.xlu0 %2691
        %2693 = vrot.lane.b32.xlu0 %v545, 12
        %v2694 = vpop.permute.xlu0 %2693
        %2695 = vrot.lane.b32.xlu0 %v546, 12
        %v2696 = vpop.permute.xlu0 %2695
        %2697 = vrot.lane.b32.xlu0 %v547, 12
        %v2698 = vpop.permute.xlu0 %2697
        %2699 = vrot.lane.b32.xlu0 %v548, 12
        %v2700 = vpop.permute.xlu0 %2699
        %2701 = vrot.lane.b32.xlu0 %v549, 12
        %v2702 = vpop.permute.xlu0 %2701
        %2703 = vrot.lane.b32.xlu0 %v550, 12
        %v2704 = vpop.permute.xlu0 %2703
        %2705 = vrot.lane.b32.xlu0 %v551, 12
        %v2706 = vpop.permute.xlu0 %2705
        %2707 = vrot.lane.b32.xlu0 %v552, 12
        %v2708 = vpop.permute.xlu0 %2707
        %2709 = vrot.lane.b32.xlu0 %v553, 12
        %v2710 = vpop.permute.xlu0 %2709
        %2711 = vrot.lane.b32.xlu0 %v554, 12
        %v2712 = vpop.permute.xlu0 %2711
        %2713 = vrot.lane.b32.xlu0 %v555, 12
        %v2714 = vpop.permute.xlu0 %2713
        %2715 = vrot.lane.b32.xlu0 %v556, 12
        %v2716 = vpop.permute.xlu0 %2715
        %2717 = vrot.lane.b32.xlu0 %v557, 12
        %v2718 = vpop.permute.xlu0 %2717
        %2719 = vrot.lane.b32.xlu0 %v558, 12
        %v2720 = vpop.permute.xlu0 %2719
        %2721 = vrot.lane.b32.xlu0 %v559, 12
        %v2722 = vpop.permute.xlu0 %2721
        %2723 = vrot.lane.b32.xlu0 %v560, 12
        %v2724 = vpop.permute.xlu0 %2723
        %2725 = vrot.lane.b32.xlu0 %v561, 12
        %v2726 = vpop.permute.xlu0 %2725
        %2727 = vrot.lane.b32.xlu0 %v562, 12
        %v2728 = vpop.permute.xlu0 %2727
        %2729 = vrot.lane.b32.xlu0 %v563, 12
        %v2730 = vpop.permute.xlu0 %2729
        %2731 = vrot.lane.b32.xlu0 %v564, 12
        %v2732 = vpop.permute.xlu0 %2731
        %2733 = vrot.lane.b32.xlu0 %v565, 12
        %v2734 = vpop.permute.xlu0 %2733
        %2735 = vrot.lane.b32.xlu0 %v566, 12
        %v2736 = vpop.permute.xlu0 %2735
        %2737 = vrot.lane.b32.xlu0 %v567, 12
        %v2738 = vpop.permute.xlu0 %2737
        %2739 = vrot.lane.b32.xlu0 %v568, 12
        %v2740 = vpop.permute.xlu0 %2739
        %2741 = vrot.lane.b32.xlu0 %v569, 12
        %v2742 = vpop.permute.xlu0 %2741
        %2743 = vrot.lane.b32.xlu0 %v570, 12
        %v2744 = vpop.permute.xlu0 %2743
        %2745 = vrot.lane.b32.xlu0 %v571, 12
        %v2746 = vpop.permute.xlu0 %2745
        %2747 = vrot.lane.b32.xlu0 %v572, 12
        %v2748 = vpop.permute.xlu0 %2747
        %2749 = vrot.lane.b32.xlu0 %v573, 12
        %v2750 = vpop.permute.xlu0 %2749
        %2751 = vrot.lane.b32.xlu0 %v574, 12
        %v2752 = vpop.permute.xlu0 %2751
        %2753 = vrot.lane.b32.xlu0 %v575, 12
        %v2754 = vpop.permute.xlu0 %2753
        %2755 = vrot.lane.b32.xlu0 %v576, 12
        %v2756 = vpop.permute.xlu0 %2755
        %2757 = vrot.lane.b32.xlu0 %v577, 12
        %v2758 = vpop.permute.xlu0 %2757
        %2759 = vrot.lane.b32.xlu0 %v578, 12
        %v2760 = vpop.permute.xlu0 %2759
        %2761 = vrot.lane.b32.xlu0 %v579, 12
        %v2762 = vpop.permute.xlu0 %2761
        %2891 = vrot.lane.b32.xlu0 %v580, 16
        %v2892 = vpop.permute.xlu0 %2891
        %2893 = vrot.lane.b32.xlu0 %v581, 16
        %v2894 = vpop.permute.xlu0 %2893
        %2895 = vrot.lane.b32.xlu0 %v582, 16
        %v2896 = vpop.permute.xlu0 %2895
        %2897 = vrot.lane.b32.xlu0 %v583, 16
        %v2898 = vpop.permute.xlu0 %2897
        %2899 = vrot.lane.b32.xlu0 %v584, 16
        %v2900 = vpop.permute.xlu0 %2899
        %2901 = vrot.lane.b32.xlu0 %v585, 16
        %v2902 = vpop.permute.xlu0 %2901
        %2903 = vrot.lane.b32.xlu0 %v586, 16
        %v2904 = vpop.permute.xlu0 %2903
        %2905 = vrot.lane.b32.xlu0 %v587, 16
        %v2906 = vpop.permute.xlu0 %2905
        %2907 = vrot.lane.b32.xlu0 %v588, 16
        %v2908 = vpop.permute.xlu0 %2907
        %2909 = vrot.lane.b32.xlu0 %v589, 16
        %v2910 = vpop.permute.xlu0 %2909
        %2911 = vrot.lane.b32.xlu0 %v590, 16
        %v2912 = vpop.permute.xlu0 %2911
        %2913 = vrot.lane.b32.xlu0 %v591, 16
        %v2914 = vpop.permute.xlu0 %2913
        %2915 = vrot.lane.b32.xlu0 %v592, 16
        %v2916 = vpop.permute.xlu0 %2915
        %2917 = vrot.lane.b32.xlu0 %v593, 16
        %v2918 = vpop.permute.xlu0 %2917
        %2919 = vrot.lane.b32.xlu0 %v594, 16
        %v2920 = vpop.permute.xlu0 %2919
        %2921 = vrot.lane.b32.xlu0 %v595, 16
        %v2922 = vpop.permute.xlu0 %2921
        %2923 = vrot.lane.b32.xlu0 %v596, 16
        %v2924 = vpop.permute.xlu0 %2923
        %2925 = vrot.lane.b32.xlu0 %v597, 16
        %v2926 = vpop.permute.xlu0 %2925
        %2927 = vrot.lane.b32.xlu0 %v598, 16
        %v2928 = vpop.permute.xlu0 %2927
        %2929 = vrot.lane.b32.xlu0 %v599, 16
        %v2930 = vpop.permute.xlu0 %2929
        %2931 = vrot.lane.b32.xlu0 %v600, 16
        %v2932 = vpop.permute.xlu0 %2931
        %2933 = vrot.lane.b32.xlu0 %v601, 16
        %v2934 = vpop.permute.xlu0 %2933
        %2935 = vrot.lane.b32.xlu0 %v602, 16
        %v2936 = vpop.permute.xlu0 %2935
        %2937 = vrot.lane.b32.xlu0 %v603, 16
        %v2938 = vpop.permute.xlu0 %2937
        %2939 = vrot.lane.b32.xlu0 %v604, 16
        %v2940 = vpop.permute.xlu0 %2939
        %2941 = vrot.lane.b32.xlu0 %v605, 16
        %v2942 = vpop.permute.xlu0 %2941
        %2943 = vrot.lane.b32.xlu0 %v606, 16
        %v2944 = vpop.permute.xlu0 %2943
        %2945 = vrot.lane.b32.xlu0 %v607, 16
        %v2946 = vpop.permute.xlu0 %2945
        %2947 = vrot.lane.b32.xlu0 %v608, 16
        %v2948 = vpop.permute.xlu0 %2947
        %2949 = vrot.lane.b32.xlu0 %v609, 16
        %v2950 = vpop.permute.xlu0 %2949
        %2951 = vrot.lane.b32.xlu0 %v610, 16
        %v2952 = vpop.permute.xlu0 %2951
        %2953 = vrot.lane.b32.xlu0 %v611, 16
        %v2954 = vpop.permute.xlu0 %2953
        %2955 = vrot.lane.b32.xlu0 %v612, 16
        %v2956 = vpop.permute.xlu0 %2955
        %2957 = vrot.lane.b32.xlu0 %v613, 16
        %v2958 = vpop.permute.xlu0 %2957
        %2959 = vrot.lane.b32.xlu0 %v614, 16
        %v2960 = vpop.permute.xlu0 %2959
        %2961 = vrot.lane.b32.xlu0 %v615, 16
        %v2962 = vpop.permute.xlu0 %2961
        %2963 = vrot.lane.b32.xlu0 %v616, 16
        %v2964 = vpop.permute.xlu0 %2963
        %2965 = vrot.lane.b32.xlu0 %v617, 16
        %v2966 = vpop.permute.xlu0 %2965
        %2967 = vrot.lane.b32.xlu0 %v618, 16
        %v2968 = vpop.permute.xlu0 %2967
        %2969 = vrot.lane.b32.xlu0 %v619, 16
        %v2970 = vpop.permute.xlu0 %2969
        %2971 = vrot.lane.b32.xlu0 %v620, 16
        %v2972 = vpop.permute.xlu0 %2971
        %2973 = vrot.lane.b32.xlu0 %v621, 16
        %v2974 = vpop.permute.xlu0 %2973
        %2975 = vrot.lane.b32.xlu0 %v622, 16
        %v2976 = vpop.permute.xlu0 %2975
        %2977 = vrot.lane.b32.xlu0 %v623, 16
        %v2978 = vpop.permute.xlu0 %2977
        %2979 = vrot.lane.b32.xlu0 %v624, 16
        %v2980 = vpop.permute.xlu0 %2979
        %2981 = vrot.lane.b32.xlu0 %v625, 16
        %v2982 = vpop.permute.xlu0 %2981
        %2983 = vrot.lane.b32.xlu0 %v626, 16
        %v2984 = vpop.permute.xlu0 %2983
        %2985 = vrot.lane.b32.xlu0 %v627, 16
        %v2986 = vpop.permute.xlu0 %2985
        %2987 = vrot.lane.b32.xlu0 %v628, 16
        %v2988 = vpop.permute.xlu0 %2987
        %2989 = vrot.lane.b32.xlu0 %v629, 16
        %v2990 = vpop.permute.xlu0 %2989
        %2991 = vrot.lane.b32.xlu0 %v630, 16
        %v2992 = vpop.permute.xlu0 %2991
        %2993 = vrot.lane.b32.xlu0 %v631, 16
        %v2994 = vpop.permute.xlu0 %2993
        %2995 = vrot.lane.b32.xlu0 %v632, 16
        %v2996 = vpop.permute.xlu0 %2995
        %2997 = vrot.lane.b32.xlu0 %v633, 16
        %v2998 = vpop.permute.xlu0 %2997
        %2999 = vrot.lane.b32.xlu0 %v634, 16
        %v3000 = vpop.permute.xlu0 %2999
        %3001 = vrot.lane.b32.xlu0 %v635, 16
        %v3002 = vpop.permute.xlu0 %3001
        %3003 = vrot.lane.b32.xlu0 %v636, 16
        %v3004 = vpop.permute.xlu0 %3003
        %3005 = vrot.lane.b32.xlu0 %v637, 16
        %v3006 = vpop.permute.xlu0 %3005
        %3007 = vrot.lane.b32.xlu0 %v638, 16
        %v3008 = vpop.permute.xlu0 %3007
        %3009 = vrot.lane.b32.xlu0 %v639, 16
        %v3010 = vpop.permute.xlu0 %3009
        %3011 = vrot.lane.b32.xlu0 %v640, 16
        %v3012 = vpop.permute.xlu0 %3011
        %3013 = vrot.lane.b32.xlu0 %v641, 16
        %v3014 = vpop.permute.xlu0 %3013
        %3015 = vrot.lane.b32.xlu0 %v642, 16
        %v3016 = vpop.permute.xlu0 %3015
        %3017 = vrot.lane.b32.xlu0 %v643, 16
        %v3018 = vpop.permute.xlu0 %3017
        %3147 = vrot.lane.b32.xlu0 %v644, 20
        %v3148 = vpop.permute.xlu0 %3147
        %3149 = vrot.lane.b32.xlu0 %v645, 20
        %v3150 = vpop.permute.xlu0 %3149
        %3151 = vrot.lane.b32.xlu0 %v646, 20
        %v3152 = vpop.permute.xlu0 %3151
        %3153 = vrot.lane.b32.xlu0 %v647, 20
        %v3154 = vpop.permute.xlu0 %3153
        %3155 = vrot.lane.b32.xlu0 %v648, 20
        %v3156 = vpop.permute.xlu0 %3155
        %3157 = vrot.lane.b32.xlu0 %v649, 20
        %v3158 = vpop.permute.xlu0 %3157
        %3159 = vrot.lane.b32.xlu0 %v650, 20
        %v3160 = vpop.permute.xlu0 %3159
        %3161 = vrot.lane.b32.xlu0 %v651, 20
        %v3162 = vpop.permute.xlu0 %3161
        %3163 = vrot.lane.b32.xlu0 %v652, 20
        %v3164 = vpop.permute.xlu0 %3163
        %3165 = vrot.lane.b32.xlu0 %v653, 20
        %v3166 = vpop.permute.xlu0 %3165
        %3167 = vrot.lane.b32.xlu0 %v654, 20
        %v3168 = vpop.permute.xlu0 %3167
        %3169 = vrot.lane.b32.xlu0 %v655, 20
        %v3170 = vpop.permute.xlu0 %3169
        %3171 = vrot.lane.b32.xlu0 %v656, 20
        %v3172 = vpop.permute.xlu0 %3171
        %3173 = vrot.lane.b32.xlu0 %v657, 20
        %v3174 = vpop.permute.xlu0 %3173
        %3175 = vrot.lane.b32.xlu0 %v658, 20
        %v3176 = vpop.permute.xlu0 %3175
        %3177 = vrot.lane.b32.xlu0 %v659, 20
        %v3178 = vpop.permute.xlu0 %3177
        %3179 = vrot.lane.b32.xlu0 %v660, 20
        %v3180 = vpop.permute.xlu0 %3179
        %3181 = vrot.lane.b32.xlu0 %v661, 20
        %v3182 = vpop.permute.xlu0 %3181
        %3183 = vrot.lane.b32.xlu0 %v662, 20
        %v3184 = vpop.permute.xlu0 %3183
        %3185 = vrot.lane.b32.xlu0 %v663, 20
        %v3186 = vpop.permute.xlu0 %3185
        %3187 = vrot.lane.b32.xlu0 %v664, 20
        %v3188 = vpop.permute.xlu0 %3187
        %3189 = vrot.lane.b32.xlu0 %v665, 20
        %v3190 = vpop.permute.xlu0 %3189
        %3191 = vrot.lane.b32.xlu0 %v666, 20
        %v3192 = vpop.permute.xlu0 %3191
        %3193 = vrot.lane.b32.xlu0 %v667, 20
        %v3194 = vpop.permute.xlu0 %3193
        %3195 = vrot.lane.b32.xlu0 %v668, 20
        %v3196 = vpop.permute.xlu0 %3195
        %3197 = vrot.lane.b32.xlu0 %v669, 20
        %v3198 = vpop.permute.xlu0 %3197
        %3199 = vrot.lane.b32.xlu0 %v670, 20
        %v3200 = vpop.permute.xlu0 %3199
        %3201 = vrot.lane.b32.xlu0 %v671, 20
        %v3202 = vpop.permute.xlu0 %3201
        %3203 = vrot.lane.b32.xlu0 %v672, 20
        %v3204 = vpop.permute.xlu0 %3203
        %3205 = vrot.lane.b32.xlu0 %v673, 20
        %v3206 = vpop.permute.xlu0 %3205
        %3207 = vrot.lane.b32.xlu0 %v674, 20
        %v3208 = vpop.permute.xlu0 %3207
        %3209 = vrot.lane.b32.xlu0 %v675, 20
        %v3210 = vpop.permute.xlu0 %3209
        %3211 = vrot.lane.b32.xlu0 %v676, 20
        %v3212 = vpop.permute.xlu0 %3211
        %3213 = vrot.lane.b32.xlu0 %v677, 20
        %v3214 = vpop.permute.xlu0 %3213
        %3215 = vrot.lane.b32.xlu0 %v678, 20
        %v3216 = vpop.permute.xlu0 %3215
        %3217 = vrot.lane.b32.xlu0 %v679, 20
        %v3218 = vpop.permute.xlu0 %3217
        %3219 = vrot.lane.b32.xlu0 %v680, 20
        %v3220 = vpop.permute.xlu0 %3219
        %3221 = vrot.lane.b32.xlu0 %v681, 20
        %v3222 = vpop.permute.xlu0 %3221
        %3223 = vrot.lane.b32.xlu0 %v682, 20
        %v3224 = vpop.permute.xlu0 %3223
        %3225 = vrot.lane.b32.xlu0 %v683, 20
        %v3226 = vpop.permute.xlu0 %3225
        %3227 = vrot.lane.b32.xlu0 %v684, 20
        %v3228 = vpop.permute.xlu0 %3227
        %3229 = vrot.lane.b32.xlu0 %v685, 20
        %v3230 = vpop.permute.xlu0 %3229
        %3231 = vrot.lane.b32.xlu0 %v686, 20
        %v3232 = vpop.permute.xlu0 %3231
        %3233 = vrot.lane.b32.xlu0 %v687, 20
        %v3234 = vpop.permute.xlu0 %3233
        %3235 = vrot.lane.b32.xlu0 %v688, 20
        %v3236 = vpop.permute.xlu0 %3235
        %3237 = vrot.lane.b32.xlu0 %v689, 20
        %v3238 = vpop.permute.xlu0 %3237
        %3239 = vrot.lane.b32.xlu0 %v690, 20
        %v3240 = vpop.permute.xlu0 %3239
        %3241 = vrot.lane.b32.xlu0 %v691, 20
        %v3242 = vpop.permute.xlu0 %3241
        %3243 = vrot.lane.b32.xlu0 %v692, 20
        %v3244 = vpop.permute.xlu0 %3243
        %3245 = vrot.lane.b32.xlu0 %v693, 20
        %v3246 = vpop.permute.xlu0 %3245
        %3247 = vrot.lane.b32.xlu0 %v694, 20
        %v3248 = vpop.permute.xlu0 %3247
        %3249 = vrot.lane.b32.xlu0 %v695, 20
        %v3250 = vpop.permute.xlu0 %3249
        %3251 = vrot.lane.b32.xlu0 %v696, 20
        %v3252 = vpop.permute.xlu0 %3251
        %3253 = vrot.lane.b32.xlu0 %v697, 20
        %v3254 = vpop.permute.xlu0 %3253
        %3255 = vrot.lane.b32.xlu0 %v698, 20
        %v3256 = vpop.permute.xlu0 %3255
        %3257 = vrot.lane.b32.xlu0 %v699, 20
        %v3258 = vpop.permute.xlu0 %3257
        %3259 = vrot.lane.b32.xlu0 %v700, 20
        %v3260 = vpop.permute.xlu0 %3259
        %3261 = vrot.lane.b32.xlu0 %v701, 20
        %v3262 = vpop.permute.xlu0 %3261
        %3263 = vrot.lane.b32.xlu0 %v702, 20
        %v3264 = vpop.permute.xlu0 %3263
        %3265 = vrot.lane.b32.xlu0 %v703, 20
        %v3266 = vpop.permute.xlu0 %3265
        %3267 = vrot.lane.b32.xlu0 %v704, 20
        %v3268 = vpop.permute.xlu0 %3267
        %3269 = vrot.lane.b32.xlu0 %v705, 20
        %v3270 = vpop.permute.xlu0 %3269
        %3271 = vrot.lane.b32.xlu0 %v706, 20
        %v3272 = vpop.permute.xlu0 %3271
        %3273 = vrot.lane.b32.xlu0 %v707, 20
        %v3274 = vpop.permute.xlu0 %3273
        %3403 = vrot.lane.b32.xlu0 %v709, 24
        %v3404 = vpop.permute.xlu0 %3403
        %3405 = vrot.lane.b32.xlu0 %v710, 24
        %v3406 = vpop.permute.xlu0 %3405
        %3407 = vrot.lane.b32.xlu0 %v711, 24
        %v3408 = vpop.permute.xlu0 %3407
        %3409 = vrot.lane.b32.xlu0 %v712, 24
        %v3410 = vpop.permute.xlu0 %3409
        %3411 = vrot.lane.b32.xlu0 %v713, 24
        %v3412 = vpop.permute.xlu0 %3411
        %3413 = vrot.lane.b32.xlu0 %v714, 24
        %v3414 = vpop.permute.xlu0 %3413
        %3415 = vrot.lane.b32.xlu0 %v715, 24
        %v3416 = vpop.permute.xlu0 %3415
        %3417 = vrot.lane.b32.xlu0 %v716, 24
        %v3418 = vpop.permute.xlu0 %3417
        %3419 = vrot.lane.b32.xlu0 %v717, 24
        %v3420 = vpop.permute.xlu0 %3419
        %3421 = vrot.lane.b32.xlu0 %v718, 24
        %v3422 = vpop.permute.xlu0 %3421
        %3423 = vrot.lane.b32.xlu0 %v719, 24
        %v3424 = vpop.permute.xlu0 %3423
        %3425 = vrot.lane.b32.xlu0 %v720, 24
        %v3426 = vpop.permute.xlu0 %3425
        %3427 = vrot.lane.b32.xlu0 %v721, 24
        %v3428 = vpop.permute.xlu0 %3427
        %3429 = vrot.lane.b32.xlu0 %v722, 24
        %v3430 = vpop.permute.xlu0 %3429
        %3431 = vrot.lane.b32.xlu0 %v723, 24
        %v3432 = vpop.permute.xlu0 %3431
        %3433 = vrot.lane.b32.xlu0 %v724, 24
        %v3434 = vpop.permute.xlu0 %3433
        %3435 = vrot.lane.b32.xlu0 %v725, 24
        %v3436 = vpop.permute.xlu0 %3435
        %3437 = vrot.lane.b32.xlu0 %v726, 24
        %v3438 = vpop.permute.xlu0 %3437
        %3439 = vrot.lane.b32.xlu0 %v727, 24
        %v3440 = vpop.permute.xlu0 %3439
        %3441 = vrot.lane.b32.xlu0 %v728, 24
        %v3442 = vpop.permute.xlu0 %3441
        %3443 = vrot.lane.b32.xlu0 %v729, 24
        %v3444 = vpop.permute.xlu0 %3443
        %3445 = vrot.lane.b32.xlu0 %v730, 24
        %v3446 = vpop.permute.xlu0 %3445
        %3447 = vrot.lane.b32.xlu0 %v731, 24
        %v3448 = vpop.permute.xlu0 %3447
        %3449 = vrot.lane.b32.xlu0 %v732, 24
        %v3450 = vpop.permute.xlu0 %3449
        %3451 = vrot.lane.b32.xlu0 %v733, 24
        %v3452 = vpop.permute.xlu0 %3451
        %3453 = vrot.lane.b32.xlu0 %v734, 24
        %v3454 = vpop.permute.xlu0 %3453
        %3455 = vrot.lane.b32.xlu0 %v735, 24
        %v3456 = vpop.permute.xlu0 %3455
        %3457 = vrot.lane.b32.xlu0 %v736, 24
        %v3458 = vpop.permute.xlu0 %3457
        %3459 = vrot.lane.b32.xlu0 %v737, 24
        %v3460 = vpop.permute.xlu0 %3459
        %3461 = vrot.lane.b32.xlu0 %v738, 24
        %v3462 = vpop.permute.xlu0 %3461
        %3463 = vrot.lane.b32.xlu0 %v739, 24
        %v3464 = vpop.permute.xlu0 %3463
        %3465 = vrot.lane.b32.xlu0 %v740, 24
        %v3466 = vpop.permute.xlu0 %3465
        %3467 = vrot.lane.b32.xlu0 %v741, 24
        %v3468 = vpop.permute.xlu0 %3467
        %3469 = vrot.lane.b32.xlu0 %v742, 24
        %v3470 = vpop.permute.xlu0 %3469
        %3471 = vrot.lane.b32.xlu0 %v743, 24
        %v3472 = vpop.permute.xlu0 %3471
        %3473 = vrot.lane.b32.xlu0 %v744, 24
        %v3474 = vpop.permute.xlu0 %3473
        %3475 = vrot.lane.b32.xlu0 %v745, 24
        %v3476 = vpop.permute.xlu0 %3475
        %3477 = vrot.lane.b32.xlu0 %v746, 24
        %v3478 = vpop.permute.xlu0 %3477
        %3479 = vrot.lane.b32.xlu0 %v747, 24
        %v3480 = vpop.permute.xlu0 %3479
        %3481 = vrot.lane.b32.xlu0 %v748, 24
        %v3482 = vpop.permute.xlu0 %3481
        %3483 = vrot.lane.b32.xlu0 %v749, 24
        %v3484 = vpop.permute.xlu0 %3483
        %3485 = vrot.lane.b32.xlu0 %v750, 24
        %v3486 = vpop.permute.xlu0 %3485
        %3487 = vrot.lane.b32.xlu0 %v751, 24
        %v3488 = vpop.permute.xlu0 %3487
        %3489 = vrot.lane.b32.xlu0 %v752, 24
        %v3490 = vpop.permute.xlu0 %3489
        %3491 = vrot.lane.b32.xlu0 %v753, 24
        %v3492 = vpop.permute.xlu0 %3491
        %3493 = vrot.lane.b32.xlu0 %v754, 24
        %v3494 = vpop.permute.xlu0 %3493
        %3495 = vrot.lane.b32.xlu0 %v755, 24
        %v3496 = vpop.permute.xlu0 %3495
        %3497 = vrot.lane.b32.xlu0 %v756, 24
        %v3498 = vpop.permute.xlu0 %3497
        %3499 = vrot.lane.b32.xlu0 %v757, 24
        %v3500 = vpop.permute.xlu0 %3499
        %3501 = vrot.lane.b32.xlu0 %v758, 24
        %v3502 = vpop.permute.xlu0 %3501
        %3503 = vrot.lane.b32.xlu0 %v759, 24
        %v3504 = vpop.permute.xlu0 %3503
        %3505 = vrot.lane.b32.xlu0 %v760, 24
        %v3506 = vpop.permute.xlu0 %3505
        %3507 = vrot.lane.b32.xlu0 %v761, 24
        %v3508 = vpop.permute.xlu0 %3507
        %3509 = vrot.lane.b32.xlu0 %v762, 24
        %v3510 = vpop.permute.xlu0 %3509
        %3511 = vrot.lane.b32.xlu0 %v763, 24
        %v3512 = vpop.permute.xlu0 %3511
        %3513 = vrot.lane.b32.xlu0 %v764, 24
        %v3514 = vpop.permute.xlu0 %3513
        %3515 = vrot.lane.b32.xlu0 %v765, 24
        %v3516 = vpop.permute.xlu0 %3515
        %3517 = vrot.lane.b32.xlu0 %v766, 24
        %v3518 = vpop.permute.xlu0 %3517
        %3519 = vrot.lane.b32.xlu0 %v767, 24
        %v3520 = vpop.permute.xlu0 %3519
        %3521 = vrot.lane.b32.xlu0 %v768, 24
        %v3522 = vpop.permute.xlu0 %3521
        %3523 = vrot.lane.b32.xlu0 %v769, 24
        %v3524 = vpop.permute.xlu0 %3523
        %3525 = vrot.lane.b32.xlu0 %v770, 24
        %v3526 = vpop.permute.xlu0 %3525
        %3527 = vrot.lane.b32.xlu0 %v771, 24
        %v3528 = vpop.permute.xlu0 %3527
        %3529 = vrot.lane.b32.xlu0 %v772, 24
        %v3530 = vpop.permute.xlu0 %3529
        %3659 = vrot.lane.b32.xlu0 %v773, 28
        %v3660 = vpop.permute.xlu0 %3659
        %3661 = vrot.lane.b32.xlu0 %v774, 28
        %v3662 = vpop.permute.xlu0 %3661
        %3663 = vrot.lane.b32.xlu0 %v775, 28
        %v3664 = vpop.permute.xlu0 %3663
        %3665 = vrot.lane.b32.xlu0 %v776, 28
        %v3666 = vpop.permute.xlu0 %3665
        %3667 = vrot.lane.b32.xlu0 %v777, 28
        %v3668 = vpop.permute.xlu0 %3667
        %3669 = vrot.lane.b32.xlu0 %v778, 28
        %v3670 = vpop.permute.xlu0 %3669
        %3671 = vrot.lane.b32.xlu0 %v779, 28
        %v3672 = vpop.permute.xlu0 %3671
        %3673 = vrot.lane.b32.xlu0 %v780, 28
        %v3674 = vpop.permute.xlu0 %3673
        %3675 = vrot.lane.b32.xlu0 %v781, 28
        %v3676 = vpop.permute.xlu0 %3675
        %3677 = vrot.lane.b32.xlu0 %v782, 28
        %v3678 = vpop.permute.xlu0 %3677
        %3679 = vrot.lane.b32.xlu0 %v783, 28
        %v3680 = vpop.permute.xlu0 %3679
        %3681 = vrot.lane.b32.xlu0 %v784, 28
        %v3682 = vpop.permute.xlu0 %3681
        %3683 = vrot.lane.b32.xlu0 %v785, 28
        %v3684 = vpop.permute.xlu0 %3683
        %3685 = vrot.lane.b32.xlu0 %v786, 28
        %v3686 = vpop.permute.xlu0 %3685
        %3687 = vrot.lane.b32.xlu0 %v787, 28
        %v3688 = vpop.permute.xlu0 %3687
        %3689 = vrot.lane.b32.xlu0 %v788, 28
        %v3690 = vpop.permute.xlu0 %3689
        %3691 = vrot.lane.b32.xlu0 %v789, 28
        %v3692 = vpop.permute.xlu0 %3691
        %3693 = vrot.lane.b32.xlu0 %v790, 28
        %v3694 = vpop.permute.xlu0 %3693
        %3695 = vrot.lane.b32.xlu0 %v791, 28
        %v3696 = vpop.permute.xlu0 %3695
        %3697 = vrot.lane.b32.xlu0 %v792, 28
        %v3698 = vpop.permute.xlu0 %3697
        %3699 = vrot.lane.b32.xlu0 %v793, 28
        %v3700 = vpop.permute.xlu0 %3699
        %3701 = vrot.lane.b32.xlu0 %v794, 28
        %v3702 = vpop.permute.xlu0 %3701
        %3703 = vrot.lane.b32.xlu0 %v795, 28
        %v3704 = vpop.permute.xlu0 %3703
        %3705 = vrot.lane.b32.xlu0 %v796, 28
        %v3706 = vpop.permute.xlu0 %3705
        %3707 = vrot.lane.b32.xlu0 %v797, 28
        %v3708 = vpop.permute.xlu0 %3707
        %3709 = vrot.lane.b32.xlu0 %v798, 28
        %v3710 = vpop.permute.xlu0 %3709
        %3711 = vrot.lane.b32.xlu0 %v799, 28
        %v3712 = vpop.permute.xlu0 %3711
        %3713 = vrot.lane.b32.xlu0 %v800, 28
        %v3714 = vpop.permute.xlu0 %3713
        %3715 = vrot.lane.b32.xlu0 %v801, 28
        %v3716 = vpop.permute.xlu0 %3715
        %3717 = vrot.lane.b32.xlu0 %v802, 28
        %v3718 = vpop.permute.xlu0 %3717
        %3719 = vrot.lane.b32.xlu0 %v803, 28
        %v3720 = vpop.permute.xlu0 %3719
        %3721 = vrot.lane.b32.xlu0 %v804, 28
        %v3722 = vpop.permute.xlu0 %3721
        %3723 = vrot.lane.b32.xlu0 %v805, 28
        %v3724 = vpop.permute.xlu0 %3723
        %3725 = vrot.lane.b32.xlu0 %v806, 28
        %v3726 = vpop.permute.xlu0 %3725
        %3727 = vrot.lane.b32.xlu0 %v807, 28
        %v3728 = vpop.permute.xlu0 %3727
        %3729 = vrot.lane.b32.xlu0 %v808, 28
        %v3730 = vpop.permute.xlu0 %3729
        %3731 = vrot.lane.b32.xlu0 %v809, 28
        %v3732 = vpop.permute.xlu0 %3731
        %3733 = vrot.lane.b32.xlu0 %v810, 28
        %v3734 = vpop.permute.xlu0 %3733
        %3735 = vrot.lane.b32.xlu0 %v811, 28
        %v3736 = vpop.permute.xlu0 %3735
        %3737 = vrot.lane.b32.xlu0 %v812, 28
        %v3738 = vpop.permute.xlu0 %3737
        %3739 = vrot.lane.b32.xlu0 %v813, 28
        %v3740 = vpop.permute.xlu0 %3739
        %3741 = vrot.lane.b32.xlu0 %v814, 28
        %v3742 = vpop.permute.xlu0 %3741
        %3743 = vrot.lane.b32.xlu0 %v815, 28
        %v3744 = vpop.permute.xlu0 %3743
        %3745 = vrot.lane.b32.xlu0 %v816, 28
        %v3746 = vpop.permute.xlu0 %3745
        %3747 = vrot.lane.b32.xlu0 %v817, 28
        %v3748 = vpop.permute.xlu0 %3747
        %3749 = vrot.lane.b32.xlu0 %v818, 28
        %v3750 = vpop.permute.xlu0 %3749
        %3751 = vrot.lane.b32.xlu0 %v819, 28
        %v3752 = vpop.permute.xlu0 %3751
        %3753 = vrot.lane.b32.xlu0 %v820, 28
        %v3754 = vpop.permute.xlu0 %3753
        %3755 = vrot.lane.b32.xlu0 %v821, 28
        %v3756 = vpop.permute.xlu0 %3755
        %3757 = vrot.lane.b32.xlu0 %v822, 28
        %v3758 = vpop.permute.xlu0 %3757
        %3759 = vrot.lane.b32.xlu0 %v823, 28
        %v3760 = vpop.permute.xlu0 %3759
        %3761 = vrot.lane.b32.xlu0 %v824, 28
        %v3762 = vpop.permute.xlu0 %3761
        %3763 = vrot.lane.b32.xlu0 %v825, 28
        %v3764 = vpop.permute.xlu0 %3763
        %3765 = vrot.lane.b32.xlu0 %v826, 28
        %v3766 = vpop.permute.xlu0 %3765
        %3767 = vrot.lane.b32.xlu0 %v827, 28
        %v3768 = vpop.permute.xlu0 %3767
        %3769 = vrot.lane.b32.xlu0 %v828, 28
        %v3770 = vpop.permute.xlu0 %3769
        %3771 = vrot.lane.b32.xlu0 %v829, 28
        %v3772 = vpop.permute.xlu0 %3771
        %3773 = vrot.lane.b32.xlu0 %v830, 28
        %v3774 = vpop.permute.xlu0 %3773
        %3775 = vrot.lane.b32.xlu0 %v831, 28
        %v3776 = vpop.permute.xlu0 %3775
        %3777 = vrot.lane.b32.xlu0 %v832, 28
        %v3778 = vpop.permute.xlu0 %3777
        %3779 = vrot.lane.b32.xlu0 %v833, 28
        %v3780 = vpop.permute.xlu0 %3779
        %3781 = vrot.lane.b32.xlu0 %v834, 28
        %v3782 = vpop.permute.xlu0 %3781
        %3783 = vrot.lane.b32.xlu0 %v835, 28
        %v3784 = vpop.permute.xlu0 %3783
        %3785 = vrot.lane.b32.xlu0 %v836, 28
        %v3786 = vpop.permute.xlu0 %3785
        %3915 = vrot.lane.b32.xlu0 %v837, 32
        %v3916 = vpop.permute.xlu0 %3915
        %3917 = vrot.lane.b32.xlu0 %v838, 32
        %v3918 = vpop.permute.xlu0 %3917
        %3919 = vrot.lane.b32.xlu0 %v839, 32
        %v3920 = vpop.permute.xlu0 %3919
        %3921 = vrot.lane.b32.xlu0 %v840, 32
        %v3922 = vpop.permute.xlu0 %3921
        %3923 = vrot.lane.b32.xlu0 %v841, 32
        %v3924 = vpop.permute.xlu0 %3923
        %3925 = vrot.lane.b32.xlu0 %v842, 32
        %v3926 = vpop.permute.xlu0 %3925
        %3927 = vrot.lane.b32.xlu0 %v843, 32
        %v3928 = vpop.permute.xlu0 %3927
        %3929 = vrot.lane.b32.xlu0 %v844, 32
        %v3930 = vpop.permute.xlu0 %3929
        %3931 = vrot.lane.b32.xlu0 %v845, 32
        %v3932 = vpop.permute.xlu0 %3931
        %3933 = vrot.lane.b32.xlu0 %v846, 32
        %v3934 = vpop.permute.xlu0 %3933
        %3935 = vrot.lane.b32.xlu0 %v847, 32
        %v3936 = vpop.permute.xlu0 %3935
        %3937 = vrot.lane.b32.xlu0 %v848, 32
        %v3938 = vpop.permute.xlu0 %3937
        %3939 = vrot.lane.b32.xlu0 %v849, 32
        %v3940 = vpop.permute.xlu0 %3939
        %3941 = vrot.lane.b32.xlu0 %v850, 32
        %v3942 = vpop.permute.xlu0 %3941
        %3943 = vrot.lane.b32.xlu0 %v851, 32
        %v3944 = vpop.permute.xlu0 %3943
        %3945 = vrot.lane.b32.xlu0 %v852, 32
        %v3946 = vpop.permute.xlu0 %3945
        %3947 = vrot.lane.b32.xlu0 %v853, 32
        %v3948 = vpop.permute.xlu0 %3947
        %3949 = vrot.lane.b32.xlu0 %v854, 32
        %v3950 = vpop.permute.xlu0 %3949
        %3951 = vrot.lane.b32.xlu0 %v855, 32
        %v3952 = vpop.permute.xlu0 %3951
        %3953 = vrot.lane.b32.xlu0 %v856, 32
        %v3954 = vpop.permute.xlu0 %3953
        %3955 = vrot.lane.b32.xlu0 %v857, 32
        %v3956 = vpop.permute.xlu0 %3955
        %3957 = vrot.lane.b32.xlu0 %v858, 32
        %v3958 = vpop.permute.xlu0 %3957
        %3959 = vrot.lane.b32.xlu0 %v859, 32
        %v3960 = vpop.permute.xlu0 %3959
        %3961 = vrot.lane.b32.xlu0 %v860, 32
        %v3962 = vpop.permute.xlu0 %3961
        %3963 = vrot.lane.b32.xlu0 %v861, 32
        %v3964 = vpop.permute.xlu0 %3963
        %3965 = vrot.lane.b32.xlu0 %v862, 32
        %v3966 = vpop.permute.xlu0 %3965
        %3967 = vrot.lane.b32.xlu0 %v863, 32
        %v3968 = vpop.permute.xlu0 %3967
        %3969 = vrot.lane.b32.xlu0 %v864, 32
        %v3970 = vpop.permute.xlu0 %3969
        %3971 = vrot.lane.b32.xlu0 %v865, 32
        %v3972 = vpop.permute.xlu0 %3971
        %3973 = vrot.lane.b32.xlu0 %v866, 32
        %v3974 = vpop.permute.xlu0 %3973
        %3975 = vrot.lane.b32.xlu0 %v867, 32
        %v3976 = vpop.permute.xlu0 %3975
        %3977 = vrot.lane.b32.xlu0 %v868, 32
        %v3978 = vpop.permute.xlu0 %3977
        %3979 = vrot.lane.b32.xlu0 %v869, 32
        %v3980 = vpop.permute.xlu0 %3979
        %3981 = vrot.lane.b32.xlu0 %v870, 32
        %v3982 = vpop.permute.xlu0 %3981
        %3983 = vrot.lane.b32.xlu0 %v871, 32
        %v3984 = vpop.permute.xlu0 %3983
        %3985 = vrot.lane.b32.xlu0 %v872, 32
        %v3986 = vpop.permute.xlu0 %3985
        %3987 = vrot.lane.b32.xlu0 %v873, 32
        %v3988 = vpop.permute.xlu0 %3987
        %3989 = vrot.lane.b32.xlu0 %v874, 32
        %v3990 = vpop.permute.xlu0 %3989
        %3991 = vrot.lane.b32.xlu0 %v875, 32
        %v3992 = vpop.permute.xlu0 %3991
        %3993 = vrot.lane.b32.xlu0 %v876, 32
        %v3994 = vpop.permute.xlu0 %3993
        %3995 = vrot.lane.b32.xlu0 %v877, 32
        %v3996 = vpop.permute.xlu0 %3995
        %3997 = vrot.lane.b32.xlu0 %v878, 32
        %v3998 = vpop.permute.xlu0 %3997
        %3999 = vrot.lane.b32.xlu0 %v879, 32
        %v4000 = vpop.permute.xlu0 %3999
        %4001 = vrot.lane.b32.xlu0 %v880, 32
        %v4002 = vpop.permute.xlu0 %4001
        %4003 = vrot.lane.b32.xlu0 %v881, 32
        %v4004 = vpop.permute.xlu0 %4003
        %4005 = vrot.lane.b32.xlu0 %v882, 32
        %v4006 = vpop.permute.xlu0 %4005
        %4007 = vrot.lane.b32.xlu0 %v883, 32
        %v4008 = vpop.permute.xlu0 %4007
        %4009 = vrot.lane.b32.xlu0 %v884, 32
        %v4010 = vpop.permute.xlu0 %4009
        %4011 = vrot.lane.b32.xlu0 %v885, 32
        %v4012 = vpop.permute.xlu0 %4011
        %4013 = vrot.lane.b32.xlu0 %v886, 32
        %v4014 = vpop.permute.xlu0 %4013
        %4015 = vrot.lane.b32.xlu0 %v887, 32
        %v4016 = vpop.permute.xlu0 %4015
        %4017 = vrot.lane.b32.xlu0 %v888, 32
        %v4018 = vpop.permute.xlu0 %4017
        %4019 = vrot.lane.b32.xlu0 %v889, 32
        %v4020 = vpop.permute.xlu0 %4019
        %4021 = vrot.lane.b32.xlu0 %v890, 32
        %v4022 = vpop.permute.xlu0 %4021
        %4023 = vrot.lane.b32.xlu0 %v891, 32
        %v4024 = vpop.permute.xlu0 %4023
        %4025 = vrot.lane.b32.xlu0 %v892, 32
        %v4026 = vpop.permute.xlu0 %4025
        %4027 = vrot.lane.b32.xlu0 %v893, 32
        %v4028 = vpop.permute.xlu0 %4027
        %4029 = vrot.lane.b32.xlu0 %v894, 32
        %v4030 = vpop.permute.xlu0 %4029
        %4031 = vrot.lane.b32.xlu0 %v895, 32
        %v4032 = vpop.permute.xlu0 %4031
        %4033 = vrot.lane.b32.xlu0 %v896, 32
        %v4034 = vpop.permute.xlu0 %4033
        %4035 = vrot.lane.b32.xlu0 %v897, 32
        %v4036 = vpop.permute.xlu0 %4035
        %4037 = vrot.lane.b32.xlu0 %v898, 32
        %v4038 = vpop.permute.xlu0 %4037
        %4039 = vrot.lane.b32.xlu0 %v899, 32
        %v4040 = vpop.permute.xlu0 %4039
        %4041 = vrot.lane.b32.xlu0 %v900, 32
        %v4042 = vpop.permute.xlu0 %4041
        %4171 = vrot.lane.b32.xlu0 %v902, 36
        %v4172 = vpop.permute.xlu0 %4171
        %4173 = vrot.lane.b32.xlu0 %v903, 36
        %v4174 = vpop.permute.xlu0 %4173
        %4175 = vrot.lane.b32.xlu0 %v904, 36
        %v4176 = vpop.permute.xlu0 %4175
        %4177 = vrot.lane.b32.xlu0 %v905, 36
        %v4178 = vpop.permute.xlu0 %4177
        %4179 = vrot.lane.b32.xlu0 %v906, 36
        %v4180 = vpop.permute.xlu0 %4179
        %4181 = vrot.lane.b32.xlu0 %v907, 36
        %v4182 = vpop.permute.xlu0 %4181
        %4183 = vrot.lane.b32.xlu0 %v908, 36
        %v4184 = vpop.permute.xlu0 %4183
        %4185 = vrot.lane.b32.xlu0 %v909, 36
        %v4186 = vpop.permute.xlu0 %4185
        %4187 = vrot.lane.b32.xlu0 %v910, 36
        %v4188 = vpop.permute.xlu0 %4187
        %4189 = vrot.lane.b32.xlu0 %v911, 36
        %v4190 = vpop.permute.xlu0 %4189
        %4191 = vrot.lane.b32.xlu0 %v912, 36
        %v4192 = vpop.permute.xlu0 %4191
        %4193 = vrot.lane.b32.xlu0 %v913, 36
        %v4194 = vpop.permute.xlu0 %4193
        %4195 = vrot.lane.b32.xlu0 %v914, 36
        %v4196 = vpop.permute.xlu0 %4195
        %4197 = vrot.lane.b32.xlu0 %v915, 36
        %v4198 = vpop.permute.xlu0 %4197
        %4199 = vrot.lane.b32.xlu0 %v916, 36
        %v4200 = vpop.permute.xlu0 %4199
        %4201 = vrot.lane.b32.xlu0 %v917, 36
        %v4202 = vpop.permute.xlu0 %4201
        %4203 = vrot.lane.b32.xlu0 %v918, 36
        %v4204 = vpop.permute.xlu0 %4203
        %4205 = vrot.lane.b32.xlu0 %v919, 36
        %v4206 = vpop.permute.xlu0 %4205
        %4207 = vrot.lane.b32.xlu0 %v920, 36
        %v4208 = vpop.permute.xlu0 %4207
        %4209 = vrot.lane.b32.xlu0 %v921, 36
        %v4210 = vpop.permute.xlu0 %4209
        %4211 = vrot.lane.b32.xlu0 %v922, 36
        %v4212 = vpop.permute.xlu0 %4211
        %4213 = vrot.lane.b32.xlu0 %v923, 36
        %v4214 = vpop.permute.xlu0 %4213
        %4215 = vrot.lane.b32.xlu0 %v924, 36
        %v4216 = vpop.permute.xlu0 %4215
        %4217 = vrot.lane.b32.xlu0 %v925, 36
        %v4218 = vpop.permute.xlu0 %4217
        %4219 = vrot.lane.b32.xlu0 %v926, 36
        %v4220 = vpop.permute.xlu0 %4219
        %4221 = vrot.lane.b32.xlu0 %v927, 36
        %v4222 = vpop.permute.xlu0 %4221
        %4223 = vrot.lane.b32.xlu0 %v928, 36
        %v4224 = vpop.permute.xlu0 %4223
        %4225 = vrot.lane.b32.xlu0 %v929, 36
        %v4226 = vpop.permute.xlu0 %4225
        %4227 = vrot.lane.b32.xlu0 %v930, 36
        %v4228 = vpop.permute.xlu0 %4227
        %4229 = vrot.lane.b32.xlu0 %v931, 36
        %v4230 = vpop.permute.xlu0 %4229
        %4231 = vrot.lane.b32.xlu0 %v932, 36
        %v4232 = vpop.permute.xlu0 %4231
        %4233 = vrot.lane.b32.xlu0 %v933, 36
        %v4234 = vpop.permute.xlu0 %4233
        %4235 = vrot.lane.b32.xlu0 %v934, 36
        %v4236 = vpop.permute.xlu0 %4235
        %4237 = vrot.lane.b32.xlu0 %v935, 36
        %v4238 = vpop.permute.xlu0 %4237
        %4239 = vrot.lane.b32.xlu0 %v936, 36
        %v4240 = vpop.permute.xlu0 %4239
        %4241 = vrot.lane.b32.xlu0 %v937, 36
        %v4242 = vpop.permute.xlu0 %4241
        %4243 = vrot.lane.b32.xlu0 %v938, 36
        %v4244 = vpop.permute.xlu0 %4243
        %4245 = vrot.lane.b32.xlu0 %v939, 36
        %v4246 = vpop.permute.xlu0 %4245
        %4247 = vrot.lane.b32.xlu0 %v940, 36
        %v4248 = vpop.permute.xlu0 %4247
        %4249 = vrot.lane.b32.xlu0 %v941, 36
        %v4250 = vpop.permute.xlu0 %4249
        %4251 = vrot.lane.b32.xlu0 %v942, 36
        %v4252 = vpop.permute.xlu0 %4251
        %4253 = vrot.lane.b32.xlu0 %v943, 36
        %v4254 = vpop.permute.xlu0 %4253
        %4255 = vrot.lane.b32.xlu0 %v944, 36
        %v4256 = vpop.permute.xlu0 %4255
        %4257 = vrot.lane.b32.xlu0 %v945, 36
        %v4258 = vpop.permute.xlu0 %4257
        %4259 = vrot.lane.b32.xlu0 %v946, 36
        %v4260 = vpop.permute.xlu0 %4259
        %4261 = vrot.lane.b32.xlu0 %v947, 36
        %v4262 = vpop.permute.xlu0 %4261
        %4263 = vrot.lane.b32.xlu0 %v948, 36
        %v4264 = vpop.permute.xlu0 %4263
        %4265 = vrot.lane.b32.xlu0 %v949, 36
        %v4266 = vpop.permute.xlu0 %4265
        %4267 = vrot.lane.b32.xlu0 %v950, 36
        %v4268 = vpop.permute.xlu0 %4267
        %4269 = vrot.lane.b32.xlu0 %v951, 36
        %v4270 = vpop.permute.xlu0 %4269
        %4271 = vrot.lane.b32.xlu0 %v952, 36
        %v4272 = vpop.permute.xlu0 %4271
        %4273 = vrot.lane.b32.xlu0 %v953, 36
        %v4274 = vpop.permute.xlu0 %4273
        %4275 = vrot.lane.b32.xlu0 %v954, 36
        %v4276 = vpop.permute.xlu0 %4275
        %4277 = vrot.lane.b32.xlu0 %v955, 36
        %v4278 = vpop.permute.xlu0 %4277
        %4279 = vrot.lane.b32.xlu0 %v956, 36
        %v4280 = vpop.permute.xlu0 %4279
        %4281 = vrot.lane.b32.xlu0 %v957, 36
        %v4282 = vpop.permute.xlu0 %4281
        %4283 = vrot.lane.b32.xlu0 %v958, 36
        %v4284 = vpop.permute.xlu0 %4283
        %4285 = vrot.lane.b32.xlu0 %v959, 36
        %v4286 = vpop.permute.xlu0 %4285
        %4287 = vrot.lane.b32.xlu0 %v960, 36
        %v4288 = vpop.permute.xlu0 %4287
        %4289 = vrot.lane.b32.xlu0 %v961, 36
        %v4290 = vpop.permute.xlu0 %4289
        %4291 = vrot.lane.b32.xlu0 %v962, 36
        %v4292 = vpop.permute.xlu0 %4291
        %4293 = vrot.lane.b32.xlu0 %v963, 36
        %v4294 = vpop.permute.xlu0 %4293
        %4295 = vrot.lane.b32.xlu0 %v964, 36
        %v4296 = vpop.permute.xlu0 %4295
        %4297 = vrot.lane.b32.xlu0 %v965, 36
        %v4298 = vpop.permute.xlu0 %4297
        %4427 = vrot.lane.b32.xlu0 %v966, 40
        %v4428 = vpop.permute.xlu0 %4427
        %4429 = vrot.lane.b32.xlu0 %v967, 40
        %v4430 = vpop.permute.xlu0 %4429
        %4431 = vrot.lane.b32.xlu0 %v968, 40
        %v4432 = vpop.permute.xlu0 %4431
        %4433 = vrot.lane.b32.xlu0 %v969, 40
        %v4434 = vpop.permute.xlu0 %4433
        %4435 = vrot.lane.b32.xlu0 %v970, 40
        %v4436 = vpop.permute.xlu0 %4435
        %4437 = vrot.lane.b32.xlu0 %v971, 40
        %v4438 = vpop.permute.xlu0 %4437
        %4439 = vrot.lane.b32.xlu0 %v972, 40
        %v4440 = vpop.permute.xlu0 %4439
        %4441 = vrot.lane.b32.xlu0 %v973, 40
        %v4442 = vpop.permute.xlu0 %4441
        %4443 = vrot.lane.b32.xlu0 %v974, 40
        %v4444 = vpop.permute.xlu0 %4443
        %4445 = vrot.lane.b32.xlu0 %v975, 40
        %v4446 = vpop.permute.xlu0 %4445
        %4447 = vrot.lane.b32.xlu0 %v976, 40
        %v4448 = vpop.permute.xlu0 %4447
        %4449 = vrot.lane.b32.xlu0 %v977, 40
        %v4450 = vpop.permute.xlu0 %4449
        %4451 = vrot.lane.b32.xlu0 %v978, 40
        %v4452 = vpop.permute.xlu0 %4451
        %4453 = vrot.lane.b32.xlu0 %v979, 40
        %v4454 = vpop.permute.xlu0 %4453
        %4455 = vrot.lane.b32.xlu0 %v980, 40
        %v4456 = vpop.permute.xlu0 %4455
        %4457 = vrot.lane.b32.xlu0 %v981, 40
        %v4458 = vpop.permute.xlu0 %4457
        %4459 = vrot.lane.b32.xlu0 %v982, 40
        %v4460 = vpop.permute.xlu0 %4459
        %4461 = vrot.lane.b32.xlu0 %v983, 40
        %v4462 = vpop.permute.xlu0 %4461
        %4463 = vrot.lane.b32.xlu0 %v984, 40
        %v4464 = vpop.permute.xlu0 %4463
        %4465 = vrot.lane.b32.xlu0 %v985, 40
        %v4466 = vpop.permute.xlu0 %4465
        %4467 = vrot.lane.b32.xlu0 %v986, 40
        %v4468 = vpop.permute.xlu0 %4467
        %4469 = vrot.lane.b32.xlu0 %v987, 40
        %v4470 = vpop.permute.xlu0 %4469
        %4471 = vrot.lane.b32.xlu0 %v988, 40
        %v4472 = vpop.permute.xlu0 %4471
        %4473 = vrot.lane.b32.xlu0 %v989, 40
        %v4474 = vpop.permute.xlu0 %4473
        %4475 = vrot.lane.b32.xlu0 %v990, 40
        %v4476 = vpop.permute.xlu0 %4475
        %4477 = vrot.lane.b32.xlu0 %v991, 40
        %v4478 = vpop.permute.xlu0 %4477
        %4479 = vrot.lane.b32.xlu0 %v992, 40
        %v4480 = vpop.permute.xlu0 %4479
        %4481 = vrot.lane.b32.xlu0 %v993, 40
        %v4482 = vpop.permute.xlu0 %4481
        %4483 = vrot.lane.b32.xlu0 %v994, 40
        %v4484 = vpop.permute.xlu0 %4483
        %4485 = vrot.lane.b32.xlu0 %v995, 40
        %v4486 = vpop.permute.xlu0 %4485
        %4487 = vrot.lane.b32.xlu0 %v996, 40
        %v4488 = vpop.permute.xlu0 %4487
        %4489 = vrot.lane.b32.xlu0 %v997, 40
        %v4490 = vpop.permute.xlu0 %4489
        %4491 = vrot.lane.b32.xlu0 %v998, 40
        %v4492 = vpop.permute.xlu0 %4491
        %4493 = vrot.lane.b32.xlu0 %v999, 40
        %v4494 = vpop.permute.xlu0 %4493
        %4495 = vrot.lane.b32.xlu0 %v1000, 40
        %v4496 = vpop.permute.xlu0 %4495
        %4497 = vrot.lane.b32.xlu0 %v1001, 40
        %v4498 = vpop.permute.xlu0 %4497
        %4499 = vrot.lane.b32.xlu0 %v1002, 40
        %v4500 = vpop.permute.xlu0 %4499
        %4501 = vrot.lane.b32.xlu0 %v1003, 40
        %v4502 = vpop.permute.xlu0 %4501
        %4503 = vrot.lane.b32.xlu0 %v1004, 40
        %v4504 = vpop.permute.xlu0 %4503
        %4505 = vrot.lane.b32.xlu0 %v1005, 40
        %v4506 = vpop.permute.xlu0 %4505
        %4507 = vrot.lane.b32.xlu0 %v1006, 40
        %v4508 = vpop.permute.xlu0 %4507
        %4509 = vrot.lane.b32.xlu0 %v1007, 40
        %v4510 = vpop.permute.xlu0 %4509
        %4511 = vrot.lane.b32.xlu0 %v1008, 40
        %v4512 = vpop.permute.xlu0 %4511
        %4513 = vrot.lane.b32.xlu0 %v1009, 40
        %v4514 = vpop.permute.xlu0 %4513
        %4515 = vrot.lane.b32.xlu0 %v1010, 40
        %v4516 = vpop.permute.xlu0 %4515
        %4517 = vrot.lane.b32.xlu0 %v1011, 40
        %v4518 = vpop.permute.xlu0 %4517
        %4519 = vrot.lane.b32.xlu0 %v1012, 40
        %v4520 = vpop.permute.xlu0 %4519
        %4521 = vrot.lane.b32.xlu0 %v1013, 40
        %v4522 = vpop.permute.xlu0 %4521
        %4523 = vrot.lane.b32.xlu0 %v1014, 40
        %v4524 = vpop.permute.xlu0 %4523
        %4525 = vrot.lane.b32.xlu0 %v1015, 40
        %v4526 = vpop.permute.xlu0 %4525
        %4527 = vrot.lane.b32.xlu0 %v1016, 40
        %v4528 = vpop.permute.xlu0 %4527
        %4529 = vrot.lane.b32.xlu0 %v1017, 40
        %v4530 = vpop.permute.xlu0 %4529
        %4531 = vrot.lane.b32.xlu0 %v1018, 40
        %v4532 = vpop.permute.xlu0 %4531
        %4533 = vrot.lane.b32.xlu0 %v1019, 40
        %v4534 = vpop.permute.xlu0 %4533
        %4535 = vrot.lane.b32.xlu0 %v1020, 40
        %v4536 = vpop.permute.xlu0 %4535
        %4537 = vrot.lane.b32.xlu0 %v1021, 40
        %v4538 = vpop.permute.xlu0 %4537
        %4539 = vrot.lane.b32.xlu0 %v1022, 40
        %v4540 = vpop.permute.xlu0 %4539
        %4541 = vrot.lane.b32.xlu0 %v1023, 40
        %v4542 = vpop.permute.xlu0 %4541
        %4543 = vrot.lane.b32.xlu0 %v1024, 40
        %v4544 = vpop.permute.xlu0 %4543
        %4545 = vrot.lane.b32.xlu0 %v1025, 40
        %v4546 = vpop.permute.xlu0 %4545
        %4547 = vrot.lane.b32.xlu0 %v1026, 40
        %v4548 = vpop.permute.xlu0 %4547
        %4549 = vrot.lane.b32.xlu0 %v1027, 40
        %v4550 = vpop.permute.xlu0 %4549
        %4551 = vrot.lane.b32.xlu0 %v1028, 40
        %v4552 = vpop.permute.xlu0 %4551
        %4553 = vrot.lane.b32.xlu0 %v1029, 40
        %v4554 = vpop.permute.xlu0 %4553
        %4683 = vrot.lane.b32.xlu0 %v1030, 44
        %v4684 = vpop.permute.xlu0 %4683
        %4685 = vrot.lane.b32.xlu0 %v1031, 44
        %v4686 = vpop.permute.xlu0 %4685
        %4687 = vrot.lane.b32.xlu0 %v1032, 44
        %v4688 = vpop.permute.xlu0 %4687
        %4689 = vrot.lane.b32.xlu0 %v1033, 44
        %v4690 = vpop.permute.xlu0 %4689
        %4691 = vrot.lane.b32.xlu0 %v1034, 44
        %v4692 = vpop.permute.xlu0 %4691
        %4693 = vrot.lane.b32.xlu0 %v1035, 44
        %v4694 = vpop.permute.xlu0 %4693
        %4695 = vrot.lane.b32.xlu0 %v1036, 44
        %v4696 = vpop.permute.xlu0 %4695
        %4697 = vrot.lane.b32.xlu0 %v1037, 44
        %v4698 = vpop.permute.xlu0 %4697
        %4699 = vrot.lane.b32.xlu0 %v1038, 44
        %v4700 = vpop.permute.xlu0 %4699
        %4701 = vrot.lane.b32.xlu0 %v1039, 44
        %v4702 = vpop.permute.xlu0 %4701
        %4703 = vrot.lane.b32.xlu0 %v1040, 44
        %v4704 = vpop.permute.xlu0 %4703
        %4705 = vrot.lane.b32.xlu0 %v1041, 44
        %v4706 = vpop.permute.xlu0 %4705
        %4707 = vrot.lane.b32.xlu0 %v1042, 44
        %v4708 = vpop.permute.xlu0 %4707
        %4709 = vrot.lane.b32.xlu0 %v1043, 44
        %v4710 = vpop.permute.xlu0 %4709
        %4711 = vrot.lane.b32.xlu0 %v1044, 44
        %v4712 = vpop.permute.xlu0 %4711
        %4713 = vrot.lane.b32.xlu0 %v1045, 44
        %v4714 = vpop.permute.xlu0 %4713
        %4715 = vrot.lane.b32.xlu0 %v1046, 44
        %v4716 = vpop.permute.xlu0 %4715
        %4717 = vrot.lane.b32.xlu0 %v1047, 44
        %v4718 = vpop.permute.xlu0 %4717
        %4719 = vrot.lane.b32.xlu0 %v1048, 44
        %v4720 = vpop.permute.xlu0 %4719
        %4721 = vrot.lane.b32.xlu0 %v1049, 44
        %v4722 = vpop.permute.xlu0 %4721
        %4723 = vrot.lane.b32.xlu0 %v1050, 44
        %v4724 = vpop.permute.xlu0 %4723
        %4725 = vrot.lane.b32.xlu0 %v1051, 44
        %v4726 = vpop.permute.xlu0 %4725
        %4727 = vrot.lane.b32.xlu0 %v1052, 44
        %v4728 = vpop.permute.xlu0 %4727
        %4729 = vrot.lane.b32.xlu0 %v1053, 44
        %v4730 = vpop.permute.xlu0 %4729
        %4731 = vrot.lane.b32.xlu0 %v1054, 44
        %v4732 = vpop.permute.xlu0 %4731
        %4733 = vrot.lane.b32.xlu0 %v1055, 44
        %v4734 = vpop.permute.xlu0 %4733
        %4735 = vrot.lane.b32.xlu0 %v1056, 44
        %v4736 = vpop.permute.xlu0 %4735
        %4737 = vrot.lane.b32.xlu0 %v1057, 44
        %v4738 = vpop.permute.xlu0 %4737
        %4739 = vrot.lane.b32.xlu0 %v1058, 44
        %v4740 = vpop.permute.xlu0 %4739
        %4741 = vrot.lane.b32.xlu0 %v1059, 44
        %v4742 = vpop.permute.xlu0 %4741
        %4743 = vrot.lane.b32.xlu0 %v1060, 44
        %v4744 = vpop.permute.xlu0 %4743
        %4745 = vrot.lane.b32.xlu0 %v1061, 44
        %v4746 = vpop.permute.xlu0 %4745
        %4747 = vrot.lane.b32.xlu0 %v1062, 44
        %v4748 = vpop.permute.xlu0 %4747
        %4749 = vrot.lane.b32.xlu0 %v1063, 44
        %v4750 = vpop.permute.xlu0 %4749
        %4751 = vrot.lane.b32.xlu0 %v1064, 44
        %v4752 = vpop.permute.xlu0 %4751
        %4753 = vrot.lane.b32.xlu0 %v1065, 44
        %v4754 = vpop.permute.xlu0 %4753
        %4755 = vrot.lane.b32.xlu0 %v1066, 44
        %v4756 = vpop.permute.xlu0 %4755
        %4757 = vrot.lane.b32.xlu0 %v1067, 44
        %v4758 = vpop.permute.xlu0 %4757
        %4759 = vrot.lane.b32.xlu0 %v1068, 44
        %v4760 = vpop.permute.xlu0 %4759
        %4761 = vrot.lane.b32.xlu0 %v1069, 44
        %v4762 = vpop.permute.xlu0 %4761
        %4763 = vrot.lane.b32.xlu0 %v1070, 44
        %v4764 = vpop.permute.xlu0 %4763
        %4765 = vrot.lane.b32.xlu0 %v1071, 44
        %v4766 = vpop.permute.xlu0 %4765
        %4767 = vrot.lane.b32.xlu0 %v1072, 44
        %v4768 = vpop.permute.xlu0 %4767
        %4769 = vrot.lane.b32.xlu0 %v1073, 44
        %v4770 = vpop.permute.xlu0 %4769
        %4771 = vrot.lane.b32.xlu0 %v1074, 44
        %v4772 = vpop.permute.xlu0 %4771
        %4773 = vrot.lane.b32.xlu0 %v1075, 44
        %v4774 = vpop.permute.xlu0 %4773
        %4775 = vrot.lane.b32.xlu0 %v1076, 44
        %v4776 = vpop.permute.xlu0 %4775
        %4777 = vrot.lane.b32.xlu0 %v1077, 44
        %v4778 = vpop.permute.xlu0 %4777
        %4779 = vrot.lane.b32.xlu0 %v1078, 44
        %v4780 = vpop.permute.xlu0 %4779
        %4781 = vrot.lane.b32.xlu0 %v1079, 44
        %v4782 = vpop.permute.xlu0 %4781
        %4783 = vrot.lane.b32.xlu0 %v1080, 44
        %v4784 = vpop.permute.xlu0 %4783
        %4785 = vrot.lane.b32.xlu0 %v1081, 44
        %v4786 = vpop.permute.xlu0 %4785
        %4787 = vrot.lane.b32.xlu0 %v1082, 44
        %v4788 = vpop.permute.xlu0 %4787
        %4789 = vrot.lane.b32.xlu0 %v1083, 44
        %v4790 = vpop.permute.xlu0 %4789
        %4791 = vrot.lane.b32.xlu0 %v1084, 44
        %v4792 = vpop.permute.xlu0 %4791
        %4793 = vrot.lane.b32.xlu0 %v1085, 44
        %v4794 = vpop.permute.xlu0 %4793
        %4795 = vrot.lane.b32.xlu0 %v1086, 44
        %v4796 = vpop.permute.xlu0 %4795
        %4797 = vrot.lane.b32.xlu0 %v1087, 44
        %v4798 = vpop.permute.xlu0 %4797
        %4799 = vrot.lane.b32.xlu0 %v1088, 44
        %v4800 = vpop.permute.xlu0 %4799
        %4801 = vrot.lane.b32.xlu0 %v1089, 44
        %v4802 = vpop.permute.xlu0 %4801
        %4803 = vrot.lane.b32.xlu0 %v1090, 44
        %v4804 = vpop.permute.xlu0 %4803
        %4805 = vrot.lane.b32.xlu0 %v1091, 44
        %v4806 = vpop.permute.xlu0 %4805
        %4807 = vrot.lane.b32.xlu0 %v1092, 44
        %v4808 = vpop.permute.xlu0 %4807
        %4809 = vrot.lane.b32.xlu0 %v1093, 44
        %v4810 = vpop.permute.xlu0 %4809
        %4939 = vrot.lane.b32.xlu0 %v1095, 48
        %v4940 = vpop.permute.xlu0 %4939
        %4941 = vrot.lane.b32.xlu0 %v1096, 48
        %v4942 = vpop.permute.xlu0 %4941
        %4943 = vrot.lane.b32.xlu0 %v1097, 48
        %v4944 = vpop.permute.xlu0 %4943
        %4945 = vrot.lane.b32.xlu0 %v1098, 48
        %v4946 = vpop.permute.xlu0 %4945
        %4947 = vrot.lane.b32.xlu0 %v1099, 48
        %v4948 = vpop.permute.xlu0 %4947
        %4949 = vrot.lane.b32.xlu0 %v1100, 48
        %v4950 = vpop.permute.xlu0 %4949
        %4951 = vrot.lane.b32.xlu0 %v1101, 48
        %v4952 = vpop.permute.xlu0 %4951
        %4953 = vrot.lane.b32.xlu0 %v1102, 48
        %v4954 = vpop.permute.xlu0 %4953
        %4955 = vrot.lane.b32.xlu0 %v1103, 48
        %v4956 = vpop.permute.xlu0 %4955
        %4957 = vrot.lane.b32.xlu0 %v1104, 48
        %v4958 = vpop.permute.xlu0 %4957
        %4959 = vrot.lane.b32.xlu0 %v1105, 48
        %v4960 = vpop.permute.xlu0 %4959
        %4961 = vrot.lane.b32.xlu0 %v1106, 48
        %v4962 = vpop.permute.xlu0 %4961
        %4963 = vrot.lane.b32.xlu0 %v1107, 48
        %v4964 = vpop.permute.xlu0 %4963
        %4965 = vrot.lane.b32.xlu0 %v1108, 48
        %v4966 = vpop.permute.xlu0 %4965
        %4967 = vrot.lane.b32.xlu0 %v1109, 48
        %v4968 = vpop.permute.xlu0 %4967
        %4969 = vrot.lane.b32.xlu0 %v1110, 48
        %v4970 = vpop.permute.xlu0 %4969
        %4971 = vrot.lane.b32.xlu0 %v1111, 48
        %v4972 = vpop.permute.xlu0 %4971
        %4973 = vrot.lane.b32.xlu0 %v1112, 48
        %v4974 = vpop.permute.xlu0 %4973
        %4975 = vrot.lane.b32.xlu0 %v1113, 48
        %v4976 = vpop.permute.xlu0 %4975
        %4977 = vrot.lane.b32.xlu0 %v1114, 48
        %v4978 = vpop.permute.xlu0 %4977
        %4979 = vrot.lane.b32.xlu0 %v1115, 48
        %v4980 = vpop.permute.xlu0 %4979
        %4981 = vrot.lane.b32.xlu0 %v1116, 48
        %v4982 = vpop.permute.xlu0 %4981
        %4983 = vrot.lane.b32.xlu0 %v1117, 48
        %v4984 = vpop.permute.xlu0 %4983
        %4985 = vrot.lane.b32.xlu0 %v1118, 48
        %v4986 = vpop.permute.xlu0 %4985
        %4987 = vrot.lane.b32.xlu0 %v1119, 48
        %v4988 = vpop.permute.xlu0 %4987
        %4989 = vrot.lane.b32.xlu0 %v1120, 48
        %v4990 = vpop.permute.xlu0 %4989
        %4991 = vrot.lane.b32.xlu0 %v1121, 48
        %v4992 = vpop.permute.xlu0 %4991
        %4993 = vrot.lane.b32.xlu0 %v1122, 48
        %v4994 = vpop.permute.xlu0 %4993
        %4995 = vrot.lane.b32.xlu0 %v1123, 48
        %v4996 = vpop.permute.xlu0 %4995
        %4997 = vrot.lane.b32.xlu0 %v1124, 48
        %v4998 = vpop.permute.xlu0 %4997
        %4999 = vrot.lane.b32.xlu0 %v1125, 48
        %v5000 = vpop.permute.xlu0 %4999
        %5001 = vrot.lane.b32.xlu0 %v1126, 48
        %v5002 = vpop.permute.xlu0 %5001
        %5003 = vrot.lane.b32.xlu0 %v1127, 48
        %v5004 = vpop.permute.xlu0 %5003
        %5005 = vrot.lane.b32.xlu0 %v1128, 48
        %v5006 = vpop.permute.xlu0 %5005
        %5007 = vrot.lane.b32.xlu0 %v1129, 48
        %v5008 = vpop.permute.xlu0 %5007
        %5009 = vrot.lane.b32.xlu0 %v1130, 48
        %v5010 = vpop.permute.xlu0 %5009
        %5011 = vrot.lane.b32.xlu0 %v1131, 48
        %v5012 = vpop.permute.xlu0 %5011
        %5013 = vrot.lane.b32.xlu0 %v1132, 48
        %v5014 = vpop.permute.xlu0 %5013
        %5015 = vrot.lane.b32.xlu0 %v1133, 48
        %v5016 = vpop.permute.xlu0 %5015
        %5017 = vrot.lane.b32.xlu0 %v1134, 48
        %v5018 = vpop.permute.xlu0 %5017
        %5019 = vrot.lane.b32.xlu0 %v1135, 48
        %v5020 = vpop.permute.xlu0 %5019
        %5021 = vrot.lane.b32.xlu0 %v1136, 48
        %v5022 = vpop.permute.xlu0 %5021
        %5023 = vrot.lane.b32.xlu0 %v1137, 48
        %v5024 = vpop.permute.xlu0 %5023
        %5025 = vrot.lane.b32.xlu0 %v1138, 48
        %v5026 = vpop.permute.xlu0 %5025
        %5027 = vrot.lane.b32.xlu0 %v1139, 48
        %v5028 = vpop.permute.xlu0 %5027
        %5029 = vrot.lane.b32.xlu0 %v1140, 48
        %v5030 = vpop.permute.xlu0 %5029
        %5031 = vrot.lane.b32.xlu0 %v1141, 48
        %v5032 = vpop.permute.xlu0 %5031
        %5033 = vrot.lane.b32.xlu0 %v1142, 48
        %v5034 = vpop.permute.xlu0 %5033
        %5035 = vrot.lane.b32.xlu0 %v1143, 48
        %v5036 = vpop.permute.xlu0 %5035
        %5037 = vrot.lane.b32.xlu0 %v1144, 48
        %v5038 = vpop.permute.xlu0 %5037
        %5039 = vrot.lane.b32.xlu0 %v1145, 48
        %v5040 = vpop.permute.xlu0 %5039
        %5041 = vrot.lane.b32.xlu0 %v1146, 48
        %v5042 = vpop.permute.xlu0 %5041
        %5043 = vrot.lane.b32.xlu0 %v1147, 48
        %v5044 = vpop.permute.xlu0 %5043
        %5045 = vrot.lane.b32.xlu0 %v1148, 48
        %v5046 = vpop.permute.xlu0 %5045
        %5047 = vrot.lane.b32.xlu0 %v1149, 48
        %v5048 = vpop.permute.xlu0 %5047
        %5049 = vrot.lane.b32.xlu0 %v1150, 48
        %v5050 = vpop.permute.xlu0 %5049
        %5051 = vrot.lane.b32.xlu0 %v1151, 48
        %v5052 = vpop.permute.xlu0 %5051
        %5053 = vrot.lane.b32.xlu0 %v1152, 48
        %v5054 = vpop.permute.xlu0 %5053
        %5055 = vrot.lane.b32.xlu0 %v1153, 48
        %v5056 = vpop.permute.xlu0 %5055
        %5057 = vrot.lane.b32.xlu0 %v1154, 48
        %v5058 = vpop.permute.xlu0 %5057
        %5059 = vrot.lane.b32.xlu0 %v1155, 48
        %v5060 = vpop.permute.xlu0 %5059
        %5061 = vrot.lane.b32.xlu0 %v1156, 48
        %v5062 = vpop.permute.xlu0 %5061
        %5063 = vrot.lane.b32.xlu0 %v1157, 48
        %v5064 = vpop.permute.xlu0 %5063
        %5065 = vrot.lane.b32.xlu0 %v1158, 48
        %v5066 = vpop.permute.xlu0 %5065
        %5195 = vrot.lane.b32.xlu0 %v1159, 52
        %v5196 = vpop.permute.xlu0 %5195
        %5197 = vrot.lane.b32.xlu0 %v1160, 52
        %v5198 = vpop.permute.xlu0 %5197
        %5199 = vrot.lane.b32.xlu0 %v1161, 52
        %v5200 = vpop.permute.xlu0 %5199
        %5201 = vrot.lane.b32.xlu0 %v1162, 52
        %v5202 = vpop.permute.xlu0 %5201
        %5203 = vrot.lane.b32.xlu0 %v1163, 52
        %v5204 = vpop.permute.xlu0 %5203
        %5205 = vrot.lane.b32.xlu0 %v1164, 52
        %v5206 = vpop.permute.xlu0 %5205
        %5207 = vrot.lane.b32.xlu0 %v1165, 52
        %v5208 = vpop.permute.xlu0 %5207
        %5209 = vrot.lane.b32.xlu0 %v1166, 52
        %v5210 = vpop.permute.xlu0 %5209
        %5211 = vrot.lane.b32.xlu0 %v1167, 52
        %v5212 = vpop.permute.xlu0 %5211
        %5213 = vrot.lane.b32.xlu0 %v1168, 52
        %v5214 = vpop.permute.xlu0 %5213
        %5215 = vrot.lane.b32.xlu0 %v1169, 52
        %v5216 = vpop.permute.xlu0 %5215
        %5217 = vrot.lane.b32.xlu0 %v1170, 52
        %v5218 = vpop.permute.xlu0 %5217
        %5219 = vrot.lane.b32.xlu0 %v1171, 52
        %v5220 = vpop.permute.xlu0 %5219
        %5221 = vrot.lane.b32.xlu0 %v1172, 52
        %v5222 = vpop.permute.xlu0 %5221
        %5223 = vrot.lane.b32.xlu0 %v1173, 52
        %v5224 = vpop.permute.xlu0 %5223
        %5225 = vrot.lane.b32.xlu0 %v1174, 52
        %v5226 = vpop.permute.xlu0 %5225
        %5227 = vrot.lane.b32.xlu0 %v1175, 52
        %v5228 = vpop.permute.xlu0 %5227
        %5229 = vrot.lane.b32.xlu0 %v1176, 52
        %v5230 = vpop.permute.xlu0 %5229
        %5231 = vrot.lane.b32.xlu0 %v1177, 52
        %v5232 = vpop.permute.xlu0 %5231
        %5233 = vrot.lane.b32.xlu0 %v1178, 52
        %v5234 = vpop.permute.xlu0 %5233
        %5235 = vrot.lane.b32.xlu0 %v1179, 52
        %v5236 = vpop.permute.xlu0 %5235
        %5237 = vrot.lane.b32.xlu0 %v1180, 52
        %v5238 = vpop.permute.xlu0 %5237
        %5239 = vrot.lane.b32.xlu0 %v1181, 52
        %v5240 = vpop.permute.xlu0 %5239
        %5241 = vrot.lane.b32.xlu0 %v1182, 52
        %v5242 = vpop.permute.xlu0 %5241
        %5243 = vrot.lane.b32.xlu0 %v1183, 52
        %v5244 = vpop.permute.xlu0 %5243
        %5245 = vrot.lane.b32.xlu0 %v1184, 52
        %v5246 = vpop.permute.xlu0 %5245
        %5247 = vrot.lane.b32.xlu0 %v1185, 52
        %v5248 = vpop.permute.xlu0 %5247
        %5249 = vrot.lane.b32.xlu0 %v1186, 52
        %v5250 = vpop.permute.xlu0 %5249
        %5251 = vrot.lane.b32.xlu0 %v1187, 52
        %v5252 = vpop.permute.xlu0 %5251
        %5253 = vrot.lane.b32.xlu0 %v1188, 52
        %v5254 = vpop.permute.xlu0 %5253
        %5255 = vrot.lane.b32.xlu0 %v1189, 52
        %v5256 = vpop.permute.xlu0 %5255
        %5257 = vrot.lane.b32.xlu0 %v1190, 52
        %v5258 = vpop.permute.xlu0 %5257
        %5259 = vrot.lane.b32.xlu0 %v1191, 52
        %v5260 = vpop.permute.xlu0 %5259
        %5261 = vrot.lane.b32.xlu0 %v1192, 52
        %v5262 = vpop.permute.xlu0 %5261
        %5263 = vrot.lane.b32.xlu0 %v1193, 52
        %v5264 = vpop.permute.xlu0 %5263
        %5265 = vrot.lane.b32.xlu0 %v1194, 52
        %v5266 = vpop.permute.xlu0 %5265
        %5267 = vrot.lane.b32.xlu0 %v1195, 52
        %v5268 = vpop.permute.xlu0 %5267
        %5269 = vrot.lane.b32.xlu0 %v1196, 52
        %v5270 = vpop.permute.xlu0 %5269
        %5271 = vrot.lane.b32.xlu0 %v1197, 52
        %v5272 = vpop.permute.xlu0 %5271
        %5273 = vrot.lane.b32.xlu0 %v1198, 52
        %v5274 = vpop.permute.xlu0 %5273
        %5275 = vrot.lane.b32.xlu0 %v1199, 52
        %v5276 = vpop.permute.xlu0 %5275
        %5277 = vrot.lane.b32.xlu0 %v1200, 52
        %v5278 = vpop.permute.xlu0 %5277
        %5279 = vrot.lane.b32.xlu0 %v1201, 52
        %v5280 = vpop.permute.xlu0 %5279
        %5281 = vrot.lane.b32.xlu0 %v1202, 52
        %v5282 = vpop.permute.xlu0 %5281
        %5283 = vrot.lane.b32.xlu0 %v1203, 52
        %v5284 = vpop.permute.xlu0 %5283
        %5285 = vrot.lane.b32.xlu0 %v1204, 52
        %v5286 = vpop.permute.xlu0 %5285
        %5287 = vrot.lane.b32.xlu0 %v1205, 52
        %v5288 = vpop.permute.xlu0 %5287
        %5289 = vrot.lane.b32.xlu0 %v1206, 52
        %v5290 = vpop.permute.xlu0 %5289
        %5291 = vrot.lane.b32.xlu0 %v1207, 52
        %v5292 = vpop.permute.xlu0 %5291
        %5293 = vrot.lane.b32.xlu0 %v1208, 52
        %v5294 = vpop.permute.xlu0 %5293
        %5295 = vrot.lane.b32.xlu0 %v1209, 52
        %v5296 = vpop.permute.xlu0 %5295
        %5297 = vrot.lane.b32.xlu0 %v1210, 52
        %v5298 = vpop.permute.xlu0 %5297
        %5299 = vrot.lane.b32.xlu0 %v1211, 52
        %v5300 = vpop.permute.xlu0 %5299
        %5301 = vrot.lane.b32.xlu0 %v1212, 52
        %v5302 = vpop.permute.xlu0 %5301
        %5303 = vrot.lane.b32.xlu0 %v1213, 52
        %v5304 = vpop.permute.xlu0 %5303
        %5305 = vrot.lane.b32.xlu0 %v1214, 52
        %v5306 = vpop.permute.xlu0 %5305
        %5307 = vrot.lane.b32.xlu0 %v1215, 52
        %v5308 = vpop.permute.xlu0 %5307
        %5309 = vrot.lane.b32.xlu0 %v1216, 52
        %v5310 = vpop.permute.xlu0 %5309
        %5311 = vrot.lane.b32.xlu0 %v1217, 52
        %v5312 = vpop.permute.xlu0 %5311
        %5313 = vrot.lane.b32.xlu0 %v1218, 52
        %v5314 = vpop.permute.xlu0 %5313
        %5315 = vrot.lane.b32.xlu0 %v1219, 52
        %v5316 = vpop.permute.xlu0 %5315
        %5317 = vrot.lane.b32.xlu0 %v1220, 52
        %v5318 = vpop.permute.xlu0 %5317
        %5319 = vrot.lane.b32.xlu0 %v1221, 52
        %v5320 = vpop.permute.xlu0 %5319
        %5321 = vrot.lane.b32.xlu0 %v1222, 52
        %v5322 = vpop.permute.xlu0 %5321
        %5451 = vrot.lane.b32.xlu0 %v1223, 56
        %v5452 = vpop.permute.xlu0 %5451
        %5453 = vrot.lane.b32.xlu0 %v1224, 56
        %v5454 = vpop.permute.xlu0 %5453
        %5455 = vrot.lane.b32.xlu0 %v1225, 56
        %v5456 = vpop.permute.xlu0 %5455
        %5457 = vrot.lane.b32.xlu0 %v1226, 56
        %v5458 = vpop.permute.xlu0 %5457
        %5459 = vrot.lane.b32.xlu0 %v1227, 56
        %v5460 = vpop.permute.xlu0 %5459
        %5461 = vrot.lane.b32.xlu0 %v1228, 56
        %v5462 = vpop.permute.xlu0 %5461
        %5463 = vrot.lane.b32.xlu0 %v1229, 56
        %v5464 = vpop.permute.xlu0 %5463
        %5465 = vrot.lane.b32.xlu0 %v1230, 56
        %v5466 = vpop.permute.xlu0 %5465
        %5467 = vrot.lane.b32.xlu0 %v1231, 56
        %v5468 = vpop.permute.xlu0 %5467
        %5469 = vrot.lane.b32.xlu0 %v1232, 56
        %v5470 = vpop.permute.xlu0 %5469
        %5471 = vrot.lane.b32.xlu0 %v1233, 56
        %v5472 = vpop.permute.xlu0 %5471
        %5473 = vrot.lane.b32.xlu0 %v1234, 56
        %v5474 = vpop.permute.xlu0 %5473
        %5475 = vrot.lane.b32.xlu0 %v1235, 56
        %v5476 = vpop.permute.xlu0 %5475
        %5477 = vrot.lane.b32.xlu0 %v1236, 56
        %v5478 = vpop.permute.xlu0 %5477
        %5479 = vrot.lane.b32.xlu0 %v1237, 56
        %v5480 = vpop.permute.xlu0 %5479
        %5481 = vrot.lane.b32.xlu0 %v1238, 56
        %v5482 = vpop.permute.xlu0 %5481
        %5483 = vrot.lane.b32.xlu0 %v1239, 56
        %v5484 = vpop.permute.xlu0 %5483
        %5485 = vrot.lane.b32.xlu0 %v1240, 56
        %v5486 = vpop.permute.xlu0 %5485
        %5487 = vrot.lane.b32.xlu0 %v1241, 56
        %v5488 = vpop.permute.xlu0 %5487
        %5489 = vrot.lane.b32.xlu0 %v1242, 56
        %v5490 = vpop.permute.xlu0 %5489
        %5491 = vrot.lane.b32.xlu0 %v1243, 56
        %v5492 = vpop.permute.xlu0 %5491
        %5493 = vrot.lane.b32.xlu0 %v1244, 56
        %v5494 = vpop.permute.xlu0 %5493
        %5495 = vrot.lane.b32.xlu0 %v1245, 56
        %v5496 = vpop.permute.xlu0 %5495
        %5497 = vrot.lane.b32.xlu0 %v1246, 56
        %v5498 = vpop.permute.xlu0 %5497
        %5499 = vrot.lane.b32.xlu0 %v1247, 56
        %v5500 = vpop.permute.xlu0 %5499
        %5501 = vrot.lane.b32.xlu0 %v1248, 56
        %v5502 = vpop.permute.xlu0 %5501
        %5503 = vrot.lane.b32.xlu0 %v1249, 56
        %v5504 = vpop.permute.xlu0 %5503
        %5505 = vrot.lane.b32.xlu0 %v1250, 56
        %v5506 = vpop.permute.xlu0 %5505
        %5507 = vrot.lane.b32.xlu0 %v1251, 56
        %v5508 = vpop.permute.xlu0 %5507
        %5509 = vrot.lane.b32.xlu0 %v1252, 56
        %v5510 = vpop.permute.xlu0 %5509
        %5511 = vrot.lane.b32.xlu0 %v1253, 56
        %v5512 = vpop.permute.xlu0 %5511
        %5513 = vrot.lane.b32.xlu0 %v1254, 56
        %v5514 = vpop.permute.xlu0 %5513
        %5515 = vrot.lane.b32.xlu0 %v1255, 56
        %v5516 = vpop.permute.xlu0 %5515
        %5517 = vrot.lane.b32.xlu0 %v1256, 56
        %v5518 = vpop.permute.xlu0 %5517
        %5519 = vrot.lane.b32.xlu0 %v1257, 56
        %v5520 = vpop.permute.xlu0 %5519
        %5521 = vrot.lane.b32.xlu0 %v1258, 56
        %v5522 = vpop.permute.xlu0 %5521
        %5523 = vrot.lane.b32.xlu0 %v1259, 56
        %v5524 = vpop.permute.xlu0 %5523
        %5525 = vrot.lane.b32.xlu0 %v1260, 56
        %v5526 = vpop.permute.xlu0 %5525
        %5527 = vrot.lane.b32.xlu0 %v1261, 56
        %v5528 = vpop.permute.xlu0 %5527
        %5529 = vrot.lane.b32.xlu0 %v1262, 56
        %v5530 = vpop.permute.xlu0 %5529
        %5531 = vrot.lane.b32.xlu0 %v1263, 56
        %v5532 = vpop.permute.xlu0 %5531
        %5533 = vrot.lane.b32.xlu0 %v1264, 56
        %v5534 = vpop.permute.xlu0 %5533
        %5535 = vrot.lane.b32.xlu0 %v1265, 56
        %v5536 = vpop.permute.xlu0 %5535
        %5537 = vrot.lane.b32.xlu0 %v1266, 56
        %v5538 = vpop.permute.xlu0 %5537
        %5539 = vrot.lane.b32.xlu0 %v1267, 56
        %v5540 = vpop.permute.xlu0 %5539
        %5541 = vrot.lane.b32.xlu0 %v1268, 56
        %v5542 = vpop.permute.xlu0 %5541
        %5543 = vrot.lane.b32.xlu0 %v1269, 56
        %v5544 = vpop.permute.xlu0 %5543
        %5545 = vrot.lane.b32.xlu0 %v1270, 56
        %v5546 = vpop.permute.xlu0 %5545
        %5547 = vrot.lane.b32.xlu0 %v1271, 56
        %v5548 = vpop.permute.xlu0 %5547
        %5549 = vrot.lane.b32.xlu0 %v1272, 56
        %v5550 = vpop.permute.xlu0 %5549
        %5551 = vrot.lane.b32.xlu0 %v1273, 56
        %v5552 = vpop.permute.xlu0 %5551
        %5553 = vrot.lane.b32.xlu0 %v1274, 56
        %v5554 = vpop.permute.xlu0 %5553
        %5555 = vrot.lane.b32.xlu0 %v1275, 56
        %v5556 = vpop.permute.xlu0 %5555
        %5557 = vrot.lane.b32.xlu0 %v1276, 56
        %v5558 = vpop.permute.xlu0 %5557
        %5559 = vrot.lane.b32.xlu0 %v1277, 56
        %v5560 = vpop.permute.xlu0 %5559
        %5561 = vrot.lane.b32.xlu0 %v1278, 56
        %v5562 = vpop.permute.xlu0 %5561
        %5563 = vrot.lane.b32.xlu0 %v1279, 56
        %v5564 = vpop.permute.xlu0 %5563
        %5565 = vrot.lane.b32.xlu0 %v1280, 56
        %v5566 = vpop.permute.xlu0 %5565
        %5567 = vrot.lane.b32.xlu0 %v1281, 56
        %v5568 = vpop.permute.xlu0 %5567
        %5569 = vrot.lane.b32.xlu0 %v1282, 56
        %v5570 = vpop.permute.xlu0 %5569
        %5571 = vrot.lane.b32.xlu0 %v1283, 56
        %v5572 = vpop.permute.xlu0 %5571
        %5573 = vrot.lane.b32.xlu0 %v1284, 56
        %v5574 = vpop.permute.xlu0 %5573
        %5575 = vrot.lane.b32.xlu0 %v1285, 56
        %v5576 = vpop.permute.xlu0 %5575
        %5577 = vrot.lane.b32.xlu0 %v1286, 56
        %v5578 = vpop.permute.xlu0 %5577
        %5707 = vrot.lane.b32.xlu0 %v1288, 60
        %v5708 = vpop.permute.xlu0 %5707
        %5709 = vrot.lane.b32.xlu0 %v1289, 60
        %v5710 = vpop.permute.xlu0 %5709
        %5711 = vrot.lane.b32.xlu0 %v1290, 60
        %v5712 = vpop.permute.xlu0 %5711
        %5713 = vrot.lane.b32.xlu0 %v1291, 60
        %v5714 = vpop.permute.xlu0 %5713
        %5715 = vrot.lane.b32.xlu0 %v1292, 60
        %v5716 = vpop.permute.xlu0 %5715
        %5717 = vrot.lane.b32.xlu0 %v1293, 60
        %v5718 = vpop.permute.xlu0 %5717
        %5719 = vrot.lane.b32.xlu0 %v1294, 60
        %v5720 = vpop.permute.xlu0 %5719
        %5721 = vrot.lane.b32.xlu0 %v1295, 60
        %v5722 = vpop.permute.xlu0 %5721
        %5723 = vrot.lane.b32.xlu0 %v1296, 60
        %v5724 = vpop.permute.xlu0 %5723
        %5725 = vrot.lane.b32.xlu0 %v1297, 60
        %v5726 = vpop.permute.xlu0 %5725
        %5727 = vrot.lane.b32.xlu0 %v1298, 60
        %v5728 = vpop.permute.xlu0 %5727
        %5729 = vrot.lane.b32.xlu0 %v1299, 60
        %v5730 = vpop.permute.xlu0 %5729
        %5731 = vrot.lane.b32.xlu0 %v1300, 60
        %v5732 = vpop.permute.xlu0 %5731
        %5733 = vrot.lane.b32.xlu0 %v1301, 60
        %v5734 = vpop.permute.xlu0 %5733
        %5735 = vrot.lane.b32.xlu0 %v1302, 60
        %v5736 = vpop.permute.xlu0 %5735
        %5737 = vrot.lane.b32.xlu0 %v1303, 60
        %v5738 = vpop.permute.xlu0 %5737
        %5739 = vrot.lane.b32.xlu0 %v1304, 60
        %v5740 = vpop.permute.xlu0 %5739
        %5741 = vrot.lane.b32.xlu0 %v1305, 60
        %v5742 = vpop.permute.xlu0 %5741
        %5743 = vrot.lane.b32.xlu0 %v1306, 60
        %v5744 = vpop.permute.xlu0 %5743
        %5745 = vrot.lane.b32.xlu0 %v1307, 60
        %v5746 = vpop.permute.xlu0 %5745
        %5747 = vrot.lane.b32.xlu0 %v1308, 60
        %v5748 = vpop.permute.xlu0 %5747
        %5749 = vrot.lane.b32.xlu0 %v1309, 60
        %v5750 = vpop.permute.xlu0 %5749
        %5751 = vrot.lane.b32.xlu0 %v1310, 60
        %v5752 = vpop.permute.xlu0 %5751
        %5753 = vrot.lane.b32.xlu0 %v1311, 60
        %v5754 = vpop.permute.xlu0 %5753
        %5755 = vrot.lane.b32.xlu0 %v1312, 60
        %v5756 = vpop.permute.xlu0 %5755
        %5757 = vrot.lane.b32.xlu0 %v1313, 60
        %v5758 = vpop.permute.xlu0 %5757
        %5759 = vrot.lane.b32.xlu0 %v1314, 60
        %v5760 = vpop.permute.xlu0 %5759
        %5761 = vrot.lane.b32.xlu0 %v1315, 60
        %v5762 = vpop.permute.xlu0 %5761
        %5763 = vrot.lane.b32.xlu0 %v1316, 60
        %v5764 = vpop.permute.xlu0 %5763
        %5765 = vrot.lane.b32.xlu0 %v1317, 60
        %v5766 = vpop.permute.xlu0 %5765
        %5767 = vrot.lane.b32.xlu0 %v1318, 60
        %v5768 = vpop.permute.xlu0 %5767
        %5769 = vrot.lane.b32.xlu0 %v1319, 60
        %v5770 = vpop.permute.xlu0 %5769
        %5771 = vrot.lane.b32.xlu0 %v1320, 60
        %v5772 = vpop.permute.xlu0 %5771
        %5773 = vrot.lane.b32.xlu0 %v1321, 60
        %v5774 = vpop.permute.xlu0 %5773
        %5775 = vrot.lane.b32.xlu0 %v1322, 60
        %v5776 = vpop.permute.xlu0 %5775
        %5777 = vrot.lane.b32.xlu0 %v1323, 60
        %v5778 = vpop.permute.xlu0 %5777
        %5779 = vrot.lane.b32.xlu0 %v1324, 60
        %v5780 = vpop.permute.xlu0 %5779
        %5781 = vrot.lane.b32.xlu0 %v1325, 60
        %v5782 = vpop.permute.xlu0 %5781
        %5783 = vrot.lane.b32.xlu0 %v1326, 60
        %v5784 = vpop.permute.xlu0 %5783
        %5785 = vrot.lane.b32.xlu0 %v1327, 60
        %v5786 = vpop.permute.xlu0 %5785
        %5787 = vrot.lane.b32.xlu0 %v1328, 60
        %v5788 = vpop.permute.xlu0 %5787
        %5789 = vrot.lane.b32.xlu0 %v1329, 60
        %v5790 = vpop.permute.xlu0 %5789
        %5791 = vrot.lane.b32.xlu0 %v1330, 60
        %v5792 = vpop.permute.xlu0 %5791
        %5793 = vrot.lane.b32.xlu0 %v1331, 60
        %v5794 = vpop.permute.xlu0 %5793
        %5795 = vrot.lane.b32.xlu0 %v1332, 60
        %v5796 = vpop.permute.xlu0 %5795
        %5797 = vrot.lane.b32.xlu0 %v1333, 60
        %v5798 = vpop.permute.xlu0 %5797
        %5799 = vrot.lane.b32.xlu0 %v1334, 60
        %v5800 = vpop.permute.xlu0 %5799
        %5801 = vrot.lane.b32.xlu0 %v1335, 60
        %v5802 = vpop.permute.xlu0 %5801
        %5803 = vrot.lane.b32.xlu0 %v1336, 60
        %v5804 = vpop.permute.xlu0 %5803
        %5805 = vrot.lane.b32.xlu0 %v1337, 60
        %v5806 = vpop.permute.xlu0 %5805
        %5807 = vrot.lane.b32.xlu0 %v1338, 60
        %v5808 = vpop.permute.xlu0 %5807
        %5809 = vrot.lane.b32.xlu0 %v1339, 60
        %v5810 = vpop.permute.xlu0 %5809
        %5811 = vrot.lane.b32.xlu0 %v1340, 60
        %v5812 = vpop.permute.xlu0 %5811
        %5813 = vrot.lane.b32.xlu0 %v1341, 60
        %v5814 = vpop.permute.xlu0 %5813
        %5815 = vrot.lane.b32.xlu0 %v1342, 60
        %v5816 = vpop.permute.xlu0 %5815
        %5817 = vrot.lane.b32.xlu0 %v1343, 60
        %v5818 = vpop.permute.xlu0 %5817
        %5819 = vrot.lane.b32.xlu0 %v1344, 60
        %v5820 = vpop.permute.xlu0 %5819
        %5821 = vrot.lane.b32.xlu0 %v1345, 60
        %v5822 = vpop.permute.xlu0 %5821
        %5823 = vrot.lane.b32.xlu0 %v1346, 60
        %v5824 = vpop.permute.xlu0 %5823
        %5825 = vrot.lane.b32.xlu0 %v1347, 60
        %v5826 = vpop.permute.xlu0 %5825
        %5827 = vrot.lane.b32.xlu0 %v1348, 60
        %v5828 = vpop.permute.xlu0 %5827
        %5829 = vrot.lane.b32.xlu0 %v1349, 60
        %v5830 = vpop.permute.xlu0 %5829
        %5831 = vrot.lane.b32.xlu0 %v1350, 60
        %v5832 = vpop.permute.xlu0 %5831
        %5833 = vrot.lane.b32.xlu0 %v1351, 60
        %v5834 = vpop.permute.xlu0 %5833
        %vm5899 = vcmask 31744
        %v5900 = vsel %vm5899, %v323, %v2124
        %v5901 = vsel %vm5899, %v324, %v2126
        %v5902 = vsel %vm5899, %v325, %v2128
        %v5903 = vsel %vm5899, %v326, %v2130
        %v5904 = vsel %vm5899, %v327, %v2132
        %v5905 = vsel %vm5899, %v328, %v2134
        %v5906 = vsel %vm5899, %v329, %v2136
        %v5907 = vsel %vm5899, %v330, %v2138
        %v5908 = vsel %vm5899, %v331, %v2140
        %v5909 = vsel %vm5899, %v332, %v2142
        %v5910 = vsel %vm5899, %v333, %v2144
        %v5911 = vsel %vm5899, %v334, %v2146
        %v5912 = vsel %vm5899, %v335, %v2148
        %v5913 = vsel %vm5899, %v336, %v2150
        %v5914 = vsel %vm5899, %v337, %v2152
        %v5915 = vsel %vm5899, %v338, %v2154
        %v5916 = vsel %vm5899, %v339, %v2156
        %v5917 = vsel %vm5899, %v340, %v2158
        %v5918 = vsel %vm5899, %v341, %v2160
        %v5919 = vsel %vm5899, %v342, %v2162
        %v5920 = vsel %vm5899, %v343, %v2164
        %v5921 = vsel %vm5899, %v344, %v2166
        %v5922 = vsel %vm5899, %v345, %v2168
        %v5923 = vsel %vm5899, %v346, %v2170
        %v5924 = vsel %vm5899, %v347, %v2172
        %v5925 = vsel %vm5899, %v348, %v2174
        %v5926 = vsel %vm5899, %v349, %v2176
        %v5927 = vsel %vm5899, %v350, %v2178
        %v5928 = vsel %vm5899, %v351, %v2180
        %v5929 = vsel %vm5899, %v352, %v2182
        %v5930 = vsel %vm5899, %v353, %v2184
        %v5931 = vsel %vm5899, %v354, %v2186
        %v5932 = vsel %vm5899, %v355, %v2188
        %v5933 = vsel %vm5899, %v356, %v2190
        %v5934 = vsel %vm5899, %v357, %v2192
        %v5935 = vsel %vm5899, %v358, %v2194
        %v5936 = vsel %vm5899, %v359, %v2196
        %v5937 = vsel %vm5899, %v360, %v2198
        %v5938 = vsel %vm5899, %v361, %v2200
        %v5939 = vsel %vm5899, %v362, %v2202
        %v5940 = vsel %vm5899, %v363, %v2204
        %v5941 = vsel %vm5899, %v364, %v2206
        %v5942 = vsel %vm5899, %v365, %v2208
        %v5943 = vsel %vm5899, %v366, %v2210
        %v5944 = vsel %vm5899, %v367, %v2212
        %v5945 = vsel %vm5899, %v368, %v2214
        %v5946 = vsel %vm5899, %v369, %v2216
        %v5947 = vsel %vm5899, %v370, %v2218
        %v5948 = vsel %vm5899, %v371, %v2220
        %v5949 = vsel %vm5899, %v372, %v2222
        %v5950 = vsel %vm5899, %v373, %v2224
        %v5951 = vsel %vm5899, %v374, %v2226
        %v5952 = vsel %vm5899, %v375, %v2228
        %v5953 = vsel %vm5899, %v376, %v2230
        %v5954 = vsel %vm5899, %v377, %v2232
        %v5955 = vsel %vm5899, %v378, %v2234
        %v5956 = vsel %vm5899, %v379, %v2236
        %v5957 = vsel %vm5899, %v380, %v2238
        %v5958 = vsel %vm5899, %v381, %v2240
        %v5959 = vsel %vm5899, %v382, %v2242
        %v5960 = vsel %vm5899, %v383, %v2244
        %v5961 = vsel %vm5899, %v384, %v2246
        %v5962 = vsel %vm5899, %v385, %v2248
        %v5963 = vsel %vm5899, %v386, %v2250
        %vm5964 = vcmask 64512
        %v5965 = vsel %vm5964, %v5900, %v2380
        %v5966 = vsel %vm5964, %v5901, %v2382
        %v5967 = vsel %vm5964, %v5902, %v2384
        %v5968 = vsel %vm5964, %v5903, %v2386
        %v5969 = vsel %vm5964, %v5904, %v2388
        %v5970 = vsel %vm5964, %v5905, %v2390
        %v5971 = vsel %vm5964, %v5906, %v2392
        %v5972 = vsel %vm5964, %v5907, %v2394
        %v5973 = vsel %vm5964, %v5908, %v2396
        %v5974 = vsel %vm5964, %v5909, %v2398
        %v5975 = vsel %vm5964, %v5910, %v2400
        %v5976 = vsel %vm5964, %v5911, %v2402
        %v5977 = vsel %vm5964, %v5912, %v2404
        %v5978 = vsel %vm5964, %v5913, %v2406
        %v5979 = vsel %vm5964, %v5914, %v2408
        %v5980 = vsel %vm5964, %v5915, %v2410
        %v5981 = vsel %vm5964, %v5916, %v2412
        %v5982 = vsel %vm5964, %v5917, %v2414
        %v5983 = vsel %vm5964, %v5918, %v2416
        %v5984 = vsel %vm5964, %v5919, %v2418
        %v5985 = vsel %vm5964, %v5920, %v2420
        %v5986 = vsel %vm5964, %v5921, %v2422
        %v5987 = vsel %vm5964, %v5922, %v2424
        %v5988 = vsel %vm5964, %v5923, %v2426
        %v5989 = vsel %vm5964, %v5924, %v2428
        %v5990 = vsel %vm5964, %v5925, %v2430
        %v5991 = vsel %vm5964, %v5926, %v2432
        %v5992 = vsel %vm5964, %v5927, %v2434
        %v5993 = vsel %vm5964, %v5928, %v2436
        %v5994 = vsel %vm5964, %v5929, %v2438
        %v5995 = vsel %vm5964, %v5930, %v2440
        %v5996 = vsel %vm5964, %v5931, %v2442
        %v5997 = vsel %vm5964, %v5932, %v2444
        %v5998 = vsel %vm5964, %v5933, %v2446
        %v5999 = vsel %vm5964, %v5934, %v2448
        %v6000 = vsel %vm5964, %v5935, %v2450
        %v6001 = vsel %vm5964, %v5936, %v2452
        %v6002 = vsel %vm5964, %v5937, %v2454
        %v6003 = vsel %vm5964, %v5938, %v2456
        %v6004 = vsel %vm5964, %v5939, %v2458
        %v6005 = vsel %vm5964, %v5940, %v2460
        %v6006 = vsel %vm5964, %v5941, %v2462
        %v6007 = vsel %vm5964, %v5942, %v2464
        %v6008 = vsel %vm5964, %v5943, %v2466
        %v6009 = vsel %vm5964, %v5944, %v2468
        %v6010 = vsel %vm5964, %v5945, %v2470
        %v6011 = vsel %vm5964, %v5946, %v2472
        %v6012 = vsel %vm5964, %v5947, %v2474
        %v6013 = vsel %vm5964, %v5948, %v2476
        %v6014 = vsel %vm5964, %v5949, %v2478
        %v6015 = vsel %vm5964, %v5950, %v2480
        %v6016 = vsel %vm5964, %v5951, %v2482
        %v6017 = vsel %vm5964, %v5952, %v2484
        %v6018 = vsel %vm5964, %v5953, %v2486
        %v6019 = vsel %vm5964, %v5954, %v2488
        %v6020 = vsel %vm5964, %v5955, %v2490
        %v6021 = vsel %vm5964, %v5956, %v2492
        %v6022 = vsel %vm5964, %v5957, %v2494
        %v6023 = vsel %vm5964, %v5958, %v2496
        %v6024 = vsel %vm5964, %v5959, %v2498
        %v6025 = vsel %vm5964, %v5960, %v2500
        %v6026 = vsel %vm5964, %v5961, %v2502
        %v6027 = vsel %vm5964, %v5962, %v2504
        %v6028 = vsel %vm5964, %v5963, %v2506
        %vm6029 = vcmask 97280
        %v6030 = vsel %vm6029, %v5965, %v2636
        %v6031 = vsel %vm6029, %v5966, %v2638
        %v6032 = vsel %vm6029, %v5967, %v2640
        %v6033 = vsel %vm6029, %v5968, %v2642
        %v6034 = vsel %vm6029, %v5969, %v2644
        %v6035 = vsel %vm6029, %v5970, %v2646
        %v6036 = vsel %vm6029, %v5971, %v2648
        %v6037 = vsel %vm6029, %v5972, %v2650
        %v6038 = vsel %vm6029, %v5973, %v2652
        %v6039 = vsel %vm6029, %v5974, %v2654
        %v6040 = vsel %vm6029, %v5975, %v2656
        %v6041 = vsel %vm6029, %v5976, %v2658
        %v6042 = vsel %vm6029, %v5977, %v2660
        %v6043 = vsel %vm6029, %v5978, %v2662
        %v6044 = vsel %vm6029, %v5979, %v2664
        %v6045 = vsel %vm6029, %v5980, %v2666
        %v6046 = vsel %vm6029, %v5981, %v2668
        %v6047 = vsel %vm6029, %v5982, %v2670
        %v6048 = vsel %vm6029, %v5983, %v2672
        %v6049 = vsel %vm6029, %v5984, %v2674
        %v6050 = vsel %vm6029, %v5985, %v2676
        %v6051 = vsel %vm6029, %v5986, %v2678
        %v6052 = vsel %vm6029, %v5987, %v2680
        %v6053 = vsel %vm6029, %v5988, %v2682
        %v6054 = vsel %vm6029, %v5989, %v2684
        %v6055 = vsel %vm6029, %v5990, %v2686
        %v6056 = vsel %vm6029, %v5991, %v2688
        %v6057 = vsel %vm6029, %v5992, %v2690
        %v6058 = vsel %vm6029, %v5993, %v2692
        %v6059 = vsel %vm6029, %v5994, %v2694
        %v6060 = vsel %vm6029, %v5995, %v2696
        %v6061 = vsel %vm6029, %v5996, %v2698
        %v6062 = vsel %vm6029, %v5997, %v2700
        %v6063 = vsel %vm6029, %v5998, %v2702
        %v6064 = vsel %vm6029, %v5999, %v2704
        %v6065 = vsel %vm6029, %v6000, %v2706
        %v6066 = vsel %vm6029, %v6001, %v2708
        %v6067 = vsel %vm6029, %v6002, %v2710
        %v6068 = vsel %vm6029, %v6003, %v2712
        %v6069 = vsel %vm6029, %v6004, %v2714
        %v6070 = vsel %vm6029, %v6005, %v2716
        %v6071 = vsel %vm6029, %v6006, %v2718
        %v6072 = vsel %vm6029, %v6007, %v2720
        %v6073 = vsel %vm6029, %v6008, %v2722
        %v6074 = vsel %vm6029, %v6009, %v2724
        %v6075 = vsel %vm6029, %v6010, %v2726
        %v6076 = vsel %vm6029, %v6011, %v2728
        %v6077 = vsel %vm6029, %v6012, %v2730
        %v6078 = vsel %vm6029, %v6013, %v2732
        %v6079 = vsel %vm6029, %v6014, %v2734
        %v6080 = vsel %vm6029, %v6015, %v2736
        %v6081 = vsel %vm6029, %v6016, %v2738
        %v6082 = vsel %vm6029, %v6017, %v2740
        %v6083 = vsel %vm6029, %v6018, %v2742
        %v6084 = vsel %vm6029, %v6019, %v2744
        %v6085 = vsel %vm6029, %v6020, %v2746
        %v6086 = vsel %vm6029, %v6021, %v2748
        %v6087 = vsel %vm6029, %v6022, %v2750
        %v6088 = vsel %vm6029, %v6023, %v2752
        %v6089 = vsel %vm6029, %v6024, %v2754
        %v6090 = vsel %vm6029, %v6025, %v2756
        %v6091 = vsel %vm6029, %v6026, %v2758
        %v6092 = vsel %vm6029, %v6027, %v2760
        %v6093 = vsel %vm6029, %v6028, %v2762
        %vm6094 = vcmask 130048
        %v6095 = vsel %vm6094, %v6030, %v2892
        %v6096 = vsel %vm6094, %v6031, %v2894
        %v6097 = vsel %vm6094, %v6032, %v2896
        %v6098 = vsel %vm6094, %v6033, %v2898
        %v6099 = vsel %vm6094, %v6034, %v2900
        %v6100 = vsel %vm6094, %v6035, %v2902
        %v6101 = vsel %vm6094, %v6036, %v2904
        %v6102 = vsel %vm6094, %v6037, %v2906
        %v6103 = vsel %vm6094, %v6038, %v2908
        %v6104 = vsel %vm6094, %v6039, %v2910
        %v6105 = vsel %vm6094, %v6040, %v2912
        %v6106 = vsel %vm6094, %v6041, %v2914
        %v6107 = vsel %vm6094, %v6042, %v2916
        %v6108 = vsel %vm6094, %v6043, %v2918
        %v6109 = vsel %vm6094, %v6044, %v2920
        %v6110 = vsel %vm6094, %v6045, %v2922
        %v6111 = vsel %vm6094, %v6046, %v2924
        %v6112 = vsel %vm6094, %v6047, %v2926
        %v6113 = vsel %vm6094, %v6048, %v2928
        %v6114 = vsel %vm6094, %v6049, %v2930
        %v6115 = vsel %vm6094, %v6050, %v2932
        %v6116 = vsel %vm6094, %v6051, %v2934
        %v6117 = vsel %vm6094, %v6052, %v2936
        %v6118 = vsel %vm6094, %v6053, %v2938
        %v6119 = vsel %vm6094, %v6054, %v2940
        %v6120 = vsel %vm6094, %v6055, %v2942
        %v6121 = vsel %vm6094, %v6056, %v2944
        %v6122 = vsel %vm6094, %v6057, %v2946
        %v6123 = vsel %vm6094, %v6058, %v2948
        %v6124 = vsel %vm6094, %v6059, %v2950
        %v6125 = vsel %vm6094, %v6060, %v2952
        %v6126 = vsel %vm6094, %v6061, %v2954
        %v6127 = vsel %vm6094, %v6062, %v2956
        %v6128 = vsel %vm6094, %v6063, %v2958
        %v6129 = vsel %vm6094, %v6064, %v2960
        %v6130 = vsel %vm6094, %v6065, %v2962
        %v6131 = vsel %vm6094, %v6066, %v2964
        %v6132 = vsel %vm6094, %v6067, %v2966
        %v6133 = vsel %vm6094, %v6068, %v2968
        %v6134 = vsel %vm6094, %v6069, %v2970
        %v6135 = vsel %vm6094, %v6070, %v2972
        %v6136 = vsel %vm6094, %v6071, %v2974
        %v6137 = vsel %vm6094, %v6072, %v2976
        %v6138 = vsel %vm6094, %v6073, %v2978
        %v6139 = vsel %vm6094, %v6074, %v2980
        %v6140 = vsel %vm6094, %v6075, %v2982
        %v6141 = vsel %vm6094, %v6076, %v2984
        %v6142 = vsel %vm6094, %v6077, %v2986
        %v6143 = vsel %vm6094, %v6078, %v2988
        %v6144 = vsel %vm6094, %v6079, %v2990
        %v6145 = vsel %vm6094, %v6080, %v2992
        %v6146 = vsel %vm6094, %v6081, %v2994
        %v6147 = vsel %vm6094, %v6082, %v2996
        %v6148 = vsel %vm6094, %v6083, %v2998
        %v6149 = vsel %vm6094, %v6084, %v3000
        %v6150 = vsel %vm6094, %v6085, %v3002
        %v6151 = vsel %vm6094, %v6086, %v3004
        %v6152 = vsel %vm6094, %v6087, %v3006
        %v6153 = vsel %vm6094, %v6088, %v3008
        %v6154 = vsel %vm6094, %v6089, %v3010
        %v6155 = vsel %vm6094, %v6090, %v3012
        %v6156 = vsel %vm6094, %v6091, %v3014
        %v6157 = vsel %vm6094, %v6092, %v3016
        %v6158 = vsel %vm6094, %v6093, %v3018
        %vm6159 = vcmask 162816
        %v6160 = vsel %vm6159, %v6095, %v3148
        %v6161 = vsel %vm6159, %v6096, %v3150
        %v6162 = vsel %vm6159, %v6097, %v3152
        %v6163 = vsel %vm6159, %v6098, %v3154
        %v6164 = vsel %vm6159, %v6099, %v3156
        %v6165 = vsel %vm6159, %v6100, %v3158
        %v6166 = vsel %vm6159, %v6101, %v3160
        %v6167 = vsel %vm6159, %v6102, %v3162
        %v6168 = vsel %vm6159, %v6103, %v3164
        %v6169 = vsel %vm6159, %v6104, %v3166
        %v6170 = vsel %vm6159, %v6105, %v3168
        %v6171 = vsel %vm6159, %v6106, %v3170
        %v6172 = vsel %vm6159, %v6107, %v3172
        %v6173 = vsel %vm6159, %v6108, %v3174
        %v6174 = vsel %vm6159, %v6109, %v3176
        %v6175 = vsel %vm6159, %v6110, %v3178
        %v6176 = vsel %vm6159, %v6111, %v3180
        %v6177 = vsel %vm6159, %v6112, %v3182
        %v6178 = vsel %vm6159, %v6113, %v3184
        %v6179 = vsel %vm6159, %v6114, %v3186
        %v6180 = vsel %vm6159, %v6115, %v3188
        %v6181 = vsel %vm6159, %v6116, %v3190
        %v6182 = vsel %vm6159, %v6117, %v3192
        %v6183 = vsel %vm6159, %v6118, %v3194
        %v6184 = vsel %vm6159, %v6119, %v3196
        %v6185 = vsel %vm6159, %v6120, %v3198
        %v6186 = vsel %vm6159, %v6121, %v3200
        %v6187 = vsel %vm6159, %v6122, %v3202
        %v6188 = vsel %vm6159, %v6123, %v3204
        %v6189 = vsel %vm6159, %v6124, %v3206
        %v6190 = vsel %vm6159, %v6125, %v3208
        %v6191 = vsel %vm6159, %v6126, %v3210
        %v6192 = vsel %vm6159, %v6127, %v3212
        %v6193 = vsel %vm6159, %v6128, %v3214
        %v6194 = vsel %vm6159, %v6129, %v3216
        %v6195 = vsel %vm6159, %v6130, %v3218
        %v6196 = vsel %vm6159, %v6131, %v3220
        %v6197 = vsel %vm6159, %v6132, %v3222
        %v6198 = vsel %vm6159, %v6133, %v3224
        %v6199 = vsel %vm6159, %v6134, %v3226
        %v6200 = vsel %vm6159, %v6135, %v3228
        %v6201 = vsel %vm6159, %v6136, %v3230
        %v6202 = vsel %vm6159, %v6137, %v3232
        %v6203 = vsel %vm6159, %v6138, %v3234
        %v6204 = vsel %vm6159, %v6139, %v3236
        %v6205 = vsel %vm6159, %v6140, %v3238
        %v6206 = vsel %vm6159, %v6141, %v3240
        %v6207 = vsel %vm6159, %v6142, %v3242
        %v6208 = vsel %vm6159, %v6143, %v3244
        %v6209 = vsel %vm6159, %v6144, %v3246
        %v6210 = vsel %vm6159, %v6145, %v3248
        %v6211 = vsel %vm6159, %v6146, %v3250
        %v6212 = vsel %vm6159, %v6147, %v3252
        %v6213 = vsel %vm6159, %v6148, %v3254
        %v6214 = vsel %vm6159, %v6149, %v3256
        %v6215 = vsel %vm6159, %v6150, %v3258
        %v6216 = vsel %vm6159, %v6151, %v3260
        %v6217 = vsel %vm6159, %v6152, %v3262
        %v6218 = vsel %vm6159, %v6153, %v3264
        %v6219 = vsel %vm6159, %v6154, %v3266
        %v6220 = vsel %vm6159, %v6155, %v3268
        %v6221 = vsel %vm6159, %v6156, %v3270
        %v6222 = vsel %vm6159, %v6157, %v3272
        %v6223 = vsel %vm6159, %v6158, %v3274
        %vm6224 = vcmask 195584
        %v6225 = vsel %vm6224, %v6160, %v3404
        %v6226 = vsel %vm6224, %v6161, %v3406
        %v6227 = vsel %vm6224, %v6162, %v3408
        %v6228 = vsel %vm6224, %v6163, %v3410
        %v6229 = vsel %vm6224, %v6164, %v3412
        %v6230 = vsel %vm6224, %v6165, %v3414
        %v6231 = vsel %vm6224, %v6166, %v3416
        %v6232 = vsel %vm6224, %v6167, %v3418
        %v6233 = vsel %vm6224, %v6168, %v3420
        %v6234 = vsel %vm6224, %v6169, %v3422
        %v6235 = vsel %vm6224, %v6170, %v3424
        %v6236 = vsel %vm6224, %v6171, %v3426
        %v6237 = vsel %vm6224, %v6172, %v3428
        %v6238 = vsel %vm6224, %v6173, %v3430
        %v6239 = vsel %vm6224, %v6174, %v3432
        %v6240 = vsel %vm6224, %v6175, %v3434
        %v6241 = vsel %vm6224, %v6176, %v3436
        %v6242 = vsel %vm6224, %v6177, %v3438
        %v6243 = vsel %vm6224, %v6178, %v3440
        %v6244 = vsel %vm6224, %v6179, %v3442
        %v6245 = vsel %vm6224, %v6180, %v3444
        %v6246 = vsel %vm6224, %v6181, %v3446
        %v6247 = vsel %vm6224, %v6182, %v3448
        %v6248 = vsel %vm6224, %v6183, %v3450
        %v6249 = vsel %vm6224, %v6184, %v3452
        %v6250 = vsel %vm6224, %v6185, %v3454
        %v6251 = vsel %vm6224, %v6186, %v3456
        %v6252 = vsel %vm6224, %v6187, %v3458
        %v6253 = vsel %vm6224, %v6188, %v3460
        %v6254 = vsel %vm6224, %v6189, %v3462
        %v6255 = vsel %vm6224, %v6190, %v3464
        %v6256 = vsel %vm6224, %v6191, %v3466
        %v6257 = vsel %vm6224, %v6192, %v3468
        %v6258 = vsel %vm6224, %v6193, %v3470
        %v6259 = vsel %vm6224, %v6194, %v3472
        %v6260 = vsel %vm6224, %v6195, %v3474
        %v6261 = vsel %vm6224, %v6196, %v3476
        %v6262 = vsel %vm6224, %v6197, %v3478
        %v6263 = vsel %vm6224, %v6198, %v3480
        %v6264 = vsel %vm6224, %v6199, %v3482
        %v6265 = vsel %vm6224, %v6200, %v3484
        %v6266 = vsel %vm6224, %v6201, %v3486
        %v6267 = vsel %vm6224, %v6202, %v3488
        %v6268 = vsel %vm6224, %v6203, %v3490
        %v6269 = vsel %vm6224, %v6204, %v3492
        %v6270 = vsel %vm6224, %v6205, %v3494
        %v6271 = vsel %vm6224, %v6206, %v3496
        %v6272 = vsel %vm6224, %v6207, %v3498
        %v6273 = vsel %vm6224, %v6208, %v3500
        %v6274 = vsel %vm6224, %v6209, %v3502
        %v6275 = vsel %vm6224, %v6210, %v3504
        %v6276 = vsel %vm6224, %v6211, %v3506
        %v6277 = vsel %vm6224, %v6212, %v3508
        %v6278 = vsel %vm6224, %v6213, %v3510
        %v6279 = vsel %vm6224, %v6214, %v3512
        %v6280 = vsel %vm6224, %v6215, %v3514
        %v6281 = vsel %vm6224, %v6216, %v3516
        %v6282 = vsel %vm6224, %v6217, %v3518
        %v6283 = vsel %vm6224, %v6218, %v3520
        %v6284 = vsel %vm6224, %v6219, %v3522
        %v6285 = vsel %vm6224, %v6220, %v3524
        %v6286 = vsel %vm6224, %v6221, %v3526
        %v6287 = vsel %vm6224, %v6222, %v3528
        %v6288 = vsel %vm6224, %v6223, %v3530
        %vm6289 = vcmask 228352
        %v6290 = vsel %vm6289, %v6225, %v3660
        %v6291 = vsel %vm6289, %v6226, %v3662
        %v6292 = vsel %vm6289, %v6227, %v3664
        %v6293 = vsel %vm6289, %v6228, %v3666
        %v6294 = vsel %vm6289, %v6229, %v3668
        %v6295 = vsel %vm6289, %v6230, %v3670
        %v6296 = vsel %vm6289, %v6231, %v3672
        %v6297 = vsel %vm6289, %v6232, %v3674
        %v6298 = vsel %vm6289, %v6233, %v3676
        %v6299 = vsel %vm6289, %v6234, %v3678
        %v6300 = vsel %vm6289, %v6235, %v3680
        %v6301 = vsel %vm6289, %v6236, %v3682
        %v6302 = vsel %vm6289, %v6237, %v3684
        %v6303 = vsel %vm6289, %v6238, %v3686
        %v6304 = vsel %vm6289, %v6239, %v3688
        %v6305 = vsel %vm6289, %v6240, %v3690
        %v6306 = vsel %vm6289, %v6241, %v3692
        %v6307 = vsel %vm6289, %v6242, %v3694
        %v6308 = vsel %vm6289, %v6243, %v3696
        %v6309 = vsel %vm6289, %v6244, %v3698
        %v6310 = vsel %vm6289, %v6245, %v3700
        %v6311 = vsel %vm6289, %v6246, %v3702
        %v6312 = vsel %vm6289, %v6247, %v3704
        %v6313 = vsel %vm6289, %v6248, %v3706
        %v6314 = vsel %vm6289, %v6249, %v3708
        %v6315 = vsel %vm6289, %v6250, %v3710
        %v6316 = vsel %vm6289, %v6251, %v3712
        %v6317 = vsel %vm6289, %v6252, %v3714
        %v6318 = vsel %vm6289, %v6253, %v3716
        %v6319 = vsel %vm6289, %v6254, %v3718
        %v6320 = vsel %vm6289, %v6255, %v3720
        %v6321 = vsel %vm6289, %v6256, %v3722
        %v6322 = vsel %vm6289, %v6257, %v3724
        %v6323 = vsel %vm6289, %v6258, %v3726
        %v6324 = vsel %vm6289, %v6259, %v3728
        %v6325 = vsel %vm6289, %v6260, %v3730
        %v6326 = vsel %vm6289, %v6261, %v3732
        %v6327 = vsel %vm6289, %v6262, %v3734
        %v6328 = vsel %vm6289, %v6263, %v3736
        %v6329 = vsel %vm6289, %v6264, %v3738
        %v6330 = vsel %vm6289, %v6265, %v3740
        %v6331 = vsel %vm6289, %v6266, %v3742
        %v6332 = vsel %vm6289, %v6267, %v3744
        %v6333 = vsel %vm6289, %v6268, %v3746
        %v6334 = vsel %vm6289, %v6269, %v3748
        %v6335 = vsel %vm6289, %v6270, %v3750
        %v6336 = vsel %vm6289, %v6271, %v3752
        %v6337 = vsel %vm6289, %v6272, %v3754
        %v6338 = vsel %vm6289, %v6273, %v3756
        %v6339 = vsel %vm6289, %v6274, %v3758
        %v6340 = vsel %vm6289, %v6275, %v3760
        %v6341 = vsel %vm6289, %v6276, %v3762
        %v6342 = vsel %vm6289, %v6277, %v3764
        %v6343 = vsel %vm6289, %v6278, %v3766
        %v6344 = vsel %vm6289, %v6279, %v3768
        %v6345 = vsel %vm6289, %v6280, %v3770
        %v6346 = vsel %vm6289, %v6281, %v3772
        %v6347 = vsel %vm6289, %v6282, %v3774
        %v6348 = vsel %vm6289, %v6283, %v3776
        %v6349 = vsel %vm6289, %v6284, %v3778
        %v6350 = vsel %vm6289, %v6285, %v3780
        %v6351 = vsel %vm6289, %v6286, %v3782
        %v6352 = vsel %vm6289, %v6287, %v3784
        %v6353 = vsel %vm6289, %v6288, %v3786
        %vm6354 = vcmask 261120
        %v6355 = vsel %vm6354, %v6290, %v3916
        %v6356 = vsel %vm6354, %v6291, %v3918
        %v6357 = vsel %vm6354, %v6292, %v3920
        %v6358 = vsel %vm6354, %v6293, %v3922
        %v6359 = vsel %vm6354, %v6294, %v3924
        %v6360 = vsel %vm6354, %v6295, %v3926
        %v6361 = vsel %vm6354, %v6296, %v3928
        %v6362 = vsel %vm6354, %v6297, %v3930
        %v6363 = vsel %vm6354, %v6298, %v3932
        %v6364 = vsel %vm6354, %v6299, %v3934
        %v6365 = vsel %vm6354, %v6300, %v3936
        %v6366 = vsel %vm6354, %v6301, %v3938
        %v6367 = vsel %vm6354, %v6302, %v3940
        %v6368 = vsel %vm6354, %v6303, %v3942
        %v6369 = vsel %vm6354, %v6304, %v3944
        %v6370 = vsel %vm6354, %v6305, %v3946
        %v6371 = vsel %vm6354, %v6306, %v3948
        %v6372 = vsel %vm6354, %v6307, %v3950
        %v6373 = vsel %vm6354, %v6308, %v3952
        %v6374 = vsel %vm6354, %v6309, %v3954
        %v6375 = vsel %vm6354, %v6310, %v3956
        %v6376 = vsel %vm6354, %v6311, %v3958
        %v6377 = vsel %vm6354, %v6312, %v3960
        %v6378 = vsel %vm6354, %v6313, %v3962
        %v6379 = vsel %vm6354, %v6314, %v3964
        %v6380 = vsel %vm6354, %v6315, %v3966
        %v6381 = vsel %vm6354, %v6316, %v3968
        %v6382 = vsel %vm6354, %v6317, %v3970
        %v6383 = vsel %vm6354, %v6318, %v3972
        %v6384 = vsel %vm6354, %v6319, %v3974
        %v6385 = vsel %vm6354, %v6320, %v3976
        %v6386 = vsel %vm6354, %v6321, %v3978
        %v6387 = vsel %vm6354, %v6322, %v3980
        %v6388 = vsel %vm6354, %v6323, %v3982
        %v6389 = vsel %vm6354, %v6324, %v3984
        %v6390 = vsel %vm6354, %v6325, %v3986
        %v6391 = vsel %vm6354, %v6326, %v3988
        %v6392 = vsel %vm6354, %v6327, %v3990
        %v6393 = vsel %vm6354, %v6328, %v3992
        %v6394 = vsel %vm6354, %v6329, %v3994
        %v6395 = vsel %vm6354, %v6330, %v3996
        %v6396 = vsel %vm6354, %v6331, %v3998
        %v6397 = vsel %vm6354, %v6332, %v4000
        %v6398 = vsel %vm6354, %v6333, %v4002
        %v6399 = vsel %vm6354, %v6334, %v4004
        %v6400 = vsel %vm6354, %v6335, %v4006
        %v6401 = vsel %vm6354, %v6336, %v4008
        %v6402 = vsel %vm6354, %v6337, %v4010
        %v6403 = vsel %vm6354, %v6338, %v4012
        %v6404 = vsel %vm6354, %v6339, %v4014
        %v6405 = vsel %vm6354, %v6340, %v4016
        %v6406 = vsel %vm6354, %v6341, %v4018
        %v6407 = vsel %vm6354, %v6342, %v4020
        %v6408 = vsel %vm6354, %v6343, %v4022
        %v6409 = vsel %vm6354, %v6344, %v4024
        %v6410 = vsel %vm6354, %v6345, %v4026
        %v6411 = vsel %vm6354, %v6346, %v4028
        %v6412 = vsel %vm6354, %v6347, %v4030
        %v6413 = vsel %vm6354, %v6348, %v4032
        %v6414 = vsel %vm6354, %v6349, %v4034
        %v6415 = vsel %vm6354, %v6350, %v4036
        %v6416 = vsel %vm6354, %v6351, %v4038
        %v6417 = vsel %vm6354, %v6352, %v4040
        %v6418 = vsel %vm6354, %v6353, %v4042
        %vm6419 = vcmask 293888
        %v6420 = vsel %vm6419, %v6355, %v4172
        %v6421 = vsel %vm6419, %v6356, %v4174
        %v6422 = vsel %vm6419, %v6357, %v4176
        %v6423 = vsel %vm6419, %v6358, %v4178
        %v6424 = vsel %vm6419, %v6359, %v4180
        %v6425 = vsel %vm6419, %v6360, %v4182
        %v6426 = vsel %vm6419, %v6361, %v4184
        %v6427 = vsel %vm6419, %v6362, %v4186
        %v6428 = vsel %vm6419, %v6363, %v4188
        %v6429 = vsel %vm6419, %v6364, %v4190
        %v6430 = vsel %vm6419, %v6365, %v4192
        %v6431 = vsel %vm6419, %v6366, %v4194
        %v6432 = vsel %vm6419, %v6367, %v4196
        %v6433 = vsel %vm6419, %v6368, %v4198
        %v6434 = vsel %vm6419, %v6369, %v4200
        %v6435 = vsel %vm6419, %v6370, %v4202
        %v6436 = vsel %vm6419, %v6371, %v4204
        %v6437 = vsel %vm6419, %v6372, %v4206
        %v6438 = vsel %vm6419, %v6373, %v4208
        %v6439 = vsel %vm6419, %v6374, %v4210
        %v6440 = vsel %vm6419, %v6375, %v4212
        %v6441 = vsel %vm6419, %v6376, %v4214
        %v6442 = vsel %vm6419, %v6377, %v4216
        %v6443 = vsel %vm6419, %v6378, %v4218
        %v6444 = vsel %vm6419, %v6379, %v4220
        %v6445 = vsel %vm6419, %v6380, %v4222
        %v6446 = vsel %vm6419, %v6381, %v4224
        %v6447 = vsel %vm6419, %v6382, %v4226
        %v6448 = vsel %vm6419, %v6383, %v4228
        %v6449 = vsel %vm6419, %v6384, %v4230
        %v6450 = vsel %vm6419, %v6385, %v4232
        %v6451 = vsel %vm6419, %v6386, %v4234
        %v6452 = vsel %vm6419, %v6387, %v4236
        %v6453 = vsel %vm6419, %v6388, %v4238
        %v6454 = vsel %vm6419, %v6389, %v4240
        %v6455 = vsel %vm6419, %v6390, %v4242
        %v6456 = vsel %vm6419, %v6391, %v4244
        %v6457 = vsel %vm6419, %v6392, %v4246
        %v6458 = vsel %vm6419, %v6393, %v4248
        %v6459 = vsel %vm6419, %v6394, %v4250
        %v6460 = vsel %vm6419, %v6395, %v4252
        %v6461 = vsel %vm6419, %v6396, %v4254
        %v6462 = vsel %vm6419, %v6397, %v4256
        %v6463 = vsel %vm6419, %v6398, %v4258
        %v6464 = vsel %vm6419, %v6399, %v4260
        %v6465 = vsel %vm6419, %v6400, %v4262
        %v6466 = vsel %vm6419, %v6401, %v4264
        %v6467 = vsel %vm6419, %v6402, %v4266
        %v6468 = vsel %vm6419, %v6403, %v4268
        %v6469 = vsel %vm6419, %v6404, %v4270
        %v6470 = vsel %vm6419, %v6405, %v4272
        %v6471 = vsel %vm6419, %v6406, %v4274
        %v6472 = vsel %vm6419, %v6407, %v4276
        %v6473 = vsel %vm6419, %v6408, %v4278
        %v6474 = vsel %vm6419, %v6409, %v4280
        %v6475 = vsel %vm6419, %v6410, %v4282
        %v6476 = vsel %vm6419, %v6411, %v4284
        %v6477 = vsel %vm6419, %v6412, %v4286
        %v6478 = vsel %vm6419, %v6413, %v4288
        %v6479 = vsel %vm6419, %v6414, %v4290
        %v6480 = vsel %vm6419, %v6415, %v4292
        %v6481 = vsel %vm6419, %v6416, %v4294
        %v6482 = vsel %vm6419, %v6417, %v4296
        %v6483 = vsel %vm6419, %v6418, %v4298
        %vm6484 = vcmask 326656
        %v6485 = vsel %vm6484, %v6420, %v4428
        %v6486 = vsel %vm6484, %v6421, %v4430
        %v6487 = vsel %vm6484, %v6422, %v4432
        %v6488 = vsel %vm6484, %v6423, %v4434
        %v6489 = vsel %vm6484, %v6424, %v4436
        %v6490 = vsel %vm6484, %v6425, %v4438
        %v6491 = vsel %vm6484, %v6426, %v4440
        %v6492 = vsel %vm6484, %v6427, %v4442
        %v6493 = vsel %vm6484, %v6428, %v4444
        %v6494 = vsel %vm6484, %v6429, %v4446
        %v6495 = vsel %vm6484, %v6430, %v4448
        %v6496 = vsel %vm6484, %v6431, %v4450
        %v6497 = vsel %vm6484, %v6432, %v4452
        %v6498 = vsel %vm6484, %v6433, %v4454
        %v6499 = vsel %vm6484, %v6434, %v4456
        %v6500 = vsel %vm6484, %v6435, %v4458
        %v6501 = vsel %vm6484, %v6436, %v4460
        %v6502 = vsel %vm6484, %v6437, %v4462
        %v6503 = vsel %vm6484, %v6438, %v4464
        %v6504 = vsel %vm6484, %v6439, %v4466
        %v6505 = vsel %vm6484, %v6440, %v4468
        %v6506 = vsel %vm6484, %v6441, %v4470
        %v6507 = vsel %vm6484, %v6442, %v4472
        %v6508 = vsel %vm6484, %v6443, %v4474
        %v6509 = vsel %vm6484, %v6444, %v4476
        %v6510 = vsel %vm6484, %v6445, %v4478
        %v6511 = vsel %vm6484, %v6446, %v4480
        %v6512 = vsel %vm6484, %v6447, %v4482
        %v6513 = vsel %vm6484, %v6448, %v4484
        %v6514 = vsel %vm6484, %v6449, %v4486
        %v6515 = vsel %vm6484, %v6450, %v4488
        %v6516 = vsel %vm6484, %v6451, %v4490
        %v6517 = vsel %vm6484, %v6452, %v4492
        %v6518 = vsel %vm6484, %v6453, %v4494
        %v6519 = vsel %vm6484, %v6454, %v4496
        %v6520 = vsel %vm6484, %v6455, %v4498
        %v6521 = vsel %vm6484, %v6456, %v4500
        %v6522 = vsel %vm6484, %v6457, %v4502
        %v6523 = vsel %vm6484, %v6458, %v4504
        %v6524 = vsel %vm6484, %v6459, %v4506
        %v6525 = vsel %vm6484, %v6460, %v4508
        %v6526 = vsel %vm6484, %v6461, %v4510
        %v6527 = vsel %vm6484, %v6462, %v4512
        %v6528 = vsel %vm6484, %v6463, %v4514
        %v6529 = vsel %vm6484, %v6464, %v4516
        %v6530 = vsel %vm6484, %v6465, %v4518
        %v6531 = vsel %vm6484, %v6466, %v4520
        %v6532 = vsel %vm6484, %v6467, %v4522
        %v6533 = vsel %vm6484, %v6468, %v4524
        %v6534 = vsel %vm6484, %v6469, %v4526
        %v6535 = vsel %vm6484, %v6470, %v4528
        %v6536 = vsel %vm6484, %v6471, %v4530
        %v6537 = vsel %vm6484, %v6472, %v4532
        %v6538 = vsel %vm6484, %v6473, %v4534
        %v6539 = vsel %vm6484, %v6474, %v4536
        %v6540 = vsel %vm6484, %v6475, %v4538
        %v6541 = vsel %vm6484, %v6476, %v4540
        %v6542 = vsel %vm6484, %v6477, %v4542
        %v6543 = vsel %vm6484, %v6478, %v4544
        %v6544 = vsel %vm6484, %v6479, %v4546
        %v6545 = vsel %vm6484, %v6480, %v4548
        %v6546 = vsel %vm6484, %v6481, %v4550
        %v6547 = vsel %vm6484, %v6482, %v4552
        %v6548 = vsel %vm6484, %v6483, %v4554
        %vm6549 = vcmask 359424
        %v6550 = vsel %vm6549, %v6485, %v4684
        %v6551 = vsel %vm6549, %v6486, %v4686
        %v6552 = vsel %vm6549, %v6487, %v4688
        %v6553 = vsel %vm6549, %v6488, %v4690
        %v6554 = vsel %vm6549, %v6489, %v4692
        %v6555 = vsel %vm6549, %v6490, %v4694
        %v6556 = vsel %vm6549, %v6491, %v4696
        %v6557 = vsel %vm6549, %v6492, %v4698
        %v6558 = vsel %vm6549, %v6493, %v4700
        %v6559 = vsel %vm6549, %v6494, %v4702
        %v6560 = vsel %vm6549, %v6495, %v4704
        %v6561 = vsel %vm6549, %v6496, %v4706
        %v6562 = vsel %vm6549, %v6497, %v4708
        %v6563 = vsel %vm6549, %v6498, %v4710
        %v6564 = vsel %vm6549, %v6499, %v4712
        %v6565 = vsel %vm6549, %v6500, %v4714
        %v6566 = vsel %vm6549, %v6501, %v4716
        %v6567 = vsel %vm6549, %v6502, %v4718
        %v6568 = vsel %vm6549, %v6503, %v4720
        %v6569 = vsel %vm6549, %v6504, %v4722
        %v6570 = vsel %vm6549, %v6505, %v4724
        %v6571 = vsel %vm6549, %v6506, %v4726
        %v6572 = vsel %vm6549, %v6507, %v4728
        %v6573 = vsel %vm6549, %v6508, %v4730
        %v6574 = vsel %vm6549, %v6509, %v4732
        %v6575 = vsel %vm6549, %v6510, %v4734
        %v6576 = vsel %vm6549, %v6511, %v4736
        %v6577 = vsel %vm6549, %v6512, %v4738
        %v6578 = vsel %vm6549, %v6513, %v4740
        %v6579 = vsel %vm6549, %v6514, %v4742
        %v6580 = vsel %vm6549, %v6515, %v4744
        %v6581 = vsel %vm6549, %v6516, %v4746
        %v6582 = vsel %vm6549, %v6517, %v4748
        %v6583 = vsel %vm6549, %v6518, %v4750
        %v6584 = vsel %vm6549, %v6519, %v4752
        %v6585 = vsel %vm6549, %v6520, %v4754
        %v6586 = vsel %vm6549, %v6521, %v4756
        %v6587 = vsel %vm6549, %v6522, %v4758
        %v6588 = vsel %vm6549, %v6523, %v4760
        %v6589 = vsel %vm6549, %v6524, %v4762
        %v6590 = vsel %vm6549, %v6525, %v4764
        %v6591 = vsel %vm6549, %v6526, %v4766
        %v6592 = vsel %vm6549, %v6527, %v4768
        %v6593 = vsel %vm6549, %v6528, %v4770
        %v6594 = vsel %vm6549, %v6529, %v4772
        %v6595 = vsel %vm6549, %v6530, %v4774
        %v6596 = vsel %vm6549, %v6531, %v4776
        %v6597 = vsel %vm6549, %v6532, %v4778
        %v6598 = vsel %vm6549, %v6533, %v4780
        %v6599 = vsel %vm6549, %v6534, %v4782
        %v6600 = vsel %vm6549, %v6535, %v4784
        %v6601 = vsel %vm6549, %v6536, %v4786
        %v6602 = vsel %vm6549, %v6537, %v4788
        %v6603 = vsel %vm6549, %v6538, %v4790
        %v6604 = vsel %vm6549, %v6539, %v4792
        %v6605 = vsel %vm6549, %v6540, %v4794
        %v6606 = vsel %vm6549, %v6541, %v4796
        %v6607 = vsel %vm6549, %v6542, %v4798
        %v6608 = vsel %vm6549, %v6543, %v4800
        %v6609 = vsel %vm6549, %v6544, %v4802
        %v6610 = vsel %vm6549, %v6545, %v4804
        %v6611 = vsel %vm6549, %v6546, %v4806
        %v6612 = vsel %vm6549, %v6547, %v4808
        %v6613 = vsel %vm6549, %v6548, %v4810
        %vm6614 = vcmask 392192
        %v6615 = vsel %vm6614, %v6550, %v4940
        %v6616 = vsel %vm6614, %v6551, %v4942
        %v6617 = vsel %vm6614, %v6552, %v4944
        %v6618 = vsel %vm6614, %v6553, %v4946
        %v6619 = vsel %vm6614, %v6554, %v4948
        %v6620 = vsel %vm6614, %v6555, %v4950
        %v6621 = vsel %vm6614, %v6556, %v4952
        %v6622 = vsel %vm6614, %v6557, %v4954
        %v6623 = vsel %vm6614, %v6558, %v4956
        %v6624 = vsel %vm6614, %v6559, %v4958
        %v6625 = vsel %vm6614, %v6560, %v4960
        %v6626 = vsel %vm6614, %v6561, %v4962
        %v6627 = vsel %vm6614, %v6562, %v4964
        %v6628 = vsel %vm6614, %v6563, %v4966
        %v6629 = vsel %vm6614, %v6564, %v4968
        %v6630 = vsel %vm6614, %v6565, %v4970
        %v6631 = vsel %vm6614, %v6566, %v4972
        %v6632 = vsel %vm6614, %v6567, %v4974
        %v6633 = vsel %vm6614, %v6568, %v4976
        %v6634 = vsel %vm6614, %v6569, %v4978
        %v6635 = vsel %vm6614, %v6570, %v4980
        %v6636 = vsel %vm6614, %v6571, %v4982
        %v6637 = vsel %vm6614, %v6572, %v4984
        %v6638 = vsel %vm6614, %v6573, %v4986
        %v6639 = vsel %vm6614, %v6574, %v4988
        %v6640 = vsel %vm6614, %v6575, %v4990
        %v6641 = vsel %vm6614, %v6576, %v4992
        %v6642 = vsel %vm6614, %v6577, %v4994
        %v6643 = vsel %vm6614, %v6578, %v4996
        %v6644 = vsel %vm6614, %v6579, %v4998
        %v6645 = vsel %vm6614, %v6580, %v5000
        %v6646 = vsel %vm6614, %v6581, %v5002
        %v6647 = vsel %vm6614, %v6582, %v5004
        %v6648 = vsel %vm6614, %v6583, %v5006
        %v6649 = vsel %vm6614, %v6584, %v5008
        %v6650 = vsel %vm6614, %v6585, %v5010
        %v6651 = vsel %vm6614, %v6586, %v5012
        %v6652 = vsel %vm6614, %v6587, %v5014
        %v6653 = vsel %vm6614, %v6588, %v5016
        %v6654 = vsel %vm6614, %v6589, %v5018
        %v6655 = vsel %vm6614, %v6590, %v5020
        %v6656 = vsel %vm6614, %v6591, %v5022
        %v6657 = vsel %vm6614, %v6592, %v5024
        %v6658 = vsel %vm6614, %v6593, %v5026
        %v6659 = vsel %vm6614, %v6594, %v5028
        %v6660 = vsel %vm6614, %v6595, %v5030
        %v6661 = vsel %vm6614, %v6596, %v5032
        %v6662 = vsel %vm6614, %v6597, %v5034
        %v6663 = vsel %vm6614, %v6598, %v5036
        %v6664 = vsel %vm6614, %v6599, %v5038
        %v6665 = vsel %vm6614, %v6600, %v5040
        %v6666 = vsel %vm6614, %v6601, %v5042
        %v6667 = vsel %vm6614, %v6602, %v5044
        %v6668 = vsel %vm6614, %v6603, %v5046
        %v6669 = vsel %vm6614, %v6604, %v5048
        %v6670 = vsel %vm6614, %v6605, %v5050
        %v6671 = vsel %vm6614, %v6606, %v5052
        %v6672 = vsel %vm6614, %v6607, %v5054
        %v6673 = vsel %vm6614, %v6608, %v5056
        %v6674 = vsel %vm6614, %v6609, %v5058
        %v6675 = vsel %vm6614, %v6610, %v5060
        %v6676 = vsel %vm6614, %v6611, %v5062
        %v6677 = vsel %vm6614, %v6612, %v5064
        %v6678 = vsel %vm6614, %v6613, %v5066
        %vm6679 = vcmask 424960
        %v6680 = vsel %vm6679, %v6615, %v5196
        %v6681 = vsel %vm6679, %v6616, %v5198
        %v6682 = vsel %vm6679, %v6617, %v5200
        %v6683 = vsel %vm6679, %v6618, %v5202
        %v6684 = vsel %vm6679, %v6619, %v5204
        %v6685 = vsel %vm6679, %v6620, %v5206
        %v6686 = vsel %vm6679, %v6621, %v5208
        %v6687 = vsel %vm6679, %v6622, %v5210
        %v6688 = vsel %vm6679, %v6623, %v5212
        %v6689 = vsel %vm6679, %v6624, %v5214
        %v6690 = vsel %vm6679, %v6625, %v5216
        %v6691 = vsel %vm6679, %v6626, %v5218
        %v6692 = vsel %vm6679, %v6627, %v5220
        %v6693 = vsel %vm6679, %v6628, %v5222
        %v6694 = vsel %vm6679, %v6629, %v5224
        %v6695 = vsel %vm6679, %v6630, %v5226
        %v6696 = vsel %vm6679, %v6631, %v5228
        %v6697 = vsel %vm6679, %v6632, %v5230
        %v6698 = vsel %vm6679, %v6633, %v5232
        %v6699 = vsel %vm6679, %v6634, %v5234
        %v6700 = vsel %vm6679, %v6635, %v5236
        %v6701 = vsel %vm6679, %v6636, %v5238
        %v6702 = vsel %vm6679, %v6637, %v5240
        %v6703 = vsel %vm6679, %v6638, %v5242
        %v6704 = vsel %vm6679, %v6639, %v5244
        %v6705 = vsel %vm6679, %v6640, %v5246
        %v6706 = vsel %vm6679, %v6641, %v5248
        %v6707 = vsel %vm6679, %v6642, %v5250
        %v6708 = vsel %vm6679, %v6643, %v5252
        %v6709 = vsel %vm6679, %v6644, %v5254
        %v6710 = vsel %vm6679, %v6645, %v5256
        %v6711 = vsel %vm6679, %v6646, %v5258
        %v6712 = vsel %vm6679, %v6647, %v5260
        %v6713 = vsel %vm6679, %v6648, %v5262
        %v6714 = vsel %vm6679, %v6649, %v5264
        %v6715 = vsel %vm6679, %v6650, %v5266
        %v6716 = vsel %vm6679, %v6651, %v5268
        %v6717 = vsel %vm6679, %v6652, %v5270
        %v6718 = vsel %vm6679, %v6653, %v5272
        %v6719 = vsel %vm6679, %v6654, %v5274
        %v6720 = vsel %vm6679, %v6655, %v5276
        %v6721 = vsel %vm6679, %v6656, %v5278
        %v6722 = vsel %vm6679, %v6657, %v5280
        %v6723 = vsel %vm6679, %v6658, %v5282
        %v6724 = vsel %vm6679, %v6659, %v5284
        %v6725 = vsel %vm6679, %v6660, %v5286
        %v6726 = vsel %vm6679, %v6661, %v5288
        %v6727 = vsel %vm6679, %v6662, %v5290
        %v6728 = vsel %vm6679, %v6663, %v5292
        %v6729 = vsel %vm6679, %v6664, %v5294
        %v6730 = vsel %vm6679, %v6665, %v5296
        %v6731 = vsel %vm6679, %v6666, %v5298
        %v6732 = vsel %vm6679, %v6667, %v5300
        %v6733 = vsel %vm6679, %v6668, %v5302
        %v6734 = vsel %vm6679, %v6669, %v5304
        %v6735 = vsel %vm6679, %v6670, %v5306
        %v6736 = vsel %vm6679, %v6671, %v5308
        %v6737 = vsel %vm6679, %v6672, %v5310
        %v6738 = vsel %vm6679, %v6673, %v5312
        %v6739 = vsel %vm6679, %v6674, %v5314
        %v6740 = vsel %vm6679, %v6675, %v5316
        %v6741 = vsel %vm6679, %v6676, %v5318
        %v6742 = vsel %vm6679, %v6677, %v5320
        %v6743 = vsel %vm6679, %v6678, %v5322
        %vm6744 = vcmask 457728
        %v6745 = vsel %vm6744, %v6680, %v5452
        %v6746 = vsel %vm6744, %v6681, %v5454
        %v6747 = vsel %vm6744, %v6682, %v5456
        %v6748 = vsel %vm6744, %v6683, %v5458
        %v6749 = vsel %vm6744, %v6684, %v5460
        %v6750 = vsel %vm6744, %v6685, %v5462
        %v6751 = vsel %vm6744, %v6686, %v5464
        %v6752 = vsel %vm6744, %v6687, %v5466
        %v6753 = vsel %vm6744, %v6688, %v5468
        %v6754 = vsel %vm6744, %v6689, %v5470
        %v6755 = vsel %vm6744, %v6690, %v5472
        %v6756 = vsel %vm6744, %v6691, %v5474
        %v6757 = vsel %vm6744, %v6692, %v5476
        %v6758 = vsel %vm6744, %v6693, %v5478
        %v6759 = vsel %vm6744, %v6694, %v5480
        %v6760 = vsel %vm6744, %v6695, %v5482
        %v6761 = vsel %vm6744, %v6696, %v5484
        %v6762 = vsel %vm6744, %v6697, %v5486
        %v6763 = vsel %vm6744, %v6698, %v5488
        %v6764 = vsel %vm6744, %v6699, %v5490
        %v6765 = vsel %vm6744, %v6700, %v5492
        %v6766 = vsel %vm6744, %v6701, %v5494
        %v6767 = vsel %vm6744, %v6702, %v5496
        %v6768 = vsel %vm6744, %v6703, %v5498
        %v6769 = vsel %vm6744, %v6704, %v5500
        %v6770 = vsel %vm6744, %v6705, %v5502
        %v6771 = vsel %vm6744, %v6706, %v5504
        %v6772 = vsel %vm6744, %v6707, %v5506
        %v6773 = vsel %vm6744, %v6708, %v5508
        %v6774 = vsel %vm6744, %v6709, %v5510
        %v6775 = vsel %vm6744, %v6710, %v5512
        %v6776 = vsel %vm6744, %v6711, %v5514
        %v6777 = vsel %vm6744, %v6712, %v5516
        %v6778 = vsel %vm6744, %v6713, %v5518
        %v6779 = vsel %vm6744, %v6714, %v5520
        %v6780 = vsel %vm6744, %v6715, %v5522
        %v6781 = vsel %vm6744, %v6716, %v5524
        %v6782 = vsel %vm6744, %v6717, %v5526
        %v6783 = vsel %vm6744, %v6718, %v5528
        %v6784 = vsel %vm6744, %v6719, %v5530
        %v6785 = vsel %vm6744, %v6720, %v5532
        %v6786 = vsel %vm6744, %v6721, %v5534
        %v6787 = vsel %vm6744, %v6722, %v5536
        %v6788 = vsel %vm6744, %v6723, %v5538
        %v6789 = vsel %vm6744, %v6724, %v5540
        %v6790 = vsel %vm6744, %v6725, %v5542
        %v6791 = vsel %vm6744, %v6726, %v5544
        %v6792 = vsel %vm6744, %v6727, %v5546
        %v6793 = vsel %vm6744, %v6728, %v5548
        %v6794 = vsel %vm6744, %v6729, %v5550
        %v6795 = vsel %vm6744, %v6730, %v5552
        %v6796 = vsel %vm6744, %v6731, %v5554
        %v6797 = vsel %vm6744, %v6732, %v5556
        %v6798 = vsel %vm6744, %v6733, %v5558
        %v6799 = vsel %vm6744, %v6734, %v5560
        %v6800 = vsel %vm6744, %v6735, %v5562
        %v6801 = vsel %vm6744, %v6736, %v5564
        %v6802 = vsel %vm6744, %v6737, %v5566
        %v6803 = vsel %vm6744, %v6738, %v5568
        %v6804 = vsel %vm6744, %v6739, %v5570
        %v6805 = vsel %vm6744, %v6740, %v5572
        %v6806 = vsel %vm6744, %v6741, %v5574
        %v6807 = vsel %vm6744, %v6742, %v5576
        %v6808 = vsel %vm6744, %v6743, %v5578
        %vm6809 = vcmask 490496
        %v6810 = vsel %vm6809, %v6745, %v5708
        %v6811 = vsel %vm6809, %v6746, %v5710
        %v6812 = vsel %vm6809, %v6747, %v5712
        %v6813 = vsel %vm6809, %v6748, %v5714
        %v6814 = vsel %vm6809, %v6749, %v5716
        %v6815 = vsel %vm6809, %v6750, %v5718
        %v6816 = vsel %vm6809, %v6751, %v5720
        %v6817 = vsel %vm6809, %v6752, %v5722
        %v6818 = vsel %vm6809, %v6753, %v5724
        %v6819 = vsel %vm6809, %v6754, %v5726
        %v6820 = vsel %vm6809, %v6755, %v5728
        %v6821 = vsel %vm6809, %v6756, %v5730
        %v6822 = vsel %vm6809, %v6757, %v5732
        %v6823 = vsel %vm6809, %v6758, %v5734
        %v6824 = vsel %vm6809, %v6759, %v5736
        %v6825 = vsel %vm6809, %v6760, %v5738
        %v6826 = vsel %vm6809, %v6761, %v5740
        %v6827 = vsel %vm6809, %v6762, %v5742
        %v6828 = vsel %vm6809, %v6763, %v5744
        %v6829 = vsel %vm6809, %v6764, %v5746
        %v6830 = vsel %vm6809, %v6765, %v5748
        %v6831 = vsel %vm6809, %v6766, %v5750
        %v6832 = vsel %vm6809, %v6767, %v5752
        %v6833 = vsel %vm6809, %v6768, %v5754
        %v6834 = vsel %vm6809, %v6769, %v5756
        %v6835 = vsel %vm6809, %v6770, %v5758
        %v6836 = vsel %vm6809, %v6771, %v5760
        %v6837 = vsel %vm6809, %v6772, %v5762
        %v6838 = vsel %vm6809, %v6773, %v5764
        %v6839 = vsel %vm6809, %v6774, %v5766
        %v6840 = vsel %vm6809, %v6775, %v5768
        %v6841 = vsel %vm6809, %v6776, %v5770
        %v6842 = vsel %vm6809, %v6777, %v5772
        %v6843 = vsel %vm6809, %v6778, %v5774
        %v6844 = vsel %vm6809, %v6779, %v5776
        %v6845 = vsel %vm6809, %v6780, %v5778
        %v6846 = vsel %vm6809, %v6781, %v5780
        %v6847 = vsel %vm6809, %v6782, %v5782
        %v6848 = vsel %vm6809, %v6783, %v5784
        %v6849 = vsel %vm6809, %v6784, %v5786
        %v6850 = vsel %vm6809, %v6785, %v5788
        %v6851 = vsel %vm6809, %v6786, %v5790
        %v6852 = vsel %vm6809, %v6787, %v5792
        %v6853 = vsel %vm6809, %v6788, %v5794
        %v6854 = vsel %vm6809, %v6789, %v5796
        %v6855 = vsel %vm6809, %v6790, %v5798
        %v6856 = vsel %vm6809, %v6791, %v5800
        %v6857 = vsel %vm6809, %v6792, %v5802
        %v6858 = vsel %vm6809, %v6793, %v5804
        %v6859 = vsel %vm6809, %v6794, %v5806
        %v6860 = vsel %vm6809, %v6795, %v5808
        %v6861 = vsel %vm6809, %v6796, %v5810
        %v6862 = vsel %vm6809, %v6797, %v5812
        %v6863 = vsel %vm6809, %v6798, %v5814
        %v6864 = vsel %vm6809, %v6799, %v5816
        %v6865 = vsel %vm6809, %v6800, %v5818
        %v6866 = vsel %vm6809, %v6801, %v5820
        %v6867 = vsel %vm6809, %v6802, %v5822
        %v6868 = vsel %vm6809, %v6803, %v5824
        %v6869 = vsel %vm6809, %v6804, %v5826
        %v6870 = vsel %vm6809, %v6805, %v5828
        %v6871 = vsel %vm6809, %v6806, %v5830
        %v6872 = vsel %vm6809, %v6807, %v5832
        %v6873 = vsel %vm6809, %v6808, %v5834
        %6938 = vrot.lane.b32.xlu0 %v1416, 4
        %v6939 = vpop.permute.xlu0 %6938
        %6940 = vrot.lane.b32.xlu0 %v1417, 4
        %v6941 = vpop.permute.xlu0 %6940
        %6942 = vrot.lane.b32.xlu0 %v1418, 4
        %v6943 = vpop.permute.xlu0 %6942
        %6944 = vrot.lane.b32.xlu0 %v1419, 4
        %v6945 = vpop.permute.xlu0 %6944
        %6946 = vrot.lane.b32.xlu0 %v1420, 4
        %v6947 = vpop.permute.xlu0 %6946
        %6948 = vrot.lane.b32.xlu0 %v1421, 4
        %v6949 = vpop.permute.xlu0 %6948
        %6950 = vrot.lane.b32.xlu0 %v1422, 4
        %v6951 = vpop.permute.xlu0 %6950
        %6952 = vrot.lane.b32.xlu0 %v1423, 4
        %v6953 = vpop.permute.xlu0 %6952
        %6954 = vrot.lane.b32.xlu0 %v1424, 4
        %v6955 = vpop.permute.xlu0 %6954
        %6956 = vrot.lane.b32.xlu0 %v1425, 4
        %v6957 = vpop.permute.xlu0 %6956
        %6958 = vrot.lane.b32.xlu0 %v1426, 4
        %v6959 = vpop.permute.xlu0 %6958
        %6960 = vrot.lane.b32.xlu0 %v1427, 4
        %v6961 = vpop.permute.xlu0 %6960
        %6962 = vrot.lane.b32.xlu0 %v1428, 4
        %v6963 = vpop.permute.xlu0 %6962
        %6964 = vrot.lane.b32.xlu0 %v1429, 4
        %v6965 = vpop.permute.xlu0 %6964
        %6966 = vrot.lane.b32.xlu0 %v1430, 4
        %v6967 = vpop.permute.xlu0 %6966
        %6968 = vrot.lane.b32.xlu0 %v1431, 4
        %v6969 = vpop.permute.xlu0 %6968
        %6970 = vrot.lane.b32.xlu0 %v1432, 4
        %v6971 = vpop.permute.xlu0 %6970
        %6972 = vrot.lane.b32.xlu0 %v1433, 4
        %v6973 = vpop.permute.xlu0 %6972
        %6974 = vrot.lane.b32.xlu0 %v1434, 4
        %v6975 = vpop.permute.xlu0 %6974
        %6976 = vrot.lane.b32.xlu0 %v1435, 4
        %v6977 = vpop.permute.xlu0 %6976
        %6978 = vrot.lane.b32.xlu0 %v1436, 4
        %v6979 = vpop.permute.xlu0 %6978
        %6980 = vrot.lane.b32.xlu0 %v1437, 4
        %v6981 = vpop.permute.xlu0 %6980
        %6982 = vrot.lane.b32.xlu0 %v1438, 4
        %v6983 = vpop.permute.xlu0 %6982
        %6984 = vrot.lane.b32.xlu0 %v1439, 4
        %v6985 = vpop.permute.xlu0 %6984
        %6986 = vrot.lane.b32.xlu0 %v1440, 4
        %v6987 = vpop.permute.xlu0 %6986
        %6988 = vrot.lane.b32.xlu0 %v1441, 4
        %v6989 = vpop.permute.xlu0 %6988
        %6990 = vrot.lane.b32.xlu0 %v1442, 4
        %v6991 = vpop.permute.xlu0 %6990
        %6992 = vrot.lane.b32.xlu0 %v1443, 4
        %v6993 = vpop.permute.xlu0 %6992
        %6994 = vrot.lane.b32.xlu0 %v1444, 4
        %v6995 = vpop.permute.xlu0 %6994
        %6996 = vrot.lane.b32.xlu0 %v1445, 4
        %v6997 = vpop.permute.xlu0 %6996
        %6998 = vrot.lane.b32.xlu0 %v1446, 4
        %v6999 = vpop.permute.xlu0 %6998
        %7000 = vrot.lane.b32.xlu0 %v1447, 4
        %v7001 = vpop.permute.xlu0 %7000
        %7002 = vrot.lane.b32.xlu0 %v1448, 4
        %v7003 = vpop.permute.xlu0 %7002
        %7004 = vrot.lane.b32.xlu0 %v1449, 4
        %v7005 = vpop.permute.xlu0 %7004
        %7006 = vrot.lane.b32.xlu0 %v1450, 4
        %v7007 = vpop.permute.xlu0 %7006
        %7008 = vrot.lane.b32.xlu0 %v1451, 4
        %v7009 = vpop.permute.xlu0 %7008
        %7010 = vrot.lane.b32.xlu0 %v1452, 4
        %v7011 = vpop.permute.xlu0 %7010
        %7012 = vrot.lane.b32.xlu0 %v1453, 4
        %v7013 = vpop.permute.xlu0 %7012
        %7014 = vrot.lane.b32.xlu0 %v1454, 4
        %v7015 = vpop.permute.xlu0 %7014
        %7016 = vrot.lane.b32.xlu0 %v1455, 4
        %v7017 = vpop.permute.xlu0 %7016
        %7018 = vrot.lane.b32.xlu0 %v1456, 4
        %v7019 = vpop.permute.xlu0 %7018
        %7020 = vrot.lane.b32.xlu0 %v1457, 4
        %v7021 = vpop.permute.xlu0 %7020
        %7022 = vrot.lane.b32.xlu0 %v1458, 4
        %v7023 = vpop.permute.xlu0 %7022
        %7024 = vrot.lane.b32.xlu0 %v1459, 4
        %v7025 = vpop.permute.xlu0 %7024
        %7026 = vrot.lane.b32.xlu0 %v1460, 4
        %v7027 = vpop.permute.xlu0 %7026
        %7028 = vrot.lane.b32.xlu0 %v1461, 4
        %v7029 = vpop.permute.xlu0 %7028
        %7030 = vrot.lane.b32.xlu0 %v1462, 4
        %v7031 = vpop.permute.xlu0 %7030
        %7032 = vrot.lane.b32.xlu0 %v1463, 4
        %v7033 = vpop.permute.xlu0 %7032
        %7034 = vrot.lane.b32.xlu0 %v1464, 4
        %v7035 = vpop.permute.xlu0 %7034
        %7036 = vrot.lane.b32.xlu0 %v1465, 4
        %v7037 = vpop.permute.xlu0 %7036
        %7038 = vrot.lane.b32.xlu0 %v1466, 4
        %v7039 = vpop.permute.xlu0 %7038
        %7040 = vrot.lane.b32.xlu0 %v1467, 4
        %v7041 = vpop.permute.xlu0 %7040
        %7042 = vrot.lane.b32.xlu0 %v1468, 4
        %v7043 = vpop.permute.xlu0 %7042
        %7044 = vrot.lane.b32.xlu0 %v1469, 4
        %v7045 = vpop.permute.xlu0 %7044
        %7046 = vrot.lane.b32.xlu0 %v1470, 4
        %v7047 = vpop.permute.xlu0 %7046
        %7048 = vrot.lane.b32.xlu0 %v1471, 4
        %v7049 = vpop.permute.xlu0 %7048
        %7050 = vrot.lane.b32.xlu0 %v1472, 4
        %v7051 = vpop.permute.xlu0 %7050
        %7052 = vrot.lane.b32.xlu0 %v1473, 4
        %v7053 = vpop.permute.xlu0 %7052
        %7054 = vrot.lane.b32.xlu0 %v1474, 4
        %v7055 = vpop.permute.xlu0 %7054
        %7056 = vrot.lane.b32.xlu0 %v1475, 4
        %v7057 = vpop.permute.xlu0 %7056
        %7058 = vrot.lane.b32.xlu0 %v1476, 4
        %v7059 = vpop.permute.xlu0 %7058
        %7060 = vrot.lane.b32.xlu0 %v1477, 4
        %v7061 = vpop.permute.xlu0 %7060
        %7062 = vrot.lane.b32.xlu0 %v1478, 4
        %v7063 = vpop.permute.xlu0 %7062
        %7064 = vrot.lane.b32.xlu0 %v1479, 4
        %v7065 = vpop.permute.xlu0 %7064
        %7194 = vrot.lane.b32.xlu0 %v1481, 8
        %v7195 = vpop.permute.xlu0 %7194
        %7196 = vrot.lane.b32.xlu0 %v1482, 8
        %v7197 = vpop.permute.xlu0 %7196
        %7198 = vrot.lane.b32.xlu0 %v1483, 8
        %v7199 = vpop.permute.xlu0 %7198
        %7200 = vrot.lane.b32.xlu0 %v1484, 8
        %v7201 = vpop.permute.xlu0 %7200
        %7202 = vrot.lane.b32.xlu0 %v1485, 8
        %v7203 = vpop.permute.xlu0 %7202
        %7204 = vrot.lane.b32.xlu0 %v1486, 8
        %v7205 = vpop.permute.xlu0 %7204
        %7206 = vrot.lane.b32.xlu0 %v1487, 8
        %v7207 = vpop.permute.xlu0 %7206
        %7208 = vrot.lane.b32.xlu0 %v1488, 8
        %v7209 = vpop.permute.xlu0 %7208
        %7210 = vrot.lane.b32.xlu0 %v1489, 8
        %v7211 = vpop.permute.xlu0 %7210
        %7212 = vrot.lane.b32.xlu0 %v1490, 8
        %v7213 = vpop.permute.xlu0 %7212
        %7214 = vrot.lane.b32.xlu0 %v1491, 8
        %v7215 = vpop.permute.xlu0 %7214
        %7216 = vrot.lane.b32.xlu0 %v1492, 8
        %v7217 = vpop.permute.xlu0 %7216
        %7218 = vrot.lane.b32.xlu0 %v1493, 8
        %v7219 = vpop.permute.xlu0 %7218
        %7220 = vrot.lane.b32.xlu0 %v1494, 8
        %v7221 = vpop.permute.xlu0 %7220
        %7222 = vrot.lane.b32.xlu0 %v1495, 8
        %v7223 = vpop.permute.xlu0 %7222
        %7224 = vrot.lane.b32.xlu0 %v1496, 8
        %v7225 = vpop.permute.xlu0 %7224
        %7226 = vrot.lane.b32.xlu0 %v1497, 8
        %v7227 = vpop.permute.xlu0 %7226
        %7228 = vrot.lane.b32.xlu0 %v1498, 8
        %v7229 = vpop.permute.xlu0 %7228
        %7230 = vrot.lane.b32.xlu0 %v1499, 8
        %v7231 = vpop.permute.xlu0 %7230
        %7232 = vrot.lane.b32.xlu0 %v1500, 8
        %v7233 = vpop.permute.xlu0 %7232
        %7234 = vrot.lane.b32.xlu0 %v1501, 8
        %v7235 = vpop.permute.xlu0 %7234
        %7236 = vrot.lane.b32.xlu0 %v1502, 8
        %v7237 = vpop.permute.xlu0 %7236
        %7238 = vrot.lane.b32.xlu0 %v1503, 8
        %v7239 = vpop.permute.xlu0 %7238
        %7240 = vrot.lane.b32.xlu0 %v1504, 8
        %v7241 = vpop.permute.xlu0 %7240
        %7242 = vrot.lane.b32.xlu0 %v1505, 8
        %v7243 = vpop.permute.xlu0 %7242
        %7244 = vrot.lane.b32.xlu0 %v1506, 8
        %v7245 = vpop.permute.xlu0 %7244
        %7246 = vrot.lane.b32.xlu0 %v1507, 8
        %v7247 = vpop.permute.xlu0 %7246
        %7248 = vrot.lane.b32.xlu0 %v1508, 8
        %v7249 = vpop.permute.xlu0 %7248
        %7250 = vrot.lane.b32.xlu0 %v1509, 8
        %v7251 = vpop.permute.xlu0 %7250
        %7252 = vrot.lane.b32.xlu0 %v1510, 8
        %v7253 = vpop.permute.xlu0 %7252
        %7254 = vrot.lane.b32.xlu0 %v1511, 8
        %v7255 = vpop.permute.xlu0 %7254
        %7256 = vrot.lane.b32.xlu0 %v1512, 8
        %v7257 = vpop.permute.xlu0 %7256
        %7258 = vrot.lane.b32.xlu0 %v1513, 8
        %v7259 = vpop.permute.xlu0 %7258
        %7260 = vrot.lane.b32.xlu0 %v1514, 8
        %v7261 = vpop.permute.xlu0 %7260
        %7262 = vrot.lane.b32.xlu0 %v1515, 8
        %v7263 = vpop.permute.xlu0 %7262
        %7264 = vrot.lane.b32.xlu0 %v1516, 8
        %v7265 = vpop.permute.xlu0 %7264
        %7266 = vrot.lane.b32.xlu0 %v1517, 8
        %v7267 = vpop.permute.xlu0 %7266
        %7268 = vrot.lane.b32.xlu0 %v1518, 8
        %v7269 = vpop.permute.xlu0 %7268
        %7270 = vrot.lane.b32.xlu0 %v1519, 8
        %v7271 = vpop.permute.xlu0 %7270
        %7272 = vrot.lane.b32.xlu0 %v1520, 8
        %v7273 = vpop.permute.xlu0 %7272
        %7274 = vrot.lane.b32.xlu0 %v1521, 8
        %v7275 = vpop.permute.xlu0 %7274
        %7276 = vrot.lane.b32.xlu0 %v1522, 8
        %v7277 = vpop.permute.xlu0 %7276
        %7278 = vrot.lane.b32.xlu0 %v1523, 8
        %v7279 = vpop.permute.xlu0 %7278
        %7280 = vrot.lane.b32.xlu0 %v1524, 8
        %v7281 = vpop.permute.xlu0 %7280
        %7282 = vrot.lane.b32.xlu0 %v1525, 8
        %v7283 = vpop.permute.xlu0 %7282
        %7284 = vrot.lane.b32.xlu0 %v1526, 8
        %v7285 = vpop.permute.xlu0 %7284
        %7286 = vrot.lane.b32.xlu0 %v1527, 8
        %v7287 = vpop.permute.xlu0 %7286
        %7288 = vrot.lane.b32.xlu0 %v1528, 8
        %v7289 = vpop.permute.xlu0 %7288
        %7290 = vrot.lane.b32.xlu0 %v1529, 8
        %v7291 = vpop.permute.xlu0 %7290
        %7292 = vrot.lane.b32.xlu0 %v1530, 8
        %v7293 = vpop.permute.xlu0 %7292
        %7294 = vrot.lane.b32.xlu0 %v1531, 8
        %v7295 = vpop.permute.xlu0 %7294
        %7296 = vrot.lane.b32.xlu0 %v1532, 8
        %v7297 = vpop.permute.xlu0 %7296
        %7298 = vrot.lane.b32.xlu0 %v1533, 8
        %v7299 = vpop.permute.xlu0 %7298
        %7300 = vrot.lane.b32.xlu0 %v1534, 8
        %v7301 = vpop.permute.xlu0 %7300
        %7302 = vrot.lane.b32.xlu0 %v1535, 8
        %v7303 = vpop.permute.xlu0 %7302
        %7304 = vrot.lane.b32.xlu0 %v1536, 8
        %v7305 = vpop.permute.xlu0 %7304
        %7306 = vrot.lane.b32.xlu0 %v1537, 8
        %v7307 = vpop.permute.xlu0 %7306
        %7308 = vrot.lane.b32.xlu0 %v1538, 8
        %v7309 = vpop.permute.xlu0 %7308
        %7310 = vrot.lane.b32.xlu0 %v1539, 8
        %v7311 = vpop.permute.xlu0 %7310
        %7312 = vrot.lane.b32.xlu0 %v1540, 8
        %v7313 = vpop.permute.xlu0 %7312
        %7314 = vrot.lane.b32.xlu0 %v1541, 8
        %v7315 = vpop.permute.xlu0 %7314
        %7316 = vrot.lane.b32.xlu0 %v1542, 8
        %v7317 = vpop.permute.xlu0 %7316
        %7318 = vrot.lane.b32.xlu0 %v1543, 8
        %v7319 = vpop.permute.xlu0 %7318
        %7320 = vrot.lane.b32.xlu0 %v1544, 8
        %v7321 = vpop.permute.xlu0 %7320
        %7450 = vrot.lane.b32.xlu0 %v1545, 12
        %v7451 = vpop.permute.xlu0 %7450
        %7452 = vrot.lane.b32.xlu0 %v1546, 12
        %v7453 = vpop.permute.xlu0 %7452
        %7454 = vrot.lane.b32.xlu0 %v1547, 12
        %v7455 = vpop.permute.xlu0 %7454
        %7456 = vrot.lane.b32.xlu0 %v1548, 12
        %v7457 = vpop.permute.xlu0 %7456
        %7458 = vrot.lane.b32.xlu0 %v1549, 12
        %v7459 = vpop.permute.xlu0 %7458
        %7460 = vrot.lane.b32.xlu0 %v1550, 12
        %v7461 = vpop.permute.xlu0 %7460
        %7462 = vrot.lane.b32.xlu0 %v1551, 12
        %v7463 = vpop.permute.xlu0 %7462
        %7464 = vrot.lane.b32.xlu0 %v1552, 12
        %v7465 = vpop.permute.xlu0 %7464
        %7466 = vrot.lane.b32.xlu0 %v1553, 12
        %v7467 = vpop.permute.xlu0 %7466
        %7468 = vrot.lane.b32.xlu0 %v1554, 12
        %v7469 = vpop.permute.xlu0 %7468
        %7470 = vrot.lane.b32.xlu0 %v1555, 12
        %v7471 = vpop.permute.xlu0 %7470
        %7472 = vrot.lane.b32.xlu0 %v1556, 12
        %v7473 = vpop.permute.xlu0 %7472
        %7474 = vrot.lane.b32.xlu0 %v1557, 12
        %v7475 = vpop.permute.xlu0 %7474
        %7476 = vrot.lane.b32.xlu0 %v1558, 12
        %v7477 = vpop.permute.xlu0 %7476
        %7478 = vrot.lane.b32.xlu0 %v1559, 12
        %v7479 = vpop.permute.xlu0 %7478
        %7480 = vrot.lane.b32.xlu0 %v1560, 12
        %v7481 = vpop.permute.xlu0 %7480
        %7482 = vrot.lane.b32.xlu0 %v1561, 12
        %v7483 = vpop.permute.xlu0 %7482
        %7484 = vrot.lane.b32.xlu0 %v1562, 12
        %v7485 = vpop.permute.xlu0 %7484
        %7486 = vrot.lane.b32.xlu0 %v1563, 12
        %v7487 = vpop.permute.xlu0 %7486
        %7488 = vrot.lane.b32.xlu0 %v1564, 12
        %v7489 = vpop.permute.xlu0 %7488
        %7490 = vrot.lane.b32.xlu0 %v1565, 12
        %v7491 = vpop.permute.xlu0 %7490
        %7492 = vrot.lane.b32.xlu0 %v1566, 12
        %v7493 = vpop.permute.xlu0 %7492
        %7494 = vrot.lane.b32.xlu0 %v1567, 12
        %v7495 = vpop.permute.xlu0 %7494
        %7496 = vrot.lane.b32.xlu0 %v1568, 12
        %v7497 = vpop.permute.xlu0 %7496
        %7498 = vrot.lane.b32.xlu0 %v1569, 12
        %v7499 = vpop.permute.xlu0 %7498
        %7500 = vrot.lane.b32.xlu0 %v1570, 12
        %v7501 = vpop.permute.xlu0 %7500
        %7502 = vrot.lane.b32.xlu0 %v1571, 12
        %v7503 = vpop.permute.xlu0 %7502
        %7504 = vrot.lane.b32.xlu0 %v1572, 12
        %v7505 = vpop.permute.xlu0 %7504
        %7506 = vrot.lane.b32.xlu0 %v1573, 12
        %v7507 = vpop.permute.xlu0 %7506
        %7508 = vrot.lane.b32.xlu0 %v1574, 12
        %v7509 = vpop.permute.xlu0 %7508
        %7510 = vrot.lane.b32.xlu0 %v1575, 12
        %v7511 = vpop.permute.xlu0 %7510
        %7512 = vrot.lane.b32.xlu0 %v1576, 12
        %v7513 = vpop.permute.xlu0 %7512
        %7514 = vrot.lane.b32.xlu0 %v1577, 12
        %v7515 = vpop.permute.xlu0 %7514
        %7516 = vrot.lane.b32.xlu0 %v1578, 12
        %v7517 = vpop.permute.xlu0 %7516
        %7518 = vrot.lane.b32.xlu0 %v1579, 12
        %v7519 = vpop.permute.xlu0 %7518
        %7520 = vrot.lane.b32.xlu0 %v1580, 12
        %v7521 = vpop.permute.xlu0 %7520
        %7522 = vrot.lane.b32.xlu0 %v1581, 12
        %v7523 = vpop.permute.xlu0 %7522
        %7524 = vrot.lane.b32.xlu0 %v1582, 12
        %v7525 = vpop.permute.xlu0 %7524
        %7526 = vrot.lane.b32.xlu0 %v1583, 12
        %v7527 = vpop.permute.xlu0 %7526
        %7528 = vrot.lane.b32.xlu0 %v1584, 12
        %v7529 = vpop.permute.xlu0 %7528
        %7530 = vrot.lane.b32.xlu0 %v1585, 12
        %v7531 = vpop.permute.xlu0 %7530
        %7532 = vrot.lane.b32.xlu0 %v1586, 12
        %v7533 = vpop.permute.xlu0 %7532
        %7534 = vrot.lane.b32.xlu0 %v1587, 12
        %v7535 = vpop.permute.xlu0 %7534
        %7536 = vrot.lane.b32.xlu0 %v1588, 12
        %v7537 = vpop.permute.xlu0 %7536
        %7538 = vrot.lane.b32.xlu0 %v1589, 12
        %v7539 = vpop.permute.xlu0 %7538
        %7540 = vrot.lane.b32.xlu0 %v1590, 12
        %v7541 = vpop.permute.xlu0 %7540
        %7542 = vrot.lane.b32.xlu0 %v1591, 12
        %v7543 = vpop.permute.xlu0 %7542
        %7544 = vrot.lane.b32.xlu0 %v1592, 12
        %v7545 = vpop.permute.xlu0 %7544
        %7546 = vrot.lane.b32.xlu0 %v1593, 12
        %v7547 = vpop.permute.xlu0 %7546
        %7548 = vrot.lane.b32.xlu0 %v1594, 12
        %v7549 = vpop.permute.xlu0 %7548
        %7550 = vrot.lane.b32.xlu0 %v1595, 12
        %v7551 = vpop.permute.xlu0 %7550
        %7552 = vrot.lane.b32.xlu0 %v1596, 12
        %v7553 = vpop.permute.xlu0 %7552
        %7554 = vrot.lane.b32.xlu0 %v1597, 12
        %v7555 = vpop.permute.xlu0 %7554
        %7556 = vrot.lane.b32.xlu0 %v1598, 12
        %v7557 = vpop.permute.xlu0 %7556
        %7558 = vrot.lane.b32.xlu0 %v1599, 12
        %v7559 = vpop.permute.xlu0 %7558
        %7560 = vrot.lane.b32.xlu0 %v1600, 12
        %v7561 = vpop.permute.xlu0 %7560
        %7562 = vrot.lane.b32.xlu0 %v1601, 12
        %v7563 = vpop.permute.xlu0 %7562
        %7564 = vrot.lane.b32.xlu0 %v1602, 12
        %v7565 = vpop.permute.xlu0 %7564
        %7566 = vrot.lane.b32.xlu0 %v1603, 12
        %v7567 = vpop.permute.xlu0 %7566
        %7568 = vrot.lane.b32.xlu0 %v1604, 12
        %v7569 = vpop.permute.xlu0 %7568
        %7570 = vrot.lane.b32.xlu0 %v1605, 12
        %v7571 = vpop.permute.xlu0 %7570
        %7572 = vrot.lane.b32.xlu0 %v1606, 12
        %v7573 = vpop.permute.xlu0 %7572
        %7574 = vrot.lane.b32.xlu0 %v1607, 12
        %v7575 = vpop.permute.xlu0 %7574
        %7576 = vrot.lane.b32.xlu0 %v1608, 12
        %v7577 = vpop.permute.xlu0 %7576
        %7706 = vrot.lane.b32.xlu0 %v1609, 16
        %v7707 = vpop.permute.xlu0 %7706
        %7708 = vrot.lane.b32.xlu0 %v1610, 16
        %v7709 = vpop.permute.xlu0 %7708
        %7710 = vrot.lane.b32.xlu0 %v1611, 16
        %v7711 = vpop.permute.xlu0 %7710
        %7712 = vrot.lane.b32.xlu0 %v1612, 16
        %v7713 = vpop.permute.xlu0 %7712
        %7714 = vrot.lane.b32.xlu0 %v1613, 16
        %v7715 = vpop.permute.xlu0 %7714
        %7716 = vrot.lane.b32.xlu0 %v1614, 16
        %v7717 = vpop.permute.xlu0 %7716
        %7718 = vrot.lane.b32.xlu0 %v1615, 16
        %v7719 = vpop.permute.xlu0 %7718
        %7720 = vrot.lane.b32.xlu0 %v1616, 16
        %v7721 = vpop.permute.xlu0 %7720
        %7722 = vrot.lane.b32.xlu0 %v1617, 16
        %v7723 = vpop.permute.xlu0 %7722
        %7724 = vrot.lane.b32.xlu0 %v1618, 16
        %v7725 = vpop.permute.xlu0 %7724
        %7726 = vrot.lane.b32.xlu0 %v1619, 16
        %v7727 = vpop.permute.xlu0 %7726
        %7728 = vrot.lane.b32.xlu0 %v1620, 16
        %v7729 = vpop.permute.xlu0 %7728
        %7730 = vrot.lane.b32.xlu0 %v1621, 16
        %v7731 = vpop.permute.xlu0 %7730
        %7732 = vrot.lane.b32.xlu0 %v1622, 16
        %v7733 = vpop.permute.xlu0 %7732
        %7734 = vrot.lane.b32.xlu0 %v1623, 16
        %v7735 = vpop.permute.xlu0 %7734
        %7736 = vrot.lane.b32.xlu0 %v1624, 16
        %v7737 = vpop.permute.xlu0 %7736
        %7738 = vrot.lane.b32.xlu0 %v1625, 16
        %v7739 = vpop.permute.xlu0 %7738
        %7740 = vrot.lane.b32.xlu0 %v1626, 16
        %v7741 = vpop.permute.xlu0 %7740
        %7742 = vrot.lane.b32.xlu0 %v1627, 16
        %v7743 = vpop.permute.xlu0 %7742
        %7744 = vrot.lane.b32.xlu0 %v1628, 16
        %v7745 = vpop.permute.xlu0 %7744
        %7746 = vrot.lane.b32.xlu0 %v1629, 16
        %v7747 = vpop.permute.xlu0 %7746
        %7748 = vrot.lane.b32.xlu0 %v1630, 16
        %v7749 = vpop.permute.xlu0 %7748
        %7750 = vrot.lane.b32.xlu0 %v1631, 16
        %v7751 = vpop.permute.xlu0 %7750
        %7752 = vrot.lane.b32.xlu0 %v1632, 16
        %v7753 = vpop.permute.xlu0 %7752
        %7754 = vrot.lane.b32.xlu0 %v1633, 16
        %v7755 = vpop.permute.xlu0 %7754
        %7756 = vrot.lane.b32.xlu0 %v1634, 16
        %v7757 = vpop.permute.xlu0 %7756
        %7758 = vrot.lane.b32.xlu0 %v1635, 16
        %v7759 = vpop.permute.xlu0 %7758
        %7760 = vrot.lane.b32.xlu0 %v1636, 16
        %v7761 = vpop.permute.xlu0 %7760
        %7762 = vrot.lane.b32.xlu0 %v1637, 16
        %v7763 = vpop.permute.xlu0 %7762
        %7764 = vrot.lane.b32.xlu0 %v1638, 16
        %v7765 = vpop.permute.xlu0 %7764
        %7766 = vrot.lane.b32.xlu0 %v1639, 16
        %v7767 = vpop.permute.xlu0 %7766
        %7768 = vrot.lane.b32.xlu0 %v1640, 16
        %v7769 = vpop.permute.xlu0 %7768
        %7770 = vrot.lane.b32.xlu0 %v1641, 16
        %v7771 = vpop.permute.xlu0 %7770
        %7772 = vrot.lane.b32.xlu0 %v1642, 16
        %v7773 = vpop.permute.xlu0 %7772
        %7774 = vrot.lane.b32.xlu0 %v1643, 16
        %v7775 = vpop.permute.xlu0 %7774
        %7776 = vrot.lane.b32.xlu0 %v1644, 16
        %v7777 = vpop.permute.xlu0 %7776
        %7778 = vrot.lane.b32.xlu0 %v1645, 16
        %v7779 = vpop.permute.xlu0 %7778
        %7780 = vrot.lane.b32.xlu0 %v1646, 16
        %v7781 = vpop.permute.xlu0 %7780
        %7782 = vrot.lane.b32.xlu0 %v1647, 16
        %v7783 = vpop.permute.xlu0 %7782
        %7784 = vrot.lane.b32.xlu0 %v1648, 16
        %v7785 = vpop.permute.xlu0 %7784
        %7786 = vrot.lane.b32.xlu0 %v1649, 16
        %v7787 = vpop.permute.xlu0 %7786
        %7788 = vrot.lane.b32.xlu0 %v1650, 16
        %v7789 = vpop.permute.xlu0 %7788
        %7790 = vrot.lane.b32.xlu0 %v1651, 16
        %v7791 = vpop.permute.xlu0 %7790
        %7792 = vrot.lane.b32.xlu0 %v1652, 16
        %v7793 = vpop.permute.xlu0 %7792
        %7794 = vrot.lane.b32.xlu0 %v1653, 16
        %v7795 = vpop.permute.xlu0 %7794
        %7796 = vrot.lane.b32.xlu0 %v1654, 16
        %v7797 = vpop.permute.xlu0 %7796
        %7798 = vrot.lane.b32.xlu0 %v1655, 16
        %v7799 = vpop.permute.xlu0 %7798
        %7800 = vrot.lane.b32.xlu0 %v1656, 16
        %v7801 = vpop.permute.xlu0 %7800
        %7802 = vrot.lane.b32.xlu0 %v1657, 16
        %v7803 = vpop.permute.xlu0 %7802
        %7804 = vrot.lane.b32.xlu0 %v1658, 16
        %v7805 = vpop.permute.xlu0 %7804
        %7806 = vrot.lane.b32.xlu0 %v1659, 16
        %v7807 = vpop.permute.xlu0 %7806
        %7808 = vrot.lane.b32.xlu0 %v1660, 16
        %v7809 = vpop.permute.xlu0 %7808
        %7810 = vrot.lane.b32.xlu0 %v1661, 16
        %v7811 = vpop.permute.xlu0 %7810
        %7812 = vrot.lane.b32.xlu0 %v1662, 16
        %v7813 = vpop.permute.xlu0 %7812
        %7814 = vrot.lane.b32.xlu0 %v1663, 16
        %v7815 = vpop.permute.xlu0 %7814
        %7816 = vrot.lane.b32.xlu0 %v1664, 16
        %v7817 = vpop.permute.xlu0 %7816
        %7818 = vrot.lane.b32.xlu0 %v1665, 16
        %v7819 = vpop.permute.xlu0 %7818
        %7820 = vrot.lane.b32.xlu0 %v1666, 16
        %v7821 = vpop.permute.xlu0 %7820
        %7822 = vrot.lane.b32.xlu0 %v1667, 16
        %v7823 = vpop.permute.xlu0 %7822
        %7824 = vrot.lane.b32.xlu0 %v1668, 16
        %v7825 = vpop.permute.xlu0 %7824
        %7826 = vrot.lane.b32.xlu0 %v1669, 16
        %v7827 = vpop.permute.xlu0 %7826
        %7828 = vrot.lane.b32.xlu0 %v1670, 16
        %v7829 = vpop.permute.xlu0 %7828
        %7830 = vrot.lane.b32.xlu0 %v1671, 16
        %v7831 = vpop.permute.xlu0 %7830
        %7832 = vrot.lane.b32.xlu0 %v1672, 16
        %v7833 = vpop.permute.xlu0 %7832
        %7962 = vrot.lane.b32.xlu0 %v1674, 20
        %v7963 = vpop.permute.xlu0 %7962
        %7964 = vrot.lane.b32.xlu0 %v1675, 20
        %v7965 = vpop.permute.xlu0 %7964
        %7966 = vrot.lane.b32.xlu0 %v1676, 20
        %v7967 = vpop.permute.xlu0 %7966
        %7968 = vrot.lane.b32.xlu0 %v1677, 20
        %v7969 = vpop.permute.xlu0 %7968
        %7970 = vrot.lane.b32.xlu0 %v1678, 20
        %v7971 = vpop.permute.xlu0 %7970
        %7972 = vrot.lane.b32.xlu0 %v1679, 20
        %v7973 = vpop.permute.xlu0 %7972
        %7974 = vrot.lane.b32.xlu0 %v1680, 20
        %v7975 = vpop.permute.xlu0 %7974
        %7976 = vrot.lane.b32.xlu0 %v1681, 20
        %v7977 = vpop.permute.xlu0 %7976
        %7978 = vrot.lane.b32.xlu0 %v1682, 20
        %v7979 = vpop.permute.xlu0 %7978
        %7980 = vrot.lane.b32.xlu0 %v1683, 20
        %v7981 = vpop.permute.xlu0 %7980
        %7982 = vrot.lane.b32.xlu0 %v1684, 20
        %v7983 = vpop.permute.xlu0 %7982
        %7984 = vrot.lane.b32.xlu0 %v1685, 20
        %v7985 = vpop.permute.xlu0 %7984
        %7986 = vrot.lane.b32.xlu0 %v1686, 20
        %v7987 = vpop.permute.xlu0 %7986
        %7988 = vrot.lane.b32.xlu0 %v1687, 20
        %v7989 = vpop.permute.xlu0 %7988
        %7990 = vrot.lane.b32.xlu0 %v1688, 20
        %v7991 = vpop.permute.xlu0 %7990
        %7992 = vrot.lane.b32.xlu0 %v1689, 20
        %v7993 = vpop.permute.xlu0 %7992
        %7994 = vrot.lane.b32.xlu0 %v1690, 20
        %v7995 = vpop.permute.xlu0 %7994
        %7996 = vrot.lane.b32.xlu0 %v1691, 20
        %v7997 = vpop.permute.xlu0 %7996
        %7998 = vrot.lane.b32.xlu0 %v1692, 20
        %v7999 = vpop.permute.xlu0 %7998
        %8000 = vrot.lane.b32.xlu0 %v1693, 20
        %v8001 = vpop.permute.xlu0 %8000
        %8002 = vrot.lane.b32.xlu0 %v1694, 20
        %v8003 = vpop.permute.xlu0 %8002
        %8004 = vrot.lane.b32.xlu0 %v1695, 20
        %v8005 = vpop.permute.xlu0 %8004
        %8006 = vrot.lane.b32.xlu0 %v1696, 20
        %v8007 = vpop.permute.xlu0 %8006
        %8008 = vrot.lane.b32.xlu0 %v1697, 20
        %v8009 = vpop.permute.xlu0 %8008
        %8010 = vrot.lane.b32.xlu0 %v1698, 20
        %v8011 = vpop.permute.xlu0 %8010
        %8012 = vrot.lane.b32.xlu0 %v1699, 20
        %v8013 = vpop.permute.xlu0 %8012
        %8014 = vrot.lane.b32.xlu0 %v1700, 20
        %v8015 = vpop.permute.xlu0 %8014
        %8016 = vrot.lane.b32.xlu0 %v1701, 20
        %v8017 = vpop.permute.xlu0 %8016
        %8018 = vrot.lane.b32.xlu0 %v1702, 20
        %v8019 = vpop.permute.xlu0 %8018
        %8020 = vrot.lane.b32.xlu0 %v1703, 20
        %v8021 = vpop.permute.xlu0 %8020
        %8022 = vrot.lane.b32.xlu0 %v1704, 20
        %v8023 = vpop.permute.xlu0 %8022
        %8024 = vrot.lane.b32.xlu0 %v1705, 20
        %v8025 = vpop.permute.xlu0 %8024
        %8026 = vrot.lane.b32.xlu0 %v1706, 20
        %v8027 = vpop.permute.xlu0 %8026
        %8028 = vrot.lane.b32.xlu0 %v1707, 20
        %v8029 = vpop.permute.xlu0 %8028
        %8030 = vrot.lane.b32.xlu0 %v1708, 20
        %v8031 = vpop.permute.xlu0 %8030
        %8032 = vrot.lane.b32.xlu0 %v1709, 20
        %v8033 = vpop.permute.xlu0 %8032
        %8034 = vrot.lane.b32.xlu0 %v1710, 20
        %v8035 = vpop.permute.xlu0 %8034
        %8036 = vrot.lane.b32.xlu0 %v1711, 20
        %v8037 = vpop.permute.xlu0 %8036
        %8038 = vrot.lane.b32.xlu0 %v1712, 20
        %v8039 = vpop.permute.xlu0 %8038
        %8040 = vrot.lane.b32.xlu0 %v1713, 20
        %v8041 = vpop.permute.xlu0 %8040
        %8042 = vrot.lane.b32.xlu0 %v1714, 20
        %v8043 = vpop.permute.xlu0 %8042
        %8044 = vrot.lane.b32.xlu0 %v1715, 20
        %v8045 = vpop.permute.xlu0 %8044
        %8046 = vrot.lane.b32.xlu0 %v1716, 20
        %v8047 = vpop.permute.xlu0 %8046
        %8048 = vrot.lane.b32.xlu0 %v1717, 20
        %v8049 = vpop.permute.xlu0 %8048
        %8050 = vrot.lane.b32.xlu0 %v1718, 20
        %v8051 = vpop.permute.xlu0 %8050
        %8052 = vrot.lane.b32.xlu0 %v1719, 20
        %v8053 = vpop.permute.xlu0 %8052
        %8054 = vrot.lane.b32.xlu0 %v1720, 20
        %v8055 = vpop.permute.xlu0 %8054
        %8056 = vrot.lane.b32.xlu0 %v1721, 20
        %v8057 = vpop.permute.xlu0 %8056
        %8058 = vrot.lane.b32.xlu0 %v1722, 20
        %v8059 = vpop.permute.xlu0 %8058
        %8060 = vrot.lane.b32.xlu0 %v1723, 20
        %v8061 = vpop.permute.xlu0 %8060
        %8062 = vrot.lane.b32.xlu0 %v1724, 20
        %v8063 = vpop.permute.xlu0 %8062
        %8064 = vrot.lane.b32.xlu0 %v1725, 20
        %v8065 = vpop.permute.xlu0 %8064
        %8066 = vrot.lane.b32.xlu0 %v1726, 20
        %v8067 = vpop.permute.xlu0 %8066
        %8068 = vrot.lane.b32.xlu0 %v1727, 20
        %v8069 = vpop.permute.xlu0 %8068
        %8070 = vrot.lane.b32.xlu0 %v1728, 20
        %v8071 = vpop.permute.xlu0 %8070
        %8072 = vrot.lane.b32.xlu0 %v1729, 20
        %v8073 = vpop.permute.xlu0 %8072
        %8074 = vrot.lane.b32.xlu0 %v1730, 20
        %v8075 = vpop.permute.xlu0 %8074
        %8076 = vrot.lane.b32.xlu0 %v1731, 20
        %v8077 = vpop.permute.xlu0 %8076
        %8078 = vrot.lane.b32.xlu0 %v1732, 20
        %v8079 = vpop.permute.xlu0 %8078
        %8080 = vrot.lane.b32.xlu0 %v1733, 20
        %v8081 = vpop.permute.xlu0 %8080
        %8082 = vrot.lane.b32.xlu0 %v1734, 20
        %v8083 = vpop.permute.xlu0 %8082
        %8084 = vrot.lane.b32.xlu0 %v1735, 20
        %v8085 = vpop.permute.xlu0 %8084
        %8086 = vrot.lane.b32.xlu0 %v1736, 20
        %v8087 = vpop.permute.xlu0 %8086
        %8088 = vrot.lane.b32.xlu0 %v1737, 20
        %v8089 = vpop.permute.xlu0 %8088
        %8218 = vrot.lane.b32.xlu0 %v1738, 24
        %v8219 = vpop.permute.xlu0 %8218
        %8220 = vrot.lane.b32.xlu0 %v1739, 24
        %v8221 = vpop.permute.xlu0 %8220
        %8222 = vrot.lane.b32.xlu0 %v1740, 24
        %v8223 = vpop.permute.xlu0 %8222
        %8224 = vrot.lane.b32.xlu0 %v1741, 24
        %v8225 = vpop.permute.xlu0 %8224
        %8226 = vrot.lane.b32.xlu0 %v1742, 24
        %v8227 = vpop.permute.xlu0 %8226
        %8228 = vrot.lane.b32.xlu0 %v1743, 24
        %v8229 = vpop.permute.xlu0 %8228
        %8230 = vrot.lane.b32.xlu0 %v1744, 24
        %v8231 = vpop.permute.xlu0 %8230
        %8232 = vrot.lane.b32.xlu0 %v1745, 24
        %v8233 = vpop.permute.xlu0 %8232
        %8234 = vrot.lane.b32.xlu0 %v1746, 24
        %v8235 = vpop.permute.xlu0 %8234
        %8236 = vrot.lane.b32.xlu0 %v1747, 24
        %v8237 = vpop.permute.xlu0 %8236
        %8238 = vrot.lane.b32.xlu0 %v1748, 24
        %v8239 = vpop.permute.xlu0 %8238
        %8240 = vrot.lane.b32.xlu0 %v1749, 24
        %v8241 = vpop.permute.xlu0 %8240
        %8242 = vrot.lane.b32.xlu0 %v1750, 24
        %v8243 = vpop.permute.xlu0 %8242
        %8244 = vrot.lane.b32.xlu0 %v1751, 24
        %v8245 = vpop.permute.xlu0 %8244
        %8246 = vrot.lane.b32.xlu0 %v1752, 24
        %v8247 = vpop.permute.xlu0 %8246
        %8248 = vrot.lane.b32.xlu0 %v1753, 24
        %v8249 = vpop.permute.xlu0 %8248
        %8250 = vrot.lane.b32.xlu0 %v1754, 24
        %v8251 = vpop.permute.xlu0 %8250
        %8252 = vrot.lane.b32.xlu0 %v1755, 24
        %v8253 = vpop.permute.xlu0 %8252
        %8254 = vrot.lane.b32.xlu0 %v1756, 24
        %v8255 = vpop.permute.xlu0 %8254
        %8256 = vrot.lane.b32.xlu0 %v1757, 24
        %v8257 = vpop.permute.xlu0 %8256
        %8258 = vrot.lane.b32.xlu0 %v1758, 24
        %v8259 = vpop.permute.xlu0 %8258
        %8260 = vrot.lane.b32.xlu0 %v1759, 24
        %v8261 = vpop.permute.xlu0 %8260
        %8262 = vrot.lane.b32.xlu0 %v1760, 24
        %v8263 = vpop.permute.xlu0 %8262
        %8264 = vrot.lane.b32.xlu0 %v1761, 24
        %v8265 = vpop.permute.xlu0 %8264
        %8266 = vrot.lane.b32.xlu0 %v1762, 24
        %v8267 = vpop.permute.xlu0 %8266
        %8268 = vrot.lane.b32.xlu0 %v1763, 24
        %v8269 = vpop.permute.xlu0 %8268
        %8270 = vrot.lane.b32.xlu0 %v1764, 24
        %v8271 = vpop.permute.xlu0 %8270
        %8272 = vrot.lane.b32.xlu0 %v1765, 24
        %v8273 = vpop.permute.xlu0 %8272
        %8274 = vrot.lane.b32.xlu0 %v1766, 24
        %v8275 = vpop.permute.xlu0 %8274
        %8276 = vrot.lane.b32.xlu0 %v1767, 24
        %v8277 = vpop.permute.xlu0 %8276
        %8278 = vrot.lane.b32.xlu0 %v1768, 24
        %v8279 = vpop.permute.xlu0 %8278
        %8280 = vrot.lane.b32.xlu0 %v1769, 24
        %v8281 = vpop.permute.xlu0 %8280
        %8282 = vrot.lane.b32.xlu0 %v1770, 24
        %v8283 = vpop.permute.xlu0 %8282
        %8284 = vrot.lane.b32.xlu0 %v1771, 24
        %v8285 = vpop.permute.xlu0 %8284
        %8286 = vrot.lane.b32.xlu0 %v1772, 24
        %v8287 = vpop.permute.xlu0 %8286
        %8288 = vrot.lane.b32.xlu0 %v1773, 24
        %v8289 = vpop.permute.xlu0 %8288
        %8290 = vrot.lane.b32.xlu0 %v1774, 24
        %v8291 = vpop.permute.xlu0 %8290
        %8292 = vrot.lane.b32.xlu0 %v1775, 24
        %v8293 = vpop.permute.xlu0 %8292
        %8294 = vrot.lane.b32.xlu0 %v1776, 24
        %v8295 = vpop.permute.xlu0 %8294
        %8296 = vrot.lane.b32.xlu0 %v1777, 24
        %v8297 = vpop.permute.xlu0 %8296
        %8298 = vrot.lane.b32.xlu0 %v1778, 24
        %v8299 = vpop.permute.xlu0 %8298
        %8300 = vrot.lane.b32.xlu0 %v1779, 24
        %v8301 = vpop.permute.xlu0 %8300
        %8302 = vrot.lane.b32.xlu0 %v1780, 24
        %v8303 = vpop.permute.xlu0 %8302
        %8304 = vrot.lane.b32.xlu0 %v1781, 24
        %v8305 = vpop.permute.xlu0 %8304
        %8306 = vrot.lane.b32.xlu0 %v1782, 24
        %v8307 = vpop.permute.xlu0 %8306
        %8308 = vrot.lane.b32.xlu0 %v1783, 24
        %v8309 = vpop.permute.xlu0 %8308
        %8310 = vrot.lane.b32.xlu0 %v1784, 24
        %v8311 = vpop.permute.xlu0 %8310
        %8312 = vrot.lane.b32.xlu0 %v1785, 24
        %v8313 = vpop.permute.xlu0 %8312
        %8314 = vrot.lane.b32.xlu0 %v1786, 24
        %v8315 = vpop.permute.xlu0 %8314
        %8316 = vrot.lane.b32.xlu0 %v1787, 24
        %v8317 = vpop.permute.xlu0 %8316
        %8318 = vrot.lane.b32.xlu0 %v1788, 24
        %v8319 = vpop.permute.xlu0 %8318
        %8320 = vrot.lane.b32.xlu0 %v1789, 24
        %v8321 = vpop.permute.xlu0 %8320
        %8322 = vrot.lane.b32.xlu0 %v1790, 24
        %v8323 = vpop.permute.xlu0 %8322
        %8324 = vrot.lane.b32.xlu0 %v1791, 24
        %v8325 = vpop.permute.xlu0 %8324
        %8326 = vrot.lane.b32.xlu0 %v1792, 24
        %v8327 = vpop.permute.xlu0 %8326
        %8328 = vrot.lane.b32.xlu0 %v1793, 24
        %v8329 = vpop.permute.xlu0 %8328
        %8330 = vrot.lane.b32.xlu0 %v1794, 24
        %v8331 = vpop.permute.xlu0 %8330
        %8332 = vrot.lane.b32.xlu0 %v1795, 24
        %v8333 = vpop.permute.xlu0 %8332
        %8334 = vrot.lane.b32.xlu0 %v1796, 24
        %v8335 = vpop.permute.xlu0 %8334
        %8336 = vrot.lane.b32.xlu0 %v1797, 24
        %v8337 = vpop.permute.xlu0 %8336
        %8338 = vrot.lane.b32.xlu0 %v1798, 24
        %v8339 = vpop.permute.xlu0 %8338
        %8340 = vrot.lane.b32.xlu0 %v1799, 24
        %v8341 = vpop.permute.xlu0 %8340
        %8342 = vrot.lane.b32.xlu0 %v1800, 24
        %v8343 = vpop.permute.xlu0 %8342
        %8344 = vrot.lane.b32.xlu0 %v1801, 24
        %v8345 = vpop.permute.xlu0 %8344
        %8474 = vrot.lane.b32.xlu0 %v1802, 28
        %v8475 = vpop.permute.xlu0 %8474
        %8476 = vrot.lane.b32.xlu0 %v1803, 28
        %v8477 = vpop.permute.xlu0 %8476
        %8478 = vrot.lane.b32.xlu0 %v1804, 28
        %v8479 = vpop.permute.xlu0 %8478
        %8480 = vrot.lane.b32.xlu0 %v1805, 28
        %v8481 = vpop.permute.xlu0 %8480
        %8482 = vrot.lane.b32.xlu0 %v1806, 28
        %v8483 = vpop.permute.xlu0 %8482
        %8484 = vrot.lane.b32.xlu0 %v1807, 28
        %v8485 = vpop.permute.xlu0 %8484
        %8486 = vrot.lane.b32.xlu0 %v1808, 28
        %v8487 = vpop.permute.xlu0 %8486
        %8488 = vrot.lane.b32.xlu0 %v1809, 28
        %v8489 = vpop.permute.xlu0 %8488
        %8490 = vrot.lane.b32.xlu0 %v1810, 28
        %v8491 = vpop.permute.xlu0 %8490
        %8492 = vrot.lane.b32.xlu0 %v1811, 28
        %v8493 = vpop.permute.xlu0 %8492
        %8494 = vrot.lane.b32.xlu0 %v1812, 28
        %v8495 = vpop.permute.xlu0 %8494
        %8496 = vrot.lane.b32.xlu0 %v1813, 28
        %v8497 = vpop.permute.xlu0 %8496
        %8498 = vrot.lane.b32.xlu0 %v1814, 28
        %v8499 = vpop.permute.xlu0 %8498
        %8500 = vrot.lane.b32.xlu0 %v1815, 28
        %v8501 = vpop.permute.xlu0 %8500
        %8502 = vrot.lane.b32.xlu0 %v1816, 28
        %v8503 = vpop.permute.xlu0 %8502
        %8504 = vrot.lane.b32.xlu0 %v1817, 28
        %v8505 = vpop.permute.xlu0 %8504
        %8506 = vrot.lane.b32.xlu0 %v1818, 28
        %v8507 = vpop.permute.xlu0 %8506
        %8508 = vrot.lane.b32.xlu0 %v1819, 28
        %v8509 = vpop.permute.xlu0 %8508
        %8510 = vrot.lane.b32.xlu0 %v1820, 28
        %v8511 = vpop.permute.xlu0 %8510
        %8512 = vrot.lane.b32.xlu0 %v1821, 28
        %v8513 = vpop.permute.xlu0 %8512
        %8514 = vrot.lane.b32.xlu0 %v1822, 28
        %v8515 = vpop.permute.xlu0 %8514
        %8516 = vrot.lane.b32.xlu0 %v1823, 28
        %v8517 = vpop.permute.xlu0 %8516
        %8518 = vrot.lane.b32.xlu0 %v1824, 28
        %v8519 = vpop.permute.xlu0 %8518
        %8520 = vrot.lane.b32.xlu0 %v1825, 28
        %v8521 = vpop.permute.xlu0 %8520
        %8522 = vrot.lane.b32.xlu0 %v1826, 28
        %v8523 = vpop.permute.xlu0 %8522
        %8524 = vrot.lane.b32.xlu0 %v1827, 28
        %v8525 = vpop.permute.xlu0 %8524
        %8526 = vrot.lane.b32.xlu0 %v1828, 28
        %v8527 = vpop.permute.xlu0 %8526
        %8528 = vrot.lane.b32.xlu0 %v1829, 28
        %v8529 = vpop.permute.xlu0 %8528
        %8530 = vrot.lane.b32.xlu0 %v1830, 28
        %v8531 = vpop.permute.xlu0 %8530
        %8532 = vrot.lane.b32.xlu0 %v1831, 28
        %v8533 = vpop.permute.xlu0 %8532
        %8534 = vrot.lane.b32.xlu0 %v1832, 28
        %v8535 = vpop.permute.xlu0 %8534
        %8536 = vrot.lane.b32.xlu0 %v1833, 28
        %v8537 = vpop.permute.xlu0 %8536
        %8538 = vrot.lane.b32.xlu0 %v1834, 28
        %v8539 = vpop.permute.xlu0 %8538
        %8540 = vrot.lane.b32.xlu0 %v1835, 28
        %v8541 = vpop.permute.xlu0 %8540
        %8542 = vrot.lane.b32.xlu0 %v1836, 28
        %v8543 = vpop.permute.xlu0 %8542
        %8544 = vrot.lane.b32.xlu0 %v1837, 28
        %v8545 = vpop.permute.xlu0 %8544
        %8546 = vrot.lane.b32.xlu0 %v1838, 28
        %v8547 = vpop.permute.xlu0 %8546
        %8548 = vrot.lane.b32.xlu0 %v1839, 28
        %v8549 = vpop.permute.xlu0 %8548
        %8550 = vrot.lane.b32.xlu0 %v1840, 28
        %v8551 = vpop.permute.xlu0 %8550
        %8552 = vrot.lane.b32.xlu0 %v1841, 28
        %v8553 = vpop.permute.xlu0 %8552
        %8554 = vrot.lane.b32.xlu0 %v1842, 28
        %v8555 = vpop.permute.xlu0 %8554
        %8556 = vrot.lane.b32.xlu0 %v1843, 28
        %v8557 = vpop.permute.xlu0 %8556
        %8558 = vrot.lane.b32.xlu0 %v1844, 28
        %v8559 = vpop.permute.xlu0 %8558
        %8560 = vrot.lane.b32.xlu0 %v1845, 28
        %v8561 = vpop.permute.xlu0 %8560
        %8562 = vrot.lane.b32.xlu0 %v1846, 28
        %v8563 = vpop.permute.xlu0 %8562
        %8564 = vrot.lane.b32.xlu0 %v1847, 28
        %v8565 = vpop.permute.xlu0 %8564
        %8566 = vrot.lane.b32.xlu0 %v1848, 28
        %v8567 = vpop.permute.xlu0 %8566
        %8568 = vrot.lane.b32.xlu0 %v1849, 28
        %v8569 = vpop.permute.xlu0 %8568
        %8570 = vrot.lane.b32.xlu0 %v1850, 28
        %v8571 = vpop.permute.xlu0 %8570
        %8572 = vrot.lane.b32.xlu0 %v1851, 28
        %v8573 = vpop.permute.xlu0 %8572
        %8574 = vrot.lane.b32.xlu0 %v1852, 28
        %v8575 = vpop.permute.xlu0 %8574
        %8576 = vrot.lane.b32.xlu0 %v1853, 28
        %v8577 = vpop.permute.xlu0 %8576
        %8578 = vrot.lane.b32.xlu0 %v1854, 28
        %v8579 = vpop.permute.xlu0 %8578
        %8580 = vrot.lane.b32.xlu0 %v1855, 28
        %v8581 = vpop.permute.xlu0 %8580
        %8582 = vrot.lane.b32.xlu0 %v1856, 28
        %v8583 = vpop.permute.xlu0 %8582
        %8584 = vrot.lane.b32.xlu0 %v1857, 28
        %v8585 = vpop.permute.xlu0 %8584
        %8586 = vrot.lane.b32.xlu0 %v1858, 28
        %v8587 = vpop.permute.xlu0 %8586
        %8588 = vrot.lane.b32.xlu0 %v1859, 28
        %v8589 = vpop.permute.xlu0 %8588
        %8590 = vrot.lane.b32.xlu0 %v1860, 28
        %v8591 = vpop.permute.xlu0 %8590
        %8592 = vrot.lane.b32.xlu0 %v1861, 28
        %v8593 = vpop.permute.xlu0 %8592
        %8594 = vrot.lane.b32.xlu0 %v1862, 28
        %v8595 = vpop.permute.xlu0 %8594
        %8596 = vrot.lane.b32.xlu0 %v1863, 28
        %v8597 = vpop.permute.xlu0 %8596
        %8598 = vrot.lane.b32.xlu0 %v1864, 28
        %v8599 = vpop.permute.xlu0 %8598
        %8600 = vrot.lane.b32.xlu0 %v1865, 28
        %v8601 = vpop.permute.xlu0 %8600
        %8730 = vrot.lane.b32.xlu0 %v1867, 32
        %v8731 = vpop.permute.xlu0 %8730
        %8732 = vrot.lane.b32.xlu0 %v1868, 32
        %v8733 = vpop.permute.xlu0 %8732
        %8734 = vrot.lane.b32.xlu0 %v1869, 32
        %v8735 = vpop.permute.xlu0 %8734
        %8736 = vrot.lane.b32.xlu0 %v1870, 32
        %v8737 = vpop.permute.xlu0 %8736
        %8738 = vrot.lane.b32.xlu0 %v1871, 32
        %v8739 = vpop.permute.xlu0 %8738
        %8740 = vrot.lane.b32.xlu0 %v1872, 32
        %v8741 = vpop.permute.xlu0 %8740
        %8742 = vrot.lane.b32.xlu0 %v1873, 32
        %v8743 = vpop.permute.xlu0 %8742
        %8744 = vrot.lane.b32.xlu0 %v1874, 32
        %v8745 = vpop.permute.xlu0 %8744
        %8746 = vrot.lane.b32.xlu0 %v1875, 32
        %v8747 = vpop.permute.xlu0 %8746
        %8748 = vrot.lane.b32.xlu0 %v1876, 32
        %v8749 = vpop.permute.xlu0 %8748
        %8750 = vrot.lane.b32.xlu0 %v1877, 32
        %v8751 = vpop.permute.xlu0 %8750
        %8752 = vrot.lane.b32.xlu0 %v1878, 32
        %v8753 = vpop.permute.xlu0 %8752
        %8754 = vrot.lane.b32.xlu0 %v1879, 32
        %v8755 = vpop.permute.xlu0 %8754
        %8756 = vrot.lane.b32.xlu0 %v1880, 32
        %v8757 = vpop.permute.xlu0 %8756
        %8758 = vrot.lane.b32.xlu0 %v1881, 32
        %v8759 = vpop.permute.xlu0 %8758
        %8760 = vrot.lane.b32.xlu0 %v1882, 32
        %v8761 = vpop.permute.xlu0 %8760
        %8762 = vrot.lane.b32.xlu0 %v1883, 32
        %v8763 = vpop.permute.xlu0 %8762
        %8764 = vrot.lane.b32.xlu0 %v1884, 32
        %v8765 = vpop.permute.xlu0 %8764
        %8766 = vrot.lane.b32.xlu0 %v1885, 32
        %v8767 = vpop.permute.xlu0 %8766
        %8768 = vrot.lane.b32.xlu0 %v1886, 32
        %v8769 = vpop.permute.xlu0 %8768
        %8770 = vrot.lane.b32.xlu0 %v1887, 32
        %v8771 = vpop.permute.xlu0 %8770
        %8772 = vrot.lane.b32.xlu0 %v1888, 32
        %v8773 = vpop.permute.xlu0 %8772
        %8774 = vrot.lane.b32.xlu0 %v1889, 32
        %v8775 = vpop.permute.xlu0 %8774
        %8776 = vrot.lane.b32.xlu0 %v1890, 32
        %v8777 = vpop.permute.xlu0 %8776
        %8778 = vrot.lane.b32.xlu0 %v1891, 32
        %v8779 = vpop.permute.xlu0 %8778
        %8780 = vrot.lane.b32.xlu0 %v1892, 32
        %v8781 = vpop.permute.xlu0 %8780
        %8782 = vrot.lane.b32.xlu0 %v1893, 32
        %v8783 = vpop.permute.xlu0 %8782
        %8784 = vrot.lane.b32.xlu0 %v1894, 32
        %v8785 = vpop.permute.xlu0 %8784
        %8786 = vrot.lane.b32.xlu0 %v1895, 32
        %v8787 = vpop.permute.xlu0 %8786
        %8788 = vrot.lane.b32.xlu0 %v1896, 32
        %v8789 = vpop.permute.xlu0 %8788
        %8790 = vrot.lane.b32.xlu0 %v1897, 32
        %v8791 = vpop.permute.xlu0 %8790
        %8792 = vrot.lane.b32.xlu0 %v1898, 32
        %v8793 = vpop.permute.xlu0 %8792
        %8794 = vrot.lane.b32.xlu0 %v1899, 32
        %v8795 = vpop.permute.xlu0 %8794
        %8796 = vrot.lane.b32.xlu0 %v1900, 32
        %v8797 = vpop.permute.xlu0 %8796
        %8798 = vrot.lane.b32.xlu0 %v1901, 32
        %v8799 = vpop.permute.xlu0 %8798
        %8800 = vrot.lane.b32.xlu0 %v1902, 32
        %v8801 = vpop.permute.xlu0 %8800
        %8802 = vrot.lane.b32.xlu0 %v1903, 32
        %v8803 = vpop.permute.xlu0 %8802
        %8804 = vrot.lane.b32.xlu0 %v1904, 32
        %v8805 = vpop.permute.xlu0 %8804
        %8806 = vrot.lane.b32.xlu0 %v1905, 32
        %v8807 = vpop.permute.xlu0 %8806
        %8808 = vrot.lane.b32.xlu0 %v1906, 32
        %v8809 = vpop.permute.xlu0 %8808
        %8810 = vrot.lane.b32.xlu0 %v1907, 32
        %v8811 = vpop.permute.xlu0 %8810
        %8812 = vrot.lane.b32.xlu0 %v1908, 32
        %v8813 = vpop.permute.xlu0 %8812
        %8814 = vrot.lane.b32.xlu0 %v1909, 32
        %v8815 = vpop.permute.xlu0 %8814
        %8816 = vrot.lane.b32.xlu0 %v1910, 32
        %v8817 = vpop.permute.xlu0 %8816
        %8818 = vrot.lane.b32.xlu0 %v1911, 32
        %v8819 = vpop.permute.xlu0 %8818
        %8820 = vrot.lane.b32.xlu0 %v1912, 32
        %v8821 = vpop.permute.xlu0 %8820
        %8822 = vrot.lane.b32.xlu0 %v1913, 32
        %v8823 = vpop.permute.xlu0 %8822
        %8824 = vrot.lane.b32.xlu0 %v1914, 32
        %v8825 = vpop.permute.xlu0 %8824
        %8826 = vrot.lane.b32.xlu0 %v1915, 32
        %v8827 = vpop.permute.xlu0 %8826
        %8828 = vrot.lane.b32.xlu0 %v1916, 32
        %v8829 = vpop.permute.xlu0 %8828
        %8830 = vrot.lane.b32.xlu0 %v1917, 32
        %v8831 = vpop.permute.xlu0 %8830
        %8832 = vrot.lane.b32.xlu0 %v1918, 32
        %v8833 = vpop.permute.xlu0 %8832
        %8834 = vrot.lane.b32.xlu0 %v1919, 32
        %v8835 = vpop.permute.xlu0 %8834
        %8836 = vrot.lane.b32.xlu0 %v1920, 32
        %v8837 = vpop.permute.xlu0 %8836
        %8838 = vrot.lane.b32.xlu0 %v1921, 32
        %v8839 = vpop.permute.xlu0 %8838
        %8840 = vrot.lane.b32.xlu0 %v1922, 32
        %v8841 = vpop.permute.xlu0 %8840
        %8842 = vrot.lane.b32.xlu0 %v1923, 32
        %v8843 = vpop.permute.xlu0 %8842
        %8844 = vrot.lane.b32.xlu0 %v1924, 32
        %v8845 = vpop.permute.xlu0 %8844
        %8846 = vrot.lane.b32.xlu0 %v1925, 32
        %v8847 = vpop.permute.xlu0 %8846
        %8848 = vrot.lane.b32.xlu0 %v1926, 32
        %v8849 = vpop.permute.xlu0 %8848
        %8850 = vrot.lane.b32.xlu0 %v1927, 32
        %v8851 = vpop.permute.xlu0 %8850
        %8852 = vrot.lane.b32.xlu0 %v1928, 32
        %v8853 = vpop.permute.xlu0 %8852
        %8854 = vrot.lane.b32.xlu0 %v1929, 32
        %v8855 = vpop.permute.xlu0 %8854
        %8856 = vrot.lane.b32.xlu0 %v1930, 32
        %v8857 = vpop.permute.xlu0 %8856
        %8986 = vrot.lane.b32.xlu0 %v1931, 36
        %v8987 = vpop.permute.xlu0 %8986
        %8988 = vrot.lane.b32.xlu0 %v1932, 36
        %v8989 = vpop.permute.xlu0 %8988
        %8990 = vrot.lane.b32.xlu0 %v1933, 36
        %v8991 = vpop.permute.xlu0 %8990
        %8992 = vrot.lane.b32.xlu0 %v1934, 36
        %v8993 = vpop.permute.xlu0 %8992
        %8994 = vrot.lane.b32.xlu0 %v1935, 36
        %v8995 = vpop.permute.xlu0 %8994
        %8996 = vrot.lane.b32.xlu0 %v1936, 36
        %v8997 = vpop.permute.xlu0 %8996
        %8998 = vrot.lane.b32.xlu0 %v1937, 36
        %v8999 = vpop.permute.xlu0 %8998
        %9000 = vrot.lane.b32.xlu0 %v1938, 36
        %v9001 = vpop.permute.xlu0 %9000
        %9002 = vrot.lane.b32.xlu0 %v1939, 36
        %v9003 = vpop.permute.xlu0 %9002
        %9004 = vrot.lane.b32.xlu0 %v1940, 36
        %v9005 = vpop.permute.xlu0 %9004
        %9006 = vrot.lane.b32.xlu0 %v1941, 36
        %v9007 = vpop.permute.xlu0 %9006
        %9008 = vrot.lane.b32.xlu0 %v1942, 36
        %v9009 = vpop.permute.xlu0 %9008
        %9010 = vrot.lane.b32.xlu0 %v1943, 36
        %v9011 = vpop.permute.xlu0 %9010
        %9012 = vrot.lane.b32.xlu0 %v1944, 36
        %v9013 = vpop.permute.xlu0 %9012
        %9014 = vrot.lane.b32.xlu0 %v1945, 36
        %v9015 = vpop.permute.xlu0 %9014
        %9016 = vrot.lane.b32.xlu0 %v1946, 36
        %v9017 = vpop.permute.xlu0 %9016
        %9018 = vrot.lane.b32.xlu0 %v1947, 36
        %v9019 = vpop.permute.xlu0 %9018
        %9020 = vrot.lane.b32.xlu0 %v1948, 36
        %v9021 = vpop.permute.xlu0 %9020
        %9022 = vrot.lane.b32.xlu0 %v1949, 36
        %v9023 = vpop.permute.xlu0 %9022
        %9024 = vrot.lane.b32.xlu0 %v1950, 36
        %v9025 = vpop.permute.xlu0 %9024
        %9026 = vrot.lane.b32.xlu0 %v1951, 36
        %v9027 = vpop.permute.xlu0 %9026
        %9028 = vrot.lane.b32.xlu0 %v1952, 36
        %v9029 = vpop.permute.xlu0 %9028
        %9030 = vrot.lane.b32.xlu0 %v1953, 36
        %v9031 = vpop.permute.xlu0 %9030
        %9032 = vrot.lane.b32.xlu0 %v1954, 36
        %v9033 = vpop.permute.xlu0 %9032
        %9034 = vrot.lane.b32.xlu0 %v1955, 36
        %v9035 = vpop.permute.xlu0 %9034
        %9036 = vrot.lane.b32.xlu0 %v1956, 36
        %v9037 = vpop.permute.xlu0 %9036
        %9038 = vrot.lane.b32.xlu0 %v1957, 36
        %v9039 = vpop.permute.xlu0 %9038
        %9040 = vrot.lane.b32.xlu0 %v1958, 36
        %v9041 = vpop.permute.xlu0 %9040
        %9042 = vrot.lane.b32.xlu0 %v1959, 36
        %v9043 = vpop.permute.xlu0 %9042
        %9044 = vrot.lane.b32.xlu0 %v1960, 36
        %v9045 = vpop.permute.xlu0 %9044
        %9046 = vrot.lane.b32.xlu0 %v1961, 36
        %v9047 = vpop.permute.xlu0 %9046
        %9048 = vrot.lane.b32.xlu0 %v1962, 36
        %v9049 = vpop.permute.xlu0 %9048
        %9050 = vrot.lane.b32.xlu0 %v1963, 36
        %v9051 = vpop.permute.xlu0 %9050
        %9052 = vrot.lane.b32.xlu0 %v1964, 36
        %v9053 = vpop.permute.xlu0 %9052
        %9054 = vrot.lane.b32.xlu0 %v1965, 36
        %v9055 = vpop.permute.xlu0 %9054
        %9056 = vrot.lane.b32.xlu0 %v1966, 36
        %v9057 = vpop.permute.xlu0 %9056
        %9058 = vrot.lane.b32.xlu0 %v1967, 36
        %v9059 = vpop.permute.xlu0 %9058
        %9060 = vrot.lane.b32.xlu0 %v1968, 36
        %v9061 = vpop.permute.xlu0 %9060
        %9062 = vrot.lane.b32.xlu0 %v1969, 36
        %v9063 = vpop.permute.xlu0 %9062
        %9064 = vrot.lane.b32.xlu0 %v1970, 36
        %v9065 = vpop.permute.xlu0 %9064
        %9066 = vrot.lane.b32.xlu0 %v1971, 36
        %v9067 = vpop.permute.xlu0 %9066
        %9068 = vrot.lane.b32.xlu0 %v1972, 36
        %v9069 = vpop.permute.xlu0 %9068
        %9070 = vrot.lane.b32.xlu0 %v1973, 36
        %v9071 = vpop.permute.xlu0 %9070
        %9072 = vrot.lane.b32.xlu0 %v1974, 36
        %v9073 = vpop.permute.xlu0 %9072
        %9074 = vrot.lane.b32.xlu0 %v1975, 36
        %v9075 = vpop.permute.xlu0 %9074
        %9076 = vrot.lane.b32.xlu0 %v1976, 36
        %v9077 = vpop.permute.xlu0 %9076
        %9078 = vrot.lane.b32.xlu0 %v1977, 36
        %v9079 = vpop.permute.xlu0 %9078
        %9080 = vrot.lane.b32.xlu0 %v1978, 36
        %v9081 = vpop.permute.xlu0 %9080
        %9082 = vrot.lane.b32.xlu0 %v1979, 36
        %v9083 = vpop.permute.xlu0 %9082
        %9084 = vrot.lane.b32.xlu0 %v1980, 36
        %v9085 = vpop.permute.xlu0 %9084
        %9086 = vrot.lane.b32.xlu0 %v1981, 36
        %v9087 = vpop.permute.xlu0 %9086
        %9088 = vrot.lane.b32.xlu0 %v1982, 36
        %v9089 = vpop.permute.xlu0 %9088
        %9090 = vrot.lane.b32.xlu0 %v1983, 36
        %v9091 = vpop.permute.xlu0 %9090
        %9092 = vrot.lane.b32.xlu0 %v1984, 36
        %v9093 = vpop.permute.xlu0 %9092
        %9094 = vrot.lane.b32.xlu0 %v1985, 36
        %v9095 = vpop.permute.xlu0 %9094
        %9096 = vrot.lane.b32.xlu0 %v1986, 36
        %v9097 = vpop.permute.xlu0 %9096
        %9098 = vrot.lane.b32.xlu0 %v1987, 36
        %v9099 = vpop.permute.xlu0 %9098
        %9100 = vrot.lane.b32.xlu0 %v1988, 36
        %v9101 = vpop.permute.xlu0 %9100
        %9102 = vrot.lane.b32.xlu0 %v1989, 36
        %v9103 = vpop.permute.xlu0 %9102
        %9104 = vrot.lane.b32.xlu0 %v1990, 36
        %v9105 = vpop.permute.xlu0 %9104
        %9106 = vrot.lane.b32.xlu0 %v1991, 36
        %v9107 = vpop.permute.xlu0 %9106
        %9108 = vrot.lane.b32.xlu0 %v1992, 36
        %v9109 = vpop.permute.xlu0 %9108
        %9110 = vrot.lane.b32.xlu0 %v1993, 36
        %v9111 = vpop.permute.xlu0 %9110
        %9112 = vrot.lane.b32.xlu0 %v1994, 36
        %v9113 = vpop.permute.xlu0 %9112
        %9242 = vrot.lane.b32.xlu0 %v1995, 40
        %v9243 = vpop.permute.xlu0 %9242
        %9244 = vrot.lane.b32.xlu0 %v1996, 40
        %v9245 = vpop.permute.xlu0 %9244
        %9246 = vrot.lane.b32.xlu0 %v1997, 40
        %v9247 = vpop.permute.xlu0 %9246
        %9248 = vrot.lane.b32.xlu0 %v1998, 40
        %v9249 = vpop.permute.xlu0 %9248
        %9250 = vrot.lane.b32.xlu0 %v1999, 40
        %v9251 = vpop.permute.xlu0 %9250
        %9252 = vrot.lane.b32.xlu0 %v2000, 40
        %v9253 = vpop.permute.xlu0 %9252
        %9254 = vrot.lane.b32.xlu0 %v2001, 40
        %v9255 = vpop.permute.xlu0 %9254
        %9256 = vrot.lane.b32.xlu0 %v2002, 40
        %v9257 = vpop.permute.xlu0 %9256
        %9258 = vrot.lane.b32.xlu0 %v2003, 40
        %v9259 = vpop.permute.xlu0 %9258
        %9260 = vrot.lane.b32.xlu0 %v2004, 40
        %v9261 = vpop.permute.xlu0 %9260
        %9262 = vrot.lane.b32.xlu0 %v2005, 40
        %v9263 = vpop.permute.xlu0 %9262
        %9264 = vrot.lane.b32.xlu0 %v2006, 40
        %v9265 = vpop.permute.xlu0 %9264
        %9266 = vrot.lane.b32.xlu0 %v2007, 40
        %v9267 = vpop.permute.xlu0 %9266
        %9268 = vrot.lane.b32.xlu0 %v2008, 40
        %v9269 = vpop.permute.xlu0 %9268
        %9270 = vrot.lane.b32.xlu0 %v2009, 40
        %v9271 = vpop.permute.xlu0 %9270
        %9272 = vrot.lane.b32.xlu0 %v2010, 40
        %v9273 = vpop.permute.xlu0 %9272
        %9274 = vrot.lane.b32.xlu0 %v2011, 40
        %v9275 = vpop.permute.xlu0 %9274
        %9276 = vrot.lane.b32.xlu0 %v2012, 40
        %v9277 = vpop.permute.xlu0 %9276
        %9278 = vrot.lane.b32.xlu0 %v2013, 40
        %v9279 = vpop.permute.xlu0 %9278
        %9280 = vrot.lane.b32.xlu0 %v2014, 40
        %v9281 = vpop.permute.xlu0 %9280
        %9282 = vrot.lane.b32.xlu0 %v2015, 40
        %v9283 = vpop.permute.xlu0 %9282
        %9284 = vrot.lane.b32.xlu0 %v2016, 40
        %v9285 = vpop.permute.xlu0 %9284
        %9286 = vrot.lane.b32.xlu0 %v2017, 40
        %v9287 = vpop.permute.xlu0 %9286
        %9288 = vrot.lane.b32.xlu0 %v2018, 40
        %v9289 = vpop.permute.xlu0 %9288
        %9290 = vrot.lane.b32.xlu0 %v2019, 40
        %v9291 = vpop.permute.xlu0 %9290
        %9292 = vrot.lane.b32.xlu0 %v2020, 40
        %v9293 = vpop.permute.xlu0 %9292
        %9294 = vrot.lane.b32.xlu0 %v2021, 40
        %v9295 = vpop.permute.xlu0 %9294
        %9296 = vrot.lane.b32.xlu0 %v2022, 40
        %v9297 = vpop.permute.xlu0 %9296
        %9298 = vrot.lane.b32.xlu0 %v2023, 40
        %v9299 = vpop.permute.xlu0 %9298
        %9300 = vrot.lane.b32.xlu0 %v2024, 40
        %v9301 = vpop.permute.xlu0 %9300
        %9302 = vrot.lane.b32.xlu0 %v2025, 40
        %v9303 = vpop.permute.xlu0 %9302
        %9304 = vrot.lane.b32.xlu0 %v2026, 40
        %v9305 = vpop.permute.xlu0 %9304
        %9306 = vrot.lane.b32.xlu0 %v2027, 40
        %v9307 = vpop.permute.xlu0 %9306
        %9308 = vrot.lane.b32.xlu0 %v2028, 40
        %v9309 = vpop.permute.xlu0 %9308
        %9310 = vrot.lane.b32.xlu0 %v2029, 40
        %v9311 = vpop.permute.xlu0 %9310
        %9312 = vrot.lane.b32.xlu0 %v2030, 40
        %v9313 = vpop.permute.xlu0 %9312
        %9314 = vrot.lane.b32.xlu0 %v2031, 40
        %v9315 = vpop.permute.xlu0 %9314
        %9316 = vrot.lane.b32.xlu0 %v2032, 40
        %v9317 = vpop.permute.xlu0 %9316
        %9318 = vrot.lane.b32.xlu0 %v2033, 40
        %v9319 = vpop.permute.xlu0 %9318
        %9320 = vrot.lane.b32.xlu0 %v2034, 40
        %v9321 = vpop.permute.xlu0 %9320
        %9322 = vrot.lane.b32.xlu0 %v2035, 40
        %v9323 = vpop.permute.xlu0 %9322
        %9324 = vrot.lane.b32.xlu0 %v2036, 40
        %v9325 = vpop.permute.xlu0 %9324
        %9326 = vrot.lane.b32.xlu0 %v2037, 40
        %v9327 = vpop.permute.xlu0 %9326
        %9328 = vrot.lane.b32.xlu0 %v2038, 40
        %v9329 = vpop.permute.xlu0 %9328
        %9330 = vrot.lane.b32.xlu0 %v2039, 40
        %v9331 = vpop.permute.xlu0 %9330
        %9332 = vrot.lane.b32.xlu0 %v2040, 40
        %v9333 = vpop.permute.xlu0 %9332
        %9334 = vrot.lane.b32.xlu0 %v2041, 40
        %v9335 = vpop.permute.xlu0 %9334
        %9336 = vrot.lane.b32.xlu0 %v2042, 40
        %v9337 = vpop.permute.xlu0 %9336
        %9338 = vrot.lane.b32.xlu0 %v2043, 40
        %v9339 = vpop.permute.xlu0 %9338
        %9340 = vrot.lane.b32.xlu0 %v2044, 40
        %v9341 = vpop.permute.xlu0 %9340
        %9342 = vrot.lane.b32.xlu0 %v2045, 40
        %v9343 = vpop.permute.xlu0 %9342
        %9344 = vrot.lane.b32.xlu0 %v2046, 40
        %v9345 = vpop.permute.xlu0 %9344
        %9346 = vrot.lane.b32.xlu0 %v2047, 40
        %v9347 = vpop.permute.xlu0 %9346
        %9348 = vrot.lane.b32.xlu0 %v2048, 40
        %v9349 = vpop.permute.xlu0 %9348
        %9350 = vrot.lane.b32.xlu0 %v2049, 40
        %v9351 = vpop.permute.xlu0 %9350
        %9352 = vrot.lane.b32.xlu0 %v2050, 40
        %v9353 = vpop.permute.xlu0 %9352
        %9354 = vrot.lane.b32.xlu0 %v2051, 40
        %v9355 = vpop.permute.xlu0 %9354
        %9356 = vrot.lane.b32.xlu0 %v2052, 40
        %v9357 = vpop.permute.xlu0 %9356
        %9358 = vrot.lane.b32.xlu0 %v2053, 40
        %v9359 = vpop.permute.xlu0 %9358
        %9360 = vrot.lane.b32.xlu0 %v2054, 40
        %v9361 = vpop.permute.xlu0 %9360
        %9362 = vrot.lane.b32.xlu0 %v2055, 40
        %v9363 = vpop.permute.xlu0 %9362
        %9364 = vrot.lane.b32.xlu0 %v2056, 40
        %v9365 = vpop.permute.xlu0 %9364
        %9366 = vrot.lane.b32.xlu0 %v2057, 40
        %v9367 = vpop.permute.xlu0 %9366
        %9368 = vrot.lane.b32.xlu0 %v2058, 40
        %v9369 = vpop.permute.xlu0 %9368
        %v9434 = vsel %vm5899, %v1352, %v6939
        %v9435 = vsel %vm5899, %v1353, %v6941
        %v9436 = vsel %vm5899, %v1354, %v6943
        %v9437 = vsel %vm5899, %v1355, %v6945
        %v9438 = vsel %vm5899, %v1356, %v6947
        %v9439 = vsel %vm5899, %v1357, %v6949
        %v9440 = vsel %vm5899, %v1358, %v6951
        %v9441 = vsel %vm5899, %v1359, %v6953
        %v9442 = vsel %vm5899, %v1360, %v6955
        %v9443 = vsel %vm5899, %v1361, %v6957
        %v9444 = vsel %vm5899, %v1362, %v6959
        %v9445 = vsel %vm5899, %v1363, %v6961
        %v9446 = vsel %vm5899, %v1364, %v6963
        %v9447 = vsel %vm5899, %v1365, %v6965
        %v9448 = vsel %vm5899, %v1366, %v6967
        %v9449 = vsel %vm5899, %v1367, %v6969
        %v9450 = vsel %vm5899, %v1368, %v6971
        %v9451 = vsel %vm5899, %v1369, %v6973
        %v9452 = vsel %vm5899, %v1370, %v6975
        %v9453 = vsel %vm5899, %v1371, %v6977
        %v9454 = vsel %vm5899, %v1372, %v6979
        %v9455 = vsel %vm5899, %v1373, %v6981
        %v9456 = vsel %vm5899, %v1374, %v6983
        %v9457 = vsel %vm5899, %v1375, %v6985
        %v9458 = vsel %vm5899, %v1376, %v6987
        %v9459 = vsel %vm5899, %v1377, %v6989
        %v9460 = vsel %vm5899, %v1378, %v6991
        %v9461 = vsel %vm5899, %v1379, %v6993
        %v9462 = vsel %vm5899, %v1380, %v6995
        %v9463 = vsel %vm5899, %v1381, %v6997
        %v9464 = vsel %vm5899, %v1382, %v6999
        %v9465 = vsel %vm5899, %v1383, %v7001
        %v9466 = vsel %vm5899, %v1384, %v7003
        %v9467 = vsel %vm5899, %v1385, %v7005
        %v9468 = vsel %vm5899, %v1386, %v7007
        %v9469 = vsel %vm5899, %v1387, %v7009
        %v9470 = vsel %vm5899, %v1388, %v7011
        %v9471 = vsel %vm5899, %v1389, %v7013
        %v9472 = vsel %vm5899, %v1390, %v7015
        %v9473 = vsel %vm5899, %v1391, %v7017
        %v9474 = vsel %vm5899, %v1392, %v7019
        %v9475 = vsel %vm5899, %v1393, %v7021
        %v9476 = vsel %vm5899, %v1394, %v7023
        %v9477 = vsel %vm5899, %v1395, %v7025
        %v9478 = vsel %vm5899, %v1396, %v7027
        %v9479 = vsel %vm5899, %v1397, %v7029
        %v9480 = vsel %vm5899, %v1398, %v7031
        %v9481 = vsel %vm5899, %v1399, %v7033
        %v9482 = vsel %vm5899, %v1400, %v7035
        %v9483 = vsel %vm5899, %v1401, %v7037
        %v9484 = vsel %vm5899, %v1402, %v7039
        %v9485 = vsel %vm5899, %v1403, %v7041
        %v9486 = vsel %vm5899, %v1404, %v7043
        %v9487 = vsel %vm5899, %v1405, %v7045
        %v9488 = vsel %vm5899, %v1406, %v7047
        %v9489 = vsel %vm5899, %v1407, %v7049
        %v9490 = vsel %vm5899, %v1408, %v7051
        %v9491 = vsel %vm5899, %v1409, %v7053
        %v9492 = vsel %vm5899, %v1410, %v7055
        %v9493 = vsel %vm5899, %v1411, %v7057
        %v9494 = vsel %vm5899, %v1412, %v7059
        %v9495 = vsel %vm5899, %v1413, %v7061
        %v9496 = vsel %vm5899, %v1414, %v7063
        %v9497 = vsel %vm5899, %v1415, %v7065
        %v9498 = vsel %vm5964, %v9434, %v7195
        %v9499 = vsel %vm5964, %v9435, %v7197
        %v9500 = vsel %vm5964, %v9436, %v7199
        %v9501 = vsel %vm5964, %v9437, %v7201
        %v9502 = vsel %vm5964, %v9438, %v7203
        %v9503 = vsel %vm5964, %v9439, %v7205
        %v9504 = vsel %vm5964, %v9440, %v7207
        %v9505 = vsel %vm5964, %v9441, %v7209
        %v9506 = vsel %vm5964, %v9442, %v7211
        %v9507 = vsel %vm5964, %v9443, %v7213
        %v9508 = vsel %vm5964, %v9444, %v7215
        %v9509 = vsel %vm5964, %v9445, %v7217
        %v9510 = vsel %vm5964, %v9446, %v7219
        %v9511 = vsel %vm5964, %v9447, %v7221
        %v9512 = vsel %vm5964, %v9448, %v7223
        %v9513 = vsel %vm5964, %v9449, %v7225
        %v9514 = vsel %vm5964, %v9450, %v7227
        %v9515 = vsel %vm5964, %v9451, %v7229
        %v9516 = vsel %vm5964, %v9452, %v7231
        %v9517 = vsel %vm5964, %v9453, %v7233
        %v9518 = vsel %vm5964, %v9454, %v7235
        %v9519 = vsel %vm5964, %v9455, %v7237
        %v9520 = vsel %vm5964, %v9456, %v7239
        %v9521 = vsel %vm5964, %v9457, %v7241
        %v9522 = vsel %vm5964, %v9458, %v7243
        %v9523 = vsel %vm5964, %v9459, %v7245
        %v9524 = vsel %vm5964, %v9460, %v7247
        %v9525 = vsel %vm5964, %v9461, %v7249
        %v9526 = vsel %vm5964, %v9462, %v7251
        %v9527 = vsel %vm5964, %v9463, %v7253
        %v9528 = vsel %vm5964, %v9464, %v7255
        %v9529 = vsel %vm5964, %v9465, %v7257
        %v9530 = vsel %vm5964, %v9466, %v7259
        %v9531 = vsel %vm5964, %v9467, %v7261
        %v9532 = vsel %vm5964, %v9468, %v7263
        %v9533 = vsel %vm5964, %v9469, %v7265
        %v9534 = vsel %vm5964, %v9470, %v7267
        %v9535 = vsel %vm5964, %v9471, %v7269
        %v9536 = vsel %vm5964, %v9472, %v7271
        %v9537 = vsel %vm5964, %v9473, %v7273
        %v9538 = vsel %vm5964, %v9474, %v7275
        %v9539 = vsel %vm5964, %v9475, %v7277
        %v9540 = vsel %vm5964, %v9476, %v7279
        %v9541 = vsel %vm5964, %v9477, %v7281
        %v9542 = vsel %vm5964, %v9478, %v7283
        %v9543 = vsel %vm5964, %v9479, %v7285
        %v9544 = vsel %vm5964, %v9480, %v7287
        %v9545 = vsel %vm5964, %v9481, %v7289
        %v9546 = vsel %vm5964, %v9482, %v7291
        %v9547 = vsel %vm5964, %v9483, %v7293
        %v9548 = vsel %vm5964, %v9484, %v7295
        %v9549 = vsel %vm5964, %v9485, %v7297
        %v9550 = vsel %vm5964, %v9486, %v7299
        %v9551 = vsel %vm5964, %v9487, %v7301
        %v9552 = vsel %vm5964, %v9488, %v7303
        %v9553 = vsel %vm5964, %v9489, %v7305
        %v9554 = vsel %vm5964, %v9490, %v7307
        %v9555 = vsel %vm5964, %v9491, %v7309
        %v9556 = vsel %vm5964, %v9492, %v7311
        %v9557 = vsel %vm5964, %v9493, %v7313
        %v9558 = vsel %vm5964, %v9494, %v7315
        %v9559 = vsel %vm5964, %v9495, %v7317
        %v9560 = vsel %vm5964, %v9496, %v7319
        %v9561 = vsel %vm5964, %v9497, %v7321
        %v9562 = vsel %vm6029, %v9498, %v7451
        %v9563 = vsel %vm6029, %v9499, %v7453
        %v9564 = vsel %vm6029, %v9500, %v7455
        %v9565 = vsel %vm6029, %v9501, %v7457
        %v9566 = vsel %vm6029, %v9502, %v7459
        %v9567 = vsel %vm6029, %v9503, %v7461
        %v9568 = vsel %vm6029, %v9504, %v7463
        %v9569 = vsel %vm6029, %v9505, %v7465
        %v9570 = vsel %vm6029, %v9506, %v7467
        %v9571 = vsel %vm6029, %v9507, %v7469
        %v9572 = vsel %vm6029, %v9508, %v7471
        %v9573 = vsel %vm6029, %v9509, %v7473
        %v9574 = vsel %vm6029, %v9510, %v7475
        %v9575 = vsel %vm6029, %v9511, %v7477
        %v9576 = vsel %vm6029, %v9512, %v7479
        %v9577 = vsel %vm6029, %v9513, %v7481
        %v9578 = vsel %vm6029, %v9514, %v7483
        %v9579 = vsel %vm6029, %v9515, %v7485
        %v9580 = vsel %vm6029, %v9516, %v7487
        %v9581 = vsel %vm6029, %v9517, %v7489
        %v9582 = vsel %vm6029, %v9518, %v7491
        %v9583 = vsel %vm6029, %v9519, %v7493
        %v9584 = vsel %vm6029, %v9520, %v7495
        %v9585 = vsel %vm6029, %v9521, %v7497
        %v9586 = vsel %vm6029, %v9522, %v7499
        %v9587 = vsel %vm6029, %v9523, %v7501
        %v9588 = vsel %vm6029, %v9524, %v7503
        %v9589 = vsel %vm6029, %v9525, %v7505
        %v9590 = vsel %vm6029, %v9526, %v7507
        %v9591 = vsel %vm6029, %v9527, %v7509
        %v9592 = vsel %vm6029, %v9528, %v7511
        %v9593 = vsel %vm6029, %v9529, %v7513
        %v9594 = vsel %vm6029, %v9530, %v7515
        %v9595 = vsel %vm6029, %v9531, %v7517
        %v9596 = vsel %vm6029, %v9532, %v7519
        %v9597 = vsel %vm6029, %v9533, %v7521
        %v9598 = vsel %vm6029, %v9534, %v7523
        %v9599 = vsel %vm6029, %v9535, %v7525
        %v9600 = vsel %vm6029, %v9536, %v7527
        %v9601 = vsel %vm6029, %v9537, %v7529
        %v9602 = vsel %vm6029, %v9538, %v7531
        %v9603 = vsel %vm6029, %v9539, %v7533
        %v9604 = vsel %vm6029, %v9540, %v7535
        %v9605 = vsel %vm6029, %v9541, %v7537
        %v9606 = vsel %vm6029, %v9542, %v7539
        %v9607 = vsel %vm6029, %v9543, %v7541
        %v9608 = vsel %vm6029, %v9544, %v7543
        %v9609 = vsel %vm6029, %v9545, %v7545
        %v9610 = vsel %vm6029, %v9546, %v7547
        %v9611 = vsel %vm6029, %v9547, %v7549
        %v9612 = vsel %vm6029, %v9548, %v7551
        %v9613 = vsel %vm6029, %v9549, %v7553
        %v9614 = vsel %vm6029, %v9550, %v7555
        %v9615 = vsel %vm6029, %v9551, %v7557
        %v9616 = vsel %vm6029, %v9552, %v7559
        %v9617 = vsel %vm6029, %v9553, %v7561
        %v9618 = vsel %vm6029, %v9554, %v7563
        %v9619 = vsel %vm6029, %v9555, %v7565
        %v9620 = vsel %vm6029, %v9556, %v7567
        %v9621 = vsel %vm6029, %v9557, %v7569
        %v9622 = vsel %vm6029, %v9558, %v7571
        %v9623 = vsel %vm6029, %v9559, %v7573
        %v9624 = vsel %vm6029, %v9560, %v7575
        %v9625 = vsel %vm6029, %v9561, %v7577
        %v9626 = vsel %vm6094, %v9562, %v7707
        %v9627 = vsel %vm6094, %v9563, %v7709
        %v9628 = vsel %vm6094, %v9564, %v7711
        %v9629 = vsel %vm6094, %v9565, %v7713
        %v9630 = vsel %vm6094, %v9566, %v7715
        %v9631 = vsel %vm6094, %v9567, %v7717
        %v9632 = vsel %vm6094, %v9568, %v7719
        %v9633 = vsel %vm6094, %v9569, %v7721
        %v9634 = vsel %vm6094, %v9570, %v7723
        %v9635 = vsel %vm6094, %v9571, %v7725
        %v9636 = vsel %vm6094, %v9572, %v7727
        %v9637 = vsel %vm6094, %v9573, %v7729
        %v9638 = vsel %vm6094, %v9574, %v7731
        %v9639 = vsel %vm6094, %v9575, %v7733
        %v9640 = vsel %vm6094, %v9576, %v7735
        %v9641 = vsel %vm6094, %v9577, %v7737
        %v9642 = vsel %vm6094, %v9578, %v7739
        %v9643 = vsel %vm6094, %v9579, %v7741
        %v9644 = vsel %vm6094, %v9580, %v7743
        %v9645 = vsel %vm6094, %v9581, %v7745
        %v9646 = vsel %vm6094, %v9582, %v7747
        %v9647 = vsel %vm6094, %v9583, %v7749
        %v9648 = vsel %vm6094, %v9584, %v7751
        %v9649 = vsel %vm6094, %v9585, %v7753
        %v9650 = vsel %vm6094, %v9586, %v7755
        %v9651 = vsel %vm6094, %v9587, %v7757
        %v9652 = vsel %vm6094, %v9588, %v7759
        %v9653 = vsel %vm6094, %v9589, %v7761
        %v9654 = vsel %vm6094, %v9590, %v7763
        %v9655 = vsel %vm6094, %v9591, %v7765
        %v9656 = vsel %vm6094, %v9592, %v7767
        %v9657 = vsel %vm6094, %v9593, %v7769
        %v9658 = vsel %vm6094, %v9594, %v7771
        %v9659 = vsel %vm6094, %v9595, %v7773
        %v9660 = vsel %vm6094, %v9596, %v7775
        %v9661 = vsel %vm6094, %v9597, %v7777
        %v9662 = vsel %vm6094, %v9598, %v7779
        %v9663 = vsel %vm6094, %v9599, %v7781
        %v9664 = vsel %vm6094, %v9600, %v7783
        %v9665 = vsel %vm6094, %v9601, %v7785
        %v9666 = vsel %vm6094, %v9602, %v7787
        %v9667 = vsel %vm6094, %v9603, %v7789
        %v9668 = vsel %vm6094, %v9604, %v7791
        %v9669 = vsel %vm6094, %v9605, %v7793
        %v9670 = vsel %vm6094, %v9606, %v7795
        %v9671 = vsel %vm6094, %v9607, %v7797
        %v9672 = vsel %vm6094, %v9608, %v7799
        %v9673 = vsel %vm6094, %v9609, %v7801
        %v9674 = vsel %vm6094, %v9610, %v7803
        %v9675 = vsel %vm6094, %v9611, %v7805
        %v9676 = vsel %vm6094, %v9612, %v7807
        %v9677 = vsel %vm6094, %v9613, %v7809
        %v9678 = vsel %vm6094, %v9614, %v7811
        %v9679 = vsel %vm6094, %v9615, %v7813
        %v9680 = vsel %vm6094, %v9616, %v7815
        %v9681 = vsel %vm6094, %v9617, %v7817
        %v9682 = vsel %vm6094, %v9618, %v7819
        %v9683 = vsel %vm6094, %v9619, %v7821
        %v9684 = vsel %vm6094, %v9620, %v7823
        %v9685 = vsel %vm6094, %v9621, %v7825
        %v9686 = vsel %vm6094, %v9622, %v7827
        %v9687 = vsel %vm6094, %v9623, %v7829
        %v9688 = vsel %vm6094, %v9624, %v7831
        %v9689 = vsel %vm6094, %v9625, %v7833
        %v9690 = vsel %vm6159, %v9626, %v7963
        %v9691 = vsel %vm6159, %v9627, %v7965
        %v9692 = vsel %vm6159, %v9628, %v7967
        %v9693 = vsel %vm6159, %v9629, %v7969
        %v9694 = vsel %vm6159, %v9630, %v7971
        %v9695 = vsel %vm6159, %v9631, %v7973
        %v9696 = vsel %vm6159, %v9632, %v7975
        %v9697 = vsel %vm6159, %v9633, %v7977
        %v9698 = vsel %vm6159, %v9634, %v7979
        %v9699 = vsel %vm6159, %v9635, %v7981
        %v9700 = vsel %vm6159, %v9636, %v7983
        %v9701 = vsel %vm6159, %v9637, %v7985
        %v9702 = vsel %vm6159, %v9638, %v7987
        %v9703 = vsel %vm6159, %v9639, %v7989
        %v9704 = vsel %vm6159, %v9640, %v7991
        %v9705 = vsel %vm6159, %v9641, %v7993
        %v9706 = vsel %vm6159, %v9642, %v7995
        %v9707 = vsel %vm6159, %v9643, %v7997
        %v9708 = vsel %vm6159, %v9644, %v7999
        %v9709 = vsel %vm6159, %v9645, %v8001
        %v9710 = vsel %vm6159, %v9646, %v8003
        %v9711 = vsel %vm6159, %v9647, %v8005
        %v9712 = vsel %vm6159, %v9648, %v8007
        %v9713 = vsel %vm6159, %v9649, %v8009
        %v9714 = vsel %vm6159, %v9650, %v8011
        %v9715 = vsel %vm6159, %v9651, %v8013
        %v9716 = vsel %vm6159, %v9652, %v8015
        %v9717 = vsel %vm6159, %v9653, %v8017
        %v9718 = vsel %vm6159, %v9654, %v8019
        %v9719 = vsel %vm6159, %v9655, %v8021
        %v9720 = vsel %vm6159, %v9656, %v8023
        %v9721 = vsel %vm6159, %v9657, %v8025
        %v9722 = vsel %vm6159, %v9658, %v8027
        %v9723 = vsel %vm6159, %v9659, %v8029
        %v9724 = vsel %vm6159, %v9660, %v8031
        %v9725 = vsel %vm6159, %v9661, %v8033
        %v9726 = vsel %vm6159, %v9662, %v8035
        %v9727 = vsel %vm6159, %v9663, %v8037
        %v9728 = vsel %vm6159, %v9664, %v8039
        %v9729 = vsel %vm6159, %v9665, %v8041
        %v9730 = vsel %vm6159, %v9666, %v8043
        %v9731 = vsel %vm6159, %v9667, %v8045
        %v9732 = vsel %vm6159, %v9668, %v8047
        %v9733 = vsel %vm6159, %v9669, %v8049
        %v9734 = vsel %vm6159, %v9670, %v8051
        %v9735 = vsel %vm6159, %v9671, %v8053
        %v9736 = vsel %vm6159, %v9672, %v8055
        %v9737 = vsel %vm6159, %v9673, %v8057
        %v9738 = vsel %vm6159, %v9674, %v8059
        %v9739 = vsel %vm6159, %v9675, %v8061
        %v9740 = vsel %vm6159, %v9676, %v8063
        %v9741 = vsel %vm6159, %v9677, %v8065
        %v9742 = vsel %vm6159, %v9678, %v8067
        %v9743 = vsel %vm6159, %v9679, %v8069
        %v9744 = vsel %vm6159, %v9680, %v8071
        %v9745 = vsel %vm6159, %v9681, %v8073
        %v9746 = vsel %vm6159, %v9682, %v8075
        %v9747 = vsel %vm6159, %v9683, %v8077
        %v9748 = vsel %vm6159, %v9684, %v8079
        %v9749 = vsel %vm6159, %v9685, %v8081
        %v9750 = vsel %vm6159, %v9686, %v8083
        %v9751 = vsel %vm6159, %v9687, %v8085
        %v9752 = vsel %vm6159, %v9688, %v8087
        %v9753 = vsel %vm6159, %v9689, %v8089
        %v9754 = vsel %vm6224, %v9690, %v8219
        %v9755 = vsel %vm6224, %v9691, %v8221
        %v9756 = vsel %vm6224, %v9692, %v8223
        %v9757 = vsel %vm6224, %v9693, %v8225
        %v9758 = vsel %vm6224, %v9694, %v8227
        %v9759 = vsel %vm6224, %v9695, %v8229
        %v9760 = vsel %vm6224, %v9696, %v8231
        %v9761 = vsel %vm6224, %v9697, %v8233
        %v9762 = vsel %vm6224, %v9698, %v8235
        %v9763 = vsel %vm6224, %v9699, %v8237
        %v9764 = vsel %vm6224, %v9700, %v8239
        %v9765 = vsel %vm6224, %v9701, %v8241
        %v9766 = vsel %vm6224, %v9702, %v8243
        %v9767 = vsel %vm6224, %v9703, %v8245
        %v9768 = vsel %vm6224, %v9704, %v8247
        %v9769 = vsel %vm6224, %v9705, %v8249
        %v9770 = vsel %vm6224, %v9706, %v8251
        %v9771 = vsel %vm6224, %v9707, %v8253
        %v9772 = vsel %vm6224, %v9708, %v8255
        %v9773 = vsel %vm6224, %v9709, %v8257
        %v9774 = vsel %vm6224, %v9710, %v8259
        %v9775 = vsel %vm6224, %v9711, %v8261
        %v9776 = vsel %vm6224, %v9712, %v8263
        %v9777 = vsel %vm6224, %v9713, %v8265
        %v9778 = vsel %vm6224, %v9714, %v8267
        %v9779 = vsel %vm6224, %v9715, %v8269
        %v9780 = vsel %vm6224, %v9716, %v8271
        %v9781 = vsel %vm6224, %v9717, %v8273
        %v9782 = vsel %vm6224, %v9718, %v8275
        %v9783 = vsel %vm6224, %v9719, %v8277
        %v9784 = vsel %vm6224, %v9720, %v8279
        %v9785 = vsel %vm6224, %v9721, %v8281
        %v9786 = vsel %vm6224, %v9722, %v8283
        %v9787 = vsel %vm6224, %v9723, %v8285
        %v9788 = vsel %vm6224, %v9724, %v8287
        %v9789 = vsel %vm6224, %v9725, %v8289
        %v9790 = vsel %vm6224, %v9726, %v8291
        %v9791 = vsel %vm6224, %v9727, %v8293
        %v9792 = vsel %vm6224, %v9728, %v8295
        %v9793 = vsel %vm6224, %v9729, %v8297
        %v9794 = vsel %vm6224, %v9730, %v8299
        %v9795 = vsel %vm6224, %v9731, %v8301
        %v9796 = vsel %vm6224, %v9732, %v8303
        %v9797 = vsel %vm6224, %v9733, %v8305
        %v9798 = vsel %vm6224, %v9734, %v8307
        %v9799 = vsel %vm6224, %v9735, %v8309
        %v9800 = vsel %vm6224, %v9736, %v8311
        %v9801 = vsel %vm6224, %v9737, %v8313
        %v9802 = vsel %vm6224, %v9738, %v8315
        %v9803 = vsel %vm6224, %v9739, %v8317
        %v9804 = vsel %vm6224, %v9740, %v8319
        %v9805 = vsel %vm6224, %v9741, %v8321
        %v9806 = vsel %vm6224, %v9742, %v8323
        %v9807 = vsel %vm6224, %v9743, %v8325
        %v9808 = vsel %vm6224, %v9744, %v8327
        %v9809 = vsel %vm6224, %v9745, %v8329
        %v9810 = vsel %vm6224, %v9746, %v8331
        %v9811 = vsel %vm6224, %v9747, %v8333
        %v9812 = vsel %vm6224, %v9748, %v8335
        %v9813 = vsel %vm6224, %v9749, %v8337
        %v9814 = vsel %vm6224, %v9750, %v8339
        %v9815 = vsel %vm6224, %v9751, %v8341
        %v9816 = vsel %vm6224, %v9752, %v8343
        %v9817 = vsel %vm6224, %v9753, %v8345
        %v9818 = vsel %vm6289, %v9754, %v8475
        %v9819 = vsel %vm6289, %v9755, %v8477
        %v9820 = vsel %vm6289, %v9756, %v8479
        %v9821 = vsel %vm6289, %v9757, %v8481
        %v9822 = vsel %vm6289, %v9758, %v8483
        %v9823 = vsel %vm6289, %v9759, %v8485
        %v9824 = vsel %vm6289, %v9760, %v8487
        %v9825 = vsel %vm6289, %v9761, %v8489
        %v9826 = vsel %vm6289, %v9762, %v8491
        %v9827 = vsel %vm6289, %v9763, %v8493
        %v9828 = vsel %vm6289, %v9764, %v8495
        %v9829 = vsel %vm6289, %v9765, %v8497
        %v9830 = vsel %vm6289, %v9766, %v8499
        %v9831 = vsel %vm6289, %v9767, %v8501
        %v9832 = vsel %vm6289, %v9768, %v8503
        %v9833 = vsel %vm6289, %v9769, %v8505
        %v9834 = vsel %vm6289, %v9770, %v8507
        %v9835 = vsel %vm6289, %v9771, %v8509
        %v9836 = vsel %vm6289, %v9772, %v8511
        %v9837 = vsel %vm6289, %v9773, %v8513
        %v9838 = vsel %vm6289, %v9774, %v8515
        %v9839 = vsel %vm6289, %v9775, %v8517
        %v9840 = vsel %vm6289, %v9776, %v8519
        %v9841 = vsel %vm6289, %v9777, %v8521
        %v9842 = vsel %vm6289, %v9778, %v8523
        %v9843 = vsel %vm6289, %v9779, %v8525
        %v9844 = vsel %vm6289, %v9780, %v8527
        %v9845 = vsel %vm6289, %v9781, %v8529
        %v9846 = vsel %vm6289, %v9782, %v8531
        %v9847 = vsel %vm6289, %v9783, %v8533
        %v9848 = vsel %vm6289, %v9784, %v8535
        %v9849 = vsel %vm6289, %v9785, %v8537
        %v9850 = vsel %vm6289, %v9786, %v8539
        %v9851 = vsel %vm6289, %v9787, %v8541
        %v9852 = vsel %vm6289, %v9788, %v8543
        %v9853 = vsel %vm6289, %v9789, %v8545
        %v9854 = vsel %vm6289, %v9790, %v8547
        %v9855 = vsel %vm6289, %v9791, %v8549
        %v9856 = vsel %vm6289, %v9792, %v8551
        %v9857 = vsel %vm6289, %v9793, %v8553
        %v9858 = vsel %vm6289, %v9794, %v8555
        %v9859 = vsel %vm6289, %v9795, %v8557
        %v9860 = vsel %vm6289, %v9796, %v8559
        %v9861 = vsel %vm6289, %v9797, %v8561
        %v9862 = vsel %vm6289, %v9798, %v8563
        %v9863 = vsel %vm6289, %v9799, %v8565
        %v9864 = vsel %vm6289, %v9800, %v8567
        %v9865 = vsel %vm6289, %v9801, %v8569
        %v9866 = vsel %vm6289, %v9802, %v8571
        %v9867 = vsel %vm6289, %v9803, %v8573
        %v9868 = vsel %vm6289, %v9804, %v8575
        %v9869 = vsel %vm6289, %v9805, %v8577
        %v9870 = vsel %vm6289, %v9806, %v8579
        %v9871 = vsel %vm6289, %v9807, %v8581
        %v9872 = vsel %vm6289, %v9808, %v8583
        %v9873 = vsel %vm6289, %v9809, %v8585
        %v9874 = vsel %vm6289, %v9810, %v8587
        %v9875 = vsel %vm6289, %v9811, %v8589
        %v9876 = vsel %vm6289, %v9812, %v8591
        %v9877 = vsel %vm6289, %v9813, %v8593
        %v9878 = vsel %vm6289, %v9814, %v8595
        %v9879 = vsel %vm6289, %v9815, %v8597
        %v9880 = vsel %vm6289, %v9816, %v8599
        %v9881 = vsel %vm6289, %v9817, %v8601
        %v9882 = vsel %vm6354, %v9818, %v8731
        %v9883 = vsel %vm6354, %v9819, %v8733
        %v9884 = vsel %vm6354, %v9820, %v8735
        %v9885 = vsel %vm6354, %v9821, %v8737
        %v9886 = vsel %vm6354, %v9822, %v8739
        %v9887 = vsel %vm6354, %v9823, %v8741
        %v9888 = vsel %vm6354, %v9824, %v8743
        %v9889 = vsel %vm6354, %v9825, %v8745
        %v9890 = vsel %vm6354, %v9826, %v8747
        %v9891 = vsel %vm6354, %v9827, %v8749
        %v9892 = vsel %vm6354, %v9828, %v8751
        %v9893 = vsel %vm6354, %v9829, %v8753
        %v9894 = vsel %vm6354, %v9830, %v8755
        %v9895 = vsel %vm6354, %v9831, %v8757
        %v9896 = vsel %vm6354, %v9832, %v8759
        %v9897 = vsel %vm6354, %v9833, %v8761
        %v9898 = vsel %vm6354, %v9834, %v8763
        %v9899 = vsel %vm6354, %v9835, %v8765
        %v9900 = vsel %vm6354, %v9836, %v8767
        %v9901 = vsel %vm6354, %v9837, %v8769
        %v9902 = vsel %vm6354, %v9838, %v8771
        %v9903 = vsel %vm6354, %v9839, %v8773
        %v9904 = vsel %vm6354, %v9840, %v8775
        %v9905 = vsel %vm6354, %v9841, %v8777
        %v9906 = vsel %vm6354, %v9842, %v8779
        %v9907 = vsel %vm6354, %v9843, %v8781
        %v9908 = vsel %vm6354, %v9844, %v8783
        %v9909 = vsel %vm6354, %v9845, %v8785
        %v9910 = vsel %vm6354, %v9846, %v8787
        %v9911 = vsel %vm6354, %v9847, %v8789
        %v9912 = vsel %vm6354, %v9848, %v8791
        %v9913 = vsel %vm6354, %v9849, %v8793
        %v9914 = vsel %vm6354, %v9850, %v8795
        %v9915 = vsel %vm6354, %v9851, %v8797
        %v9916 = vsel %vm6354, %v9852, %v8799
        %v9917 = vsel %vm6354, %v9853, %v8801
        %v9918 = vsel %vm6354, %v9854, %v8803
        %v9919 = vsel %vm6354, %v9855, %v8805
        %v9920 = vsel %vm6354, %v9856, %v8807
        %v9921 = vsel %vm6354, %v9857, %v8809
        %v9922 = vsel %vm6354, %v9858, %v8811
        %v9923 = vsel %vm6354, %v9859, %v8813
        %v9924 = vsel %vm6354, %v9860, %v8815
        %v9925 = vsel %vm6354, %v9861, %v8817
        %v9926 = vsel %vm6354, %v9862, %v8819
        %v9927 = vsel %vm6354, %v9863, %v8821
        %v9928 = vsel %vm6354, %v9864, %v8823
        %v9929 = vsel %vm6354, %v9865, %v8825
        %v9930 = vsel %vm6354, %v9866, %v8827
        %v9931 = vsel %vm6354, %v9867, %v8829
        %v9932 = vsel %vm6354, %v9868, %v8831
        %v9933 = vsel %vm6354, %v9869, %v8833
        %v9934 = vsel %vm6354, %v9870, %v8835
        %v9935 = vsel %vm6354, %v9871, %v8837
        %v9936 = vsel %vm6354, %v9872, %v8839
        %v9937 = vsel %vm6354, %v9873, %v8841
        %v9938 = vsel %vm6354, %v9874, %v8843
        %v9939 = vsel %vm6354, %v9875, %v8845
        %v9940 = vsel %vm6354, %v9876, %v8847
        %v9941 = vsel %vm6354, %v9877, %v8849
        %v9942 = vsel %vm6354, %v9878, %v8851
        %v9943 = vsel %vm6354, %v9879, %v8853
        %v9944 = vsel %vm6354, %v9880, %v8855
        %v9945 = vsel %vm6354, %v9881, %v8857
        %v9946 = vsel %vm6419, %v9882, %v8987
        %v9947 = vsel %vm6419, %v9883, %v8989
        %v9948 = vsel %vm6419, %v9884, %v8991
        %v9949 = vsel %vm6419, %v9885, %v8993
        %v9950 = vsel %vm6419, %v9886, %v8995
        %v9951 = vsel %vm6419, %v9887, %v8997
        %v9952 = vsel %vm6419, %v9888, %v8999
        %v9953 = vsel %vm6419, %v9889, %v9001
        %v9954 = vsel %vm6419, %v9890, %v9003
        %v9955 = vsel %vm6419, %v9891, %v9005
        %v9956 = vsel %vm6419, %v9892, %v9007
        %v9957 = vsel %vm6419, %v9893, %v9009
        %v9958 = vsel %vm6419, %v9894, %v9011
        %v9959 = vsel %vm6419, %v9895, %v9013
        %v9960 = vsel %vm6419, %v9896, %v9015
        %v9961 = vsel %vm6419, %v9897, %v9017
        %v9962 = vsel %vm6419, %v9898, %v9019
        %v9963 = vsel %vm6419, %v9899, %v9021
        %v9964 = vsel %vm6419, %v9900, %v9023
        %v9965 = vsel %vm6419, %v9901, %v9025
        %v9966 = vsel %vm6419, %v9902, %v9027
        %v9967 = vsel %vm6419, %v9903, %v9029
        %v9968 = vsel %vm6419, %v9904, %v9031
        %v9969 = vsel %vm6419, %v9905, %v9033
        %v9970 = vsel %vm6419, %v9906, %v9035
        %v9971 = vsel %vm6419, %v9907, %v9037
        %v9972 = vsel %vm6419, %v9908, %v9039
        %v9973 = vsel %vm6419, %v9909, %v9041
        %v9974 = vsel %vm6419, %v9910, %v9043
        %v9975 = vsel %vm6419, %v9911, %v9045
        %v9976 = vsel %vm6419, %v9912, %v9047
        %v9977 = vsel %vm6419, %v9913, %v9049
        %v9978 = vsel %vm6419, %v9914, %v9051
        %v9979 = vsel %vm6419, %v9915, %v9053
        %v9980 = vsel %vm6419, %v9916, %v9055
        %v9981 = vsel %vm6419, %v9917, %v9057
        %v9982 = vsel %vm6419, %v9918, %v9059
        %v9983 = vsel %vm6419, %v9919, %v9061
        %v9984 = vsel %vm6419, %v9920, %v9063
        %v9985 = vsel %vm6419, %v9921, %v9065
        %v9986 = vsel %vm6419, %v9922, %v9067
        %v9987 = vsel %vm6419, %v9923, %v9069
        %v9988 = vsel %vm6419, %v9924, %v9071
        %v9989 = vsel %vm6419, %v9925, %v9073
        %v9990 = vsel %vm6419, %v9926, %v9075
        %v9991 = vsel %vm6419, %v9927, %v9077
        %v9992 = vsel %vm6419, %v9928, %v9079
        %v9993 = vsel %vm6419, %v9929, %v9081
        %v9994 = vsel %vm6419, %v9930, %v9083
        %v9995 = vsel %vm6419, %v9931, %v9085
        %v9996 = vsel %vm6419, %v9932, %v9087
        %v9997 = vsel %vm6419, %v9933, %v9089
        %v9998 = vsel %vm6419, %v9934, %v9091
        %v9999 = vsel %vm6419, %v9935, %v9093
        %v10000 = vsel %vm6419, %v9936, %v9095
        %v10001 = vsel %vm6419, %v9937, %v9097
        %v10002 = vsel %vm6419, %v9938, %v9099
        %v10003 = vsel %vm6419, %v9939, %v9101
        %v10004 = vsel %vm6419, %v9940, %v9103
        %v10005 = vsel %vm6419, %v9941, %v9105
        %v10006 = vsel %vm6419, %v9942, %v9107
        %v10007 = vsel %vm6419, %v9943, %v9109
        %v10008 = vsel %vm6419, %v9944, %v9111
        %v10009 = vsel %vm6419, %v9945, %v9113
        %v10010 = vsel %vm6484, %v9946, %v9243
        %v10011 = vsel %vm6484, %v9947, %v9245
        %v10012 = vsel %vm6484, %v9948, %v9247
        %v10013 = vsel %vm6484, %v9949, %v9249
        %v10014 = vsel %vm6484, %v9950, %v9251
        %v10015 = vsel %vm6484, %v9951, %v9253
        %v10016 = vsel %vm6484, %v9952, %v9255
        %v10017 = vsel %vm6484, %v9953, %v9257
        %v10018 = vsel %vm6484, %v9954, %v9259
        %v10019 = vsel %vm6484, %v9955, %v9261
        %v10020 = vsel %vm6484, %v9956, %v9263
        %v10021 = vsel %vm6484, %v9957, %v9265
        %v10022 = vsel %vm6484, %v9958, %v9267
        %v10023 = vsel %vm6484, %v9959, %v9269
        %v10024 = vsel %vm6484, %v9960, %v9271
        %v10025 = vsel %vm6484, %v9961, %v9273
        %v10026 = vsel %vm6484, %v9962, %v9275
        %v10027 = vsel %vm6484, %v9963, %v9277
        %v10028 = vsel %vm6484, %v9964, %v9279
        %v10029 = vsel %vm6484, %v9965, %v9281
        %v10030 = vsel %vm6484, %v9966, %v9283
        %v10031 = vsel %vm6484, %v9967, %v9285
        %v10032 = vsel %vm6484, %v9968, %v9287
        %v10033 = vsel %vm6484, %v9969, %v9289
        %v10034 = vsel %vm6484, %v9970, %v9291
        %v10035 = vsel %vm6484, %v9971, %v9293
        %v10036 = vsel %vm6484, %v9972, %v9295
        %v10037 = vsel %vm6484, %v9973, %v9297
        %v10038 = vsel %vm6484, %v9974, %v9299
        %v10039 = vsel %vm6484, %v9975, %v9301
        %v10040 = vsel %vm6484, %v9976, %v9303
        %v10041 = vsel %vm6484, %v9977, %v9305
        %v10042 = vsel %vm6484, %v9978, %v9307
        %v10043 = vsel %vm6484, %v9979, %v9309
        %v10044 = vsel %vm6484, %v9980, %v9311
        %v10045 = vsel %vm6484, %v9981, %v9313
        %v10046 = vsel %vm6484, %v9982, %v9315
        %v10047 = vsel %vm6484, %v9983, %v9317
        %v10048 = vsel %vm6484, %v9984, %v9319
        %v10049 = vsel %vm6484, %v9985, %v9321
        %v10050 = vsel %vm6484, %v9986, %v9323
        %v10051 = vsel %vm6484, %v9987, %v9325
        %v10052 = vsel %vm6484, %v9988, %v9327
        %v10053 = vsel %vm6484, %v9989, %v9329
        %v10054 = vsel %vm6484, %v9990, %v9331
        %v10055 = vsel %vm6484, %v9991, %v9333
        %v10056 = vsel %vm6484, %v9992, %v9335
        %v10057 = vsel %vm6484, %v9993, %v9337
        %v10058 = vsel %vm6484, %v9994, %v9339
        %v10059 = vsel %vm6484, %v9995, %v9341
        %v10060 = vsel %vm6484, %v9996, %v9343
        %v10061 = vsel %vm6484, %v9997, %v9345
        %v10062 = vsel %vm6484, %v9998, %v9347
        %v10063 = vsel %vm6484, %v9999, %v9349
        %v10064 = vsel %vm6484, %v10000, %v9351
        %v10065 = vsel %vm6484, %v10001, %v9353
        %v10066 = vsel %vm6484, %v10002, %v9355
        %v10067 = vsel %vm6484, %v10003, %v9357
        %v10068 = vsel %vm6484, %v10004, %v9359
        %v10069 = vsel %vm6484, %v10005, %v9361
        %v10070 = vsel %vm6484, %v10006, %v9363
        %v10071 = vsel %vm6484, %v10007, %v9365
        %v10072 = vsel %vm6484, %v10008, %v9367
        %v10073 = vsel %vm6484, %v10009, %v9369
        %v10074 = vsel %vm6549, %v10010, 0.0
        %v10075 = vsel %vm6549, %v10011, 0.0
        %v10076 = vsel %vm6549, %v10012, 0.0
        %v10077 = vsel %vm6549, %v10013, 0.0
        %v10078 = vsel %vm6549, %v10014, 0.0
        %v10079 = vsel %vm6549, %v10015, 0.0
        %v10080 = vsel %vm6549, %v10016, 0.0
        %v10081 = vsel %vm6549, %v10017, 0.0
        %v10082 = vsel %vm6549, %v10018, 0.0
        %v10083 = vsel %vm6549, %v10019, 0.0
        %v10084 = vsel %vm6549, %v10020, 0.0
        %v10085 = vsel %vm6549, %v10021, 0.0
        %v10086 = vsel %vm6549, %v10022, 0.0
        %v10087 = vsel %vm6549, %v10023, 0.0
        %v10088 = vsel %vm6549, %v10024, 0.0
        %v10089 = vsel %vm6549, %v10025, 0.0
        %v10090 = vsel %vm6549, %v10026, 0.0
        %v10091 = vsel %vm6549, %v10027, 0.0
        %v10092 = vsel %vm6549, %v10028, 0.0
        %v10093 = vsel %vm6549, %v10029, 0.0
        %v10094 = vsel %vm6549, %v10030, 0.0
        %v10095 = vsel %vm6549, %v10031, 0.0
        %v10096 = vsel %vm6549, %v10032, 0.0
        %v10097 = vsel %vm6549, %v10033, 0.0
        %v10098 = vsel %vm6549, %v10034, 0.0
        %v10099 = vsel %vm6549, %v10035, 0.0
        %v10100 = vsel %vm6549, %v10036, 0.0
        %v10101 = vsel %vm6549, %v10037, 0.0
        %v10102 = vsel %vm6549, %v10038, 0.0
        %v10103 = vsel %vm6549, %v10039, 0.0
        %v10104 = vsel %vm6549, %v10040, 0.0
        %v10105 = vsel %vm6549, %v10041, 0.0
        %v10106 = vsel %vm6549, %v10042, 0.0
        %v10107 = vsel %vm6549, %v10043, 0.0
        %v10108 = vsel %vm6549, %v10044, 0.0
        %v10109 = vsel %vm6549, %v10045, 0.0
        %v10110 = vsel %vm6549, %v10046, 0.0
        %v10111 = vsel %vm6549, %v10047, 0.0
        %v10112 = vsel %vm6549, %v10048, 0.0
        %v10113 = vsel %vm6549, %v10049, 0.0
        %v10114 = vsel %vm6549, %v10050, 0.0
        %v10115 = vsel %vm6549, %v10051, 0.0
        %v10116 = vsel %vm6549, %v10052, 0.0
        %v10117 = vsel %vm6549, %v10053, 0.0
        %v10118 = vsel %vm6549, %v10054, 0.0
        %v10119 = vsel %vm6549, %v10055, 0.0
        %v10120 = vsel %vm6549, %v10056, 0.0
        %v10121 = vsel %vm6549, %v10057, 0.0
        %v10122 = vsel %vm6549, %v10058, 0.0
        %v10123 = vsel %vm6549, %v10059, 0.0
        %v10124 = vsel %vm6549, %v10060, 0.0
        %v10125 = vsel %vm6549, %v10061, 0.0
        %v10126 = vsel %vm6549, %v10062, 0.0
        %v10127 = vsel %vm6549, %v10063, 0.0
        %v10128 = vsel %vm6549, %v10064, 0.0
        %v10129 = vsel %vm6549, %v10065, 0.0
        %v10130 = vsel %vm6549, %v10066, 0.0
        %v10131 = vsel %vm6549, %v10067, 0.0
        %v10132 = vsel %vm6549, %v10068, 0.0
        %v10133 = vsel %vm6549, %v10069, 0.0
        %v10134 = vsel %vm6549, %v10070, 0.0
        %v10135 = vsel %vm6549, %v10071, 0.0
        %v10136 = vsel %vm6549, %v10072, 0.0
        %v10137 = vsel %vm6549, %v10073, 0.0
        %10202 = vrot.lane.b32.xlu0 %v10074, 64
        %v10203 = vpop.permute.xlu0 %10202
        %10204 = vrot.lane.b32.xlu0 %v10075, 64
        %v10205 = vpop.permute.xlu0 %10204
        %10206 = vrot.lane.b32.xlu0 %v10076, 64
        %v10207 = vpop.permute.xlu0 %10206
        %10208 = vrot.lane.b32.xlu0 %v10077, 64
        %v10209 = vpop.permute.xlu0 %10208
        %10210 = vrot.lane.b32.xlu0 %v10078, 64
        %v10211 = vpop.permute.xlu0 %10210
        %10212 = vrot.lane.b32.xlu0 %v10079, 64
        %v10213 = vpop.permute.xlu0 %10212
        %10214 = vrot.lane.b32.xlu0 %v10080, 64
        %v10215 = vpop.permute.xlu0 %10214
        %10216 = vrot.lane.b32.xlu0 %v10081, 64
        %v10217 = vpop.permute.xlu0 %10216
        %10218 = vrot.lane.b32.xlu0 %v10082, 64
        %v10219 = vpop.permute.xlu0 %10218
        %10220 = vrot.lane.b32.xlu0 %v10083, 64
        %v10221 = vpop.permute.xlu0 %10220
        %10222 = vrot.lane.b32.xlu0 %v10084, 64
        %v10223 = vpop.permute.xlu0 %10222
        %10224 = vrot.lane.b32.xlu0 %v10085, 64
        %v10225 = vpop.permute.xlu0 %10224
        %10226 = vrot.lane.b32.xlu0 %v10086, 64
        %v10227 = vpop.permute.xlu0 %10226
        %10228 = vrot.lane.b32.xlu0 %v10087, 64
        %v10229 = vpop.permute.xlu0 %10228
        %10230 = vrot.lane.b32.xlu0 %v10088, 64
        %v10231 = vpop.permute.xlu0 %10230
        %10232 = vrot.lane.b32.xlu0 %v10089, 64
        %v10233 = vpop.permute.xlu0 %10232
        %10234 = vrot.lane.b32.xlu0 %v10090, 64
        %v10235 = vpop.permute.xlu0 %10234
        %10236 = vrot.lane.b32.xlu0 %v10091, 64
        %v10237 = vpop.permute.xlu0 %10236
        %10238 = vrot.lane.b32.xlu0 %v10092, 64
        %v10239 = vpop.permute.xlu0 %10238
        %10240 = vrot.lane.b32.xlu0 %v10093, 64
        %v10241 = vpop.permute.xlu0 %10240
        %10242 = vrot.lane.b32.xlu0 %v10094, 64
        %v10243 = vpop.permute.xlu0 %10242
        %10244 = vrot.lane.b32.xlu0 %v10095, 64
        %v10245 = vpop.permute.xlu0 %10244
        %10246 = vrot.lane.b32.xlu0 %v10096, 64
        %v10247 = vpop.permute.xlu0 %10246
        %10248 = vrot.lane.b32.xlu0 %v10097, 64
        %v10249 = vpop.permute.xlu0 %10248
        %10250 = vrot.lane.b32.xlu0 %v10098, 64
        %v10251 = vpop.permute.xlu0 %10250
        %10252 = vrot.lane.b32.xlu0 %v10099, 64
        %v10253 = vpop.permute.xlu0 %10252
        %10254 = vrot.lane.b32.xlu0 %v10100, 64
        %v10255 = vpop.permute.xlu0 %10254
        %10256 = vrot.lane.b32.xlu0 %v10101, 64
        %v10257 = vpop.permute.xlu0 %10256
        %10258 = vrot.lane.b32.xlu0 %v10102, 64
        %v10259 = vpop.permute.xlu0 %10258
        %10260 = vrot.lane.b32.xlu0 %v10103, 64
        %v10261 = vpop.permute.xlu0 %10260
        %10262 = vrot.lane.b32.xlu0 %v10104, 64
        %v10263 = vpop.permute.xlu0 %10262
        %10264 = vrot.lane.b32.xlu0 %v10105, 64
        %v10265 = vpop.permute.xlu0 %10264
        %10266 = vrot.lane.b32.xlu0 %v10106, 64
        %v10267 = vpop.permute.xlu0 %10266
        %10268 = vrot.lane.b32.xlu0 %v10107, 64
        %v10269 = vpop.permute.xlu0 %10268
        %10270 = vrot.lane.b32.xlu0 %v10108, 64
        %v10271 = vpop.permute.xlu0 %10270
        %10272 = vrot.lane.b32.xlu0 %v10109, 64
        %v10273 = vpop.permute.xlu0 %10272
        %10274 = vrot.lane.b32.xlu0 %v10110, 64
        %v10275 = vpop.permute.xlu0 %10274
        %10276 = vrot.lane.b32.xlu0 %v10111, 64
        %v10277 = vpop.permute.xlu0 %10276
        %10278 = vrot.lane.b32.xlu0 %v10112, 64
        %v10279 = vpop.permute.xlu0 %10278
        %10280 = vrot.lane.b32.xlu0 %v10113, 64
        %v10281 = vpop.permute.xlu0 %10280
        %10282 = vrot.lane.b32.xlu0 %v10114, 64
        %v10283 = vpop.permute.xlu0 %10282
        %10284 = vrot.lane.b32.xlu0 %v10115, 64
        %v10285 = vpop.permute.xlu0 %10284
        %10286 = vrot.lane.b32.xlu0 %v10116, 64
        %v10287 = vpop.permute.xlu0 %10286
        %10288 = vrot.lane.b32.xlu0 %v10117, 64
        %v10289 = vpop.permute.xlu0 %10288
        %10290 = vrot.lane.b32.xlu0 %v10118, 64
        %v10291 = vpop.permute.xlu0 %10290
        %10292 = vrot.lane.b32.xlu0 %v10119, 64
        %v10293 = vpop.permute.xlu0 %10292
        %10294 = vrot.lane.b32.xlu0 %v10120, 64
        %v10295 = vpop.permute.xlu0 %10294
        %10296 = vrot.lane.b32.xlu0 %v10121, 64
        %v10297 = vpop.permute.xlu0 %10296
        %10298 = vrot.lane.b32.xlu0 %v10122, 64
        %v10299 = vpop.permute.xlu0 %10298
        %10300 = vrot.lane.b32.xlu0 %v10123, 64
        %v10301 = vpop.permute.xlu0 %10300
        %10302 = vrot.lane.b32.xlu0 %v10124, 64
        %v10303 = vpop.permute.xlu0 %10302
        %10304 = vrot.lane.b32.xlu0 %v10125, 64
        %v10305 = vpop.permute.xlu0 %10304
        %10306 = vrot.lane.b32.xlu0 %v10126, 64
        %v10307 = vpop.permute.xlu0 %10306
        %10308 = vrot.lane.b32.xlu0 %v10127, 64
        %v10309 = vpop.permute.xlu0 %10308
        %10310 = vrot.lane.b32.xlu0 %v10128, 64
        %v10311 = vpop.permute.xlu0 %10310
        %10312 = vrot.lane.b32.xlu0 %v10129, 64
        %v10313 = vpop.permute.xlu0 %10312
        %10314 = vrot.lane.b32.xlu0 %v10130, 64
        %v10315 = vpop.permute.xlu0 %10314
        %10316 = vrot.lane.b32.xlu0 %v10131, 64
        %v10317 = vpop.permute.xlu0 %10316
        %10318 = vrot.lane.b32.xlu0 %v10132, 64
        %v10319 = vpop.permute.xlu0 %10318
        %10320 = vrot.lane.b32.xlu0 %v10133, 64
        %v10321 = vpop.permute.xlu0 %10320
        %10322 = vrot.lane.b32.xlu0 %v10134, 64
        %v10323 = vpop.permute.xlu0 %10322
        %10324 = vrot.lane.b32.xlu0 %v10135, 64
        %v10325 = vpop.permute.xlu0 %10324
        %10326 = vrot.lane.b32.xlu0 %v10136, 64
        %v10327 = vpop.permute.xlu0 %10326
        %10328 = vrot.lane.b32.xlu0 %v10137, 64
        %v10329 = vpop.permute.xlu0 %10328
        %vm10394 = vcmask 523264
        %v10395 = vsel %vm10394, %v6810, %v10203
        %v10396 = vsel %vm10394, %v6811, %v10205
        %v10397 = vsel %vm10394, %v6812, %v10207
        %v10398 = vsel %vm10394, %v6813, %v10209
        %v10399 = vsel %vm10394, %v6814, %v10211
        %v10400 = vsel %vm10394, %v6815, %v10213
        %v10401 = vsel %vm10394, %v6816, %v10215
        %v10402 = vsel %vm10394, %v6817, %v10217
        %v10403 = vsel %vm10394, %v6818, %v10219
        %v10404 = vsel %vm10394, %v6819, %v10221
        %v10405 = vsel %vm10394, %v6820, %v10223
        %v10406 = vsel %vm10394, %v6821, %v10225
        %v10407 = vsel %vm10394, %v6822, %v10227
        %v10408 = vsel %vm10394, %v6823, %v10229
        %v10409 = vsel %vm10394, %v6824, %v10231
        %v10410 = vsel %vm10394, %v6825, %v10233
        %v10411 = vsel %vm10394, %v6826, %v10235
        %v10412 = vsel %vm10394, %v6827, %v10237
        %v10413 = vsel %vm10394, %v6828, %v10239
        %v10414 = vsel %vm10394, %v6829, %v10241
        %v10415 = vsel %vm10394, %v6830, %v10243
        %v10416 = vsel %vm10394, %v6831, %v10245
        %v10417 = vsel %vm10394, %v6832, %v10247
        %v10418 = vsel %vm10394, %v6833, %v10249
        %v10419 = vsel %vm10394, %v6834, %v10251
        %v10420 = vsel %vm10394, %v6835, %v10253
        %v10421 = vsel %vm10394, %v6836, %v10255
        %v10422 = vsel %vm10394, %v6837, %v10257
        %v10423 = vsel %vm10394, %v6838, %v10259
        %v10424 = vsel %vm10394, %v6839, %v10261
        %v10425 = vsel %vm10394, %v6840, %v10263
        %v10426 = vsel %vm10394, %v6841, %v10265
        %v10427 = vsel %vm10394, %v6842, %v10267
        %v10428 = vsel %vm10394, %v6843, %v10269
        %v10429 = vsel %vm10394, %v6844, %v10271
        %v10430 = vsel %vm10394, %v6845, %v10273
        %v10431 = vsel %vm10394, %v6846, %v10275
        %v10432 = vsel %vm10394, %v6847, %v10277
        %v10433 = vsel %vm10394, %v6848, %v10279
        %v10434 = vsel %vm10394, %v6849, %v10281
        %v10435 = vsel %vm10394, %v6850, %v10283
        %v10436 = vsel %vm10394, %v6851, %v10285
        %v10437 = vsel %vm10394, %v6852, %v10287
        %v10438 = vsel %vm10394, %v6853, %v10289
        %v10439 = vsel %vm10394, %v6854, %v10291
        %v10440 = vsel %vm10394, %v6855, %v10293
        %v10441 = vsel %vm10394, %v6856, %v10295
        %v10442 = vsel %vm10394, %v6857, %v10297
        %v10443 = vsel %vm10394, %v6858, %v10299
        %v10444 = vsel %vm10394, %v6859, %v10301
        %v10445 = vsel %vm10394, %v6860, %v10303
        %v10446 = vsel %vm10394, %v6861, %v10305
        %v10447 = vsel %vm10394, %v6862, %v10307
        %v10448 = vsel %vm10394, %v6863, %v10309
        %v10449 = vsel %vm10394, %v6864, %v10311
        %v10450 = vsel %vm10394, %v6865, %v10313
        %v10451 = vsel %vm10394, %v6866, %v10315
        %v10452 = vsel %vm10394, %v6867, %v10317
        %v10453 = vsel %vm10394, %v6868, %v10319
        %v10454 = vsel %vm10394, %v6869, %v10321
        %v10455 = vsel %vm10394, %v6870, %v10323
        %v10456 = vsel %vm10394, %v6871, %v10325
        %v10457 = vsel %vm10394, %v6872, %v10327
        %v10458 = vsel %vm10394, %v6873, %v10329
        %v10459 = vld [vmem:[#allocation7] sm:$0xff]
        %v10460 = vld [vmem:[#allocation7 + $0x8] sm:$0xff]
        %v10461 = vld [vmem:[#allocation7 + $0x10] sm:$0xff]
        %v10462 = vld [vmem:[#allocation7 + $0x18] sm:$0xff]
        %v10463 = vld [vmem:[#allocation7 + $0x20] sm:$0xff]
        %v10464 = vld [vmem:[#allocation7 + $0x28] sm:$0xff]
        %v10465 = vld [vmem:[#allocation7 + $0x30] sm:$0xff]
        %v10466 = vld [vmem:[#allocation7 + $0x38] sm:$0xff]
        %v10467 = vld [vmem:[#allocation7 + $0x40] sm:$0xff]
        %v10468 = vld [vmem:[#allocation7 + $0x48] sm:$0xff]
        %v10469 = vld [vmem:[#allocation7 + $0x50] sm:$0xff]
        %v10470 = vld [vmem:[#allocation7 + $0x58] sm:$0xff]
        %v10471 = vld [vmem:[#allocation7 + $0x60] sm:$0xff]
        %v10472 = vld [vmem:[#allocation7 + $0x68] sm:$0xff]
        %v10473 = vld [vmem:[#allocation7 + $0x70] sm:$0xff]
        %v10474 = vld [vmem:[#allocation7 + $0x78] sm:$0xff]
        %v10475 = vld [vmem:[#allocation9] sm:$0x1]
        %v10477 = vlaneseq
        %v10478 = vshrl.u32 %v10477, 7
        %v10479 = vsub.s32 0, %v10478
        %v10480 = vrot.slane %v10475, %v10479
        %10482 = vmatprep.subr.mxu0 0.0
        %10483 = vmatpush1.msra.mxu0 %v10459
        %10484 = vmatprep.subr.mxu0 0.0
        %10485 = vmatpush1.msra.mxu0 %v10460
        %10486 = vmatprep.subr.mxu0 0.0
        %10487 = vmatpush1.msra.mxu0 %v10461
        %10488 = vmatprep.subr.mxu0 0.0
        %10489 = vmatpush1.msra.mxu0 %v10462
        %10490 = vmatprep.subr.mxu0 0.0
        %10491 = vmatpush1.msra.mxu0 %v10463
        %10492 = vmatprep.subr.mxu0 0.0
        %10493 = vmatpush1.msra.mxu0 %v10464
        %10494 = vmatprep.subr.mxu0 0.0
        %10495 = vmatpush1.msra.mxu0 %v10465
        %10496 = vmatprep.subr.mxu0 0.0
        %10497 = vmatpush1.msra.mxu0 %v10466
        %10498 = vmatprep.subr.mxu0 0.0
        %10499 = vmatpush1.msra.mxu0 %v10467
        %10500 = vmatprep.subr.mxu0 0.0
        %10501 = vmatpush1.msra.mxu0 %v10468
        %10502 = vmatprep.subr.mxu0 0.0
        %10503 = vmatpush1.msra.mxu0 %v10469
        %10504 = vmatprep.subr.mxu0 0.0
        %10505 = vmatpush1.msra.mxu0 %v10470
        %10506 = vmatprep.subr.mxu0 0.0
        %10507 = vmatpush1.msra.mxu0 %v10471
        %10508 = vmatprep.subr.mxu0 0.0
        %10509 = vmatpush1.msra.mxu0 %v10472
        %10510 = vmatprep.subr.mxu0 0.0
        %10511 = vmatpush1.msra.mxu0 %v10473
        %10512 = vmatprep.subr.mxu0 0.0
        %10513 = vmatpush1.msra.mxu0 %v10474
        %10514 = vmatprep.subr.mxu0 0.0
        %10515 = vmatpush1.msra.mxu0 0.0
        %10516 = vmatprep.subr.mxu0 0.0
        %10517 = vmatpush1.msra.mxu0 0.0
        %10518 = vmatprep.subr.mxu0 0.0
        %10519 = vmatpush1.msra.mxu0 0.0
        %10520 = vmatprep.subr.mxu0 0.0
        %10521 = vmatpush1.msra.mxu0 0.0
        %10522 = vmatprep.subr.mxu0 0.0
        %10523 = vmatpush1.msra.mxu0 0.0
        %10524 = vmatprep.subr.mxu0 0.0
        %10525 = vmatpush1.msra.mxu0 0.0
        %10526 = vmatprep.subr.mxu0 0.0
        %10527 = vmatpush1.msra.mxu0 0.0
        %10528 = vmatprep.subr.mxu0 0.0
        %10529 = vmatpush1.msra.mxu0 0.0
        %10530 = vmatprep.subr.mxu0 0.0
        %10531 = vmatpush1.msra.mxu0 0.0
        %10532 = vmatprep.subr.mxu0 0.0
        %10533 = vmatpush1.msra.mxu0 0.0
        %10534 = vmatprep.subr.mxu0 0.0
        %10535 = vmatpush1.msra.mxu0 0.0
        %10536 = vmatprep.subr.mxu0 0.0
        %10537 = vmatpush1.msra.mxu0 0.0
        %10538 = vmatprep.subr.mxu0 0.0
        %10539 = vmatpush1.msra.mxu0 0.0
        %10540 = vmatprep.subr.mxu0 0.0
        %10541 = vmatpush1.msra.mxu0 0.0
        %10542 = vmatprep.subr.mxu0 0.0
        %10543 = vmatpush1.msra.mxu0 0.0
        %10544 = vmatprep.subr.mxu0 0.0
        %10545 = vmatpush1.msra.mxu0 0.0
        %10546 = vmatprep.mubr.f32.mxu0 0.0
        %10547 = vmatmul.mubr.f32.gmra.mrb[0].mxu0 %v10395
        %v10548 = vpop.f32.mrb[0].mxu0
        %v10549 = vadd.f32 %v10480, %v10548
        %v10550 = vpop.f32.mrb[0].mxu0
        %10551 = vmatprep.mubr.f32.mxu0 0.0
        %10552 = vmatmul.mubr.f32.gmra.mrb[0].mxu0 %v10396
        %v10553 = vpop.f32.mrb[0].mxu0
        %v10554 = vadd.f32 %v10480, %v10553
        %v10555 = vpop.f32.mrb[0].mxu0
        %10556 = vmatprep.mubr.f32.mxu0 0.0
        %10557 = vmatmul.mubr.f32.gmra.mrb[0].mxu0 %v10397
        %v10558 = vpop.f32.mrb[0].mxu0
        %v10559 = vadd.f32 %v10480, %v10558
        %v10560 = vpop.f32.mrb[0].mxu0
        %10561 = vmatprep.mubr.f32.mxu0 0.0
        %10562 = vmatmul.mubr.f32.gmra.mrb[0].mxu0 %v10398
        %v10563 = vpop.f32.mrb[0].mxu0
        %v10564 = vadd.f32 %v10480, %v10563
        %v10565 = vpop.f32.mrb[0].mxu0
        %10566 = vmatprep.mubr.f32.mxu0 0.0
        %10567 = vmatmul.mubr.f32.gmra.mrb[0].mxu0 %v10399
        %v10568 = vpop.f32.mrb[0].mxu0
        %v10569 = vadd.f32 %v10480, %v10568
        %v10570 = vpop.f32.mrb[0].mxu0
        %10571 = vmatprep.mubr.f32.mxu0 0.0
        %10572 = vmatmul.mubr.f32.gmra.mrb[0].mxu0 %v10400
        %v10573 = vpop.f32.mrb[0].mxu0
        %v10574 = vadd.f32 %v10480, %v10573
        %v10575 = vpop.f32.mrb[0].mxu0
        %10576 = vmatprep.mubr.f32.mxu0 0.0
        %10577 = vmatmul.mubr.f32.gmra.mrb[0].mxu0 %v10401
        %v10578 = vpop.f32.mrb[0].mxu0
        %v10579 = vadd.f32 %v10480, %v10578
        %v10580 = vpop.f32.mrb[0].mxu0
        %10581 = vmatprep.mubr.f32.mxu0 0.0
        %10582 = vmatmul.mubr.f32.gmra.mrb[0].mxu0 %v10402
        %v10583 = vpop.f32.mrb[0].mxu0
        %v10584 = vadd.f32 %v10480, %v10583
        %v10585 = vpop.f32.mrb[0].mxu0
        %10586 = vmatprep.mubr.f32.mxu0 0.0
        %10587 = vmatmul.mubr.f32.gmra.mrb[0].mxu0 %v10403
        %v10588 = vpop.f32.mrb[0].mxu0
        %v10589 = vadd.f32 %v10480, %v10588
        %v10590 = vpop.f32.mrb[0].mxu0
        %10591 = vmatprep.mubr.f32.mxu0 0.0
        %10592 = vmatmul.mubr.f32.gmra.mrb[0].mxu0 %v10404
        %v10593 = vpop.f32.mrb[0].mxu0
        %v10594 = vadd.f32 %v10480, %v10593
        %v10595 = vpop.f32.mrb[0].mxu0
        %10596 = vmatprep.mubr.f32.mxu0 0.0
        %10597 = vmatmul.mubr.f32.gmra.mrb[0].mxu0 %v10405
        %v10598 = vpop.f32.mrb[0].mxu0
        %v10599 = vadd.f32 %v10480, %v10598
        %v10600 = vpop.f32.mrb[0].mxu0
        %10601 = vmatprep.mubr.f32.mxu0 0.0
        %10602 = vmatmul.mubr.f32.gmra.mrb[0].mxu0 %v10406
        %v10603 = vpop.f32.mrb[0].mxu0
        %v10604 = vadd.f32 %v10480, %v10603
        %v10605 = vpop.f32.mrb[0].mxu0
        %10606 = vmatprep.mubr.f32.mxu0 0.0
        %10607 = vmatmul.mubr.f32.gmra.mrb[0].mxu0 %v10407
        %v10608 = vpop.f32.mrb[0].mxu0
        %v10609 = vadd.f32 %v10480, %v10608
        %v10610 = vpop.f32.mrb[0].mxu0
        %10611 = vmatprep.mubr.f32.mxu0 0.0
        %10612 = vmatmul.mubr.f32.gmra.mrb[0].mxu0 %v10408
        %v10613 = vpop.f32.mrb[0].mxu0
        %v10614 = vadd.f32 %v10480, %v10613
        %v10615 = vpop.f32.mrb[0].mxu0
        %10616 = vmatprep.mubr.f32.mxu0 0.0
        %10617 = vmatmul.mubr.f32.gmra.mrb[0].mxu0 %v10409
        %v10618 = vpop.f32.mrb[0].mxu0
        %v10619 = vadd.f32 %v10480, %v10618
        %v10620 = vpop.f32.mrb[0].mxu0
        %10621 = vmatprep.mubr.f32.mxu0 0.0
        %10622 = vmatmul.mubr.f32.gmra.mrb[0].mxu0 %v10410
        %v10623 = vpop.f32.mrb[0].mxu0
        %v10624 = vadd.f32 %v10480, %v10623
        %v10625 = vpop.f32.mrb[0].mxu0
        %10626 = vmatprep.mubr.f32.mxu0 0.0
        %10627 = vmatmul.mubr.f32.gmra.mrb[0].mxu0 %v10411
        %v10628 = vpop.f32.mrb[0].mxu0
        %v10629 = vadd.f32 %v10480, %v10628
        %v10630 = vpop.f32.mrb[0].mxu0
        %10631 = vmatprep.mubr.f32.mxu0 0.0
        %10632 = vmatmul.mubr.f32.gmra.mrb[0].mxu0 %v10412
        %v10633 = vpop.f32.mrb[0].mxu0
        %v10634 = vadd.f32 %v10480, %v10633
        %v10635 = vpop.f32.mrb[0].mxu0
        %10636 = vmatprep.mubr.f32.mxu0 0.0
        %10637 = vmatmul.mubr.f32.gmra.mrb[0].mxu0 %v10413
        %v10638 = vpop.f32.mrb[0].mxu0
        %v10639 = vadd.f32 %v10480, %v10638
        %v10640 = vpop.f32.mrb[0].mxu0
        %10641 = vmatprep.mubr.f32.mxu0 0.0
        %10642 = vmatmul.mubr.f32.gmra.mrb[0].mxu0 %v10414
        %v10643 = vpop.f32.mrb[0].mxu0
        %v10644 = vadd.f32 %v10480, %v10643
        %v10645 = vpop.f32.mrb[0].mxu0
        %10646 = vmatprep.mubr.f32.mxu0 0.0
        %10647 = vmatmul.mubr.f32.gmra.mrb[0].mxu0 %v10415
        %v10648 = vpop.f32.mrb[0].mxu0
        %v10649 = vadd.f32 %v10480, %v10648
        %v10650 = vpop.f32.mrb[0].mxu0
        %10651 = vmatprep.mubr.f32.mxu0 0.0
        %10652 = vmatmul.mubr.f32.gmra.mrb[0].mxu0 %v10416
        %v10653 = vpop.f32.mrb[0].mxu0
        %v10654 = vadd.f32 %v10480, %v10653
        %v10655 = vpop.f32.mrb[0].mxu0
        %10656 = vmatprep.mubr.f32.mxu0 0.0
        %10657 = vmatmul.mubr.f32.gmra.mrb[0].mxu0 %v10417
        %v10658 = vpop.f32.mrb[0].mxu0
        %v10659 = vadd.f32 %v10480, %v10658
        %v10660 = vpop.f32.mrb[0].mxu0
        %10661 = vmatprep.mubr.f32.mxu0 0.0
        %10662 = vmatmul.mubr.f32.gmra.mrb[0].mxu0 %v10418
        %v10663 = vpop.f32.mrb[0].mxu0
        %v10664 = vadd.f32 %v10480, %v10663
        %v10665 = vpop.f32.mrb[0].mxu0
        %10666 = vmatprep.mubr.f32.mxu0 0.0
        %10667 = vmatmul.mubr.f32.gmra.mrb[0].mxu0 %v10419
        %v10668 = vpop.f32.mrb[0].mxu0
        %v10669 = vadd.f32 %v10480, %v10668
        %v10670 = vpop.f32.mrb[0].mxu0
        %10671 = vmatprep.mubr.f32.mxu0 0.0
        %10672 = vmatmul.mubr.f32.gmra.mrb[0].mxu0 %v10420
        %v10673 = vpop.f32.mrb[0].mxu0
        %v10674 = vadd.f32 %v10480, %v10673
        %v10675 = vpop.f32.mrb[0].mxu0
        %10676 = vmatprep.mubr.f32.mxu0 0.0
        %10677 = vmatmul.mubr.f32.gmra.mrb[0].mxu0 %v10421
        %v10678 = vpop.f32.mrb[0].mxu0
        %v10679 = vadd.f32 %v10480, %v10678
        %v10680 = vpop.f32.mrb[0].mxu0
        %10681 = vmatprep.mubr.f32.mxu0 0.0
        %10682 = vmatmul.mubr.f32.gmra.mrb[0].mxu0 %v10422
        %v10683 = vpop.f32.mrb[0].mxu0
        %v10684 = vadd.f32 %v10480, %v10683
        %v10685 = vpop.f32.mrb[0].mxu0
        %10686 = vmatprep.mubr.f32.mxu0 0.0
        %10687 = vmatmul.mubr.f32.gmra.mrb[0].mxu0 %v10423
        %v10688 = vpop.f32.mrb[0].mxu0
        %v10689 = vadd.f32 %v10480, %v10688
        %v10690 = vpop.f32.mrb[0].mxu0
        %10691 = vmatprep.mubr.f32.mxu0 0.0
        %10692 = vmatmul.mubr.f32.gmra.mrb[0].mxu0 %v10424
        %v10693 = vpop.f32.mrb[0].mxu0
        %v10694 = vadd.f32 %v10480, %v10693
        %v10695 = vpop.f32.mrb[0].mxu0
        %10696 = vmatprep.mubr.f32.mxu0 0.0
        %10697 = vmatmul.mubr.f32.gmra.mrb[0].mxu0 %v10425
        %v10698 = vpop.f32.mrb[0].mxu0
        %v10699 = vadd.f32 %v10480, %v10698
        %v10700 = vpop.f32.mrb[0].mxu0
        %10701 = vmatprep.mubr.f32.mxu0 0.0
        %10702 = vmatmul.mubr.f32.gmra.mrb[0].mxu0 %v10426
        %v10703 = vpop.f32.mrb[0].mxu0
        %v10704 = vadd.f32 %v10480, %v10703
        %v10705 = vpop.f32.mrb[0].mxu0
        %10706 = vmatprep.mubr.f32.mxu0 0.0
        %10707 = vmatmul.mubr.f32.gmra.mrb[0].mxu0 %v10427
        %v10708 = vpop.f32.mrb[0].mxu0
        %v10709 = vadd.f32 %v10480, %v10708
        %v10710 = vpop.f32.mrb[0].mxu0
        %10711 = vmatprep.mubr.f32.mxu0 0.0
        %10712 = vmatmul.mubr.f32.gmra.mrb[0].mxu0 %v10428
        %v10713 = vpop.f32.mrb[0].mxu0
        %v10714 = vadd.f32 %v10480, %v10713
        %v10715 = vpop.f32.mrb[0].mxu0
        %10716 = vmatprep.mubr.f32.mxu0 0.0
        %10717 = vmatmul.mubr.f32.gmra.mrb[0].mxu0 %v10429
        %v10718 = vpop.f32.mrb[0].mxu0
        %v10719 = vadd.f32 %v10480, %v10718
        %v10720 = vpop.f32.mrb[0].mxu0
        %10721 = vmatprep.mubr.f32.mxu0 0.0
        %10722 = vmatmul.mubr.f32.gmra.mrb[0].mxu0 %v10430
        %v10723 = vpop.f32.mrb[0].mxu0
        %v10724 = vadd.f32 %v10480, %v10723
        %v10725 = vpop.f32.mrb[0].mxu0
        %10726 = vmatprep.mubr.f32.mxu0 0.0
        %10727 = vmatmul.mubr.f32.gmra.mrb[0].mxu0 %v10431
        %v10728 = vpop.f32.mrb[0].mxu0
        %v10729 = vadd.f32 %v10480, %v10728
        %v10730 = vpop.f32.mrb[0].mxu0
        %10731 = vmatprep.mubr.f32.mxu0 0.0
        %10732 = vmatmul.mubr.f32.gmra.mrb[0].mxu0 %v10432
        %v10733 = vpop.f32.mrb[0].mxu0
        %v10734 = vadd.f32 %v10480, %v10733
        %v10735 = vpop.f32.mrb[0].mxu0
        %10736 = vmatprep.mubr.f32.mxu0 0.0
        %10737 = vmatmul.mubr.f32.gmra.mrb[0].mxu0 %v10433
        %v10738 = vpop.f32.mrb[0].mxu0
        %v10739 = vadd.f32 %v10480, %v10738
        %v10740 = vpop.f32.mrb[0].mxu0
        %10741 = vmatprep.mubr.f32.mxu0 0.0
        %10742 = vmatmul.mubr.f32.gmra.mrb[0].mxu0 %v10434
        %v10743 = vpop.f32.mrb[0].mxu0
        %v10744 = vadd.f32 %v10480, %v10743
        %v10745 = vpop.f32.mrb[0].mxu0
        %10746 = vmatprep.mubr.f32.mxu0 0.0
        %10747 = vmatmul.mubr.f32.gmra.mrb[0].mxu0 %v10435
        %v10748 = vpop.f32.mrb[0].mxu0
        %v10749 = vadd.f32 %v10480, %v10748
        %v10750 = vpop.f32.mrb[0].mxu0
        %10751 = vmatprep.mubr.f32.mxu0 0.0
        %10752 = vmatmul.mubr.f32.gmra.mrb[0].mxu0 %v10436
        %v10753 = vpop.f32.mrb[0].mxu0
        %v10754 = vadd.f32 %v10480, %v10753
        %v10755 = vpop.f32.mrb[0].mxu0
        %10756 = vmatprep.mubr.f32.mxu0 0.0
        %10757 = vmatmul.mubr.f32.gmra.mrb[0].mxu0 %v10437
        %v10758 = vpop.f32.mrb[0].mxu0
        %v10759 = vadd.f32 %v10480, %v10758
        %v10760 = vpop.f32.mrb[0].mxu0
        %10761 = vmatprep.mubr.f32.mxu0 0.0
        %10762 = vmatmul.mubr.f32.gmra.mrb[0].mxu0 %v10438
        %v10763 = vpop.f32.mrb[0].mxu0
        %v10764 = vadd.f32 %v10480, %v10763
        %v10765 = vpop.f32.mrb[0].mxu0
        %10766 = vmatprep.mubr.f32.mxu0 0.0
        %10767 = vmatmul.mubr.f32.gmra.mrb[0].mxu0 %v10439
        %v10768 = vpop.f32.mrb[0].mxu0
        %v10769 = vadd.f32 %v10480, %v10768
        %v10770 = vpop.f32.mrb[0].mxu0
        %10771 = vmatprep.mubr.f32.mxu0 0.0
        %10772 = vmatmul.mubr.f32.gmra.mrb[0].mxu0 %v10440
        %v10773 = vpop.f32.mrb[0].mxu0
        %v10774 = vadd.f32 %v10480, %v10773
        %v10775 = vpop.f32.mrb[0].mxu0
        %10776 = vmatprep.mubr.f32.mxu0 0.0
        %10777 = vmatmul.mubr.f32.gmra.mrb[0].mxu0 %v10441
        %v10778 = vpop.f32.mrb[0].mxu0
        %v10779 = vadd.f32 %v10480, %v10778
        %v10780 = vpop.f32.mrb[0].mxu0
        %10781 = vmatprep.mubr.f32.mxu0 0.0
        %10782 = vmatmul.mubr.f32.gmra.mrb[0].mxu0 %v10442
        %v10783 = vpop.f32.mrb[0].mxu0
        %v10784 = vadd.f32 %v10480, %v10783
        %v10785 = vpop.f32.mrb[0].mxu0
        %10786 = vmatprep.mubr.f32.mxu0 0.0
        %10787 = vmatmul.mubr.f32.gmra.mrb[0].mxu0 %v10443
        %v10788 = vpop.f32.mrb[0].mxu0
        %v10789 = vadd.f32 %v10480, %v10788
        %v10790 = vpop.f32.mrb[0].mxu0
        %10791 = vmatprep.mubr.f32.mxu0 0.0
        %10792 = vmatmul.mubr.f32.gmra.mrb[0].mxu0 %v10444
        %v10793 = vpop.f32.mrb[0].mxu0
        %v10794 = vadd.f32 %v10480, %v10793
        %v10795 = vpop.f32.mrb[0].mxu0
        %10796 = vmatprep.mubr.f32.mxu0 0.0
        %10797 = vmatmul.mubr.f32.gmra.mrb[0].mxu0 %v10445
        %v10798 = vpop.f32.mrb[0].mxu0
        %v10799 = vadd.f32 %v10480, %v10798
        %v10800 = vpop.f32.mrb[0].mxu0
        %10801 = vmatprep.mubr.f32.mxu0 0.0
        %10802 = vmatmul.mubr.f32.gmra.mrb[0].mxu0 %v10446
        %v10803 = vpop.f32.mrb[0].mxu0
        %v10804 = vadd.f32 %v10480, %v10803
        %v10805 = vpop.f32.mrb[0].mxu0
        %10806 = vmatprep.mubr.f32.mxu0 0.0
        %10807 = vmatmul.mubr.f32.gmra.mrb[0].mxu0 %v10447
        %v10808 = vpop.f32.mrb[0].mxu0
        %v10809 = vadd.f32 %v10480, %v10808
        %v10810 = vpop.f32.mrb[0].mxu0
        %10811 = vmatprep.mubr.f32.mxu0 0.0
        %10812 = vmatmul.mubr.f32.gmra.mrb[0].mxu0 %v10448
        %v10813 = vpop.f32.mrb[0].mxu0
        %v10814 = vadd.f32 %v10480, %v10813
        %v10815 = vpop.f32.mrb[0].mxu0
        %10816 = vmatprep.mubr.f32.mxu0 0.0
        %10817 = vmatmul.mubr.f32.gmra.mrb[0].mxu0 %v10449
        %v10818 = vpop.f32.mrb[0].mxu0
        %v10819 = vadd.f32 %v10480, %v10818
        %v10820 = vpop.f32.mrb[0].mxu0
        %10821 = vmatprep.mubr.f32.mxu0 0.0
        %10822 = vmatmul.mubr.f32.gmra.mrb[0].mxu0 %v10450
        %v10823 = vpop.f32.mrb[0].mxu0
        %v10824 = vadd.f32 %v10480, %v10823
        %v10825 = vpop.f32.mrb[0].mxu0
        %10826 = vmatprep.mubr.f32.mxu0 0.0
        %10827 = vmatmul.mubr.f32.gmra.mrb[0].mxu0 %v10451
        %v10828 = vpop.f32.mrb[0].mxu0
        %v10829 = vadd.f32 %v10480, %v10828
        %v10830 = vpop.f32.mrb[0].mxu0
        %10831 = vmatprep.mubr.f32.mxu0 0.0
        %10832 = vmatmul.mubr.f32.gmra.mrb[0].mxu0 %v10452
        %v10833 = vpop.f32.mrb[0].mxu0
        %v10834 = vadd.f32 %v10480, %v10833
        %v10835 = vpop.f32.mrb[0].mxu0
        %10836 = vmatprep.mubr.f32.mxu0 0.0
        %10837 = vmatmul.mubr.f32.gmra.mrb[0].mxu0 %v10453
        %v10838 = vpop.f32.mrb[0].mxu0
        %v10839 = vadd.f32 %v10480, %v10838
        %v10840 = vpop.f32.mrb[0].mxu0
        %10841 = vmatprep.mubr.f32.mxu0 0.0
        %10842 = vmatmul.mubr.f32.gmra.mrb[0].mxu0 %v10454
        %v10843 = vpop.f32.mrb[0].mxu0
        %v10844 = vadd.f32 %v10480, %v10843
        %v10845 = vpop.f32.mrb[0].mxu0
        %10846 = vmatprep.mubr.f32.mxu0 0.0
        %10847 = vmatmul.mubr.f32.gmra.mrb[0].mxu0 %v10455
        %v10848 = vpop.f32.mrb[0].mxu0
        %v10849 = vadd.f32 %v10480, %v10848
        %v10850 = vpop.f32.mrb[0].mxu0
        %10851 = vmatprep.mubr.f32.mxu0 0.0
        %10852 = vmatmul.mubr.f32.gmra.mrb[0].mxu0 %v10456
        %v10853 = vpop.f32.mrb[0].mxu0
        %v10854 = vadd.f32 %v10480, %v10853
        %v10855 = vpop.f32.mrb[0].mxu0
        %10856 = vmatprep.mubr.f32.mxu0 0.0
        %10857 = vmatmul.mubr.f32.gmra.mrb[0].mxu0 %v10457
        %v10858 = vpop.f32.mrb[0].mxu0
        %v10859 = vadd.f32 %v10480, %v10858
        %v10860 = vpop.f32.mrb[0].mxu0
        %10861 = vmatprep.mubr.f32.mxu0 0.0
        %10862 = vmatmul.mubr.f32.gmra.mrb[0].mxu0 %v10458
        %v10863 = vpop.f32.mrb[0].mxu0
        %v10864 = vadd.f32 %v10480, %v10863
        %v10865 = vpop.f32.mrb[0].mxu0
        %10866 = vdwg.mxu0
        %s10867 = smul.u32 %s24, 512
        %s10868 = scalar_lea.vmem [#allocation2], %s10867
        %10869 = vst [vmem:[%s10868] sm:$0xff] %v10549
        %10870 = vst [vmem:[%s10868 + $0x8] sm:$0xff] %v10554
        %10871 = vst [vmem:[%s10868 + $0x10] sm:$0xff] %v10559
        %10872 = vst [vmem:[%s10868 + $0x18] sm:$0xff] %v10564
        %10873 = vst [vmem:[%s10868 + $0x20] sm:$0xff] %v10569
        %10874 = vst [vmem:[%s10868 + $0x28] sm:$0xff] %v10574
        %10875 = vst [vmem:[%s10868 + $0x30] sm:$0xff] %v10579
        %10876 = vst [vmem:[%s10868 + $0x38] sm:$0xff] %v10584
        %10877 = vst [vmem:[%s10868 + $0x40] sm:$0xff] %v10589
        %10878 = vst [vmem:[%s10868 + $0x48] sm:$0xff] %v10594
        %10879 = vst [vmem:[%s10868 + $0x50] sm:$0xff] %v10599
        %10880 = vst [vmem:[%s10868 + $0x58] sm:$0xff] %v10604
        %10881 = vst [vmem:[%s10868 + $0x60] sm:$0xff] %v10609
        %10882 = vst [vmem:[%s10868 + $0x68] sm:$0xff] %v10614
        %10883 = vst [vmem:[%s10868 + $0x70] sm:$0xff] %v10619
        %10884 = vst [vmem:[%s10868 + $0x78] sm:$0xff] %v10624
        %10885 = vst [vmem:[%s10868 + $0x80] sm:$0xff] %v10629
        %10886 = vst [vmem:[%s10868 + $0x88] sm:$0xff] %v10634
        %10887 = vst [vmem:[%s10868 + $0x90] sm:$0xff] %v10639
        %10888 = vst [vmem:[%s10868 + $0x98] sm:$0xff] %v10644
        %10889 = vst [vmem:[%s10868 + $0xa0] sm:$0xff] %v10649
        %10890 = vst [vmem:[%s10868 + $0xa8] sm:$0xff] %v10654
        %10891 = vst [vmem:[%s10868 + $0xb0] sm:$0xff] %v10659
        %10892 = vst [vmem:[%s10868 + $0xb8] sm:$0xff] %v10664
        %10893 = vst [vmem:[%s10868 + $0xc0] sm:$0xff] %v10669
        %10894 = vst [vmem:[%s10868 + $0xc8] sm:$0xff] %v10674
        %10895 = vst [vmem:[%s10868 + $0xd0] sm:$0xff] %v10679
        %10896 = vst [vmem:[%s10868 + $0xd8] sm:$0xff] %v10684
        %10897 = vst [vmem:[%s10868 + $0xe0] sm:$0xff] %v10689
        %10898 = vst [vmem:[%s10868 + $0xe8] sm:$0xff] %v10694
        %10899 = vst [vmem:[%s10868 + $0xf0] sm:$0xff] %v10699
        %10900 = vst [vmem:[%s10868 + $0xf8] sm:$0xff] %v10704
        %10901 = vst [vmem:[%s10868 + $0x100] sm:$0xff] %v10709
        %10902 = vst [vmem:[%s10868 + $0x108] sm:$0xff] %v10714
        %10903 = vst [vmem:[%s10868 + $0x110] sm:$0xff] %v10719
        %10904 = vst [vmem:[%s10868 + $0x118] sm:$0xff] %v10724
        %10905 = vst [vmem:[%s10868 + $0x120] sm:$0xff] %v10729
        %10906 = vst [vmem:[%s10868 + $0x128] sm:$0xff] %v10734
        %10907 = vst [vmem:[%s10868 + $0x130] sm:$0xff] %v10739
        %10908 = vst [vmem:[%s10868 + $0x138] sm:$0xff] %v10744
        %10909 = vst [vmem:[%s10868 + $0x140] sm:$0xff] %v10749
        %10910 = vst [vmem:[%s10868 + $0x148] sm:$0xff] %v10754
        %10911 = vst [vmem:[%s10868 + $0x150] sm:$0xff] %v10759
        %10912 = vst [vmem:[%s10868 + $0x158] sm:$0xff] %v10764
        %10913 = vst [vmem:[%s10868 + $0x160] sm:$0xff] %v10769
        %10914 = vst [vmem:[%s10868 + $0x168] sm:$0xff] %v10774
        %10915 = vst [vmem:[%s10868 + $0x170] sm:$0xff] %v10779
        %10916 = vst [vmem:[%s10868 + $0x178] sm:$0xff] %v10784
        %10917 = vst [vmem:[%s10868 + $0x180] sm:$0xff] %v10789
        %10918 = vst [vmem:[%s10868 + $0x188] sm:$0xff] %v10794
        %10919 = vst [vmem:[%s10868 + $0x190] sm:$0xff] %v10799
        %10920 = vst [vmem:[%s10868 + $0x198] sm:$0xff] %v10804
        %10921 = vst [vmem:[%s10868 + $0x1a0] sm:$0xff] %v10809
        %10922 = vst [vmem:[%s10868 + $0x1a8] sm:$0xff] %v10814
        %10923 = vst [vmem:[%s10868 + $0x1b0] sm:$0xff] %v10819
        %10924 = vst [vmem:[%s10868 + $0x1b8] sm:$0xff] %v10824
        %10925 = vst [vmem:[%s10868 + $0x1c0] sm:$0xff] %v10829
        %10926 = vst [vmem:[%s10868 + $0x1c8] sm:$0xff] %v10834
        %10927 = vst [vmem:[%s10868 + $0x1d0] sm:$0xff] %v10839
        %10928 = vst [vmem:[%s10868 + $0x1d8] sm:$0xff] %v10844
        %10929 = vst [vmem:[%s10868 + $0x1e0] sm:$0xff] %v10849
        %10930 = vst [vmem:[%s10868 + $0x1e8] sm:$0xff] %v10854
        %10931 = vst [vmem:[%s10868 + $0x1f0] sm:$0xff] %v10859
        %10932 = vst [vmem:[%s10868 + $0x1f8] sm:$0xff] %v10864
        %v10933 = vadd.f32 %v10549, %v10554
        %v10934 = vadd.f32 %v10933, %v10559
        %v10935 = vadd.f32 %v10934, %v10564
        %v10936 = vadd.f32 %v10935, %v10569
        %v10937 = vadd.f32 %v10936, %v10574
        %v10938 = vadd.f32 %v10937, %v10579
        %v10939 = vadd.f32 %v10938, %v10584
        %v10940 = vadd.f32 %v10939, %v10589
        %v10941 = vadd.f32 %v10940, %v10594
        %v10942 = vadd.f32 %v10941, %v10599
        %v10943 = vadd.f32 %v10942, %v10604
        %v10944 = vadd.f32 %v10943, %v10609
        %v10945 = vadd.f32 %v10944, %v10614
        %v10946 = vadd.f32 %v10945, %v10619
        %v10947 = vadd.f32 %v10946, %v10624
        %v10948 = vadd.f32 %v10947, %v10629
        %v10949 = vadd.f32 %v10948, %v10634
        %v10950 = vadd.f32 %v10949, %v10639
        %v10951 = vadd.f32 %v10950, %v10644
        %v10952 = vadd.f32 %v10951, %v10649
        %v10953 = vadd.f32 %v10952, %v10654
        %v10954 = vadd.f32 %v10953, %v10659
        %v10955 = vadd.f32 %v10954, %v10664
        %v10956 = vadd.f32 %v10955, %v10669
        %v10957 = vadd.f32 %v10956, %v10674
        %v10958 = vadd.f32 %v10957, %v10679
        %v10959 = vadd.f32 %v10958, %v10684
        %v10960 = vadd.f32 %v10959, %v10689
        %v10961 = vadd.f32 %v10960, %v10694
        %v10962 = vadd.f32 %v10961, %v10699
        %v10963 = vadd.f32 %v10962, %v10704
        %v10964 = vadd.f32 %v10963, %v10709
        %v10965 = vadd.f32 %v10964, %v10714
        %v10966 = vadd.f32 %v10965, %v10719
        %v10967 = vadd.f32 %v10966, %v10724
        %v10968 = vadd.f32 %v10967, %v10729
        %v10969 = vadd.f32 %v10968, %v10734
        %v10970 = vadd.f32 %v10969, %v10739
        %v10971 = vadd.f32 %v10970, %v10744
        %v10972 = vadd.f32 %v10971, %v10749
        %v10973 = vadd.f32 %v10972, %v10754
        %v10974 = vadd.f32 %v10973, %v10759
        %v10975 = vadd.f32 %v10974, %v10764
        %v10976 = vadd.f32 %v10975, %v10769
        %v10977 = vadd.f32 %v10976, %v10774
        %v10978 = vadd.f32 %v10977, %v10779
        %v10979 = vadd.f32 %v10978, %v10784
        %v10980 = vadd.f32 %v10979, %v10789
        %v10981 = vadd.f32 %v10980, %v10794
        %v10982 = vadd.f32 %v10981, %v10799
        %v10983 = vadd.f32 %v10982, %v10804
        %v10984 = vadd.f32 %v10983, %v10809
        %v10985 = vadd.f32 %v10984, %v10814
        %v10986 = vadd.f32 %v10985, %v10819
        %v10987 = vadd.f32 %v10986, %v10824
        %v10988 = vadd.f32 %v10987, %v10829
        %v10989 = vadd.f32 %v10988, %v10834
        %v10990 = vadd.f32 %v10989, %v10839
        %v10991 = vadd.f32 %v10990, %v10844
        %v10992 = vadd.f32 %v10991, %v10849
        %v10993 = vadd.f32 %v10992, %v10854
        %v10994 = vadd.f32 %v10993, %v10859
        %v10995 = vadd.f32 %v10994, %v10864
        %v10996 = vrot.slane %v10995, 4
        %v10997 = vadd.f32 %v10995, %v10996
        %v10998 = vrot.slane %v10997, 2
        %v10999 = vadd.f32 %v10997, %v10998
        %v11000 = vrot.slane %v10999, 1
        %v11001 = vadd.f32 %v10999, %v11000
        %v11002 = vmul.f32 %v10549, %v10549
        %v11003 = vmul.f32 %v10554, %v10554
        %v11004 = vmul.f32 %v10559, %v10559
        %v11005 = vmul.f32 %v10564, %v10564
        %v11006 = vmul.f32 %v10569, %v10569
        %v11007 = vmul.f32 %v10574, %v10574
        %v11008 = vmul.f32 %v10579, %v10579
        %v11009 = vmul.f32 %v10584, %v10584
        %v11010 = vmul.f32 %v10589, %v10589
        %v11011 = vmul.f32 %v10594, %v10594
        %v11012 = vmul.f32 %v10599, %v10599
        %v11013 = vmul.f32 %v10604, %v10604
        %v11014 = vmul.f32 %v10609, %v10609
        %v11015 = vmul.f32 %v10614, %v10614
        %v11016 = vmul.f32 %v10619, %v10619
        %v11017 = vmul.f32 %v10624, %v10624
        %v11018 = vmul.f32 %v10629, %v10629
        %v11019 = vmul.f32 %v10634, %v10634
        %v11020 = vmul.f32 %v10639, %v10639
        %v11021 = vmul.f32 %v10644, %v10644
        %v11022 = vmul.f32 %v10649, %v10649
        %v11023 = vmul.f32 %v10654, %v10654
        %v11024 = vmul.f32 %v10659, %v10659
        %v11025 = vmul.f32 %v10664, %v10664
        %v11026 = vmul.f32 %v10669, %v10669
        %v11027 = vmul.f32 %v10674, %v10674
        %v11028 = vmul.f32 %v10679, %v10679
        %v11029 = vmul.f32 %v10684, %v10684
        %v11030 = vmul.f32 %v10689, %v10689
        %v11031 = vmul.f32 %v10694, %v10694
        %v11032 = vmul.f32 %v10699, %v10699
        %v11033 = vmul.f32 %v10704, %v10704
        %v11034 = vmul.f32 %v10709, %v10709
        %v11035 = vmul.f32 %v10714, %v10714
        %v11036 = vmul.f32 %v10719, %v10719
        %v11037 = vmul.f32 %v10724, %v10724
        %v11038 = vmul.f32 %v10729, %v10729
        %v11039 = vmul.f32 %v10734, %v10734
        %v11040 = vmul.f32 %v10739, %v10739
        %v11041 = vmul.f32 %v10744, %v10744
        %v11042 = vmul.f32 %v10749, %v10749
        %v11043 = vmul.f32 %v10754, %v10754
        %v11044 = vmul.f32 %v10759, %v10759
        %v11045 = vmul.f32 %v10764, %v10764
        %v11046 = vmul.f32 %v10769, %v10769
        %v11047 = vmul.f32 %v10774, %v10774
        %v11048 = vmul.f32 %v10779, %v10779
        %v11049 = vmul.f32 %v10784, %v10784
        %v11050 = vmul.f32 %v10789, %v10789
        %v11051 = vmul.f32 %v10794, %v10794
        %v11052 = vmul.f32 %v10799, %v10799
        %v11053 = vmul.f32 %v10804, %v10804
        %v11054 = vmul.f32 %v10809, %v10809
        %v11055 = vmul.f32 %v10814, %v10814
        %v11056 = vmul.f32 %v10819, %v10819
        %v11057 = vmul.f32 %v10824, %v10824
        %v11058 = vmul.f32 %v10829, %v10829
        %v11059 = vmul.f32 %v10834, %v10834
        %v11060 = vmul.f32 %v10839, %v10839
        %v11061 = vmul.f32 %v10844, %v10844
        %v11062 = vmul.f32 %v10849, %v10849
        %v11063 = vmul.f32 %v10854, %v10854
        %v11064 = vmul.f32 %v10859, %v10859
        %v11065 = vmul.f32 %v10864, %v10864
        %v11066 = vadd.f32 %v11002, %v11003
        %v11067 = vadd.f32 %v11066, %v11004
        %v11068 = vadd.f32 %v11067, %v11005
        %v11069 = vadd.f32 %v11068, %v11006
        %v11070 = vadd.f32 %v11069, %v11007
        %v11071 = vadd.f32 %v11070, %v11008
        %v11072 = vadd.f32 %v11071, %v11009
        %v11073 = vadd.f32 %v11072, %v11010
        %v11074 = vadd.f32 %v11073, %v11011
        %v11075 = vadd.f32 %v11074, %v11012
        %v11076 = vadd.f32 %v11075, %v11013
        %v11077 = vadd.f32 %v11076, %v11014
        %v11078 = vadd.f32 %v11077, %v11015
        %v11079 = vadd.f32 %v11078, %v11016
        %v11080 = vadd.f32 %v11079, %v11017
        %v11081 = vadd.f32 %v11080, %v11018
        %v11082 = vadd.f32 %v11081, %v11019
        %v11083 = vadd.f32 %v11082, %v11020
        %v11084 = vadd.f32 %v11083, %v11021
        %v11085 = vadd.f32 %v11084, %v11022
        %v11086 = vadd.f32 %v11085, %v11023
        %v11087 = vadd.f32 %v11086, %v11024
        %v11088 = vadd.f32 %v11087, %v11025
        %v11089 = vadd.f32 %v11088, %v11026
        %v11090 = vadd.f32 %v11089, %v11027
        %v11091 = vadd.f32 %v11090, %v11028
        %v11092 = vadd.f32 %v11091, %v11029
        %v11093 = vadd.f32 %v11092, %v11030
        %v11094 = vadd.f32 %v11093, %v11031
        %v11095 = vadd.f32 %v11094, %v11032
        %v11096 = vadd.f32 %v11095, %v11033
        %v11097 = vadd.f32 %v11096, %v11034
        %v11098 = vadd.f32 %v11097, %v11035
        %v11099 = vadd.f32 %v11098, %v11036
        %v11100 = vadd.f32 %v11099, %v11037
        %v11101 = vadd.f32 %v11100, %v11038
        %v11102 = vadd.f32 %v11101, %v11039
        %v11103 = vadd.f32 %v11102, %v11040
        %v11104 = vadd.f32 %v11103, %v11041
        %v11105 = vadd.f32 %v11104, %v11042
        %v11106 = vadd.f32 %v11105, %v11043
        %v11107 = vadd.f32 %v11106, %v11044
        %v11108 = vadd.f32 %v11107, %v11045
        %v11109 = vadd.f32 %v11108, %v11046
        %v11110 = vadd.f32 %v11109, %v11047
        %v11111 = vadd.f32 %v11110, %v11048
        %v11112 = vadd.f32 %v11111, %v11049
        %v11113 = vadd.f32 %v11112, %v11050
        %v11114 = vadd.f32 %v11113, %v11051
        %v11115 = vadd.f32 %v11114, %v11052
        %v11116 = vadd.f32 %v11115, %v11053
        %v11117 = vadd.f32 %v11116, %v11054
        %v11118 = vadd.f32 %v11117, %v11055
        %v11119 = vadd.f32 %v11118, %v11056
        %v11120 = vadd.f32 %v11119, %v11057
        %v11121 = vadd.f32 %v11120, %v11058
        %v11122 = vadd.f32 %v11121, %v11059
        %v11123 = vadd.f32 %v11122, %v11060
        %v11124 = vadd.f32 %v11123, %v11061
        %v11125 = vadd.f32 %v11124, %v11062
        %v11126 = vadd.f32 %v11125, %v11063
        %v11127 = vadd.f32 %v11126, %v11064
        %v11128 = vadd.f32 %v11127, %v11065
        %v11129 = vrot.slane %v11128, 4
        %v11130 = vadd.f32 %v11128, %v11129
        %v11131 = vrot.slane %v11130, 2
        %v11132 = vadd.f32 %v11130, %v11131
        %v11133 = vrot.slane %v11132, 1
        %v11134 = vadd.f32 %v11132, %v11133
        %vm11135 = vcmask 1040384
        %v11136 = vsel %vm11135, %v11001, %v11134
        %p11137 = scmp.eq.s32.totalorder %s24, 0
        // Predicated region
        $region69: #{block_decoder_final.1} parent=43 // pred_check
          %p11138 = pneg %p11137
        $region70: #{block_decoder_final.1} parent=43 // pred_check_branch
          %11140 = sbr.rel (%p11138) target = $region72
        $region71: #{block_decoder_final.1} parent=43 // pred_region
          %11141 = vst [vmem:[#allocation3] sm:$0x3] 0.0
        $region72: #{block_decoder_final.1} parent=43 // pred_fallthru
          _
        %v11142 = vld [vmem:[#allocation3] sm:$0x3]
        %v11143 = vadd.f32 %v11142, %v11136
        %11144 = vst [vmem:[#allocation3] sm:$0x3] %v11143
        %p11145 = scmp.eq.s32.totalorder %s24, 1
        // Predicated region
        $region73: #{block_decoder_final.1} parent=43 // pred_check
          %p11146 = pneg %p11145
        $region74: #{block_decoder_final.1} parent=43 // pred_check_branch
          %11148 = sbr.rel (%p11146) target = $region76
        $region75: #{block_decoder_final.1} parent=43 // pred_region
          %v11149 = vld [vmem:[#allocation3] sm:$0x1]
          %v11150 = vmul.f32 %v11149, 0.0009765625
          %v11151 = vld [vmem:[#allocation3 + $0x1] sm:$0x1]
          %v11152 = vmul.f32 %v11151, 0.0009765625
          %v11153 = vmul.f32 %v11150, %v11150
          %v11154 = vsub.f32 %v11152, %v11153
          %v11155 = vmax.f32 %v11154, 0.0
          %v11156 = vadd.f32 %v11155, 1e-05
          %v11157 = vrsqrt.pop %v11156
          %v11158 = vld [vmem:[#allocation10] sm:$0x1]
          %v11159 = vmul.f32 %v11158, %v11157
          %v11160 = vld [vmem:[#allocation10 + $0x1] sm:$0x1]
          %v11161 = vmul.f32 %v11150, %v11159
          %v11162 = vsub.f32 %v11160, %v11161
          %v11163 = vld [vmem:[#allocation2] sm:$0xff]
          %v11164 = vld [vmem:[#allocation2 + $0x8] sm:$0xff]
          %v11165 = vld [vmem:[#allocation2 + $0x10] sm:$0xff]
          %v11166 = vld [vmem:[#allocation2 + $0x18] sm:$0xff]
          %v11167 = vld [vmem:[#allocation2 + $0x20] sm:$0xff]
          %v11168 = vld [vmem:[#allocation2 + $0x28] sm:$0xff]
          %v11169 = vld [vmem:[#allocation2 + $0x30] sm:$0xff]
          %v11170 = vld [vmem:[#allocation2 + $0x38] sm:$0xff]
          %v11171 = vld [vmem:[#allocation2 + $0x40] sm:$0xff]
          %v11172 = vld [vmem:[#allocation2 + $0x48] sm:$0xff]
          %v11173 = vld [vmem:[#allocation2 + $0x50] sm:$0xff]
          %v11174 = vld [vmem:[#allocation2 + $0x58] sm:$0xff]
          %v11175 = vld [vmem:[#allocation2 + $0x60] sm:$0xff]
          %v11176 = vld [vmem:[#allocation2 + $0x68] sm:$0xff]
          %v11177 = vld [vmem:[#allocation2 + $0x70] sm:$0xff]
          %v11178 = vld [vmem:[#allocation2 + $0x78] sm:$0xff]
          %v11179 = vld [vmem:[#allocation2 + $0x80] sm:$0xff]
          %v11180 = vld [vmem:[#allocation2 + $0x88] sm:$0xff]
          %v11181 = vld [vmem:[#allocation2 + $0x90] sm:$0xff]
          %v11182 = vld [vmem:[#allocation2 + $0x98] sm:$0xff]
          %v11183 = vld [vmem:[#allocation2 + $0xa0] sm:$0xff]
          %v11184 = vld [vmem:[#allocation2 + $0xa8] sm:$0xff]
          %v11185 = vld [vmem:[#allocation2 + $0xb0] sm:$0xff]
          %v11186 = vld [vmem:[#allocation2 + $0xb8] sm:$0xff]
          %v11187 = vld [vmem:[#allocation2 + $0xc0] sm:$0xff]
          %v11188 = vld [vmem:[#allocation2 + $0xc8] sm:$0xff]
          %v11189 = vld [vmem:[#allocation2 + $0xd0] sm:$0xff]
          %v11190 = vld [vmem:[#allocation2 + $0xd8] sm:$0xff]
          %v11191 = vld [vmem:[#allocation2 + $0xe0] sm:$0xff]
          %v11192 = vld [vmem:[#allocation2 + $0xe8] sm:$0xff]
          %v11193 = vld [vmem:[#allocation2 + $0xf0] sm:$0xff]
          %v11194 = vld [vmem:[#allocation2 + $0xf8] sm:$0xff]
          %v11195 = vld [vmem:[#allocation2 + $0x100] sm:$0xff]
          %v11196 = vld [vmem:[#allocation2 + $0x108] sm:$0xff]
          %v11197 = vld [vmem:[#allocation2 + $0x110] sm:$0xff]
          %v11198 = vld [vmem:[#allocation2 + $0x118] sm:$0xff]
          %v11199 = vld [vmem:[#allocation2 + $0x120] sm:$0xff]
          %v11200 = vld [vmem:[#allocation2 + $0x128] sm:$0xff]
          %v11201 = vld [vmem:[#allocation2 + $0x130] sm:$0xff]
          %v11202 = vld [vmem:[#allocation2 + $0x138] sm:$0xff]
          %v11203 = vld [vmem:[#allocation2 + $0x140] sm:$0xff]
          %v11204 = vld [vmem:[#allocation2 + $0x148] sm:$0xff]
          %v11205 = vld [vmem:[#allocation2 + $0x150] sm:$0xff]
          %v11206 = vld [vmem:[#allocation2 + $0x158] sm:$0xff]
          %v11207 = vld [vmem:[#allocation2 + $0x160] sm:$0xff]
          %v11208 = vld [vmem:[#allocation2 + $0x168] sm:$0xff]
          %v11209 = vld [vmem:[#allocation2 + $0x170] sm:$0xff]
          %v11210 = vld [vmem:[#allocation2 + $0x178] sm:$0xff]
          %v11211 = vld [vmem:[#allocation2 + $0x180] sm:$0xff]
          %v11212 = vld [vmem:[#allocation2 + $0x188] sm:$0xff]
          %v11213 = vld [vmem:[#allocation2 + $0x190] sm:$0xff]
          %v11214 = vld [vmem:[#allocation2 + $0x198] sm:$0xff]
          %v11215 = vld [vmem:[#allocation2 + $0x1a0] sm:$0xff]
          %v11216 = vld [vmem:[#allocation2 + $0x1a8] sm:$0xff]
          %v11217 = vld [vmem:[#allocation2 + $0x1b0] sm:$0xff]
          %v11218 = vld [vmem:[#allocation2 + $0x1b8] sm:$0xff]
          %v11219 = vld [vmem:[#allocation2 + $0x1c0] sm:$0xff]
          %v11220 = vld [vmem:[#allocation2 + $0x1c8] sm:$0xff]
          %v11221 = vld [vmem:[#allocation2 + $0x1d0] sm:$0xff]
          %v11222 = vld [vmem:[#allocation2 + $0x1d8] sm:$0xff]
          %v11223 = vld [vmem:[#allocation2 + $0x1e0] sm:$0xff]
          %v11224 = vld [vmem:[#allocation2 + $0x1e8] sm:$0xff]
          %v11225 = vld [vmem:[#allocation2 + $0x1f0] sm:$0xff]
          %v11226 = vld [vmem:[#allocation2 + $0x1f8] sm:$0xff]
          %v11227 = vlaneseq
          %v11228 = vshrl.u32 %v11227, 7
          %v11229 = vsub.s32 0, %v11228
          %v11230 = vrot.slane %v11159, %v11229
          %v11231 = vmul.f32 %v11163, %v11230
          %v11232 = vmul.f32 %v11164, %v11230
          %v11233 = vmul.f32 %v11165, %v11230
          %v11234 = vmul.f32 %v11166, %v11230
          %v11235 = vmul.f32 %v11167, %v11230
          %v11236 = vmul.f32 %v11168, %v11230
          %v11237 = vmul.f32 %v11169, %v11230
          %v11238 = vmul.f32 %v11170, %v11230
          %v11239 = vmul.f32 %v11171, %v11230
          %v11240 = vmul.f32 %v11172, %v11230
          %v11241 = vmul.f32 %v11173, %v11230
          %v11242 = vmul.f32 %v11174, %v11230
          %v11243 = vmul.f32 %v11175, %v11230
          %v11244 = vmul.f32 %v11176, %v11230
          %v11245 = vmul.f32 %v11177, %v11230
          %v11246 = vmul.f32 %v11178, %v11230
          %v11247 = vmul.f32 %v11179, %v11230
          %v11248 = vmul.f32 %v11180, %v11230
          %v11249 = vmul.f32 %v11181, %v11230
          %v11250 = vmul.f32 %v11182, %v11230
          %v11251 = vmul.f32 %v11183, %v11230
          %v11252 = vmul.f32 %v11184, %v11230
          %v11253 = vmul.f32 %v11185, %v11230
          %v11254 = vmul.f32 %v11186, %v11230
          %v11255 = vmul.f32 %v11187, %v11230
          %v11256 = vmul.f32 %v11188, %v11230
          %v11257 = vmul.f32 %v11189, %v11230
          %v11258 = vmul.f32 %v11190, %v11230
          %v11259 = vmul.f32 %v11191, %v11230
          %v11260 = vmul.f32 %v11192, %v11230
          %v11261 = vmul.f32 %v11193, %v11230
          %v11262 = vmul.f32 %v11194, %v11230
          %v11263 = vmul.f32 %v11195, %v11230
          %v11264 = vmul.f32 %v11196, %v11230
          %v11265 = vmul.f32 %v11197, %v11230
          %v11266 = vmul.f32 %v11198, %v11230
          %v11267 = vmul.f32 %v11199, %v11230
          %v11268 = vmul.f32 %v11200, %v11230
          %v11269 = vmul.f32 %v11201, %v11230
          %v11270 = vmul.f32 %v11202, %v11230
          %v11271 = vmul.f32 %v11203, %v11230
          %v11272 = vmul.f32 %v11204, %v11230
          %v11273 = vmul.f32 %v11205, %v11230
          %v11274 = vmul.f32 %v11206, %v11230
          %v11275 = vmul.f32 %v11207, %v11230
          %v11276 = vmul.f32 %v11208, %v11230
          %v11277 = vmul.f32 %v11209, %v11230
          %v11278 = vmul.f32 %v11210, %v11230
          %v11279 = vmul.f32 %v11211, %v11230
          %v11280 = vmul.f32 %v11212, %v11230
          %v11281 = vmul.f32 %v11213, %v11230
          %v11282 = vmul.f32 %v11214, %v11230
          %v11283 = vmul.f32 %v11215, %v11230
          %v11284 = vmul.f32 %v11216, %v11230
          %v11285 = vmul.f32 %v11217, %v11230
          %v11286 = vmul.f32 %v11218, %v11230
          %v11287 = vmul.f32 %v11219, %v11230
          %v11288 = vmul.f32 %v11220, %v11230
          %v11289 = vmul.f32 %v11221, %v11230
          %v11290 = vmul.f32 %v11222, %v11230
          %v11291 = vmul.f32 %v11223, %v11230
          %v11292 = vmul.f32 %v11224, %v11230
          %v11293 = vmul.f32 %v11225, %v11230
          %v11294 = vmul.f32 %v11226, %v11230
          %v11295 = vlaneseq
          %v11296 = vshrl.u32 %v11295, 7
          %v11297 = vsub.s32 0, %v11296
          %v11298 = vrot.slane %v11162, %v11297
          %v11299 = vadd.f32 %v11231, %v11298
          %v11300 = vadd.f32 %v11232, %v11298
          %v11301 = vadd.f32 %v11233, %v11298
          %v11302 = vadd.f32 %v11234, %v11298
          %v11303 = vadd.f32 %v11235, %v11298
          %v11304 = vadd.f32 %v11236, %v11298
          %v11305 = vadd.f32 %v11237, %v11298
          %v11306 = vadd.f32 %v11238, %v11298
          %v11307 = vadd.f32 %v11239, %v11298
          %v11308 = vadd.f32 %v11240, %v11298
          %v11309 = vadd.f32 %v11241, %v11298
          %v11310 = vadd.f32 %v11242, %v11298
          %v11311 = vadd.f32 %v11243, %v11298
          %v11312 = vadd.f32 %v11244, %v11298
          %v11313 = vadd.f32 %v11245, %v11298
          %v11314 = vadd.f32 %v11246, %v11298
          %v11315 = vadd.f32 %v11247, %v11298
          %v11316 = vadd.f32 %v11248, %v11298
          %v11317 = vadd.f32 %v11249, %v11298
          %v11318 = vadd.f32 %v11250, %v11298
          %v11319 = vadd.f32 %v11251, %v11298
          %v11320 = vadd.f32 %v11252, %v11298
          %v11321 = vadd.f32 %v11253, %v11298
          %v11322 = vadd.f32 %v11254, %v11298
          %v11323 = vadd.f32 %v11255, %v11298
          %v11324 = vadd.f32 %v11256, %v11298
          %v11325 = vadd.f32 %v11257, %v11298
          %v11326 = vadd.f32 %v11258, %v11298
          %v11327 = vadd.f32 %v11259, %v11298
          %v11328 = vadd.f32 %v11260, %v11298
          %v11329 = vadd.f32 %v11261, %v11298
          %v11330 = vadd.f32 %v11262, %v11298
          %v11331 = vadd.f32 %v11263, %v11298
          %v11332 = vadd.f32 %v11264, %v11298
          %v11333 = vadd.f32 %v11265, %v11298
          %v11334 = vadd.f32 %v11266, %v11298
          %v11335 = vadd.f32 %v11267, %v11298
          %v11336 = vadd.f32 %v11268, %v11298
          %v11337 = vadd.f32 %v11269, %v11298
          %v11338 = vadd.f32 %v11270, %v11298
          %v11339 = vadd.f32 %v11271, %v11298
          %v11340 = vadd.f32 %v11272, %v11298
          %v11341 = vadd.f32 %v11273, %v11298
          %v11342 = vadd.f32 %v11274, %v11298
          %v11343 = vadd.f32 %v11275, %v11298
          %v11344 = vadd.f32 %v11276, %v11298
          %v11345 = vadd.f32 %v11277, %v11298
          %v11346 = vadd.f32 %v11278, %v11298
          %v11347 = vadd.f32 %v11279, %v11298
          %v11348 = vadd.f32 %v11280, %v11298
          %v11349 = vadd.f32 %v11281, %v11298
          %v11350 = vadd.f32 %v11282, %v11298
          %v11351 = vadd.f32 %v11283, %v11298
          %v11352 = vadd.f32 %v11284, %v11298
          %v11353 = vadd.f32 %v11285, %v11298
          %v11354 = vadd.f32 %v11286, %v11298
          %v11355 = vadd.f32 %v11287, %v11298
          %v11356 = vadd.f32 %v11288, %v11298
          %v11357 = vadd.f32 %v11289, %v11298
          %v11358 = vadd.f32 %v11290, %v11298
          %v11359 = vadd.f32 %v11291, %v11298
          %v11360 = vadd.f32 %v11292, %v11298
          %v11361 = vadd.f32 %v11293, %v11298
          %v11362 = vadd.f32 %v11294, %v11298
          %v11363 = vmax.f32 %v11299, 0.0
          %v11364 = vmax.f32 %v11300, 0.0
          %v11365 = vmax.f32 %v11301, 0.0
          %v11366 = vmax.f32 %v11302, 0.0
          %v11367 = vmax.f32 %v11303, 0.0
          %v11368 = vmax.f32 %v11304, 0.0
          %v11369 = vmax.f32 %v11305, 0.0
          %v11370 = vmax.f32 %v11306, 0.0
          %v11371 = vmax.f32 %v11307, 0.0
          %v11372 = vmax.f32 %v11308, 0.0
          %v11373 = vmax.f32 %v11309, 0.0
          %v11374 = vmax.f32 %v11310, 0.0
          %v11375 = vmax.f32 %v11311, 0.0
          %v11376 = vmax.f32 %v11312, 0.0
          %v11377 = vmax.f32 %v11313, 0.0
          %v11378 = vmax.f32 %v11314, 0.0
          %v11379 = vmax.f32 %v11315, 0.0
          %v11380 = vmax.f32 %v11316, 0.0
          %v11381 = vmax.f32 %v11317, 0.0
          %v11382 = vmax.f32 %v11318, 0.0
          %v11383 = vmax.f32 %v11319, 0.0
          %v11384 = vmax.f32 %v11320, 0.0
          %v11385 = vmax.f32 %v11321, 0.0
          %v11386 = vmax.f32 %v11322, 0.0
          %v11387 = vmax.f32 %v11323, 0.0
          %v11388 = vmax.f32 %v11324, 0.0
          %v11389 = vmax.f32 %v11325, 0.0
          %v11390 = vmax.f32 %v11326, 0.0
          %v11391 = vmax.f32 %v11327, 0.0
          %v11392 = vmax.f32 %v11328, 0.0
          %v11393 = vmax.f32 %v11329, 0.0
          %v11394 = vmax.f32 %v11330, 0.0
          %v11395 = vmax.f32 %v11331, 0.0
          %v11396 = vmax.f32 %v11332, 0.0
          %v11397 = vmax.f32 %v11333, 0.0
          %v11398 = vmax.f32 %v11334, 0.0
          %v11399 = vmax.f32 %v11335, 0.0
          %v11400 = vmax.f32 %v11336, 0.0
          %v11401 = vmax.f32 %v11337, 0.0
          %v11402 = vmax.f32 %v11338, 0.0
          %v11403 = vmax.f32 %v11339, 0.0
          %v11404 = vmax.f32 %v11340, 0.0
          %v11405 = vmax.f32 %v11341, 0.0
          %v11406 = vmax.f32 %v11342, 0.0
          %v11407 = vmax.f32 %v11343, 0.0
          %v11408 = vmax.f32 %v11344, 0.0
          %v11409 = vmax.f32 %v11345, 0.0
          %v11410 = vmax.f32 %v11346, 0.0
          %v11411 = vmax.f32 %v11347, 0.0
          %v11412 = vmax.f32 %v11348, 0.0
          %v11413 = vmax.f32 %v11349, 0.0
          %v11414 = vmax.f32 %v11350, 0.0
          %v11415 = vmax.f32 %v11351, 0.0
          %v11416 = vmax.f32 %v11352, 0.0
          %v11417 = vmax.f32 %v11353, 0.0
          %v11418 = vmax.f32 %v11354, 0.0
          %v11419 = vmax.f32 %v11355, 0.0
          %v11420 = vmax.f32 %v11356, 0.0
          %v11421 = vmax.f32 %v11357, 0.0
          %v11422 = vmax.f32 %v11358, 0.0
          %v11423 = vmax.f32 %v11359, 0.0
          %v11424 = vmax.f32 %v11360, 0.0
          %v11425 = vmax.f32 %v11361, 0.0
          %v11426 = vmax.f32 %v11362, 0.0
          %v11427 = vld [vmem:[#allocation12] sm:$0xff]
          %v11428 = vld [vmem:[#allocation13] sm:$0xff]
          %11430 = vset.pattern.permute.xlu0 0
          %11431 = vperm.xlu0 %11430, %v11428
          %v11432 = vpop.permute.xlu0 %11431
          %11434 = vmatprep.subr.mxu0 0.0
          %11435 = vmatpush1.xpose.msra.mxu0 %v11363
          %11436 = vmatprep.subr.mxu0 0.0
          %11437 = vmatpush1.xpose.msra.mxu0 %v11364
          %11438 = vmatprep.subr.mxu0 0.0
          %11439 = vmatpush1.xpose.msra.mxu0 %v11365
          %11440 = vmatprep.subr.mxu0 0.0
          %11441 = vmatpush1.xpose.msra.mxu0 %v11366
          %11442 = vmatprep.subr.mxu0 0.0
          %11443 = vmatpush1.xpose.msra.mxu0 %v11367
          %11444 = vmatprep.subr.mxu0 0.0
          %11445 = vmatpush1.xpose.msra.mxu0 %v11368
          %11446 = vmatprep.subr.mxu0 0.0
          %11447 = vmatpush1.xpose.msra.mxu0 %v11369
          %11448 = vmatprep.subr.mxu0 0.0
          %11449 = vmatpush1.xpose.msra.mxu0 %v11370
          %11450 = vmatprep.subr.mxu0 0.0
          %11451 = vmatpush1.xpose.msra.mxu0 %v11371
          %11452 = vmatprep.subr.mxu0 0.0
          %11453 = vmatpush1.xpose.msra.mxu0 %v11372
          %11454 = vmatprep.subr.mxu0 0.0
          %11455 = vmatpush1.xpose.msra.mxu0 %v11373
          %11456 = vmatprep.subr.mxu0 0.0
          %11457 = vmatpush1.xpose.msra.mxu0 %v11374
          %11458 = vmatprep.subr.mxu0 0.0
          %11459 = vmatpush1.xpose.msra.mxu0 %v11375
          %11460 = vmatprep.subr.mxu0 0.0
          %11461 = vmatpush1.xpose.msra.mxu0 %v11376
          %11462 = vmatprep.subr.mxu0 0.0
          %11463 = vmatpush1.xpose.msra.mxu0 %v11377
          %11464 = vmatprep.subr.mxu0 0.0
          %11465 = vmatpush1.xpose.msra.mxu0 %v11378
          %11466 = vmatprep.subr.mxu0 0.0
          %11467 = vmatpush1.xpose.msra.mxu0 %v11379
          %11468 = vmatprep.subr.mxu0 0.0
          %11469 = vmatpush1.xpose.msra.mxu0 %v11380
          %11470 = vmatprep.subr.mxu0 0.0
          %11471 = vmatpush1.xpose.msra.mxu0 %v11381
          %11472 = vmatprep.subr.mxu0 0.0
          %11473 = vmatpush1.xpose.msra.mxu0 %v11382
          %11474 = vmatprep.subr.mxu0 0.0
          %11475 = vmatpush1.xpose.msra.mxu0 %v11383
          %11476 = vmatprep.subr.mxu0 0.0
          %11477 = vmatpush1.xpose.msra.mxu0 %v11384
          %11478 = vmatprep.subr.mxu0 0.0
          %11479 = vmatpush1.xpose.msra.mxu0 %v11385
          %11480 = vmatprep.subr.mxu0 0.0
          %11481 = vmatpush1.xpose.msra.mxu0 %v11386
          %11482 = vmatprep.subr.mxu0 0.0
          %11483 = vmatpush1.xpose.msra.mxu0 %v11387
          %11484 = vmatprep.subr.mxu0 0.0
          %11485 = vmatpush1.xpose.msra.mxu0 %v11388
          %11486 = vmatprep.subr.mxu0 0.0
          %11487 = vmatpush1.xpose.msra.mxu0 %v11389
          %11488 = vmatprep.subr.mxu0 0.0
          %11489 = vmatpush1.xpose.msra.mxu0 %v11390
          %11490 = vmatprep.subr.mxu0 0.0
          %11491 = vmatpush1.xpose.msra.mxu0 %v11391
          %11492 = vmatprep.subr.mxu0 0.0
          %11493 = vmatpush1.xpose.msra.mxu0 %v11392
          %11494 = vmatprep.subr.mxu0 0.0
          %11495 = vmatpush1.xpose.msra.mxu0 %v11393
          %11496 = vmatprep.subr.mxu0 0.0
          %11497 = vmatpush1.xpose.msra.mxu0 %v11394
          %11498 = vmatprep.mubr.f32.mxu0 0.0
          %11499 = vmatmul.mubr.f32.gmra.mrb[0].mxu0 %v11427
          %v11500 = vpop.f32.mrb[0].mxu0
          %v11501 = vadd.f32 %v11432, %v11500
          %v11502 = vpop.f32.mrb[0].mxu0
          %v11503 = vadd.f32 %v11432, %v11502
          %11504 = vdwg.mxu0
          %11505 = vmatprep.subr.mxu0 0.0
          %11506 = vmatpush1.xpose.msra.mxu0 %v11395
          %11507 = vmatprep.subr.mxu0 0.0
          %11508 = vmatpush1.xpose.msra.mxu0 %v11396
          %11509 = vmatprep.subr.mxu0 0.0
          %11510 = vmatpush1.xpose.msra.mxu0 %v11397
          %11511 = vmatprep.subr.mxu0 0.0
          %11512 = vmatpush1.xpose.msra.mxu0 %v11398
          %11513 = vmatprep.subr.mxu0 0.0
          %11514 = vmatpush1.xpose.msra.mxu0 %v11399
          %11515 = vmatprep.subr.mxu0 0.0
          %11516 = vmatpush1.xpose.msra.mxu0 %v11400
          %11517 = vmatprep.subr.mxu0 0.0
          %11518 = vmatpush1.xpose.msra.mxu0 %v11401
          %11519 = vmatprep.subr.mxu0 0.0
          %11520 = vmatpush1.xpose.msra.mxu0 %v11402
          %11521 = vmatprep.subr.mxu0 0.0
          %11522 = vmatpush1.xpose.msra.mxu0 %v11403
          %11523 = vmatprep.subr.mxu0 0.0
          %11524 = vmatpush1.xpose.msra.mxu0 %v11404
          %11525 = vmatprep.subr.mxu0 0.0
          %11526 = vmatpush1.xpose.msra.mxu0 %v11405
          %11527 = vmatprep.subr.mxu0 0.0
          %11528 = vmatpush1.xpose.msra.mxu0 %v11406
          %11529 = vmatprep.subr.mxu0 0.0
          %11530 = vmatpush1.xpose.msra.mxu0 %v11407
          %11531 = vmatprep.subr.mxu0 0.0
          %11532 = vmatpush1.xpose.msra.mxu0 %v11408
          %11533 = vmatprep.subr.mxu0 0.0
          %11534 = vmatpush1.xpose.msra.mxu0 %v11409
          %11535 = vmatprep.subr.mxu0 0.0
          %11536 = vmatpush1.xpose.msra.mxu0 %v11410
          %11537 = vmatprep.subr.mxu0 0.0
          %11538 = vmatpush1.xpose.msra.mxu0 %v11411
          %11539 = vmatprep.subr.mxu0 0.0
          %11540 = vmatpush1.xpose.msra.mxu0 %v11412
          %11541 = vmatprep.subr.mxu0 0.0
          %11542 = vmatpush1.xpose.msra.mxu0 %v11413
          %11543 = vmatprep.subr.mxu0 0.0
          %11544 = vmatpush1.xpose.msra.mxu0 %v11414
          %11545 = vmatprep.subr.mxu0 0.0
          %11546 = vmatpush1.xpose.msra.mxu0 %v11415
          %11547 = vmatprep.subr.mxu0 0.0
          %11548 = vmatpush1.xpose.msra.mxu0 %v11416
          %11549 = vmatprep.subr.mxu0 0.0
          %11550 = vmatpush1.xpose.msra.mxu0 %v11417
          %11551 = vmatprep.subr.mxu0 0.0
          %11552 = vmatpush1.xpose.msra.mxu0 %v11418
          %11553 = vmatprep.subr.mxu0 0.0
          %11554 = vmatpush1.xpose.msra.mxu0 %v11419
          %11555 = vmatprep.subr.mxu0 0.0
          %11556 = vmatpush1.xpose.msra.mxu0 %v11420
          %11557 = vmatprep.subr.mxu0 0.0
          %11558 = vmatpush1.xpose.msra.mxu0 %v11421
          %11559 = vmatprep.subr.mxu0 0.0
          %11560 = vmatpush1.xpose.msra.mxu0 %v11422
          %11561 = vmatprep.subr.mxu0 0.0
          %11562 = vmatpush1.xpose.msra.mxu0 %v11423
          %11563 = vmatprep.subr.mxu0 0.0
          %11564 = vmatpush1.xpose.msra.mxu0 %v11424
          %11565 = vmatprep.subr.mxu0 0.0
          %11566 = vmatpush1.xpose.msra.mxu0 %v11425
          %11567 = vmatprep.subr.mxu0 0.0
          %11568 = vmatpush1.xpose.msra.mxu0 %v11426
          %11569 = vmatprep.mubr.f32.mxu0 0.0
          %11570 = vmatmul.mubr.f32.gmra.mrb[0].mxu0 %v11427
          %v11571 = vpop.f32.mrb[0].mxu0
          %v11572 = vadd.f32 %v11432, %v11571
          %v11573 = vpop.f32.mrb[0].mxu0
          %v11574 = vadd.f32 %v11432, %v11573
          %11575 = vdwg.mxu0
          %v11580 = vcombine.low %v11501, %v11503
          %v11581 = vcombine.low %v11572, %v11574
          %11584 = vst [vmem:[#allocation15] sm:$0xff] %v11580
          %11585 = vst [vmem:[#allocation15 + $0x8] sm:$0xff] %v11581
          %s11586 = scalar_lea.vmem [#allocation2], 512
          %v11587 = vld [vmem:[%s11586] sm:$0xff]
          %v11588 = vld [vmem:[%s11586 + $0x8] sm:$0xff]
          %v11589 = vld [vmem:[%s11586 + $0x10] sm:$0xff]
          %v11590 = vld [vmem:[%s11586 + $0x18] sm:$0xff]
          %v11591 = vld [vmem:[%s11586 + $0x20] sm:$0xff]
          %v11592 = vld [vmem:[%s11586 + $0x28] sm:$0xff]
          %v11593 = vld [vmem:[%s11586 + $0x30] sm:$0xff]
          %v11594 = vld [vmem:[%s11586 + $0x38] sm:$0xff]
          %v11595 = vld [vmem:[%s11586 + $0x40] sm:$0xff]
          %v11596 = vld [vmem:[%s11586 + $0x48] sm:$0xff]
          %v11597 = vld [vmem:[%s11586 + $0x50] sm:$0xff]
          %v11598 = vld [vmem:[%s11586 + $0x58] sm:$0xff]
          %v11599 = vld [vmem:[%s11586 + $0x60] sm:$0xff]
          %v11600 = vld [vmem:[%s11586 + $0x68] sm:$0xff]
          %v11601 = vld [vmem:[%s11586 + $0x70] sm:$0xff]
          %v11602 = vld [vmem:[%s11586 + $0x78] sm:$0xff]
          %v11603 = vld [vmem:[%s11586 + $0x80] sm:$0xff]
          %v11604 = vld [vmem:[%s11586 + $0x88] sm:$0xff]
          %v11605 = vld [vmem:[%s11586 + $0x90] sm:$0xff]
          %v11606 = vld [vmem:[%s11586 + $0x98] sm:$0xff]
          %v11607 = vld [vmem:[%s11586 + $0xa0] sm:$0xff]
          %v11608 = vld [vmem:[%s11586 + $0xa8] sm:$0xff]
          %v11609 = vld [vmem:[%s11586 + $0xb0] sm:$0xff]
          %v11610 = vld [vmem:[%s11586 + $0xb8] sm:$0xff]
          %v11611 = vld [vmem:[%s11586 + $0xc0] sm:$0xff]
          %v11612 = vld [vmem:[%s11586 + $0xc8] sm:$0xff]
          %v11613 = vld [vmem:[%s11586 + $0xd0] sm:$0xff]
          %v11614 = vld [vmem:[%s11586 + $0xd8] sm:$0xff]
          %v11615 = vld [vmem:[%s11586 + $0xe0] sm:$0xff]
          %v11616 = vld [vmem:[%s11586 + $0xe8] sm:$0xff]
          %v11617 = vld [vmem:[%s11586 + $0xf0] sm:$0xff]
          %v11618 = vld [vmem:[%s11586 + $0xf8] sm:$0xff]
          %v11619 = vld [vmem:[%s11586 + $0x100] sm:$0xff]
          %v11620 = vld [vmem:[%s11586 + $0x108] sm:$0xff]
          %v11621 = vld [vmem:[%s11586 + $0x110] sm:$0xff]
          %v11622 = vld [vmem:[%s11586 + $0x118] sm:$0xff]
          %v11623 = vld [vmem:[%s11586 + $0x120] sm:$0xff]
          %v11624 = vld [vmem:[%s11586 + $0x128] sm:$0xff]
          %v11625 = vld [vmem:[%s11586 + $0x130] sm:$0xff]
          %v11626 = vld [vmem:[%s11586 + $0x138] sm:$0xff]
          %v11627 = vld [vmem:[%s11586 + $0x140] sm:$0xff]
          %v11628 = vld [vmem:[%s11586 + $0x148] sm:$0xff]
          %v11629 = vld [vmem:[%s11586 + $0x150] sm:$0xff]
          %v11630 = vld [vmem:[%s11586 + $0x158] sm:$0xff]
          %v11631 = vld [vmem:[%s11586 + $0x160] sm:$0xff]
          %v11632 = vld [vmem:[%s11586 + $0x168] sm:$0xff]
          %v11633 = vld [vmem:[%s11586 + $0x170] sm:$0xff]
          %v11634 = vld [vmem:[%s11586 + $0x178] sm:$0xff]
          %v11635 = vld [vmem:[%s11586 + $0x180] sm:$0xff]
          %v11636 = vld [vmem:[%s11586 + $0x188] sm:$0xff]
          %v11637 = vld [vmem:[%s11586 + $0x190] sm:$0xff]
          %v11638 = vld [vmem:[%s11586 + $0x198] sm:$0xff]
          %v11639 = vld [vmem:[%s11586 + $0x1a0] sm:$0xff]
          %v11640 = vld [vmem:[%s11586 + $0x1a8] sm:$0xff]
          %v11641 = vld [vmem:[%s11586 + $0x1b0] sm:$0xff]
          %v11642 = vld [vmem:[%s11586 + $0x1b8] sm:$0xff]
          %v11643 = vld [vmem:[%s11586 + $0x1c0] sm:$0xff]
          %v11644 = vld [vmem:[%s11586 + $0x1c8] sm:$0xff]
          %v11645 = vld [vmem:[%s11586 + $0x1d0] sm:$0xff]
          %v11646 = vld [vmem:[%s11586 + $0x1d8] sm:$0xff]
          %v11647 = vld [vmem:[%s11586 + $0x1e0] sm:$0xff]
          %v11648 = vld [vmem:[%s11586 + $0x1e8] sm:$0xff]
          %v11649 = vld [vmem:[%s11586 + $0x1f0] sm:$0xff]
          %v11650 = vld [vmem:[%s11586 + $0x1f8] sm:$0xff]
          %v11651 = vmul.f32 %v11587, %v11230
          %v11652 = vmul.f32 %v11588, %v11230
          %v11653 = vmul.f32 %v11589, %v11230
          %v11654 = vmul.f32 %v11590, %v11230
          %v11655 = vmul.f32 %v11591, %v11230
          %v11656 = vmul.f32 %v11592, %v11230
          %v11657 = vmul.f32 %v11593, %v11230
          %v11658 = vmul.f32 %v11594, %v11230
          %v11659 = vmul.f32 %v11595, %v11230
          %v11660 = vmul.f32 %v11596, %v11230
          %v11661 = vmul.f32 %v11597, %v11230
          %v11662 = vmul.f32 %v11598, %v11230
          %v11663 = vmul.f32 %v11599, %v11230
          %v11664 = vmul.f32 %v11600, %v11230
          %v11665 = vmul.f32 %v11601, %v11230
          %v11666 = vmul.f32 %v11602, %v11230
          %v11667 = vmul.f32 %v11603, %v11230
          %v11668 = vmul.f32 %v11604, %v11230
          %v11669 = vmul.f32 %v11605, %v11230
          %v11670 = vmul.f32 %v11606, %v11230
          %v11671 = vmul.f32 %v11607, %v11230
          %v11672 = vmul.f32 %v11608, %v11230
          %v11673 = vmul.f32 %v11609, %v11230
          %v11674 = vmul.f32 %v11610, %v11230
          %v11675 = vmul.f32 %v11611, %v11230
          %v11676 = vmul.f32 %v11612, %v11230
          %v11677 = vmul.f32 %v11613, %v11230
          %v11678 = vmul.f32 %v11614, %v11230
          %v11679 = vmul.f32 %v11615, %v11230
          %v11680 = vmul.f32 %v11616, %v11230
          %v11681 = vmul.f32 %v11617, %v11230
          %v11682 = vmul.f32 %v11618, %v11230
          %v11683 = vmul.f32 %v11619, %v11230
          %v11684 = vmul.f32 %v11620, %v11230
          %v11685 = vmul.f32 %v11621, %v11230
          %v11686 = vmul.f32 %v11622, %v11230
          %v11687 = vmul.f32 %v11623, %v11230
          %v11688 = vmul.f32 %v11624, %v11230
          %v11689 = vmul.f32 %v11625, %v11230
          %v11690 = vmul.f32 %v11626, %v11230
          %v11691 = vmul.f32 %v11627, %v11230
          %v11692 = vmul.f32 %v11628, %v11230
          %v11693 = vmul.f32 %v11629, %v11230
          %v11694 = vmul.f32 %v11630, %v11230
          %v11695 = vmul.f32 %v11631, %v11230
          %v11696 = vmul.f32 %v11632, %v11230
          %v11697 = vmul.f32 %v11633, %v11230
          %v11698 = vmul.f32 %v11634, %v11230
          %v11699 = vmul.f32 %v11635, %v11230
          %v11700 = vmul.f32 %v11636, %v11230
          %v11701 = vmul.f32 %v11637, %v11230
          %v11702 = vmul.f32 %v11638, %v11230
          %v11703 = vmul.f32 %v11639, %v11230
          %v11704 = vmul.f32 %v11640, %v11230
          %v11705 = vmul.f32 %v11641, %v11230
          %v11706 = vmul.f32 %v11642, %v11230
          %v11707 = vmul.f32 %v11643, %v11230
          %v11708 = vmul.f32 %v11644, %v11230
          %v11709 = vmul.f32 %v11645, %v11230
          %v11710 = vmul.f32 %v11646, %v11230
          %v11711 = vmul.f32 %v11647, %v11230
          %v11712 = vmul.f32 %v11648, %v11230
          %v11713 = vmul.f32 %v11649, %v11230
          %v11714 = vmul.f32 %v11650, %v11230
          %v11715 = vadd.f32 %v11651, %v11298
          %v11716 = vadd.f32 %v11652, %v11298
          %v11717 = vadd.f32 %v11653, %v11298
          %v11718 = vadd.f32 %v11654, %v11298
          %v11719 = vadd.f32 %v11655, %v11298
          %v11720 = vadd.f32 %v11656, %v11298
          %v11721 = vadd.f32 %v11657, %v11298
          %v11722 = vadd.f32 %v11658, %v11298
          %v11723 = vadd.f32 %v11659, %v11298
          %v11724 = vadd.f32 %v11660, %v11298
          %v11725 = vadd.f32 %v11661, %v11298
          %v11726 = vadd.f32 %v11662, %v11298
          %v11727 = vadd.f32 %v11663, %v11298
          %v11728 = vadd.f32 %v11664, %v11298
          %v11729 = vadd.f32 %v11665, %v11298
          %v11730 = vadd.f32 %v11666, %v11298
          %v11731 = vadd.f32 %v11667, %v11298
          %v11732 = vadd.f32 %v11668, %v11298
          %v11733 = vadd.f32 %v11669, %v11298
          %v11734 = vadd.f32 %v11670, %v11298
          %v11735 = vadd.f32 %v11671, %v11298
          %v11736 = vadd.f32 %v11672, %v11298
          %v11737 = vadd.f32 %v11673, %v11298
          %v11738 = vadd.f32 %v11674, %v11298
          %v11739 = vadd.f32 %v11675, %v11298
          %v11740 = vadd.f32 %v11676, %v11298
          %v11741 = vadd.f32 %v11677, %v11298
          %v11742 = vadd.f32 %v11678, %v11298
          %v11743 = vadd.f32 %v11679, %v11298
          %v11744 = vadd.f32 %v11680, %v11298
          %v11745 = vadd.f32 %v11681, %v11298
          %v11746 = vadd.f32 %v11682, %v11298
          %v11747 = vadd.f32 %v11683, %v11298
          %v11748 = vadd.f32 %v11684, %v11298
          %v11749 = vadd.f32 %v11685, %v11298
          %v11750 = vadd.f32 %v11686, %v11298
          %v11751 = vadd.f32 %v11687, %v11298
          %v11752 = vadd.f32 %v11688, %v11298
          %v11753 = vadd.f32 %v11689, %v11298
          %v11754 = vadd.f32 %v11690, %v11298
          %v11755 = vadd.f32 %v11691, %v11298
          %v11756 = vadd.f32 %v11692, %v11298
          %v11757 = vadd.f32 %v11693, %v11298
          %v11758 = vadd.f32 %v11694, %v11298
          %v11759 = vadd.f32 %v11695, %v11298
          %v11760 = vadd.f32 %v11696, %v11298
          %v11761 = vadd.f32 %v11697, %v11298
          %v11762 = vadd.f32 %v11698, %v11298
          %v11763 = vadd.f32 %v11699, %v11298
          %v11764 = vadd.f32 %v11700, %v11298
          %v11765 = vadd.f32 %v11701, %v11298
          %v11766 = vadd.f32 %v11702, %v11298
          %v11767 = vadd.f32 %v11703, %v11298
          %v11768 = vadd.f32 %v11704, %v11298
          %v11769 = vadd.f32 %v11705, %v11298
          %v11770 = vadd.f32 %v11706, %v11298
          %v11771 = vadd.f32 %v11707, %v11298
          %v11772 = vadd.f32 %v11708, %v11298
          %v11773 = vadd.f32 %v11709, %v11298
          %v11774 = vadd.f32 %v11710, %v11298
          %v11775 = vadd.f32 %v11711, %v11298
          %v11776 = vadd.f32 %v11712, %v11298
          %v11777 = vadd.f32 %v11713, %v11298
          %v11778 = vadd.f32 %v11714, %v11298
          %v11779 = vmax.f32 %v11715, 0.0
          %v11780 = vmax.f32 %v11716, 0.0
          %v11781 = vmax.f32 %v11717, 0.0
          %v11782 = vmax.f32 %v11718, 0.0
          %v11783 = vmax.f32 %v11719, 0.0
          %v11784 = vmax.f32 %v11720, 0.0
          %v11785 = vmax.f32 %v11721, 0.0
          %v11786 = vmax.f32 %v11722, 0.0
          %v11787 = vmax.f32 %v11723, 0.0
          %v11788 = vmax.f32 %v11724, 0.0
          %v11789 = vmax.f32 %v11725, 0.0
          %v11790 = vmax.f32 %v11726, 0.0
          %v11791 = vmax.f32 %v11727, 0.0
          %v11792 = vmax.f32 %v11728, 0.0
          %v11793 = vmax.f32 %v11729, 0.0
          %v11794 = vmax.f32 %v11730, 0.0
          %v11795 = vmax.f32 %v11731, 0.0
          %v11796 = vmax.f32 %v11732, 0.0
          %v11797 = vmax.f32 %v11733, 0.0
          %v11798 = vmax.f32 %v11734, 0.0
          %v11799 = vmax.f32 %v11735, 0.0
          %v11800 = vmax.f32 %v11736, 0.0
          %v11801 = vmax.f32 %v11737, 0.0
          %v11802 = vmax.f32 %v11738, 0.0
          %v11803 = vmax.f32 %v11739, 0.0
          %v11804 = vmax.f32 %v11740, 0.0
          %v11805 = vmax.f32 %v11741, 0.0
          %v11806 = vmax.f32 %v11742, 0.0
          %v11807 = vmax.f32 %v11743, 0.0
          %v11808 = vmax.f32 %v11744, 0.0
          %v11809 = vmax.f32 %v11745, 0.0
          %v11810 = vmax.f32 %v11746, 0.0
          %v11811 = vmax.f32 %v11747, 0.0
          %v11812 = vmax.f32 %v11748, 0.0
          %v11813 = vmax.f32 %v11749, 0.0
          %v11814 = vmax.f32 %v11750, 0.0
          %v11815 = vmax.f32 %v11751, 0.0
          %v11816 = vmax.f32 %v11752, 0.0
          %v11817 = vmax.f32 %v11753, 0.0
          %v11818 = vmax.f32 %v11754, 0.0
          %v11819 = vmax.f32 %v11755, 0.0
          %v11820 = vmax.f32 %v11756, 0.0
          %v11821 = vmax.f32 %v11757, 0.0
          %v11822 = vmax.f32 %v11758, 0.0
          %v11823 = vmax.f32 %v11759, 0.0
          %v11824 = vmax.f32 %v11760, 0.0
          %v11825 = vmax.f32 %v11761, 0.0
          %v11826 = vmax.f32 %v11762, 0.0
          %v11827 = vmax.f32 %v11763, 0.0
          %v11828 = vmax.f32 %v11764, 0.0
          %v11829 = vmax.f32 %v11765, 0.0
          %v11830 = vmax.f32 %v11766, 0.0
          %v11831 = vmax.f32 %v11767, 0.0
          %v11832 = vmax.f32 %v11768, 0.0
          %v11833 = vmax.f32 %v11769, 0.0
          %v11834 = vmax.f32 %v11770, 0.0
          %v11835 = vmax.f32 %v11771, 0.0
          %v11836 = vmax.f32 %v11772, 0.0
          %v11837 = vmax.f32 %v11773, 0.0
          %v11838 = vmax.f32 %v11774, 0.0
          %v11839 = vmax.f32 %v11775, 0.0
          %v11840 = vmax.f32 %v11776, 0.0
          %v11841 = vmax.f32 %v11777, 0.0
          %v11842 = vmax.f32 %v11778, 0.0
          %v11843 = vld [vmem:[#allocation12] sm:$0xff]
          %v11844 = vld [vmem:[#allocation13] sm:$0xff]
          %11846 = vset.pattern.permute.xlu0 0
          %11847 = vperm.xlu0 %11846, %v11844
          %v11848 = vpop.permute.xlu0 %11847
          %11850 = vmatprep.subr.mxu0 0.0
          %11851 = vmatpush1.xpose.msra.mxu0 %v11779
          %11852 = vmatprep.subr.mxu0 0.0
          %11853 = vmatpush1.xpose.msra.mxu0 %v11780
          %11854 = vmatprep.subr.mxu0 0.0
          %11855 = vmatpush1.xpose.msra.mxu0 %v11781
          %11856 = vmatprep.subr.mxu0 0.0
          %11857 = vmatpush1.xpose.msra.mxu0 %v11782
          %11858 = vmatprep.subr.mxu0 0.0
          %11859 = vmatpush1.xpose.msra.mxu0 %v11783
          %11860 = vmatprep.subr.mxu0 0.0
          %11861 = vmatpush1.xpose.msra.mxu0 %v11784
          %11862 = vmatprep.subr.mxu0 0.0
          %11863 = vmatpush1.xpose.msra.mxu0 %v11785
          %11864 = vmatprep.subr.mxu0 0.0
          %11865 = vmatpush1.xpose.msra.mxu0 %v11786
          %11866 = vmatprep.subr.mxu0 0.0
          %11867 = vmatpush1.xpose.msra.mxu0 %v11787
          %11868 = vmatprep.subr.mxu0 0.0
          %11869 = vmatpush1.xpose.msra.mxu0 %v11788
          %11870 = vmatprep.subr.mxu0 0.0
          %11871 = vmatpush1.xpose.msra.mxu0 %v11789
          %11872 = vmatprep.subr.mxu0 0.0
          %11873 = vmatpush1.xpose.msra.mxu0 %v11790
          %11874 = vmatprep.subr.mxu0 0.0
          %11875 = vmatpush1.xpose.msra.mxu0 %v11791
          %11876 = vmatprep.subr.mxu0 0.0
          %11877 = vmatpush1.xpose.msra.mxu0 %v11792
          %11878 = vmatprep.subr.mxu0 0.0
          %11879 = vmatpush1.xpose.msra.mxu0 %v11793
          %11880 = vmatprep.subr.mxu0 0.0
          %11881 = vmatpush1.xpose.msra.mxu0 %v11794
          %11882 = vmatprep.subr.mxu0 0.0
          %11883 = vmatpush1.xpose.msra.mxu0 %v11795
          %11884 = vmatprep.subr.mxu0 0.0
          %11885 = vmatpush1.xpose.msra.mxu0 %v11796
          %11886 = vmatprep.subr.mxu0 0.0
          %11887 = vmatpush1.xpose.msra.mxu0 %v11797
          %11888 = vmatprep.subr.mxu0 0.0
          %11889 = vmatpush1.xpose.msra.mxu0 %v11798
          %11890 = vmatprep.subr.mxu0 0.0
          %11891 = vmatpush1.xpose.msra.mxu0 %v11799
          %11892 = vmatprep.subr.mxu0 0.0
          %11893 = vmatpush1.xpose.msra.mxu0 %v11800
          %11894 = vmatprep.subr.mxu0 0.0
          %11895 = vmatpush1.xpose.msra.mxu0 %v11801
          %11896 = vmatprep.subr.mxu0 0.0
          %11897 = vmatpush1.xpose.msra.mxu0 %v11802
          %11898 = vmatprep.subr.mxu0 0.0
          %11899 = vmatpush1.xpose.msra.mxu0 %v11803
          %11900 = vmatprep.subr.mxu0 0.0
          %11901 = vmatpush1.xpose.msra.mxu0 %v11804
          %11902 = vmatprep.subr.mxu0 0.0
          %11903 = vmatpush1.xpose.msra.mxu0 %v11805
          %11904 = vmatprep.subr.mxu0 0.0
          %11905 = vmatpush1.xpose.msra.mxu0 %v11806
          %11906 = vmatprep.subr.mxu0 0.0
          %11907 = vmatpush1.xpose.msra.mxu0 %v11807
          %11908 = vmatprep.subr.mxu0 0.0
          %11909 = vmatpush1.xpose.msra.mxu0 %v11808
          %11910 = vmatprep.subr.mxu0 0.0
          %11911 = vmatpush1.xpose.msra.mxu0 %v11809
          %11912 = vmatprep.subr.mxu0 0.0
          %11913 = vmatpush1.xpose.msra.mxu0 %v11810
          %11914 = vmatprep.mubr.f32.mxu0 0.0
          %11915 = vmatmul.mubr.f32.gmra.mrb[0].mxu0 %v11843
          %v11916 = vpop.f32.mrb[0].mxu0
          %v11917 = vadd.f32 %v11848, %v11916
          %v11918 = vpop.f32.mrb[0].mxu0
          %v11919 = vadd.f32 %v11848, %v11918
          %11920 = vdwg.mxu0
          %11921 = vmatprep.subr.mxu0 0.0
          %11922 = vmatpush1.xpose.msra.mxu0 %v11811
          %11923 = vmatprep.subr.mxu0 0.0
          %11924 = vmatpush1.xpose.msra.mxu0 %v11812
          %11925 = vmatprep.subr.mxu0 0.0
          %11926 = vmatpush1.xpose.msra.mxu0 %v11813
          %11927 = vmatprep.subr.mxu0 0.0
          %11928 = vmatpush1.xpose.msra.mxu0 %v11814
          %11929 = vmatprep.subr.mxu0 0.0
          %11930 = vmatpush1.xpose.msra.mxu0 %v11815
          %11931 = vmatprep.subr.mxu0 0.0
          %11932 = vmatpush1.xpose.msra.mxu0 %v11816
          %11933 = vmatprep.subr.mxu0 0.0
          %11934 = vmatpush1.xpose.msra.mxu0 %v11817
          %11935 = vmatprep.subr.mxu0 0.0
          %11936 = vmatpush1.xpose.msra.mxu0 %v11818
          %11937 = vmatprep.subr.mxu0 0.0
          %11938 = vmatpush1.xpose.msra.mxu0 %v11819
          %11939 = vmatprep.subr.mxu0 0.0
          %11940 = vmatpush1.xpose.msra.mxu0 %v11820
          %11941 = vmatprep.subr.mxu0 0.0
          %11942 = vmatpush1.xpose.msra.mxu0 %v11821
          %11943 = vmatprep.subr.mxu0 0.0
          %11944 = vmatpush1.xpose.msra.mxu0 %v11822
          %11945 = vmatprep.subr.mxu0 0.0
          %11946 = vmatpush1.xpose.msra.mxu0 %v11823
          %11947 = vmatprep.subr.mxu0 0.0
          %11948 = vmatpush1.xpose.msra.mxu0 %v11824
          %11949 = vmatprep.subr.mxu0 0.0
          %11950 = vmatpush1.xpose.msra.mxu0 %v11825
          %11951 = vmatprep.subr.mxu0 0.0
          %11952 = vmatpush1.xpose.msra.mxu0 %v11826
          %11953 = vmatprep.subr.mxu0 0.0
          %11954 = vmatpush1.xpose.msra.mxu0 %v11827
          %11955 = vmatprep.subr.mxu0 0.0
          %11956 = vmatpush1.xpose.msra.mxu0 %v11828
          %11957 = vmatprep.subr.mxu0 0.0
          %11958 = vmatpush1.xpose.msra.mxu0 %v11829
          %11959 = vmatprep.subr.mxu0 0.0
          %11960 = vmatpush1.xpose.msra.mxu0 %v11830
          %11961 = vmatprep.subr.mxu0 0.0
          %11962 = vmatpush1.xpose.msra.mxu0 %v11831
          %11963 = vmatprep.subr.mxu0 0.0
          %11964 = vmatpush1.xpose.msra.mxu0 %v11832
          %11965 = vmatprep.subr.mxu0 0.0
          %11966 = vmatpush1.xpose.msra.mxu0 %v11833
          %11967 = vmatprep.subr.mxu0 0.0
          %11968 = vmatpush1.xpose.msra.mxu0 %v11834
          %11969 = vmatprep.subr.mxu0 0.0
          %11970 = vmatpush1.xpose.msra.mxu0 %v11835
          %11971 = vmatprep.subr.mxu0 0.0
          %11972 = vmatpush1.xpose.msra.mxu0 %v11836
          %11973 = vmatprep.subr.mxu0 0.0
          %11974 = vmatpush1.xpose.msra.mxu0 %v11837
          %11975 = vmatprep.subr.mxu0 0.0
          %11976 = vmatpush1.xpose.msra.mxu0 %v11838
          %11977 = vmatprep.subr.mxu0 0.0
          %11978 = vmatpush1.xpose.msra.mxu0 %v11839
          %11979 = vmatprep.subr.mxu0 0.0
          %11980 = vmatpush1.xpose.msra.mxu0 %v11840
          %11981 = vmatprep.subr.mxu0 0.0
          %11982 = vmatpush1.xpose.msra.mxu0 %v11841
          %11983 = vmatprep.subr.mxu0 0.0
          %11984 = vmatpush1.xpose.msra.mxu0 %v11842
          %11985 = vmatprep.mubr.f32.mxu0 0.0
          %11986 = vmatmul.mubr.f32.gmra.mrb[0].mxu0 %v11843
          %v11987 = vpop.f32.mrb[0].mxu0
          %v11988 = vadd.f32 %v11848, %v11987
          %v11989 = vpop.f32.mrb[0].mxu0
          %v11990 = vadd.f32 %v11848, %v11989
          %11991 = vdwg.mxu0
          %v11996 = vcombine.low %v11917, %v11919
          %v11997 = vcombine.low %v11988, %v11990
          %s12000 = scalar_lea.vmem [#allocation15], 16
          %12001 = vst [vmem:[%s12000] sm:$0xff] %v11996
          %12002 = vst [vmem:[%s12000 + $0x8] sm:$0xff] %v11997
        $region76: #{block_decoder_final.1} parent=43 // pred_fallthru
          _
        // Predicated region
        $region77: #{block_decoder_final.1} parent=43 // pred_check
          %p12003 = pneg %p168
        $region78: #{block_decoder_final.1} parent=43 // pred_check_branch
          %12005 = sbr.rel (%p12003) target = $region80
        $region79: #{block_decoder_final.1} parent=43 // pred_region
          %s12007 = ssub.s32 512, 512
          %12008 = vsyncadd [#allocation6], %s12007
          %s12009 = sshll.u32 [#allocation15], 4
          %s12010 = int_to_ptr.vmem [resolvable:$true] %s12009
          %12015 = dma.vmem_to_hbm [thread:$0]  %s12010, 512, %s6, [#allocation6], 256, 256, 16
        $region80: #{block_decoder_final.1} parent=43 // pred_fallthru
          _
        // Predicated region
        $region81: #{block_decoder_final.1} parent=43 // pred_check
          %p12016 = pneg %p168
        $region82: #{block_decoder_final.1} parent=43 // pred_check_branch
          %12018 = sbr.rel (%p12016) target = $region84
        $region83: #{block_decoder_final.1} parent=43 // pred_region
          %12019 = dma.done [#allocation6], 512
        $region84: #{block_decoder_final.1} parent=43 // pred_fallthru
          _
      $region44: #{block_decoder_final.1} parent=5 // pred_fallthru
        _
      %p12020 = scmp.le.s32.totalorder 2, %s19
      // Predicated region
      $region85: #{block_decoder_final.1} parent=5 // pred_check
        %p12021 = pneg %p12020
      $region86: #{block_decoder_final.1} parent=5 // pred_check_branch
        %12023 = sbr.rel (%p12021) target = $region88
      $region87: #{block_decoder_final.1} parent=5 // pred_region
        %s12024 = ssub.s32 %s19, 2
      $region88: #{block_decoder_final.1} parent=5 // pred_fallthru
        _
    $region6: #{block_decoder_final.1} parent=1 // loop_footer
      %s23 = sadd.s32 1, %s19
    $region7: #{block_decoder_final.1} parent=1 // loop_footer_branch
      %18 = sbr.rel target = $region3
    $region8: #{block_decoder_final.1} parent=1 // loop_exit
      _
    %12025 = vsyncpa [#allocation5], 1
    %s12026 = scalar_lea.sflag [#allocation5], 1
    %12027 = vsyncpa %s12026, 1
    %12028 = vsyncpa [#allocation8], 1
    %12029 = vsyncpa [#allocation11], 1
    %12030 = vsyncpa [#allocation14], 1
    %12031 = vsyncpa [#allocation6], 1
    %s12032 = scalar_lea.sflag [#allocation6], 1
    %12033 = vsyncpa %s12032, 1

</llo_original>
